<compile_context>
chip_gen: v5e
topology: v5e:2x2
jax: 0.10.0
libtpu: 0.0.40
codegen_flags: <defaults>
</compile_context>

<pallas_src>
import functools

import jax
import jax.numpy as jnp
import numpy as np
from jax.experimental import pallas as pl
from jax.experimental.pallas import tpu as pltpu


def _round_up(x, m):
    return (x + m - 1) // m * m


# ---------------------------------------------------------------------------
# Pallas kernels
# ---------------------------------------------------------------------------
def _matmul_bias_act_kernel(x_ref, w_ref, b_ref, o_ref, acc_ref, *, relu):
    """One (tm, tn) output tile: accumulate x@w over the K grid axis, then
    bias + optional ReLU + downcast on the final K step."""
    @pl.when(pl.program_id(2) == 0)
    def _():
        acc_ref[...] = jnp.zeros_like(acc_ref)

    acc_ref[...] += jnp.dot(x_ref[...], w_ref[...],
                            preferred_element_type=jnp.float32)

    @pl.when(pl.program_id(2) == pl.num_programs(2) - 1)
    def _():
        y = acc_ref[...] + b_ref[...]
        if relu:
            y = jnp.maximum(y, 0.0)
        o_ref[...] = y.astype(o_ref.dtype)


def pallas_linear(x, w, b, *, relu, out_dtype=jnp.bfloat16,
                  tm_max=256, k_full_max=4096):
    """y = relu?(x @ w + b) as a tiled Pallas matmul.

    x: (M, K), w: (K, N), b: (N,) f32  ->  (M, N) out_dtype.
    """
    M, K = x.shape
    Kw, N = w.shape
    assert K == Kw and b.shape == (N,)

    # Tile sizes (second-to-last dims multiples of 8, last dims multiples of
    # 128 or full-extent, per the Mosaic (8, 128) block constraint).
    tm = min(tm_max, _round_up(M, 8))
    tk = K if K <= k_full_max else 512
    if N % 256 == 0:
        tn = 256
    elif N % 128 == 0:
        tn = 128
    elif N < 128:
        tn = N          # small conv output channels: full-extent block
    else:
        tn = 128        # generic fallback: pad N to a 128 multiple

    Mp, Kp, Np = _round_up(M, tm), _round_up(K, tk), _round_up(N, tn)

    # Explicit zero padding -> exact reduction, no garbage in partial blocks.
    xp = x if (Mp, Kp) == (M, K) else jnp.pad(x, ((0, Mp - M), (0, Kp - K)))
    wp = w if (Kp, Np) == (K, N) else jnp.pad(w, ((0, Kp - K), (0, Np - N)))
    bp = b if Np == N else jnp.pad(b, (0, Np - N))
    bp = bp.astype(jnp.float32).reshape(1, Np)

    grid = (Mp // tm, Np // tn, Kp // tk)

    flops = 2 * Mp * Np * Kp
    bytes_accessed = (Mp * Kp * xp.dtype.itemsize * grid[1]
                      + Kp * Np * wp.dtype.itemsize * grid[0]
                      + Np * 4
                      + Mp * Np * np.dtype(out_dtype).itemsize)

    out = pl.pallas_call(
        functools.partial(_matmul_bias_act_kernel, relu=relu),
        out_shape=jax.ShapeDtypeStruct((Mp, Np), out_dtype),
        grid=grid,
        in_specs=[
            pl.BlockSpec((tm, tk), lambda i, j, k: (i, k)),
            pl.BlockSpec((tk, tn), lambda i, j, k: (k, j)),
            pl.BlockSpec((1, tn), lambda i, j, k: (0, j)),
        ],
        out_specs=pl.BlockSpec((tm, tn), lambda i, j, k: (i, j)),
        scratch_shapes=[pltpu.VMEM((tm, tn), jnp.float32)],
        compiler_params=pltpu.CompilerParams(
            dimension_semantics=("parallel", "parallel", "arbitrary"),
            vmem_limit_bytes=32 << 20,
        ),
        cost_estimate=pl.CostEstimate(flops=flops, transcendentals=0,
                                      bytes_accessed=bytes_accessed),
    )(xp, wp, bp)

    if (Mp, Np) != (M, N):
        out = out[:M, :N]
    return out


def _softmax_head_kernel(x_ref, w_ref, b_ref, o_ref):
    """Fused fc2 + clamp(-10, 10) + softmax(dim=1)."""
    logits = jnp.dot(x_ref[...], w_ref[...], preferred_element_type=jnp.float32)
    logits = jnp.clip(logits + b_ref[...], -10.0, 10.0)
    m = jnp.max(logits, axis=1, keepdims=True)
    e = jnp.exp(logits - m)
    o_ref[...] = (e / jnp.sum(e, axis=1, keepdims=True)).astype(o_ref.dtype)


def pallas_softmax_head(x, w, b):
    B, H = x.shape
    Hw, A = w.shape
    assert H == Hw and b.shape == (A,)
    return pl.pallas_call(
        _softmax_head_kernel,
        out_shape=jax.ShapeDtypeStruct((B, A), jnp.float32),
        grid=(1,),
        in_specs=[
            pl.BlockSpec((B, H), lambda i: (0, 0)),
            pl.BlockSpec((H, A), lambda i: (0, 0)),
            pl.BlockSpec((1, A), lambda i: (0, 0)),
        ],
        out_specs=pl.BlockSpec((B, A), lambda i: (0, 0)),
        compiler_params=pltpu.CompilerParams(vmem_limit_bytes=8 << 20),
    )(x, w, b.astype(jnp.float32).reshape(1, A))


# ---------------------------------------------------------------------------
# Plain-JAX glue: im2col patch extraction (bf16) + layout plumbing
# ---------------------------------------------------------------------------
def _im2col(x_nhwc, ksize, stride):
    """VALID conv patches; feature ordering (kh, kw, ic)."""
    B, H, W, C = x_nhwc.shape
    oh = (H - ksize) // stride + 1
    ow = (W - ksize) // stride + 1
    cols = []
    for i in range(ksize):
        for j in range(ksize):
            cols.append(x_nhwc[:, i:i + stride * oh:stride,
                               j:j + stride * ow:stride, :])
    patches = jnp.stack(cols, axis=3)                   # (B, oh, ow, k*k, C)
    return patches.reshape(B * oh * ow, ksize * ksize * C), oh, ow


def _conv2d_relu(x_nhwc, w_mat, b, *, ksize, stride):
    """Conv2d (VALID) + bias + ReLU via im2col + tiled Pallas matmul."""
    patches, oh, ow = _im2col(x_nhwc, ksize, stride)
    y = pallas_linear(patches, w_mat, b, relu=True, out_dtype=jnp.bfloat16)
    B = x_nhwc.shape[0]
    return y.reshape(B, oh, ow, w_mat.shape[1])


def policy_forward(x_nchw, fp):
    x = jnp.transpose(x_nchw, (0, 2, 3, 1)).astype(jnp.bfloat16)  # NCHW -> NHWC
    x = _conv2d_relu(x, *fp["conv1"], ksize=8, stride=4)          # (B, 20, 20, 32)
    x = _conv2d_relu(x, *fp["conv2"], ksize=4, stride=2)          # (B,  9,  9, 64)
    x = _conv2d_relu(x, *fp["conv3"], ksize=3, stride=1)          # (B,  7,  7, 64)

    B = x.shape[0]
    # NHWC flatten; fc1 weight rows were pre-permuted to match this order,
    # so no activation transpose is needed here.
    feat = x.reshape(B, -1)                                       # (B, 3136)
    h = pallas_linear(feat, *fp["fc1"], relu=True,
                      out_dtype=jnp.bfloat16)                     # (B, 512)
    return pallas_softmax_head(h, *fp["fc2"])                     # (B, A) probs


# ---------------------------------------------------------------------------
# Parameters (conv: OIHW like torch; fc: (in, out)) + one-time kernel prep
# ---------------------------------------------------------------------------
def init_params(key, in_channels, num_actions):
    ks = jax.random.split(key, 10)
    def w(k, shape, scale):
        return jax.random.normal(k, shape, jnp.float32) * scale
    return {
        "conv1": (w(ks[0], (32, in_channels, 8, 8), 0.05), w(ks[1], (32,), 0.01)),
        "conv2": (w(ks[2], (64, 32, 4, 4), 0.05),          w(ks[3], (64,), 0.01)),
        "conv3": (w(ks[4], (64, 64, 3, 3), 0.05),          w(ks[5], (64,), 0.01)),
        "fc1":   (w(ks[6], (7 * 7 * 64, 512), 0.02),       w(ks[7], (512,), 0.01)),
        "fc2":   (w(ks[8], (512, num_actions), 0.02),      w(ks[9], (num_actions,), 0.01)),
    }


def prepare_params(params):
    """One-time weight prep: conv OIHW -> (kh*kw*ic, oc) matmul layout; fc1
    rows permuted from torch's NCHW-flatten order (c, h, w) to the NHWC-flatten
    order (h, w, c) used by the kernels; weights cast to bf16, biases f32."""
    fast = {}
    for name in ("conv1", "conv2", "conv3"):
        wc, bc = params[name]
        oc, ic, kh, kw = wc.shape
        w_mat = jnp.transpose(wc, (2, 3, 1, 0)).reshape(kh * kw * ic, oc)
        fast[name] = (w_mat.astype(jnp.bfloat16), bc.astype(jnp.float32))
    w1, b1 = params["fc1"]
    w1 = w1.reshape(64, 7, 7, 512)                        # rows indexed (c, h, w)
    w1 = jnp.transpose(w1, (1, 2, 0, 3)).reshape(7 * 7 * 64, 512)  # -> (h, w, c)
    fast["fc1"] = (w1.astype(jnp.bfloat16), b1.astype(jnp.float32))
    w2, b2 = params["fc2"]
    fast["fc2"] = (w2.astype(jnp.bfloat16), b2.astype(jnp.float32))
    return fast


# ---------------------------------------------------------------------------
# Pure-JAX f32 reference (same semantics as the PyTorch Policy.forward)
# ---------------------------------------------------------------------------
def reference_forward(x_nchw, params):
    def conv(x, wb, stride):
        wc, bc = wb
        y = jax.lax.conv_general_dilated(
            x, wc, (stride, stride), "VALID",
            dimension_numbers=("NCHW", "OIHW", "NCHW"))
        return jax.nn.relu(y + bc[None, :, None, None])

    x = conv(x_nchw, params["conv1"], 4)
    x = conv(x, params["conv2"], 2)
    x = conv(x, params["conv3"], 1)
    B = x.shape[0]
    feat = x.reshape(B, -1)
    h = jax.nn.relu(feat @ params["fc1"][0] + params["fc1"][1])
    logits = jnp.clip(h @ params["fc2"][0] + params["fc2"][1], -10.0, 10.0)
    return jax.nn.softmax(logits, axis=1)


if __name__ == "__main__":
    key = jax.random.PRNGKey(0)
    kx, kp = jax.random.split(key)

    # The module hard-codes fc1 in_features = 7*7*64, which implies 84x84 input.
    B, C, A = 2, 4, 6
    x = jax.random.normal(kx, (B, C, 84, 84), jnp.float32)
    params = init_params(kp, C, A)
    fast_params = prepare_params(params)

    fwd = jax.jit(policy_forward)
    out = jax.block_until_ready(fwd(x, fast_params))
    assert out.shape == (B, A)

    ref = jax.block_until_ready(reference_forward(x, params))
    np.testing.assert_allclose(np.asarray(out.sum(axis=1)), np.ones(B),
                               atol=1e-3, rtol=0)
    np.testing.assert_allclose(np.asarray(out), np.asarray(ref),
                               atol=2e-2, rtol=2e-2)
    print("KERNEL_OK")
</pallas_src>

<mosaic_0001>
module attributes {stable_mosaic.version = 11 : i64} {
  func.func @_matmul_bias_act_kernel(%arg0: i32, %arg1: i32, %arg2: i32, %arg3: memref<256x256xbf16, #tpu.memory_space<vmem>>, %arg4: memref<256x32xbf16, #tpu.memory_space<vmem>>, %arg5: memref<1x32xf32, #tpu.memory_space<vmem>>, %arg6: memref<256x32xbf16, #tpu.memory_space<vmem>>, %arg7: memref<256x32xf32, #tpu.memory_space<vmem>>) attributes {dimension_semantics = [#tpu.dimension_semantics<parallel>, #tpu.dimension_semantics<parallel>, #tpu.dimension_semantics<arbitrary>], iteration_bounds = array<i64: 4, 1, 1>, scalar_prefetch = 0 : i64, scratch_operands = 1 : i64, tpu.core_type = #tpu.core_type<tc>, window_params = [{transform_indices = @transform_0, window_bounds = array<i64: 256, 256>}, {transform_indices = @transform_1, window_bounds = array<i64: 256, 32>}, {transform_indices = @transform_2, window_bounds = array<i64: 1, 32>}, {transform_indices = @transform_3, window_bounds = array<i64: 256, 32>}]} {
    %c0_i32 = arith.constant 0 : i32
    %0 = arith.cmpi eq, %arg2, %c0_i32 : i32
    %1 = arith.extui %0 : i1 to i32
    %c0_i32_0 = arith.constant 0 : i32
    %2 = arith.cmpi ne, %1, %c0_i32_0 : i32
    scf.if %2 {
      %cst_10 = arith.constant 0.000000e+00 : f32
      %12 = vector.broadcast %cst_10 : f32 to vector<256x32xf32>
      %c0_11 = arith.constant 0 : index
      %c0_12 = arith.constant 0 : index
      %13 = vector.load %arg7[%c0_11, %c0_12] : memref<256x32xf32, #tpu.memory_space<vmem>>, vector<256x32xf32>
      tpu.vector_store %arg7[%c0_11, %c0_12], %12 {strides = array<i32>} : memref<256x32xf32, #tpu.memory_space<vmem>>, vector<256x32xf32>,
    } else {
    }
    %c0 = arith.constant 0 : index
    %c0_1 = arith.constant 0 : index
    %3 = vector.load %arg7[%c0, %c0_1] : memref<256x32xf32, #tpu.memory_space<vmem>>, vector<256x32xf32>
    %c0_2 = arith.constant 0 : index
    %c0_3 = arith.constant 0 : index
    %4 = vector.load %arg3[%c0_2, %c0_3] : memref<256x256xbf16, #tpu.memory_space<vmem>>, vector<256x256xbf16>
    %c0_4 = arith.constant 0 : index
    %c0_5 = arith.constant 0 : index
    %5 = vector.load %arg4[%c0_4, %c0_5] : memref<256x32xbf16, #tpu.memory_space<vmem>>, vector<256x32xbf16>
    %cst = arith.constant dense<0.000000e+00> : vector<256x32xf32>
    %6 = tpu.matmul %4, %5, %cst {dimension_numbers = #tpu.dot_dimension_numbers<[1], [0], [0], [1], [0, 0, 1, 1], [], []>} : vector<256x256xbf16>, vector<256x32xbf16>, vector<256x32xf32> -> vector<256x32xf32>
    %7 = arith.addf %3, %6 : vector<256x32xf32>
    %c0_6 = arith.constant 0 : index
    %c0_7 = arith.constant 0 : index
    %8 = vector.load %arg7[%c0_6, %c0_7] : memref<256x32xf32, #tpu.memory_space<vmem>>, vector<256x32xf32>
    tpu.vector_store %arg7[%c0_6, %c0_7], %7 {strides = array<i32>} : memref<256x32xf32, #tpu.memory_space<vmem>>, vector<256x32xf32>,
    %c0_i32_8 = arith.constant 0 : i32
    %9 = arith.cmpi eq, %arg2, %c0_i32_8 : i32
    %10 = arith.extui %9 : i1 to i32
    %c0_i32_9 = arith.constant 0 : i32
    %11 = arith.cmpi ne, %10, %c0_i32_9 : i32
    scf.if %11 {
      %c0_10 = arith.constant 0 : index
      %c0_11 = arith.constant 0 : index
      %12 = vector.load %arg7[%c0_10, %c0_11] : memref<256x32xf32, #tpu.memory_space<vmem>>, vector<256x32xf32>
      %c0_12 = arith.constant 0 : index
      %c0_13 = arith.constant 0 : index
      %13 = vector.load %arg5[%c0_12, %c0_13] : memref<1x32xf32, #tpu.memory_space<vmem>>, vector<1x32xf32>
      %14 = vector.broadcast %13 : vector<1x32xf32> to vector<256x32xf32>
      %15 = arith.addf %12, %14 : vector<256x32xf32>
      %cst_14 = arith.constant 0.000000e+00 : f32
      %16 = vector.broadcast %cst_14 : f32 to vector<256x32xf32>
      %17 = arith.maximumf %15, %16 : vector<256x32xf32>
      %18 = arith.truncf %17 : vector<256x32xf32> to vector<256x32xbf16>
      %c0_15 = arith.constant 0 : index
      %c0_16 = arith.constant 0 : index
      %19 = vector.load %arg6[%c0_15, %c0_16] : memref<256x32xbf16, #tpu.memory_space<vmem>>, vector<256x32xbf16>
      tpu.vector_store %arg6[%c0_15, %c0_16], %18 {strides = array<i32>} : memref<256x32xbf16, #tpu.memory_space<vmem>>, vector<256x32xbf16>,
    } else {
    }
    return
  }
  func.func @transform_0(%arg0: i32, %arg1: i32, %arg2: i32) -> (i32, i32) {
    %c0_i32 = arith.constant 0 : i32
    return %arg0, %arg2 : i32, i32
  }
  func.func @transform_1(%arg0: i32, %arg1: i32, %arg2: i32) -> (i32, i32) {
    %c0_i32 = arith.constant 0 : i32
    return %arg2, %arg1 : i32, i32
  }
  func.func @transform_2(%arg0: i32, %arg1: i32, %arg2: i32) -> (i32, i32) {
    %c0_i32 = arith.constant 0 : i32
    %c0_i32_0 = arith.constant 0 : i32
    return %c0_i32, %arg1 : i32, i32
  }
  func.func @transform_3(%arg0: i32, %arg1: i32, %arg2: i32) -> (i32, i32) {
    %c0_i32 = arith.constant 0 : i32
    return %arg0, %arg1 : i32, i32
  }
}

module attributes {stable_mosaic.version = 11 : i64} {
  func.func @_matmul_bias_act_kernel(%arg0: i32, %arg1: i32, %arg2: i32, %arg3: memref<168x512xbf16, #tpu.memory_space<vmem>>, %arg4: memref<512x64xbf16, #tpu.memory_space<vmem>>, %arg5: memref<1x64xf32, #tpu.memory_space<vmem>>, %arg6: memref<168x64xbf16, #tpu.memory_space<vmem>>, %arg7: memref<168x64xf32, #tpu.memory_space<vmem>>) attributes {dimension_semantics = [#tpu.dimension_semantics<parallel>, #tpu.dimension_semantics<parallel>, #tpu.dimension_semantics<arbitrary>], iteration_bounds = array<i64: 1, 1, 1>, scalar_prefetch = 0 : i64, scratch_operands = 1 : i64, tpu.core_type = #tpu.core_type<tc>, window_params = [{transform_indices = @transform_0, window_bounds = array<i64: 168, 512>}, {transform_indices = @transform_1, window_bounds = array<i64: 512, 64>}, {transform_indices = @transform_2, window_bounds = array<i64: 1, 64>}, {transform_indices = @transform_3, window_bounds = array<i64: 168, 64>}]} {
    %c0_i32 = arith.constant 0 : i32
    %0 = arith.cmpi eq, %arg2, %c0_i32 : i32
    %1 = arith.extui %0 : i1 to i32
    %c0_i32_0 = arith.constant 0 : i32
    %2 = arith.cmpi ne, %1, %c0_i32_0 : i32
    scf.if %2 {
      %cst_10 = arith.constant 0.000000e+00 : f32
      %12 = vector.broadcast %cst_10 : f32 to vector<168x64xf32>
      %c0_11 = arith.constant 0 : index
      %c0_12 = arith.constant 0 : index
      %13 = vector.load %arg7[%c0_11, %c0_12] : memref<168x64xf32, #tpu.memory_space<vmem>>, vector<168x64xf32>
      tpu.vector_store %arg7[%c0_11, %c0_12], %12 {strides = array<i32>} : memref<168x64xf32, #tpu.memory_space<vmem>>, vector<168x64xf32>,
    } else {
    }
    %c0 = arith.constant 0 : index
    %c0_1 = arith.constant 0 : index
    %3 = vector.load %arg7[%c0, %c0_1] : memref<168x64xf32, #tpu.memory_space<vmem>>, vector<168x64xf32>
    %c0_2 = arith.constant 0 : index
    %c0_3 = arith.constant 0 : index
    %4 = vector.load %arg3[%c0_2, %c0_3] : memref<168x512xbf16, #tpu.memory_space<vmem>>, vector<168x512xbf16>
    %c0_4 = arith.constant 0 : index
    %c0_5 = arith.constant 0 : index
    %5 = vector.load %arg4[%c0_4, %c0_5] : memref<512x64xbf16, #tpu.memory_space<vmem>>, vector<512x64xbf16>
    %cst = arith.constant dense<0.000000e+00> : vector<168x64xf32>
    %6 = tpu.matmul %4, %5, %cst {dimension_numbers = #tpu.dot_dimension_numbers<[1], [0], [0], [1], [0, 0, 1, 1], [], []>} : vector<168x512xbf16>, vector<512x64xbf16>, vector<168x64xf32> -> vector<168x64xf32>
    %7 = arith.addf %3, %6 : vector<168x64xf32>
    %c0_6 = arith.constant 0 : index
    %c0_7 = arith.constant 0 : index
    %8 = vector.load %arg7[%c0_6, %c0_7] : memref<168x64xf32, #tpu.memory_space<vmem>>, vector<168x64xf32>
    tpu.vector_store %arg7[%c0_6, %c0_7], %7 {strides = array<i32>} : memref<168x64xf32, #tpu.memory_space<vmem>>, vector<168x64xf32>,
    %c0_i32_8 = arith.constant 0 : i32
    %9 = arith.cmpi eq, %arg2, %c0_i32_8 : i32
    %10 = arith.extui %9 : i1 to i32
    %c0_i32_9 = arith.constant 0 : i32
    %11 = arith.cmpi ne, %10, %c0_i32_9 : i32
    scf.if %11 {
      %c0_10 = arith.constant 0 : index
      %c0_11 = arith.constant 0 : index
      %12 = vector.load %arg7[%c0_10, %c0_11] : memref<168x64xf32, #tpu.memory_space<vmem>>, vector<168x64xf32>
      %c0_12 = arith.constant 0 : index
      %c0_13 = arith.constant 0 : index
      %13 = vector.load %arg5[%c0_12, %c0_13] : memref<1x64xf32, #tpu.memory_space<vmem>>, vector<1x64xf32>
      %14 = vector.broadcast %13 : vector<1x64xf32> to vector<168x64xf32>
      %15 = arith.addf %12, %14 : vector<168x64xf32>
      %cst_14 = arith.constant 0.000000e+00 : f32
      %16 = vector.broadcast %cst_14 : f32 to vector<168x64xf32>
      %17 = arith.maximumf %15, %16 : vector<168x64xf32>
      %18 = arith.truncf %17 : vector<168x64xf32> to vector<168x64xbf16>
      %c0_15 = arith.constant 0 : index
      %c0_16 = arith.constant 0 : index
      %19 = vector.load %arg6[%c0_15, %c0_16] : memref<168x64xbf16, #tpu.memory_space<vmem>>, vector<168x64xbf16>
      tpu.vector_store %arg6[%c0_15, %c0_16], %18 {strides = array<i32>} : memref<168x64xbf16, #tpu.memory_space<vmem>>, vector<168x64xbf16>,
    } else {
    }
    return
  }
  func.func @transform_0(%arg0: i32, %arg1: i32, %arg2: i32) -> (i32, i32) {
    %c0_i32 = arith.constant 0 : i32
    return %arg0, %arg2 : i32, i32
  }
  func.func @transform_1(%arg0: i32, %arg1: i32, %arg2: i32) -> (i32, i32) {
    %c0_i32 = arith.constant 0 : i32
    return %arg2, %arg1 : i32, i32
  }
  func.func @transform_2(%arg0: i32, %arg1: i32, %arg2: i32) -> (i32, i32) {
    %c0_i32 = arith.constant 0 : i32
    %c0_i32_0 = arith.constant 0 : i32
    return %c0_i32, %arg1 : i32, i32
  }
  func.func @transform_3(%arg0: i32, %arg1: i32, %arg2: i32) -> (i32, i32) {
    %c0_i32 = arith.constant 0 : i32
    return %arg0, %arg1 : i32, i32
  }
}

module attributes {stable_mosaic.version = 11 : i64} {
  func.func @_matmul_bias_act_kernel(%arg0: i32, %arg1: i32, %arg2: i32, %arg3: memref<104x576xbf16, #tpu.memory_space<vmem>>, %arg4: memref<576x64xbf16, #tpu.memory_space<vmem>>, %arg5: memref<1x64xf32, #tpu.memory_space<vmem>>, %arg6: memref<104x64xbf16, #tpu.memory_space<vmem>>, %arg7: memref<104x64xf32, #tpu.memory_space<vmem>>) attributes {dimension_semantics = [#tpu.dimension_semantics<parallel>, #tpu.dimension_semantics<parallel>, #tpu.dimension_semantics<arbitrary>], iteration_bounds = array<i64: 1, 1, 1>, scalar_prefetch = 0 : i64, scratch_operands = 1 : i64, tpu.core_type = #tpu.core_type<tc>, window_params = [{transform_indices = @transform_0, window_bounds = array<i64: 104, 576>}, {transform_indices = @transform_1, window_bounds = array<i64: 576, 64>}, {transform_indices = @transform_2, window_bounds = array<i64: 1, 64>}, {transform_indices = @transform_3, window_bounds = array<i64: 104, 64>}]} {
    %c0_i32 = arith.constant 0 : i32
    %0 = arith.cmpi eq, %arg2, %c0_i32 : i32
    %1 = arith.extui %0 : i1 to i32
    %c0_i32_0 = arith.constant 0 : i32
    %2 = arith.cmpi ne, %1, %c0_i32_0 : i32
    scf.if %2 {
      %cst_10 = arith.constant 0.000000e+00 : f32
      %12 = vector.broadcast %cst_10 : f32 to vector<104x64xf32>
      %c0_11 = arith.constant 0 : index
      %c0_12 = arith.constant 0 : index
      %13 = vector.load %arg7[%c0_11, %c0_12] : memref<104x64xf32, #tpu.memory_space<vmem>>, vector<104x64xf32>
      tpu.vector_store %arg7[%c0_11, %c0_12], %12 {strides = array<i32>} : memref<104x64xf32, #tpu.memory_space<vmem>>, vector<104x64xf32>,
    } else {
    }
    %c0 = arith.constant 0 : index
    %c0_1 = arith.constant 0 : index
    %3 = vector.load %arg7[%c0, %c0_1] : memref<104x64xf32, #tpu.memory_space<vmem>>, vector<104x64xf32>
    %c0_2 = arith.constant 0 : index
    %c0_3 = arith.constant 0 : index
    %4 = vector.load %arg3[%c0_2, %c0_3] : memref<104x576xbf16, #tpu.memory_space<vmem>>, vector<104x576xbf16>
    %c0_4 = arith.constant 0 : index
    %c0_5 = arith.constant 0 : index
    %5 = vector.load %arg4[%c0_4, %c0_5] : memref<576x64xbf16, #tpu.memory_space<vmem>>, vector<576x64xbf16>
    %cst = arith.constant dense<0.000000e+00> : vector<104x64xf32>
    %6 = tpu.matmul %4, %5, %cst {dimension_numbers = #tpu.dot_dimension_numbers<[1], [0], [0], [1], [0, 0, 1, 1], [], []>} : vector<104x576xbf16>, vector<576x64xbf16>, vector<104x64xf32> -> vector<104x64xf32>
    %7 = arith.addf %3, %6 : vector<104x64xf32>
    %c0_6 = arith.constant 0 : index
    %c0_7 = arith.constant 0 : index
    %8 = vector.load %arg7[%c0_6, %c0_7] : memref<104x64xf32, #tpu.memory_space<vmem>>, vector<104x64xf32>
    tpu.vector_store %arg7[%c0_6, %c0_7], %7 {strides = array<i32>} : memref<104x64xf32, #tpu.memory_space<vmem>>, vector<104x64xf32>,
    %c0_i32_8 = arith.constant 0 : i32
    %9 = arith.cmpi eq, %arg2, %c0_i32_8 : i32
    %10 = arith.extui %9 : i1 to i32
    %c0_i32_9 = arith.constant 0 : i32
    %11 = arith.cmpi ne, %10, %c0_i32_9 : i32
    scf.if %11 {
      %c0_10 = arith.constant 0 : index
      %c0_11 = arith.constant 0 : index
      %12 = vector.load %arg7[%c0_10, %c0_11] : memref<104x64xf32, #tpu.memory_space<vmem>>, vector<104x64xf32>
      %c0_12 = arith.constant 0 : index
      %c0_13 = arith.constant 0 : index
      %13 = vector.load %arg5[%c0_12, %c0_13] : memref<1x64xf32, #tpu.memory_space<vmem>>, vector<1x64xf32>
      %14 = vector.broadcast %13 : vector<1x64xf32> to vector<104x64xf32>
      %15 = arith.addf %12, %14 : vector<104x64xf32>
      %cst_14 = arith.constant 0.000000e+00 : f32
      %16 = vector.broadcast %cst_14 : f32 to vector<104x64xf32>
      %17 = arith.maximumf %15, %16 : vector<104x64xf32>
      %18 = arith.truncf %17 : vector<104x64xf32> to vector<104x64xbf16>
      %c0_15 = arith.constant 0 : index
      %c0_16 = arith.constant 0 : index
      %19 = vector.load %arg6[%c0_15, %c0_16] : memref<104x64xbf16, #tpu.memory_space<vmem>>, vector<104x64xbf16>
      tpu.vector_store %arg6[%c0_15, %c0_16], %18 {strides = array<i32>} : memref<104x64xbf16, #tpu.memory_space<vmem>>, vector<104x64xbf16>,
    } else {
    }
    return
  }
  func.func @transform_0(%arg0: i32, %arg1: i32, %arg2: i32) -> (i32, i32) {
    %c0_i32 = arith.constant 0 : i32
    return %arg0, %arg2 : i32, i32
  }
  func.func @transform_1(%arg0: i32, %arg1: i32, %arg2: i32) -> (i32, i32) {
    %c0_i32 = arith.constant 0 : i32
    return %arg2, %arg1 : i32, i32
  }
  func.func @transform_2(%arg0: i32, %arg1: i32, %arg2: i32) -> (i32, i32) {
    %c0_i32 = arith.constant 0 : i32
    %c0_i32_0 = arith.constant 0 : i32
    return %c0_i32, %arg1 : i32, i32
  }
  func.func @transform_3(%arg0: i32, %arg1: i32, %arg2: i32) -> (i32, i32) {
    %c0_i32 = arith.constant 0 : i32
    return %arg0, %arg1 : i32, i32
  }
}

module attributes {stable_mosaic.version = 11 : i64} {
  func.func @_matmul_bias_act_kernel(%arg0: i32, %arg1: i32, %arg2: i32, %arg3: memref<8x3136xbf16, #tpu.memory_space<vmem>>, %arg4: memref<3136x256xbf16, #tpu.memory_space<vmem>>, %arg5: memref<1x256xf32, #tpu.memory_space<vmem>>, %arg6: memref<8x256xbf16, #tpu.memory_space<vmem>>, %arg7: memref<8x256xf32, #tpu.memory_space<vmem>>) attributes {dimension_semantics = [#tpu.dimension_semantics<parallel>, #tpu.dimension_semantics<parallel>, #tpu.dimension_semantics<arbitrary>], iteration_bounds = array<i64: 1, 2, 1>, scalar_prefetch = 0 : i64, scratch_operands = 1 : i64, tpu.core_type = #tpu.core_type<tc>, window_params = [{transform_indices = @transform_0, window_bounds = array<i64: 8, 3136>}, {transform_indices = @transform_1, window_bounds = array<i64: 3136, 256>}, {transform_indices = @transform_2, window_bounds = array<i64: 1, 256>}, {transform_indices = @transform_3, window_bounds = array<i64: 8, 256>}]} {
    %c0_i32 = arith.constant 0 : i32
    %0 = arith.cmpi eq, %arg2, %c0_i32 : i32
    %1 = arith.extui %0 : i1 to i32
    %c0_i32_0 = arith.constant 0 : i32
    %2 = arith.cmpi ne, %1, %c0_i32_0 : i32
    scf.if %2 {
      %cst_10 = arith.constant 0.000000e+00 : f32
      %12 = vector.broadcast %cst_10 : f32 to vector<8x256xf32>
      %c0_11 = arith.constant 0 : index
      %c0_12 = arith.constant 0 : index
      %13 = vector.load %arg7[%c0_11, %c0_12] : memref<8x256xf32, #tpu.memory_space<vmem>>, vector<8x256xf32>
      tpu.vector_store %arg7[%c0_11, %c0_12], %12 {strides = array<i32>} : memref<8x256xf32, #tpu.memory_space<vmem>>, vector<8x256xf32>,
    } else {
    }
    %c0 = arith.constant 0 : index
    %c0_1 = arith.constant 0 : index
    %3 = vector.load %arg7[%c0, %c0_1] : memref<8x256xf32, #tpu.memory_space<vmem>>, vector<8x256xf32>
    %c0_2 = arith.constant 0 : index
    %c0_3 = arith.constant 0 : index
    %4 = vector.load %arg3[%c0_2, %c0_3] : memref<8x3136xbf16, #tpu.memory_space<vmem>>, vector<8x3136xbf16>
    %c0_4 = arith.constant 0 : index
    %c0_5 = arith.constant 0 : index
    %5 = vector.load %arg4[%c0_4, %c0_5] : memref<3136x256xbf16, #tpu.memory_space<vmem>>, vector<3136x256xbf16>
    %cst = arith.constant dense<0.000000e+00> : vector<8x256xf32>
    %6 = tpu.matmul %4, %5, %cst {dimension_numbers = #tpu.dot_dimension_numbers<[1], [0], [0], [1], [0, 0, 1, 1], [], []>} : vector<8x3136xbf16>, vector<3136x256xbf16>, vector<8x256xf32> -> vector<8x256xf32>
    %7 = arith.addf %3, %6 : vector<8x256xf32>
    %c0_6 = arith.constant 0 : index
    %c0_7 = arith.constant 0 : index
    %8 = vector.load %arg7[%c0_6, %c0_7] : memref<8x256xf32, #tpu.memory_space<vmem>>, vector<8x256xf32>
    tpu.vector_store %arg7[%c0_6, %c0_7], %7 {strides = array<i32>} : memref<8x256xf32, #tpu.memory_space<vmem>>, vector<8x256xf32>,
    %c0_i32_8 = arith.constant 0 : i32
    %9 = arith.cmpi eq, %arg2, %c0_i32_8 : i32
    %10 = arith.extui %9 : i1 to i32
    %c0_i32_9 = arith.constant 0 : i32
    %11 = arith.cmpi ne, %10, %c0_i32_9 : i32
    scf.if %11 {
      %c0_10 = arith.constant 0 : index
      %c0_11 = arith.constant 0 : index
      %12 = vector.load %arg7[%c0_10, %c0_11] : memref<8x256xf32, #tpu.memory_space<vmem>>, vector<8x256xf32>
      %c0_12 = arith.constant 0 : index
      %c0_13 = arith.constant 0 : index
      %13 = vector.load %arg5[%c0_12, %c0_13] : memref<1x256xf32, #tpu.memory_space<vmem>>, vector<1x256xf32>
      %14 = vector.broadcast %13 : vector<1x256xf32> to vector<8x256xf32>
      %15 = arith.addf %12, %14 : vector<8x256xf32>
      %cst_14 = arith.constant 0.000000e+00 : f32
      %16 = vector.broadcast %cst_14 : f32 to vector<8x256xf32>
      %17 = arith.maximumf %15, %16 : vector<8x256xf32>
      %18 = arith.truncf %17 : vector<8x256xf32> to vector<8x256xbf16>
      %c0_15 = arith.constant 0 : index
      %c0_16 = arith.constant 0 : index
      %19 = vector.load %arg6[%c0_15, %c0_16] : memref<8x256xbf16, #tpu.memory_space<vmem>>, vector<8x256xbf16>
      tpu.vector_store %arg6[%c0_15, %c0_16], %18 {strides = array<i32>} : memref<8x256xbf16, #tpu.memory_space<vmem>>, vector<8x256xbf16>,
    } else {
    }
    return
  }
  func.func @transform_0(%arg0: i32, %arg1: i32, %arg2: i32) -> (i32, i32) {
    %c0_i32 = arith.constant 0 : i32
    return %arg0, %arg2 : i32, i32
  }
  func.func @transform_1(%arg0: i32, %arg1: i32, %arg2: i32) -> (i32, i32) {
    %c0_i32 = arith.constant 0 : i32
    return %arg2, %arg1 : i32, i32
  }
  func.func @transform_2(%arg0: i32, %arg1: i32, %arg2: i32) -> (i32, i32) {
    %c0_i32 = arith.constant 0 : i32
    %c0_i32_0 = arith.constant 0 : i32
    return %c0_i32, %arg1 : i32, i32
  }
  func.func @transform_3(%arg0: i32, %arg1: i32, %arg2: i32) -> (i32, i32) {
    %c0_i32 = arith.constant 0 : i32
    return %arg0, %arg1 : i32, i32
  }
}

module attributes {stable_mosaic.version = 11 : i64} {
  func.func @_softmax_head_kernel(%arg0: i32, %arg1: memref<2x512xbf16, #tpu.memory_space<vmem>>, %arg2: memref<512x6xbf16, #tpu.memory_space<vmem>>, %arg3: memref<1x6xf32, #tpu.memory_space<vmem>>, %arg4: memref<2x6xf32, #tpu.memory_space<vmem>>) attributes {dimension_semantics = [#tpu.dimension_semantics<arbitrary>], iteration_bounds = array<i64: 1>, scalar_prefetch = 0 : i64, scratch_operands = 0 : i64, tpu.core_type = #tpu.core_type<tc>, window_params = [{pipeline_mode = #tpu.pipeline_mode<synchronous>, transform_indices = @transform_0, window_bounds = array<i64: 2, 512>}, {pipeline_mode = #tpu.pipeline_mode<synchronous>, transform_indices = @transform_1, window_bounds = array<i64: 512, 6>}, {pipeline_mode = #tpu.pipeline_mode<synchronous>, transform_indices = @transform_2, window_bounds = array<i64: 1, 6>}, {pipeline_mode = #tpu.pipeline_mode<synchronous>, transform_indices = @transform_3, window_bounds = array<i64: 2, 6>}]} {
    %c0 = arith.constant 0 : index
    %c0_0 = arith.constant 0 : index
    %0 = vector.load %arg1[%c0, %c0_0] : memref<2x512xbf16, #tpu.memory_space<vmem>>, vector<2x512xbf16>
    %c0_1 = arith.constant 0 : index
    %c0_2 = arith.constant 0 : index
    %1 = vector.load %arg2[%c0_1, %c0_2] : memref<512x6xbf16, #tpu.memory_space<vmem>>, vector<512x6xbf16>
    %cst = arith.constant dense<0.000000e+00> : vector<2x6xf32>
    %2 = tpu.matmul %0, %1, %cst {dimension_numbers = #tpu.dot_dimension_numbers<[1], [0], [0], [1], [0, 0, 1, 1], [], []>} : vector<2x512xbf16>, vector<512x6xbf16>, vector<2x6xf32> -> vector<2x6xf32>
    %c0_3 = arith.constant 0 : index
    %c0_4 = arith.constant 0 : index
    %3 = vector.load %arg3[%c0_3, %c0_4] : memref<1x6xf32, #tpu.memory_space<vmem>>, vector<1x6xf32>
    %4 = vector.broadcast %3 : vector<1x6xf32> to vector<2x6xf32>
    %5 = arith.addf %2, %4 : vector<2x6xf32>
    %cst_5 = arith.constant -1.000000e+01 : f32
    %cst_6 = arith.constant 1.000000e+01 : f32
    %6 = vector.broadcast %cst_5 : f32 to vector<2x6xf32>
    %7 = arith.maximumf %6, %5 : vector<2x6xf32>
    %8 = vector.broadcast %cst_6 : f32 to vector<2x6xf32>
    %9 = arith.minimumf %8, %7 : vector<2x6xf32>
    %cst_7 = arith.constant dense<0xFF800000> : vector<2xf32>
    %10 = vector.multi_reduction <maximumf>, %9, %cst_7 [1] : vector<2x6xf32> to vector<2xf32>
    %11 = vector.shape_cast %10 : vector<2xf32> to vector<2x1xf32>
    %12 = vector.broadcast %11 : vector<2x1xf32> to vector<2x6xf32>
    %13 = arith.subf %9, %12 : vector<2x6xf32>
    %14 = math.exp %13 : vector<2x6xf32>
    %cst_8 = arith.constant dense<0.000000e+00> : vector<2xf32>
    %15 = vector.multi_reduction <add>, %14, %cst_8 [1] : vector<2x6xf32> to vector<2xf32>
    %16 = vector.shape_cast %15 : vector<2xf32> to vector<2x1xf32>
    %17 = vector.broadcast %16 : vector<2x1xf32> to vector<2x6xf32>
    %18 = arith.divf %14, %17 : vector<2x6xf32>
    %c0_9 = arith.constant 0 : index
    %c0_10 = arith.constant 0 : index
    %19 = vector.load %arg4[%c0_9, %c0_10] : memref<2x6xf32, #tpu.memory_space<vmem>>, vector<2x6xf32>
    tpu.vector_store %arg4[%c0_9, %c0_10], %18 {strides = array<i32>} : memref<2x6xf32, #tpu.memory_space<vmem>>, vector<2x6xf32>,
    return
  }
  func.func @transform_0(%arg0: i32) -> (i32, i32) {
    %c0_i32 = arith.constant 0 : i32
    %c0_i32_0 = arith.constant 0 : i32
    %c0_i32_1 = arith.constant 0 : i32
    return %c0_i32, %c0_i32_0 : i32, i32
  }
  func.func @transform_1(%arg0: i32) -> (i32, i32) {
    %c0_i32 = arith.constant 0 : i32
    %c0_i32_0 = arith.constant 0 : i32
    %c0_i32_1 = arith.constant 0 : i32
    return %c0_i32, %c0_i32_0 : i32, i32
  }
  func.func @transform_2(%arg0: i32) -> (i32, i32) {
    %c0_i32 = arith.constant 0 : i32
    %c0_i32_0 = arith.constant 0 : i32
    %c0_i32_1 = arith.constant 0 : i32
    return %c0_i32, %c0_i32_0 : i32, i32
  }
  func.func @transform_3(%arg0: i32) -> (i32, i32) {
    %c0_i32 = arith.constant 0 : i32
    %c0_i32_0 = arith.constant 0 : i32
    %c0_i32_1 = arith.constant 0 : i32
    return %c0_i32, %c0_i32_0 : i32, i32
  }
}

</mosaic_0001>

<llo_original>
// kernel: policy_forward.5
$region0: #{policy_forward.5}
  #allocation0 [shape = 'u32[]', space=smem, size = 0x4, offset = 0x4, fixed_abs, tag = 'smem constant byte address 0x4 - core index']
  #allocation1 [shape = 'u32[72,128]{1,0:T(1,128)}', space=vmem, size = 0x9000, scoped, tag = 'internal scratch']
  #allocation2 [shape = 'f32[256,32]{1,0:T(8,128)}', space=vmem, size = 0x20000, scoped, tag = 'scratch operand']
  %s0 = inlined_call_operand.vmem [shape: bf16[1024,256], index: 0, kind: input, shape index: {}]
  %s1 = inlined_call_operand.vmem [shape: bf16[256,32], index: 1, kind: input, shape index: {}]
  %s2 = inlined_call_operand.vmem [shape: f32[1,32], index: 2, kind: input, shape index: {}]
  %s3 = inlined_call_operand.vmem [shape: bf16[1024,32], index: 3, kind: output, shape index: {}]
  %s4 = sld [smem:[#allocation0]]
  $region53: #{policy_forward.5} parent=0
    _
  %s6 = ssub.s32 1, %s4
  %s7 = scalar_select 0, %s6, %s4
  loop: start=0, step=1, limit=6
  $region2: #{policy_forward.5} parent=0 // loop_pre_header
    _
  $region3: #{policy_forward.5} parent=0 // loop_header
    %s9 = sphi 0, %s13
    %p10 = scmp.ge.s32.totalorder %s9, 6
    %s16 = sphi 0, %s35
    %s17 = sphi 0, %s31
    %s18 = sphi 0, %s27
    %s19 = sphi 0, %s16
    %s20 = sphi 0, %s17
    %s21 = sphi 0, %s18
    %s22 = sphi 0, %s19
    %s23 = sphi 0, %s20
    %s24 = sphi 0, %s21
    %s40 = sphi 0, %s42
    %s43 = sphi 0, %s40
    %s44 = sphi 0, %s43
    %s60 = sphi 0, %s44
    %s68 = sphi 0, %s70
    %s71 = sphi 0, %s68
    %s72 = sphi 0, %s71
    %s88 = sphi 0, %s72
    %s94 = sphi 0, %s96
    %s97 = sphi 0, %s94
    %s98 = sphi 0, %s97
    %s114 = sphi 0, %s98
    %s122 = sphi 0, %s124
    %s125 = sphi 0, %s122
    %s126 = sphi 0, %s125
    %s142 = sphi 0, %s126
  $region4: #{policy_forward.5} parent=0 // loop_header_branch
    %12 = sbr.rel (%p10) target = $region8
  $region5: #{policy_forward.5} parent=0 // loop_body
    %s14 = ssub.s32 %s9, 1
    %s15 = ssub.s32 %s9, 2
    %s25 = sadd.s32 1, %s18
    %p26 = scmp.ge.s32.totalorder %s25, 1
    %s27 = scalar_select %p26, 0, %s25
    %s28 = sadd.s32 1, %s17
    %s29 = scalar_select %p26, %s28, %s17
    %p30 = scmp.ge.s32.totalorder %s29, 1
    %s31 = scalar_select %p30, 0, %s29
    %s32 = sadd.s32 1, %s16
    %s33 = scalar_select %p30, %s32, %s16
    %p34 = scmp.ge.s32.totalorder %s33, 4
    %s35 = scalar_select %p34, 0, %s33
    %s36 = ssub.s32 %s16, %s35
    %s37 = ssub.s32 %s18, %s27
    %s38 = sor.u32 %s36, %s37
    %p39 = scmp.eq.s32.totalorder %s38, 0
    %s41 = sadd.s32 %s40, 1
    %s42 = scalar_select %p39, %s40, %s41
    %p45 = pneg %p39
    %p46 = scmp.eq.s32.totalorder %s9, 3
    %p47 = por %p45, %p46
    %p48 = scmp.ne.s32.totalorder %s40, %s43
    %p49 = scmp.eq.s32.totalorder %s9, 0
    %p50 = por %p48, %p49
    %p51 = scmp.ne.s32.totalorder %s40, %s43
    %p52 = scmp.eq.s32.totalorder %s14, 3
    %p53 = por %p51, %p52
    %p54 = scmp.ne.s32.totalorder %s43, %s44
    %p55 = scmp.eq.s32.totalorder %s14, 0
    %p56 = por %p54, %p55
    %p57 = scmp.ne.s32.totalorder %s43, %s44
    %p58 = scmp.eq.s32.totalorder %s15, 3
    %p59 = por %p57, %p58
    %p61 = scmp.ne.s32.totalorder %s44, %s60
    %p62 = scmp.eq.s32.totalorder %s15, 0
    %p63 = por %p61, %p62
    %s64 = ssub.s32 %s18, %s27
    %s65 = ssub.s32 %s17, %s31
    %s66 = sor.u32 %s64, %s65
    %p67 = scmp.eq.s32.totalorder %s66, 0
    %s69 = sadd.s32 %s68, 1
    %s70 = scalar_select %p67, %s68, %s69
    %p73 = pneg %p67
    %p74 = scmp.eq.s32.totalorder %s9, 3
    %p75 = por %p73, %p74
    %p76 = scmp.ne.s32.totalorder %s68, %s71
    %p77 = scmp.eq.s32.totalorder %s9, 0
    %p78 = por %p76, %p77
    %p79 = scmp.ne.s32.totalorder %s68, %s71
    %p80 = scmp.eq.s32.totalorder %s14, 3
    %p81 = por %p79, %p80
    %p82 = scmp.ne.s32.totalorder %s71, %s72
    %p83 = scmp.eq.s32.totalorder %s14, 0
    %p84 = por %p82, %p83
    %p85 = scmp.ne.s32.totalorder %s71, %s72
    %p86 = scmp.eq.s32.totalorder %s15, 3
    %p87 = por %p85, %p86
    %p89 = scmp.ne.s32.totalorder %s72, %s88
    %p90 = scmp.eq.s32.totalorder %s15, 0
    %p91 = por %p89, %p90
    %s92 = ssub.s32 %s17, %s31
    %p93 = scmp.eq.s32.totalorder %s92, 0
    %s95 = sadd.s32 %s94, 1
    %s96 = scalar_select %p93, %s94, %s95
    %p99 = pneg %p93
    %p100 = scmp.eq.s32.totalorder %s9, 3
    %p101 = por %p99, %p100
    %p102 = scmp.ne.s32.totalorder %s94, %s97
    %p103 = scmp.eq.s32.totalorder %s9, 0
    %p104 = por %p102, %p103
    %p105 = scmp.ne.s32.totalorder %s94, %s97
    %p106 = scmp.eq.s32.totalorder %s14, 3
    %p107 = por %p105, %p106
    %p108 = scmp.ne.s32.totalorder %s97, %s98
    %p109 = scmp.eq.s32.totalorder %s14, 0
    %p110 = por %p108, %p109
    %p111 = scmp.ne.s32.totalorder %s97, %s98
    %p112 = scmp.eq.s32.totalorder %s15, 3
    %p113 = por %p111, %p112
    %p115 = scmp.ne.s32.totalorder %s98, %s114
    %p116 = scmp.eq.s32.totalorder %s15, 0
    %p117 = por %p115, %p116
    %s118 = ssub.s32 %s16, %s35
    %s119 = ssub.s32 %s17, %s31
    %s120 = sor.u32 %s118, %s119
    %p121 = scmp.eq.s32.totalorder %s120, 0
    %s123 = sadd.s32 %s122, 1
    %s124 = scalar_select %p121, %s122, %s123
    %p127 = pneg %p121
    %p128 = scmp.eq.s32.totalorder %s9, 3
    %p129 = por %p127, %p128
    %p130 = scmp.ne.s32.totalorder %s122, %s125
    %p131 = scmp.eq.s32.totalorder %s9, 0
    %p132 = por %p130, %p131
    %p133 = scmp.ne.s32.totalorder %s122, %s125
    %p134 = scmp.eq.s32.totalorder %s14, 3
    %p135 = por %p133, %p134
    %p136 = scmp.ne.s32.totalorder %s125, %s126
    %p137 = scmp.eq.s32.totalorder %s14, 0
    %p138 = por %p136, %p137
    %p139 = scmp.ne.s32.totalorder %s125, %s126
    %p140 = scmp.eq.s32.totalorder %s15, 3
    %p141 = por %p139, %p140
    %p143 = scmp.ne.s32.totalorder %s126, %s142
    %p144 = scmp.eq.s32.totalorder %s15, 0
    %p145 = por %p143, %p144
    %p146 = scmp.le.s32.totalorder 1, %s9
    %p147 = scmp.lt.s32.totalorder %s9, 5
    %p148 = pnand %p146, %p147
    %p149 = pneg %p148
    // Predicated region
    $region9: #{policy_forward.5} parent=5 // pred_check
      _
    $region10: #{policy_forward.5} parent=5 // pred_check_branch
      %151 = sbr.rel (%p148) target = $region12
    $region11: #{policy_forward.5} parent=5 // pred_region
      %s152 = ssub.s32 %s9, 1
      // Predicated region
      $region13: #{policy_forward.5} parent=11 // pred_check
        %p153 = pneg %p84
      $region14: #{policy_forward.5} parent=11 // pred_check_branch
        %155 = sbr.rel (%p153) target = $region16
      $region15: #{policy_forward.5} parent=11 // pred_region
        %s156 = smul.u32 32, %s21
        %p157 = scmp.lt.s32.totalorder %s156, 31
        %s158 = scalar_select %p157, %s156, 31
        %p159 = scmp.lt.s32.totalorder %s20, 0
        %s160 = scalar_select %p159, %s20, 0
        %s161 = sadd.s32 %s160, %s158
        %s162 = smul.addr %s161, 4
        %s163 = scalar_lea.vmem %s1, %s162
        %s164 = smul.u32 32, %s21
      $region16: #{policy_forward.5} parent=11 // pred_fallthru
        _
      // Predicated region
      $region17: #{policy_forward.5} parent=11 // pred_check
        %p165 = pneg %p110
      $region18: #{policy_forward.5} parent=11 // pred_check_branch
        %167 = sbr.rel (%p165) target = $region20
      $region19: #{policy_forward.5} parent=11 // pred_region
        %p168 = scmp.lt.s32.totalorder %s20, 0
        %s169 = scalar_select %p168, %s20, 0
        %s170 = scalar_lea.vmem %s2, %s169
      $region20: #{policy_forward.5} parent=11 // pred_fallthru
        _
    $region12: #{policy_forward.5} parent=5 // pred_fallthru
      _
    %p171 = scmp.lt.s32.totalorder %s9, 4
    // Predicated region
    $region21: #{policy_forward.5} parent=5 // pred_check
      %p172 = pneg %p171
    $region22: #{policy_forward.5} parent=5 // pred_check_branch
      %174 = sbr.rel (%p172) target = $region24
    $region23: #{policy_forward.5} parent=5 // pred_region
      // Predicated region
      $region25: #{policy_forward.5} parent=23 // pred_check
        %p175 = pneg %p50
      $region26: #{policy_forward.5} parent=23 // pred_check_branch
        %177 = sbr.rel (%p175) target = $region28
      $region27: #{policy_forward.5} parent=23 // pred_region
        %s178 = smul.u32 32, %s16
        %s179 = smul.u32 2, %s18
        %p180 = scmp.lt.s32.totalorder %s178, 127
        %s181 = scalar_select %p180, %s178, 127
        %p182 = scmp.lt.s32.totalorder %s179, 1
        %s183 = scalar_select %p182, %s179, 1
        %s184 = smul.addr %s181, 2
        %s185 = sadd.s32 %s183, %s184
        %s186 = smul.addr %s185, 4
        %s187 = scalar_lea.vmem %s0, %s186
        %s188 = smul.u32 32, %s16
        %s189 = smul.u32 2, %s18
      $region28: #{policy_forward.5} parent=23 // pred_fallthru
        _
    $region24: #{policy_forward.5} parent=5 // pred_fallthru
      _
    %p190 = scmp.le.s32.totalorder 1, %s9
    %p191 = scmp.lt.s32.totalorder %s9, 5
    %p192 = pnand %p190, %p191
    %p193 = pneg %p192
    // Predicated region
    $region29: #{policy_forward.5} parent=5 // pred_check
      _
    $region30: #{policy_forward.5} parent=5 // pred_check_branch
      %195 = sbr.rel (%p192) target = $region32
    $region31: #{policy_forward.5} parent=5 // pred_region
      %s196 = ssub.s32 %s9, 1
      %s197 = smul.u32 32, %s19
      %s198 = smul.u32 2, %s21
      %p199 = scmp.lt.s32.totalorder %s197, 127
      %s200 = scalar_select %p199, %s197, 127
      %p201 = scmp.lt.s32.totalorder %s198, 1
      %s202 = scalar_select %p201, %s198, 1
      %s203 = smul.addr %s200, 2
      %s204 = sadd.s32 %s202, %s203
      %s205 = smul.addr %s204, 4
      %s206 = scalar_lea.vmem %s0, %s205
      %p207 = pneg %p56
      %p208 = pneg %p53
      %s209 = smul.u32 32, %s21
      %p210 = scmp.lt.s32.totalorder %s209, 31
      %s211 = scalar_select %p210, %s209, 31
      %p212 = scmp.lt.s32.totalorder %s20, 0
      %s213 = scalar_select %p212, %s20, 0
      %s214 = sadd.s32 %s213, %s211
      %s215 = smul.addr %s214, 4
      %s216 = scalar_lea.vmem %s1, %s215
      %p217 = pneg %p84
      %p218 = pneg %p81
      %p219 = scmp.lt.s32.totalorder %s20, 0
      %s220 = scalar_select %p219, %s20, 0
      %s221 = scalar_lea.vmem %s2, %s220
      %p222 = pneg %p110
      %p223 = pneg %p107
      %p224 = pneg %p138
      %p225 = pneg %p135
      %s226 = smul.u32 32, %s19
      %p227 = scmp.lt.s32.totalorder %s226, 127
      %s228 = scalar_select %p227, %s226, 127
      %p229 = scmp.lt.s32.totalorder %s20, 0
      %s230 = scalar_select %p229, %s20, 0
      %s231 = sadd.s32 %s230, %s228
      %s232 = smul.addr %s231, 4
      %s233 = scalar_lea.vmem %s3, %s232
      %s234 = smul.u32 32, %s19
      %s235 = smul.u32 2, %s21
      %p236 = scmp.lt.s32.totalorder %s234, 127
      %s237 = scalar_select %p236, %s234, 127
      %p238 = scmp.lt.s32.totalorder %s235, 1
      %s239 = scalar_select %p238, %s235, 1
      %s240 = smul.addr %s237, 2
      %s241 = sadd.s32 %s239, %s240
      %s242 = smul.addr %s241, 4
      %s243 = scalar_lea.vmem %s0, %s242
      %s244 = smul.u32 32, %s19
      %s245 = smul.u32 2, %s21
      %s246 = smul.u32 32, %s21
      %p247 = scmp.lt.s32.totalorder %s246, 31
      %s248 = scalar_select %p247, %s246, 31
      %p249 = scmp.lt.s32.totalorder %s20, 0
      %s250 = scalar_select %p249, %s20, 0
      %s251 = sadd.s32 %s250, %s248
      %s252 = smul.addr %s251, 4
      %s253 = scalar_lea.vmem %s1, %s252
      %s254 = smul.u32 32, %s21
      %p255 = scmp.lt.s32.totalorder %s20, 0
      %s256 = scalar_select %p255, %s20, 0
      %s257 = scalar_lea.vmem %s2, %s256
      %s258 = smul.u32 32, %s19
      %p259 = scmp.lt.s32.totalorder %s258, 127
      %s260 = scalar_select %p259, %s258, 127
      %p261 = scmp.lt.s32.totalorder %s20, 0
      %s262 = scalar_select %p261, %s20, 0
      %s263 = sadd.s32 %s262, %s260
      %s264 = smul.addr %s263, 4
      %s265 = scalar_lea.vmem %s3, %s264
      %s266 = smul.u32 32, %s19
      %p267 = scmp.eq.s32.totalorder %s21, 0
      // Predicated region
      $region33: #{policy_forward.5} parent=31 // pred_check
        %p268 = pneg %p267
      $region34: #{policy_forward.5} parent=31 // pred_check_branch
        %270 = sbr.rel (%p268) target = $region36
      $region35: #{policy_forward.5} parent=31 // pred_region
        %vm271 = vcmask 261120
        %272 = vst.msk [vmem:[#allocation2] sm:$0xff] %vm271, 0.0
        %273 = vst.msk [vmem:[#allocation2 + $0x8] sm:$0xff] %vm271, 0.0
        %274 = vst.msk [vmem:[#allocation2 + $0x10] sm:$0xff] %vm271, 0.0
        %275 = vst.msk [vmem:[#allocation2 + $0x18] sm:$0xff] %vm271, 0.0
        %276 = vst.msk [vmem:[#allocation2 + $0x20] sm:$0xff] %vm271, 0.0
        %277 = vst.msk [vmem:[#allocation2 + $0x28] sm:$0xff] %vm271, 0.0
        %278 = vst.msk [vmem:[#allocation2 + $0x30] sm:$0xff] %vm271, 0.0
        %279 = vst.msk [vmem:[#allocation2 + $0x38] sm:$0xff] %vm271, 0.0
        %280 = vst.msk [vmem:[#allocation2 + $0x40] sm:$0xff] %vm271, 0.0
        %281 = vst.msk [vmem:[#allocation2 + $0x48] sm:$0xff] %vm271, 0.0
        %282 = vst.msk [vmem:[#allocation2 + $0x50] sm:$0xff] %vm271, 0.0
        %283 = vst.msk [vmem:[#allocation2 + $0x58] sm:$0xff] %vm271, 0.0
        %284 = vst.msk [vmem:[#allocation2 + $0x60] sm:$0xff] %vm271, 0.0
        %285 = vst.msk [vmem:[#allocation2 + $0x68] sm:$0xff] %vm271, 0.0
        %286 = vst.msk [vmem:[#allocation2 + $0x70] sm:$0xff] %vm271, 0.0
        %287 = vst.msk [vmem:[#allocation2 + $0x78] sm:$0xff] %vm271, 0.0
        %288 = vst.msk [vmem:[#allocation2 + $0x80] sm:$0xff] %vm271, 0.0
        %289 = vst.msk [vmem:[#allocation2 + $0x88] sm:$0xff] %vm271, 0.0
        %290 = vst.msk [vmem:[#allocation2 + $0x90] sm:$0xff] %vm271, 0.0
        %291 = vst.msk [vmem:[#allocation2 + $0x98] sm:$0xff] %vm271, 0.0
        %292 = vst.msk [vmem:[#allocation2 + $0xa0] sm:$0xff] %vm271, 0.0
        %293 = vst.msk [vmem:[#allocation2 + $0xa8] sm:$0xff] %vm271, 0.0
        %294 = vst.msk [vmem:[#allocation2 + $0xb0] sm:$0xff] %vm271, 0.0
        %295 = vst.msk [vmem:[#allocation2 + $0xb8] sm:$0xff] %vm271, 0.0
        %296 = vst.msk [vmem:[#allocation2 + $0xc0] sm:$0xff] %vm271, 0.0
        %297 = vst.msk [vmem:[#allocation2 + $0xc8] sm:$0xff] %vm271, 0.0
        %298 = vst.msk [vmem:[#allocation2 + $0xd0] sm:$0xff] %vm271, 0.0
        %299 = vst.msk [vmem:[#allocation2 + $0xd8] sm:$0xff] %vm271, 0.0
        %300 = vst.msk [vmem:[#allocation2 + $0xe0] sm:$0xff] %vm271, 0.0
        %301 = vst.msk [vmem:[#allocation2 + $0xe8] sm:$0xff] %vm271, 0.0
        %302 = vst.msk [vmem:[#allocation2 + $0xf0] sm:$0xff] %vm271, 0.0
        %303 = vst.msk [vmem:[#allocation2 + $0xf8] sm:$0xff] %vm271, 0.0
      $region36: #{policy_forward.5} parent=31 // pred_fallthru
        _
      %v304 = vld [vmem:[#allocation2] sm:$0xff]
      %v305 = vld [vmem:[#allocation2 + $0x8] sm:$0xff]
      %v306 = vld [vmem:[#allocation2 + $0x10] sm:$0xff]
      %v307 = vld [vmem:[#allocation2 + $0x18] sm:$0xff]
      %v308 = vld [vmem:[#allocation2 + $0x20] sm:$0xff]
      %v309 = vld [vmem:[#allocation2 + $0x28] sm:$0xff]
      %v310 = vld [vmem:[#allocation2 + $0x30] sm:$0xff]
      %v311 = vld [vmem:[#allocation2 + $0x38] sm:$0xff]
      %v312 = vld [vmem:[#allocation2 + $0x40] sm:$0xff]
      %v313 = vld [vmem:[#allocation2 + $0x48] sm:$0xff]
      %v314 = vld [vmem:[#allocation2 + $0x50] sm:$0xff]
      %v315 = vld [vmem:[#allocation2 + $0x58] sm:$0xff]
      %v316 = vld [vmem:[#allocation2 + $0x60] sm:$0xff]
      %v317 = vld [vmem:[#allocation2 + $0x68] sm:$0xff]
      %v318 = vld [vmem:[#allocation2 + $0x70] sm:$0xff]
      %v319 = vld [vmem:[#allocation2 + $0x78] sm:$0xff]
      %v320 = vld [vmem:[#allocation2 + $0x80] sm:$0xff]
      %v321 = vld [vmem:[#allocation2 + $0x88] sm:$0xff]
      %v322 = vld [vmem:[#allocation2 + $0x90] sm:$0xff]
      %v323 = vld [vmem:[#allocation2 + $0x98] sm:$0xff]
      %v324 = vld [vmem:[#allocation2 + $0xa0] sm:$0xff]
      %v325 = vld [vmem:[#allocation2 + $0xa8] sm:$0xff]
      %v326 = vld [vmem:[#allocation2 + $0xb0] sm:$0xff]
      %v327 = vld [vmem:[#allocation2 + $0xb8] sm:$0xff]
      %v328 = vld [vmem:[#allocation2 + $0xc0] sm:$0xff]
      %v329 = vld [vmem:[#allocation2 + $0xc8] sm:$0xff]
      %v330 = vld [vmem:[#allocation2 + $0xd0] sm:$0xff]
      %v331 = vld [vmem:[#allocation2 + $0xd8] sm:$0xff]
      %v332 = vld [vmem:[#allocation2 + $0xe0] sm:$0xff]
      %v333 = vld [vmem:[#allocation2 + $0xe8] sm:$0xff]
      %v334 = vld [vmem:[#allocation2 + $0xf0] sm:$0xff]
      %v335 = vld [vmem:[#allocation2 + $0xf8] sm:$0xff]
      %v336 = vld [vmem:[%s243] sm:$0xff]
      %v337 = vld [vmem:[%s243 + $0x8] sm:$0xff]
      %v338 = vld [vmem:[%s243 + $0x10] sm:$0xff]
      %v339 = vld [vmem:[%s243 + $0x18] sm:$0xff]
      %v340 = vld [vmem:[%s243 + $0x20] sm:$0xff]
      %v341 = vld [vmem:[%s243 + $0x28] sm:$0xff]
      %v342 = vld [vmem:[%s243 + $0x30] sm:$0xff]
      %v343 = vld [vmem:[%s243 + $0x38] sm:$0xff]
      %v344 = vld [vmem:[%s243 + $0x40] sm:$0xff]
      %v345 = vld [vmem:[%s243 + $0x48] sm:$0xff]
      %v346 = vld [vmem:[%s243 + $0x50] sm:$0xff]
      %v347 = vld [vmem:[%s243 + $0x58] sm:$0xff]
      %v348 = vld [vmem:[%s243 + $0x60] sm:$0xff]
      %v349 = vld [vmem:[%s243 + $0x68] sm:$0xff]
      %v350 = vld [vmem:[%s243 + $0x70] sm:$0xff]
      %v351 = vld [vmem:[%s243 + $0x78] sm:$0xff]
      %v352 = vld [vmem:[%s243 + $0x80] sm:$0xff]
      %v353 = vld [vmem:[%s243 + $0x88] sm:$0xff]
      %v354 = vld [vmem:[%s243 + $0x90] sm:$0xff]
      %v355 = vld [vmem:[%s243 + $0x98] sm:$0xff]
      %v356 = vld [vmem:[%s243 + $0xa0] sm:$0xff]
      %v357 = vld [vmem:[%s243 + $0xa8] sm:$0xff]
      %v358 = vld [vmem:[%s243 + $0xb0] sm:$0xff]
      %v359 = vld [vmem:[%s243 + $0xb8] sm:$0xff]
      %v360 = vld [vmem:[%s243 + $0xc0] sm:$0xff]
      %v361 = vld [vmem:[%s243 + $0xc8] sm:$0xff]
      %v362 = vld [vmem:[%s243 + $0xd0] sm:$0xff]
      %v363 = vld [vmem:[%s243 + $0xd8] sm:$0xff]
      %v364 = vld [vmem:[%s243 + $0xe0] sm:$0xff]
      %v365 = vld [vmem:[%s243 + $0xe8] sm:$0xff]
      %v366 = vld [vmem:[%s243 + $0xf0] sm:$0xff]
      %v367 = vld [vmem:[%s243 + $0xf8] sm:$0xff]
      %v368 = vld [vmem:[%s253] sm:$0xf]
      %v369 = vld [vmem:[%s253 + $0x4] sm:$0xf]
      %v370 = vld [vmem:[%s253 + $0x8] sm:$0xf]
      %v371 = vld [vmem:[%s253 + $0xc] sm:$0xf]
      %v372 = vld [vmem:[%s253 + $0x10] sm:$0xf]
      %v373 = vld [vmem:[%s253 + $0x14] sm:$0xf]
      %v374 = vld [vmem:[%s253 + $0x18] sm:$0xf]
      %v375 = vld [vmem:[%s253 + $0x1c] sm:$0xf]
      %v376 = vld [vmem:[%s253 + $0x20] sm:$0xf]
      %v377 = vld [vmem:[%s253 + $0x24] sm:$0xf]
      %v378 = vld [vmem:[%s253 + $0x28] sm:$0xf]
      %v379 = vld [vmem:[%s253 + $0x2c] sm:$0xf]
      %v380 = vld [vmem:[%s253 + $0x30] sm:$0xf]
      %v381 = vld [vmem:[%s253 + $0x34] sm:$0xf]
      %v382 = vld [vmem:[%s253 + $0x38] sm:$0xf]
      %v383 = vld [vmem:[%s253 + $0x3c] sm:$0xf]
      %v384 = vld [vmem:[%s253 + $0x40] sm:$0xf]
      %v385 = vld [vmem:[%s253 + $0x44] sm:$0xf]
      %v386 = vld [vmem:[%s253 + $0x48] sm:$0xf]
      %v387 = vld [vmem:[%s253 + $0x4c] sm:$0xf]
      %v388 = vld [vmem:[%s253 + $0x50] sm:$0xf]
      %v389 = vld [vmem:[%s253 + $0x54] sm:$0xf]
      %v390 = vld [vmem:[%s253 + $0x58] sm:$0xf]
      %v391 = vld [vmem:[%s253 + $0x5c] sm:$0xf]
      %v392 = vld [vmem:[%s253 + $0x60] sm:$0xf]
      %v393 = vld [vmem:[%s253 + $0x64] sm:$0xf]
      %v394 = vld [vmem:[%s253 + $0x68] sm:$0xf]
      %v395 = vld [vmem:[%s253 + $0x6c] sm:$0xf]
      %v396 = vld [vmem:[%s253 + $0x70] sm:$0xf]
      %v397 = vld [vmem:[%s253 + $0x74] sm:$0xf]
      %v398 = vld [vmem:[%s253 + $0x78] sm:$0xf]
      %v399 = vld [vmem:[%s253 + $0x7c] sm:$0xf]
      %v432 = vunpack.c.l.b16 %v336
      %v433 = vunpack.c.h.b16 %v336
      %v434 = vunpack.c.l.b16 %v337
      %v435 = vunpack.c.h.b16 %v337
      %v436 = vunpack.c.l.b16 %v338
      %v437 = vunpack.c.h.b16 %v338
      %v438 = vunpack.c.l.b16 %v339
      %v439 = vunpack.c.h.b16 %v339
      %v440 = vunpack.c.l.b16 %v340
      %v441 = vunpack.c.h.b16 %v340
      %v442 = vunpack.c.l.b16 %v341
      %v443 = vunpack.c.h.b16 %v341
      %v444 = vunpack.c.l.b16 %v342
      %v445 = vunpack.c.h.b16 %v342
      %v446 = vunpack.c.l.b16 %v343
      %v447 = vunpack.c.h.b16 %v343
      %v448 = vunpack.c.l.b16 %v344
      %v449 = vunpack.c.h.b16 %v344
      %v450 = vunpack.c.l.b16 %v345
      %v451 = vunpack.c.h.b16 %v345
      %v452 = vunpack.c.l.b16 %v346
      %v453 = vunpack.c.h.b16 %v346
      %v454 = vunpack.c.l.b16 %v347
      %v455 = vunpack.c.h.b16 %v347
      %v456 = vunpack.c.l.b16 %v348
      %v457 = vunpack.c.h.b16 %v348
      %v458 = vunpack.c.l.b16 %v349
      %v459 = vunpack.c.h.b16 %v349
      %v460 = vunpack.c.l.b16 %v350
      %v461 = vunpack.c.h.b16 %v350
      %v462 = vunpack.c.l.b16 %v351
      %v463 = vunpack.c.h.b16 %v351
      %v464 = vunpack.c.l.b16 %v352
      %v465 = vunpack.c.h.b16 %v352
      %v466 = vunpack.c.l.b16 %v353
      %v467 = vunpack.c.h.b16 %v353
      %v468 = vunpack.c.l.b16 %v354
      %v469 = vunpack.c.h.b16 %v354
      %v470 = vunpack.c.l.b16 %v355
      %v471 = vunpack.c.h.b16 %v355
      %v472 = vunpack.c.l.b16 %v356
      %v473 = vunpack.c.h.b16 %v356
      %v474 = vunpack.c.l.b16 %v357
      %v475 = vunpack.c.h.b16 %v357
      %v476 = vunpack.c.l.b16 %v358
      %v477 = vunpack.c.h.b16 %v358
      %v478 = vunpack.c.l.b16 %v359
      %v479 = vunpack.c.h.b16 %v359
      %v480 = vunpack.c.l.b16 %v360
      %v481 = vunpack.c.h.b16 %v360
      %v482 = vunpack.c.l.b16 %v361
      %v483 = vunpack.c.h.b16 %v361
      %v484 = vunpack.c.l.b16 %v362
      %v485 = vunpack.c.h.b16 %v362
      %v486 = vunpack.c.l.b16 %v363
      %v487 = vunpack.c.h.b16 %v363
      %v488 = vunpack.c.l.b16 %v364
      %v489 = vunpack.c.h.b16 %v364
      %v490 = vunpack.c.l.b16 %v365
      %v491 = vunpack.c.h.b16 %v365
      %v492 = vunpack.c.l.b16 %v366
      %v493 = vunpack.c.h.b16 %v366
      %v494 = vunpack.c.l.b16 %v367
      %v495 = vunpack.c.h.b16 %v367
      %v496 = vpack.c.b16 %v434, %v432
      %v497 = vpack.c.b16 %v435, %v433
      %v498 = vpack.c.b16 %v438, %v436
      %v499 = vpack.c.b16 %v439, %v437
      %v500 = vpack.c.b16 %v442, %v440
      %v501 = vpack.c.b16 %v443, %v441
      %v502 = vpack.c.b16 %v446, %v444
      %v503 = vpack.c.b16 %v447, %v445
      %v504 = vpack.c.b16 %v450, %v448
      %v505 = vpack.c.b16 %v451, %v449
      %v506 = vpack.c.b16 %v454, %v452
      %v507 = vpack.c.b16 %v455, %v453
      %v508 = vpack.c.b16 %v458, %v456
      %v509 = vpack.c.b16 %v459, %v457
      %v510 = vpack.c.b16 %v462, %v460
      %v511 = vpack.c.b16 %v463, %v461
      %v512 = vpack.c.b16 %v466, %v464
      %v513 = vpack.c.b16 %v467, %v465
      %v514 = vpack.c.b16 %v470, %v468
      %v515 = vpack.c.b16 %v471, %v469
      %v516 = vpack.c.b16 %v474, %v472
      %v517 = vpack.c.b16 %v475, %v473
      %v518 = vpack.c.b16 %v478, %v476
      %v519 = vpack.c.b16 %v479, %v477
      %v520 = vpack.c.b16 %v482, %v480
      %v521 = vpack.c.b16 %v483, %v481
      %v522 = vpack.c.b16 %v486, %v484
      %v523 = vpack.c.b16 %v487, %v485
      %v524 = vpack.c.b16 %v490, %v488
      %v525 = vpack.c.b16 %v491, %v489
      %v526 = vpack.c.b16 %v494, %v492
      %v527 = vpack.c.b16 %v495, %v493
      %v592 = vunpack.c.l.b16 %v368
      %v593 = vunpack.c.l.b16 %v369
      %v594 = vunpack.c.l.b16 %v370
      %v595 = vunpack.c.l.b16 %v371
      %v596 = vunpack.c.l.b16 %v372
      %v597 = vunpack.c.l.b16 %v373
      %v598 = vunpack.c.l.b16 %v374
      %v599 = vunpack.c.l.b16 %v375
      %v600 = vunpack.c.l.b16 %v376
      %v601 = vunpack.c.l.b16 %v377
      %v602 = vunpack.c.l.b16 %v378
      %v603 = vunpack.c.l.b16 %v379
      %v604 = vunpack.c.l.b16 %v380
      %v605 = vunpack.c.l.b16 %v381
      %v606 = vunpack.c.l.b16 %v382
      %v607 = vunpack.c.l.b16 %v383
      %v608 = vunpack.c.l.b16 %v384
      %v609 = vunpack.c.l.b16 %v385
      %v610 = vunpack.c.l.b16 %v386
      %v611 = vunpack.c.l.b16 %v387
      %v612 = vunpack.c.l.b16 %v388
      %v613 = vunpack.c.l.b16 %v389
      %v614 = vunpack.c.l.b16 %v390
      %v615 = vunpack.c.l.b16 %v391
      %v616 = vunpack.c.l.b16 %v392
      %v617 = vunpack.c.l.b16 %v393
      %v618 = vunpack.c.l.b16 %v394
      %v619 = vunpack.c.l.b16 %v395
      %v620 = vunpack.c.l.b16 %v396
      %v621 = vunpack.c.l.b16 %v397
      %v622 = vunpack.c.l.b16 %v398
      %v623 = vunpack.c.l.b16 %v399
      %v624 = vpack.c.b16 %v593, %v592
      %v625 = vpack.c.b16 %v595, %v594
      %v626 = vpack.c.b16 %v597, %v596
      %v627 = vpack.c.b16 %v599, %v598
      %v628 = vpack.c.b16 %v601, %v600
      %v629 = vpack.c.b16 %v603, %v602
      %v630 = vpack.c.b16 %v605, %v604
      %v631 = vpack.c.b16 %v607, %v606
      %v632 = vpack.c.b16 %v609, %v608
      %v633 = vpack.c.b16 %v611, %v610
      %v634 = vpack.c.b16 %v613, %v612
      %v635 = vpack.c.b16 %v615, %v614
      %v636 = vpack.c.b16 %v617, %v616
      %v637 = vpack.c.b16 %v619, %v618
      %v638 = vpack.c.b16 %v621, %v620
      %v639 = vpack.c.b16 %v623, %v622
      %656 = vmatpush.bf16.msra.mxu0 %v631
      %657 = vmatpush.bf16.msra.mxu0 %v630
      %658 = vmatpush.bf16.msra.mxu0 %v629
      %659 = vmatpush.bf16.msra.mxu0 %v628
      %660 = vmatpush.bf16.msra.mxu0 %v627
      %661 = vmatpush.bf16.msra.mxu0 %v626
      %662 = vmatpush.bf16.msra.mxu0 %v625
      %663 = vmatpush.bf16.msra.mxu0 %v624
      %664 = vmatmul.bf16.gmra.mxu0 %v496
      %v665 = vpop.f32.mrf.mxu0
      %v666 = vadd.f32 0.0, %v665
      %v667 = vpop.f32.mrf.mxu0
      %v668 = vadd.f32 0.0, %v667
      %669 = vmatmul.bf16.gmra.mxu0 %v498
      %v670 = vpop.f32.mrf.mxu0
      %v671 = vadd.f32 0.0, %v670
      %v672 = vpop.f32.mrf.mxu0
      %v673 = vadd.f32 0.0, %v672
      %674 = vmatmul.bf16.gmra.mxu0 %v500
      %v675 = vpop.f32.mrf.mxu0
      %v676 = vadd.f32 0.0, %v675
      %v677 = vpop.f32.mrf.mxu0
      %v678 = vadd.f32 0.0, %v677
      %679 = vmatmul.bf16.gmra.mxu0 %v502
      %v680 = vpop.f32.mrf.mxu0
      %v681 = vadd.f32 0.0, %v680
      %v682 = vpop.f32.mrf.mxu0
      %v683 = vadd.f32 0.0, %v682
      %684 = vmatmul.bf16.gmra.mxu0 %v504
      %v685 = vpop.f32.mrf.mxu0
      %v686 = vadd.f32 0.0, %v685
      %v687 = vpop.f32.mrf.mxu0
      %v688 = vadd.f32 0.0, %v687
      %689 = vmatmul.bf16.gmra.mxu0 %v506
      %v690 = vpop.f32.mrf.mxu0
      %v691 = vadd.f32 0.0, %v690
      %v692 = vpop.f32.mrf.mxu0
      %v693 = vadd.f32 0.0, %v692
      %694 = vmatmul.bf16.gmra.mxu0 %v508
      %v695 = vpop.f32.mrf.mxu0
      %v696 = vadd.f32 0.0, %v695
      %v697 = vpop.f32.mrf.mxu0
      %v698 = vadd.f32 0.0, %v697
      %699 = vmatmul.bf16.gmra.mxu0 %v510
      %v700 = vpop.f32.mrf.mxu0
      %v701 = vadd.f32 0.0, %v700
      %v702 = vpop.f32.mrf.mxu0
      %v703 = vadd.f32 0.0, %v702
      %704 = vmatmul.bf16.gmra.mxu0 %v512
      %v705 = vpop.f32.mrf.mxu0
      %v706 = vadd.f32 0.0, %v705
      %v707 = vpop.f32.mrf.mxu0
      %v708 = vadd.f32 0.0, %v707
      %709 = vmatmul.bf16.gmra.mxu0 %v514
      %v710 = vpop.f32.mrf.mxu0
      %v711 = vadd.f32 0.0, %v710
      %v712 = vpop.f32.mrf.mxu0
      %v713 = vadd.f32 0.0, %v712
      %714 = vmatmul.bf16.gmra.mxu0 %v516
      %v715 = vpop.f32.mrf.mxu0
      %v716 = vadd.f32 0.0, %v715
      %v717 = vpop.f32.mrf.mxu0
      %v718 = vadd.f32 0.0, %v717
      %719 = vmatmul.bf16.gmra.mxu0 %v518
      %v720 = vpop.f32.mrf.mxu0
      %v721 = vadd.f32 0.0, %v720
      %v722 = vpop.f32.mrf.mxu0
      %v723 = vadd.f32 0.0, %v722
      %724 = vmatmul.bf16.gmra.mxu0 %v520
      %v725 = vpop.f32.mrf.mxu0
      %v726 = vadd.f32 0.0, %v725
      %v727 = vpop.f32.mrf.mxu0
      %v728 = vadd.f32 0.0, %v727
      %729 = vmatmul.bf16.gmra.mxu0 %v522
      %v730 = vpop.f32.mrf.mxu0
      %v731 = vadd.f32 0.0, %v730
      %v732 = vpop.f32.mrf.mxu0
      %v733 = vadd.f32 0.0, %v732
      %734 = vmatmul.bf16.gmra.mxu0 %v524
      %v735 = vpop.f32.mrf.mxu0
      %v736 = vadd.f32 0.0, %v735
      %v737 = vpop.f32.mrf.mxu0
      %v738 = vadd.f32 0.0, %v737
      %739 = vmatmul.bf16.gmra.mxu0 %v526
      %v740 = vpop.f32.mrf.mxu0
      %v741 = vadd.f32 0.0, %v740
      %v742 = vpop.f32.mrf.mxu0
      %v743 = vadd.f32 0.0, %v742
      %744 = vdwg.mxu0
      %745 = vmatpush.bf16.msra.mxu0 %v639
      %746 = vmatpush.bf16.msra.mxu0 %v638
      %747 = vmatpush.bf16.msra.mxu0 %v637
      %748 = vmatpush.bf16.msra.mxu0 %v636
      %749 = vmatpush.bf16.msra.mxu0 %v635
      %750 = vmatpush.bf16.msra.mxu0 %v634
      %751 = vmatpush.bf16.msra.mxu0 %v633
      %752 = vmatpush.bf16.msra.mxu0 %v632
      %753 = vmatmul.bf16.gmra.mxu0 %v497
      %v754 = vpop.f32.mrf.mxu0
      %v755 = vadd.f32 %v666, %v754
      %v756 = vpop.f32.mrf.mxu0
      %v757 = vadd.f32 %v668, %v756
      %758 = vmatmul.bf16.gmra.mxu0 %v499
      %v759 = vpop.f32.mrf.mxu0
      %v760 = vadd.f32 %v671, %v759
      %v761 = vpop.f32.mrf.mxu0
      %v762 = vadd.f32 %v673, %v761
      %763 = vmatmul.bf16.gmra.mxu0 %v501
      %v764 = vpop.f32.mrf.mxu0
      %v765 = vadd.f32 %v676, %v764
      %v766 = vpop.f32.mrf.mxu0
      %v767 = vadd.f32 %v678, %v766
      %768 = vmatmul.bf16.gmra.mxu0 %v503
      %v769 = vpop.f32.mrf.mxu0
      %v770 = vadd.f32 %v681, %v769
      %v771 = vpop.f32.mrf.mxu0
      %v772 = vadd.f32 %v683, %v771
      %773 = vmatmul.bf16.gmra.mxu0 %v505
      %v774 = vpop.f32.mrf.mxu0
      %v775 = vadd.f32 %v686, %v774
      %v776 = vpop.f32.mrf.mxu0
      %v777 = vadd.f32 %v688, %v776
      %778 = vmatmul.bf16.gmra.mxu0 %v507
      %v779 = vpop.f32.mrf.mxu0
      %v780 = vadd.f32 %v691, %v779
      %v781 = vpop.f32.mrf.mxu0
      %v782 = vadd.f32 %v693, %v781
      %783 = vmatmul.bf16.gmra.mxu0 %v509
      %v784 = vpop.f32.mrf.mxu0
      %v785 = vadd.f32 %v696, %v784
      %v786 = vpop.f32.mrf.mxu0
      %v787 = vadd.f32 %v698, %v786
      %788 = vmatmul.bf16.gmra.mxu0 %v511
      %v789 = vpop.f32.mrf.mxu0
      %v790 = vadd.f32 %v701, %v789
      %v791 = vpop.f32.mrf.mxu0
      %v792 = vadd.f32 %v703, %v791
      %793 = vmatmul.bf16.gmra.mxu0 %v513
      %v794 = vpop.f32.mrf.mxu0
      %v795 = vadd.f32 %v706, %v794
      %v796 = vpop.f32.mrf.mxu0
      %v797 = vadd.f32 %v708, %v796
      %798 = vmatmul.bf16.gmra.mxu0 %v515
      %v799 = vpop.f32.mrf.mxu0
      %v800 = vadd.f32 %v711, %v799
      %v801 = vpop.f32.mrf.mxu0
      %v802 = vadd.f32 %v713, %v801
      %803 = vmatmul.bf16.gmra.mxu0 %v517
      %v804 = vpop.f32.mrf.mxu0
      %v805 = vadd.f32 %v716, %v804
      %v806 = vpop.f32.mrf.mxu0
      %v807 = vadd.f32 %v718, %v806
      %808 = vmatmul.bf16.gmra.mxu0 %v519
      %v809 = vpop.f32.mrf.mxu0
      %v810 = vadd.f32 %v721, %v809
      %v811 = vpop.f32.mrf.mxu0
      %v812 = vadd.f32 %v723, %v811
      %813 = vmatmul.bf16.gmra.mxu0 %v521
      %v814 = vpop.f32.mrf.mxu0
      %v815 = vadd.f32 %v726, %v814
      %v816 = vpop.f32.mrf.mxu0
      %v817 = vadd.f32 %v728, %v816
      %818 = vmatmul.bf16.gmra.mxu0 %v523
      %v819 = vpop.f32.mrf.mxu0
      %v820 = vadd.f32 %v731, %v819
      %v821 = vpop.f32.mrf.mxu0
      %v822 = vadd.f32 %v733, %v821
      %823 = vmatmul.bf16.gmra.mxu0 %v525
      %v824 = vpop.f32.mrf.mxu0
      %v825 = vadd.f32 %v736, %v824
      %v826 = vpop.f32.mrf.mxu0
      %v827 = vadd.f32 %v738, %v826
      %828 = vmatmul.bf16.gmra.mxu0 %v527
      %v829 = vpop.f32.mrf.mxu0
      %v830 = vadd.f32 %v741, %v829
      %v831 = vpop.f32.mrf.mxu0
      %v832 = vadd.f32 %v743, %v831
      %833 = vdwg.mxu0
      %v834 = vadd.f32 %v304, %v755
      %v835 = vadd.f32 %v305, %v757
      %v836 = vadd.f32 %v306, %v760
      %v837 = vadd.f32 %v307, %v762
      %v838 = vadd.f32 %v308, %v765
      %v839 = vadd.f32 %v309, %v767
      %v840 = vadd.f32 %v310, %v770
      %v841 = vadd.f32 %v311, %v772
      %v842 = vadd.f32 %v312, %v775
      %v843 = vadd.f32 %v313, %v777
      %v844 = vadd.f32 %v314, %v780
      %v845 = vadd.f32 %v315, %v782
      %v846 = vadd.f32 %v316, %v785
      %v847 = vadd.f32 %v317, %v787
      %v848 = vadd.f32 %v318, %v790
      %v849 = vadd.f32 %v319, %v792
      %v850 = vadd.f32 %v320, %v795
      %v851 = vadd.f32 %v321, %v797
      %v852 = vadd.f32 %v322, %v800
      %v853 = vadd.f32 %v323, %v802
      %v854 = vadd.f32 %v324, %v805
      %v855 = vadd.f32 %v325, %v807
      %v856 = vadd.f32 %v326, %v810
      %v857 = vadd.f32 %v327, %v812
      %v858 = vadd.f32 %v328, %v815
      %v859 = vadd.f32 %v329, %v817
      %v860 = vadd.f32 %v330, %v820
      %v861 = vadd.f32 %v331, %v822
      %v862 = vadd.f32 %v332, %v825
      %v863 = vadd.f32 %v333, %v827
      %v864 = vadd.f32 %v334, %v830
      %v865 = vadd.f32 %v335, %v832
      %vm866 = vcmask 261120
      %867 = vst.msk [vmem:[#allocation2] sm:$0xff] %vm866, %v834
      %868 = vst.msk [vmem:[#allocation2 + $0x8] sm:$0xff] %vm866, %v835
      %869 = vst.msk [vmem:[#allocation2 + $0x10] sm:$0xff] %vm866, %v836
      %870 = vst.msk [vmem:[#allocation2 + $0x18] sm:$0xff] %vm866, %v837
      %871 = vst.msk [vmem:[#allocation2 + $0x20] sm:$0xff] %vm866, %v838
      %872 = vst.msk [vmem:[#allocation2 + $0x28] sm:$0xff] %vm866, %v839
      %873 = vst.msk [vmem:[#allocation2 + $0x30] sm:$0xff] %vm866, %v840
      %874 = vst.msk [vmem:[#allocation2 + $0x38] sm:$0xff] %vm866, %v841
      %875 = vst.msk [vmem:[#allocation2 + $0x40] sm:$0xff] %vm866, %v842
      %876 = vst.msk [vmem:[#allocation2 + $0x48] sm:$0xff] %vm866, %v843
      %877 = vst.msk [vmem:[#allocation2 + $0x50] sm:$0xff] %vm866, %v844
      %878 = vst.msk [vmem:[#allocation2 + $0x58] sm:$0xff] %vm866, %v845
      %879 = vst.msk [vmem:[#allocation2 + $0x60] sm:$0xff] %vm866, %v846
      %880 = vst.msk [vmem:[#allocation2 + $0x68] sm:$0xff] %vm866, %v847
      %881 = vst.msk [vmem:[#allocation2 + $0x70] sm:$0xff] %vm866, %v848
      %882 = vst.msk [vmem:[#allocation2 + $0x78] sm:$0xff] %vm866, %v849
      %883 = vst.msk [vmem:[#allocation2 + $0x80] sm:$0xff] %vm866, %v850
      %884 = vst.msk [vmem:[#allocation2 + $0x88] sm:$0xff] %vm866, %v851
      %885 = vst.msk [vmem:[#allocation2 + $0x90] sm:$0xff] %vm866, %v852
      %886 = vst.msk [vmem:[#allocation2 + $0x98] sm:$0xff] %vm866, %v853
      %887 = vst.msk [vmem:[#allocation2 + $0xa0] sm:$0xff] %vm866, %v854
      %888 = vst.msk [vmem:[#allocation2 + $0xa8] sm:$0xff] %vm866, %v855
      %889 = vst.msk [vmem:[#allocation2 + $0xb0] sm:$0xff] %vm866, %v856
      %890 = vst.msk [vmem:[#allocation2 + $0xb8] sm:$0xff] %vm866, %v857
      %891 = vst.msk [vmem:[#allocation2 + $0xc0] sm:$0xff] %vm866, %v858
      %892 = vst.msk [vmem:[#allocation2 + $0xc8] sm:$0xff] %vm866, %v859
      %893 = vst.msk [vmem:[#allocation2 + $0xd0] sm:$0xff] %vm866, %v860
      %894 = vst.msk [vmem:[#allocation2 + $0xd8] sm:$0xff] %vm866, %v861
      %895 = vst.msk [vmem:[#allocation2 + $0xe0] sm:$0xff] %vm866, %v862
      %896 = vst.msk [vmem:[#allocation2 + $0xe8] sm:$0xff] %vm866, %v863
      %897 = vst.msk [vmem:[#allocation2 + $0xf0] sm:$0xff] %vm866, %v864
      %898 = vst.msk [vmem:[#allocation2 + $0xf8] sm:$0xff] %vm866, %v865
      // Predicated region
      $region37: #{policy_forward.5} parent=31 // pred_check
        %p899 = pneg %p267
      $region38: #{policy_forward.5} parent=31 // pred_check_branch
        %901 = sbr.rel (%p899) target = $region40
      $region39: #{policy_forward.5} parent=31 // pred_region
        %v902 = vld [vmem:[#allocation2] sm:$0xff]
        %v903 = vld [vmem:[#allocation2 + $0x8] sm:$0xff]
        %v904 = vld [vmem:[#allocation2 + $0x10] sm:$0xff]
        %v905 = vld [vmem:[#allocation2 + $0x18] sm:$0xff]
        %v906 = vld [vmem:[#allocation2 + $0x20] sm:$0xff]
        %v907 = vld [vmem:[#allocation2 + $0x28] sm:$0xff]
        %v908 = vld [vmem:[#allocation2 + $0x30] sm:$0xff]
        %v909 = vld [vmem:[#allocation2 + $0x38] sm:$0xff]
        %v910 = vld [vmem:[#allocation2 + $0x40] sm:$0xff]
        %v911 = vld [vmem:[#allocation2 + $0x48] sm:$0xff]
        %v912 = vld [vmem:[#allocation2 + $0x50] sm:$0xff]
        %v913 = vld [vmem:[#allocation2 + $0x58] sm:$0xff]
        %v914 = vld [vmem:[#allocation2 + $0x60] sm:$0xff]
        %v915 = vld [vmem:[#allocation2 + $0x68] sm:$0xff]
        %v916 = vld [vmem:[#allocation2 + $0x70] sm:$0xff]
        %v917 = vld [vmem:[#allocation2 + $0x78] sm:$0xff]
        %v918 = vld [vmem:[#allocation2 + $0x80] sm:$0xff]
        %v919 = vld [vmem:[#allocation2 + $0x88] sm:$0xff]
        %v920 = vld [vmem:[#allocation2 + $0x90] sm:$0xff]
        %v921 = vld [vmem:[#allocation2 + $0x98] sm:$0xff]
        %v922 = vld [vmem:[#allocation2 + $0xa0] sm:$0xff]
        %v923 = vld [vmem:[#allocation2 + $0xa8] sm:$0xff]
        %v924 = vld [vmem:[#allocation2 + $0xb0] sm:$0xff]
        %v925 = vld [vmem:[#allocation2 + $0xb8] sm:$0xff]
        %v926 = vld [vmem:[#allocation2 + $0xc0] sm:$0xff]
        %v927 = vld [vmem:[#allocation2 + $0xc8] sm:$0xff]
        %v928 = vld [vmem:[#allocation2 + $0xd0] sm:$0xff]
        %v929 = vld [vmem:[#allocation2 + $0xd8] sm:$0xff]
        %v930 = vld [vmem:[#allocation2 + $0xe0] sm:$0xff]
        %v931 = vld [vmem:[#allocation2 + $0xe8] sm:$0xff]
        %v932 = vld [vmem:[#allocation2 + $0xf0] sm:$0xff]
        %v933 = vld [vmem:[#allocation2 + $0xf8] sm:$0xff]
        %v934 = vld [vmem:[%s257] sm:$0x1]
        %v936 = vperm.slane %v934, 0
        %v938 = vadd.f32 %v902, %v936
        %v939 = vadd.f32 %v903, %v936
        %v940 = vadd.f32 %v904, %v936
        %v941 = vadd.f32 %v905, %v936
        %v942 = vadd.f32 %v906, %v936
        %v943 = vadd.f32 %v907, %v936
        %v944 = vadd.f32 %v908, %v936
        %v945 = vadd.f32 %v909, %v936
        %v946 = vadd.f32 %v910, %v936
        %v947 = vadd.f32 %v911, %v936
        %v948 = vadd.f32 %v912, %v936
        %v949 = vadd.f32 %v913, %v936
        %v950 = vadd.f32 %v914, %v936
        %v951 = vadd.f32 %v915, %v936
        %v952 = vadd.f32 %v916, %v936
        %v953 = vadd.f32 %v917, %v936
        %v954 = vadd.f32 %v918, %v936
        %v955 = vadd.f32 %v919, %v936
        %v956 = vadd.f32 %v920, %v936
        %v957 = vadd.f32 %v921, %v936
        %v958 = vadd.f32 %v922, %v936
        %v959 = vadd.f32 %v923, %v936
        %v960 = vadd.f32 %v924, %v936
        %v961 = vadd.f32 %v925, %v936
        %v962 = vadd.f32 %v926, %v936
        %v963 = vadd.f32 %v927, %v936
        %v964 = vadd.f32 %v928, %v936
        %v965 = vadd.f32 %v929, %v936
        %v966 = vadd.f32 %v930, %v936
        %v967 = vadd.f32 %v931, %v936
        %v968 = vadd.f32 %v932, %v936
        %v969 = vadd.f32 %v933, %v936
        %v970 = vmax.f32 %v938, 0.0
        %v971 = vmax.f32 %v939, 0.0
        %v972 = vmax.f32 %v940, 0.0
        %v973 = vmax.f32 %v941, 0.0
        %v974 = vmax.f32 %v942, 0.0
        %v975 = vmax.f32 %v943, 0.0
        %v976 = vmax.f32 %v944, 0.0
        %v977 = vmax.f32 %v945, 0.0
        %v978 = vmax.f32 %v946, 0.0
        %v979 = vmax.f32 %v947, 0.0
        %v980 = vmax.f32 %v948, 0.0
        %v981 = vmax.f32 %v949, 0.0
        %v982 = vmax.f32 %v950, 0.0
        %v983 = vmax.f32 %v951, 0.0
        %v984 = vmax.f32 %v952, 0.0
        %v985 = vmax.f32 %v953, 0.0
        %v986 = vmax.f32 %v954, 0.0
        %v987 = vmax.f32 %v955, 0.0
        %v988 = vmax.f32 %v956, 0.0
        %v989 = vmax.f32 %v957, 0.0
        %v990 = vmax.f32 %v958, 0.0
        %v991 = vmax.f32 %v959, 0.0
        %v992 = vmax.f32 %v960, 0.0
        %v993 = vmax.f32 %v961, 0.0
        %v994 = vmax.f32 %v962, 0.0
        %v995 = vmax.f32 %v963, 0.0
        %v996 = vmax.f32 %v964, 0.0
        %v997 = vmax.f32 %v965, 0.0
        %v998 = vmax.f32 %v966, 0.0
        %v999 = vmax.f32 %v967, 0.0
        %v1000 = vmax.f32 %v968, 0.0
        %v1001 = vmax.f32 %v969, 0.0
        %v1002 = vpack.c.bf16 %v970, %v970
        %v1003 = vpack.c.bf16 %v971, %v971
        %v1004 = vpack.c.bf16 %v972, %v972
        %v1005 = vpack.c.bf16 %v973, %v973
        %v1006 = vpack.c.bf16 %v974, %v974
        %v1007 = vpack.c.bf16 %v975, %v975
        %v1008 = vpack.c.bf16 %v976, %v976
        %v1009 = vpack.c.bf16 %v977, %v977
        %v1010 = vpack.c.bf16 %v978, %v978
        %v1011 = vpack.c.bf16 %v979, %v979
        %v1012 = vpack.c.bf16 %v980, %v980
        %v1013 = vpack.c.bf16 %v981, %v981
        %v1014 = vpack.c.bf16 %v982, %v982
        %v1015 = vpack.c.bf16 %v983, %v983
        %v1016 = vpack.c.bf16 %v984, %v984
        %v1017 = vpack.c.bf16 %v985, %v985
        %v1018 = vpack.c.bf16 %v986, %v986
        %v1019 = vpack.c.bf16 %v987, %v987
        %v1020 = vpack.c.bf16 %v988, %v988
        %v1021 = vpack.c.bf16 %v989, %v989
        %v1022 = vpack.c.bf16 %v990, %v990
        %v1023 = vpack.c.bf16 %v991, %v991
        %v1024 = vpack.c.bf16 %v992, %v992
        %v1025 = vpack.c.bf16 %v993, %v993
        %v1026 = vpack.c.bf16 %v994, %v994
        %v1027 = vpack.c.bf16 %v995, %v995
        %v1028 = vpack.c.bf16 %v996, %v996
        %v1029 = vpack.c.bf16 %v997, %v997
        %v1030 = vpack.c.bf16 %v998, %v998
        %v1031 = vpack.c.bf16 %v999, %v999
        %v1032 = vpack.c.bf16 %v1000, %v1000
        %v1033 = vpack.c.bf16 %v1001, %v1001
        %vm1034 = vcmask 257024
        %1035 = vst.msk [vmem:[%s265] sm:$0xf] %vm1034, %v1002
        %1036 = vst.msk [vmem:[%s265 + $0x4] sm:$0xf] %vm1034, %v1003
        %1037 = vst.msk [vmem:[%s265 + $0x8] sm:$0xf] %vm1034, %v1004
        %1038 = vst.msk [vmem:[%s265 + $0xc] sm:$0xf] %vm1034, %v1005
        %1039 = vst.msk [vmem:[%s265 + $0x10] sm:$0xf] %vm1034, %v1006
        %1040 = vst.msk [vmem:[%s265 + $0x14] sm:$0xf] %vm1034, %v1007
        %1041 = vst.msk [vmem:[%s265 + $0x18] sm:$0xf] %vm1034, %v1008
        %1042 = vst.msk [vmem:[%s265 + $0x1c] sm:$0xf] %vm1034, %v1009
        %1043 = vst.msk [vmem:[%s265 + $0x20] sm:$0xf] %vm1034, %v1010
        %1044 = vst.msk [vmem:[%s265 + $0x24] sm:$0xf] %vm1034, %v1011
        %1045 = vst.msk [vmem:[%s265 + $0x28] sm:$0xf] %vm1034, %v1012
        %1046 = vst.msk [vmem:[%s265 + $0x2c] sm:$0xf] %vm1034, %v1013
        %1047 = vst.msk [vmem:[%s265 + $0x30] sm:$0xf] %vm1034, %v1014
        %1048 = vst.msk [vmem:[%s265 + $0x34] sm:$0xf] %vm1034, %v1015
        %1049 = vst.msk [vmem:[%s265 + $0x38] sm:$0xf] %vm1034, %v1016
        %1050 = vst.msk [vmem:[%s265 + $0x3c] sm:$0xf] %vm1034, %v1017
        %1051 = vst.msk [vmem:[%s265 + $0x40] sm:$0xf] %vm1034, %v1018
        %1052 = vst.msk [vmem:[%s265 + $0x44] sm:$0xf] %vm1034, %v1019
        %1053 = vst.msk [vmem:[%s265 + $0x48] sm:$0xf] %vm1034, %v1020
        %1054 = vst.msk [vmem:[%s265 + $0x4c] sm:$0xf] %vm1034, %v1021
        %1055 = vst.msk [vmem:[%s265 + $0x50] sm:$0xf] %vm1034, %v1022
        %1056 = vst.msk [vmem:[%s265 + $0x54] sm:$0xf] %vm1034, %v1023
        %1057 = vst.msk [vmem:[%s265 + $0x58] sm:$0xf] %vm1034, %v1024
        %1058 = vst.msk [vmem:[%s265 + $0x5c] sm:$0xf] %vm1034, %v1025
        %1059 = vst.msk [vmem:[%s265 + $0x60] sm:$0xf] %vm1034, %v1026
        %1060 = vst.msk [vmem:[%s265 + $0x64] sm:$0xf] %vm1034, %v1027
        %1061 = vst.msk [vmem:[%s265 + $0x68] sm:$0xf] %vm1034, %v1028
        %1062 = vst.msk [vmem:[%s265 + $0x6c] sm:$0xf] %vm1034, %v1029
        %1063 = vst.msk [vmem:[%s265 + $0x70] sm:$0xf] %vm1034, %v1030
        %1064 = vst.msk [vmem:[%s265 + $0x74] sm:$0xf] %vm1034, %v1031
        %1065 = vst.msk [vmem:[%s265 + $0x78] sm:$0xf] %vm1034, %v1032
        %1066 = vst.msk [vmem:[%s265 + $0x7c] sm:$0xf] %vm1034, %v1033
      $region40: #{policy_forward.5} parent=31 // pred_fallthru
        _
      %s1067 = smul.u32 32, %s19
      %p1068 = scmp.lt.s32.totalorder %s1067, 127
      %s1069 = scalar_select %p1068, %s1067, 127
      %p1070 = scmp.lt.s32.totalorder %s20, 0
      %s1071 = scalar_select %p1070, %s20, 0
      %s1072 = sadd.s32 %s1071, %s1069
      %s1073 = smul.addr %s1072, 4
      %s1074 = scalar_lea.vmem %s3, %s1073
      // Predicated region
      $region41: #{policy_forward.5} parent=31 // pred_check
        %p1075 = pneg %p135
      $region42: #{policy_forward.5} parent=31 // pred_check_branch
        %1077 = sbr.rel (%p1075) target = $region44
      $region43: #{policy_forward.5} parent=31 // pred_region
        %s1078 = smul.u32 32, %s19
      $region44: #{policy_forward.5} parent=31 // pred_fallthru
        _
    $region32: #{policy_forward.5} parent=5 // pred_fallthru
      _
    %p1079 = scmp.le.s32.totalorder 2, %s9
    // Predicated region
    $region45: #{policy_forward.5} parent=5 // pred_check
      %p1080 = pneg %p1079
    $region46: #{policy_forward.5} parent=5 // pred_check_branch
      %1082 = sbr.rel (%p1080) target = $region48
    $region47: #{policy_forward.5} parent=5 // pred_region
      %s1083 = ssub.s32 %s9, 2
      // Predicated region
      $region49: #{policy_forward.5} parent=47 // pred_check
        %p1084 = pneg %p141
      $region50: #{policy_forward.5} parent=47 // pred_check_branch
        %1086 = sbr.rel (%p1084) target = $region52
      $region51: #{policy_forward.5} parent=47 // pred_region
        %s1087 = smul.u32 32, %s22
        %p1088 = scmp.lt.s32.totalorder %s1087, 127
        %s1089 = scalar_select %p1088, %s1087, 127
        %p1090 = scmp.lt.s32.totalorder %s23, 0
        %s1091 = scalar_select %p1090, %s23, 0
        %s1092 = sadd.s32 %s1091, %s1089
        %s1093 = smul.addr %s1092, 4
        %s1094 = scalar_lea.vmem %s3, %s1093
      $region52: #{policy_forward.5} parent=47 // pred_fallthru
        _
    $region48: #{policy_forward.5} parent=5 // pred_fallthru
      _
  $region6: #{policy_forward.5} parent=0 // loop_footer
    %s13 = sadd.s32 1, %s9
  $region7: #{policy_forward.5} parent=0 // loop_footer_branch
    %8 = sbr.rel target = $region3
  $region8: #{policy_forward.5} parent=0 // loop_exit
    _

// kernel: policy_forward.6
$region0: #{policy_forward.6}
  #allocation0 [shape = 'u32[]', space=smem, size = 0x4, offset = 0x4, fixed_abs, tag = 'smem constant byte address 0x4 - core index']
  #allocation1 [shape = 'u32[72,128]{1,0:T(1,128)}', space=vmem, size = 0x9000, scoped, tag = 'internal scratch']
  #allocation2 [shape = 'f32[168,64]{1,0:T(8,128)}', space=vmem, size = 0x15000, scoped, tag = 'scratch operand']
  %s0 = inlined_call_operand.vmem [shape: bf16[168,512], index: 0, kind: input, shape index: {}]
  %s1 = inlined_call_operand.vmem [shape: bf16[512,64], index: 1, kind: input, shape index: {}]
  %s2 = inlined_call_operand.vmem [shape: f32[1,64], index: 2, kind: input, shape index: {}]
  %s3 = inlined_call_operand.vmem [shape: bf16[168,64], index: 3, kind: output, shape index: {}]
  %s4 = sld [smem:[#allocation0]]
  $region30: #{policy_forward.6} parent=0
    _
  %s6 = ssub.s32 1, %s4
  %s7 = scalar_select 0, %s6, %s4
  // Predicated region
  $region2: #{policy_forward.6} parent=0 // pred_check
    _
  $region3: #{policy_forward.6} parent=0 // pred_check_branch
    %9 = sbr.rel (0) target = $region5
  $region4: #{policy_forward.6} parent=0 // pred_region
    _
  $region5: #{policy_forward.6} parent=0 // pred_fallthru
    _
  // Predicated region
  $region6: #{policy_forward.6} parent=0 // pred_check
    _
  $region7: #{policy_forward.6} parent=0 // pred_check_branch
    %11 = sbr.rel (0) target = $region9
  $region8: #{policy_forward.6} parent=0 // pred_region
    _
  $region9: #{policy_forward.6} parent=0 // pred_fallthru
    _
  // Predicated region
  $region10: #{policy_forward.6} parent=0 // pred_check
    _
  $region11: #{policy_forward.6} parent=0 // pred_check_branch
    %13 = sbr.rel (0) target = $region13
  $region12: #{policy_forward.6} parent=0 // pred_region
    _
  $region13: #{policy_forward.6} parent=0 // pred_fallthru
    _
  %p14 = scmp.eq.s32.totalorder 0, 0
  // Predicated region
  $region14: #{policy_forward.6} parent=0 // pred_check
    %p15 = pneg %p14
  $region15: #{policy_forward.6} parent=0 // pred_check_branch
    %17 = sbr.rel (%p15) target = $region17
  $region16: #{policy_forward.6} parent=0 // pred_region
    %vm18 = vcmask 523264
    %19 = vst.msk [vmem:[#allocation2] sm:$0xff] %vm18, 0.0
    %20 = vst.msk [vmem:[#allocation2 + $0x8] sm:$0xff] %vm18, 0.0
    %21 = vst.msk [vmem:[#allocation2 + $0x10] sm:$0xff] %vm18, 0.0
    %22 = vst.msk [vmem:[#allocation2 + $0x18] sm:$0xff] %vm18, 0.0
    %23 = vst.msk [vmem:[#allocation2 + $0x20] sm:$0xff] %vm18, 0.0
    %24 = vst.msk [vmem:[#allocation2 + $0x28] sm:$0xff] %vm18, 0.0
    %25 = vst.msk [vmem:[#allocation2 + $0x30] sm:$0xff] %vm18, 0.0
    %26 = vst.msk [vmem:[#allocation2 + $0x38] sm:$0xff] %vm18, 0.0
    %27 = vst.msk [vmem:[#allocation2 + $0x40] sm:$0xff] %vm18, 0.0
    %28 = vst.msk [vmem:[#allocation2 + $0x48] sm:$0xff] %vm18, 0.0
    %29 = vst.msk [vmem:[#allocation2 + $0x50] sm:$0xff] %vm18, 0.0
    %30 = vst.msk [vmem:[#allocation2 + $0x58] sm:$0xff] %vm18, 0.0
    %31 = vst.msk [vmem:[#allocation2 + $0x60] sm:$0xff] %vm18, 0.0
    %32 = vst.msk [vmem:[#allocation2 + $0x68] sm:$0xff] %vm18, 0.0
    %33 = vst.msk [vmem:[#allocation2 + $0x70] sm:$0xff] %vm18, 0.0
    %34 = vst.msk [vmem:[#allocation2 + $0x78] sm:$0xff] %vm18, 0.0
    %35 = vst.msk [vmem:[#allocation2 + $0x80] sm:$0xff] %vm18, 0.0
    %36 = vst.msk [vmem:[#allocation2 + $0x88] sm:$0xff] %vm18, 0.0
    %37 = vst.msk [vmem:[#allocation2 + $0x90] sm:$0xff] %vm18, 0.0
    %38 = vst.msk [vmem:[#allocation2 + $0x98] sm:$0xff] %vm18, 0.0
    %39 = vst.msk [vmem:[#allocation2 + $0xa0] sm:$0xff] %vm18, 0.0
  $region17: #{policy_forward.6} parent=0 // pred_fallthru
    _
  %v40 = vld [vmem:[#allocation2] sm:$0xff]
  %v41 = vld [vmem:[#allocation2 + $0x8] sm:$0xff]
  %v42 = vld [vmem:[#allocation2 + $0x10] sm:$0xff]
  %v43 = vld [vmem:[#allocation2 + $0x18] sm:$0xff]
  %v44 = vld [vmem:[#allocation2 + $0x20] sm:$0xff]
  %v45 = vld [vmem:[#allocation2 + $0x28] sm:$0xff]
  %v46 = vld [vmem:[#allocation2 + $0x30] sm:$0xff]
  %v47 = vld [vmem:[#allocation2 + $0x38] sm:$0xff]
  %v48 = vld [vmem:[#allocation2 + $0x40] sm:$0xff]
  %v49 = vld [vmem:[#allocation2 + $0x48] sm:$0xff]
  %v50 = vld [vmem:[#allocation2 + $0x50] sm:$0xff]
  %v51 = vld [vmem:[#allocation2 + $0x58] sm:$0xff]
  %v52 = vld [vmem:[#allocation2 + $0x60] sm:$0xff]
  %v53 = vld [vmem:[#allocation2 + $0x68] sm:$0xff]
  %v54 = vld [vmem:[#allocation2 + $0x70] sm:$0xff]
  %v55 = vld [vmem:[#allocation2 + $0x78] sm:$0xff]
  %v56 = vld [vmem:[#allocation2 + $0x80] sm:$0xff]
  %v57 = vld [vmem:[#allocation2 + $0x88] sm:$0xff]
  %v58 = vld [vmem:[#allocation2 + $0x90] sm:$0xff]
  %v59 = vld [vmem:[#allocation2 + $0x98] sm:$0xff]
  %v60 = vld [vmem:[#allocation2 + $0xa0] sm:$0xff]
  %v61 = vld [vmem:[%s0] sm:$0xff]
  %v62 = vld [vmem:[%s0 + $0x8] sm:$0xff]
  %v63 = vld [vmem:[%s0 + $0x10] sm:$0xff]
  %v64 = vld [vmem:[%s0 + $0x18] sm:$0xff]
  %v65 = vld [vmem:[%s0 + $0x20] sm:$0xff]
  %v66 = vld [vmem:[%s0 + $0x28] sm:$0xff]
  %v67 = vld [vmem:[%s0 + $0x30] sm:$0xff]
  %v68 = vld [vmem:[%s0 + $0x38] sm:$0xff]
  %v69 = vld [vmem:[%s0 + $0x40] sm:$0xff]
  %v70 = vld [vmem:[%s0 + $0x48] sm:$0xff]
  %v71 = vld [vmem:[%s0 + $0x50] sm:$0xff]
  %v72 = vld [vmem:[%s0 + $0x58] sm:$0xff]
  %v73 = vld [vmem:[%s0 + $0x60] sm:$0xff]
  %v74 = vld [vmem:[%s0 + $0x68] sm:$0xff]
  %v75 = vld [vmem:[%s0 + $0x70] sm:$0xff]
  %v76 = vld [vmem:[%s0 + $0x78] sm:$0xff]
  %v77 = vld [vmem:[%s0 + $0x80] sm:$0xff]
  %v78 = vld [vmem:[%s0 + $0x88] sm:$0xff]
  %v79 = vld [vmem:[%s0 + $0x90] sm:$0xff]
  %v80 = vld [vmem:[%s0 + $0x98] sm:$0xff]
  %v81 = vld [vmem:[%s0 + $0xa0] sm:$0xff]
  %v82 = vld [vmem:[%s0 + $0xa8] sm:$0xff]
  %v83 = vld [vmem:[%s0 + $0xb0] sm:$0xff]
  %v84 = vld [vmem:[%s0 + $0xb8] sm:$0xff]
  %v85 = vld [vmem:[%s0 + $0xc0] sm:$0xff]
  %v86 = vld [vmem:[%s0 + $0xc8] sm:$0xff]
  %v87 = vld [vmem:[%s0 + $0xd0] sm:$0xff]
  %v88 = vld [vmem:[%s0 + $0xd8] sm:$0xff]
  %v89 = vld [vmem:[%s0 + $0xe0] sm:$0xff]
  %v90 = vld [vmem:[%s0 + $0xe8] sm:$0xff]
  %v91 = vld [vmem:[%s0 + $0xf0] sm:$0xff]
  %v92 = vld [vmem:[%s0 + $0xf8] sm:$0xff]
  %v93 = vld [vmem:[%s0 + $0x100] sm:$0xff]
  %v94 = vld [vmem:[%s0 + $0x108] sm:$0xff]
  %v95 = vld [vmem:[%s0 + $0x110] sm:$0xff]
  %v96 = vld [vmem:[%s0 + $0x118] sm:$0xff]
  %v97 = vld [vmem:[%s0 + $0x120] sm:$0xff]
  %v98 = vld [vmem:[%s0 + $0x128] sm:$0xff]
  %v99 = vld [vmem:[%s0 + $0x130] sm:$0xff]
  %v100 = vld [vmem:[%s0 + $0x138] sm:$0xff]
  %v101 = vld [vmem:[%s0 + $0x140] sm:$0xff]
  %v102 = vld [vmem:[%s0 + $0x148] sm:$0xff]
  %v103 = vld [vmem:[%s1] sm:$0xf]
  %v104 = vld [vmem:[%s1 + $0x4] sm:$0xf]
  %v105 = vld [vmem:[%s1 + $0x8] sm:$0xf]
  %v106 = vld [vmem:[%s1 + $0xc] sm:$0xf]
  %v107 = vld [vmem:[%s1 + $0x10] sm:$0xf]
  %v108 = vld [vmem:[%s1 + $0x14] sm:$0xf]
  %v109 = vld [vmem:[%s1 + $0x18] sm:$0xf]
  %v110 = vld [vmem:[%s1 + $0x1c] sm:$0xf]
  %v111 = vld [vmem:[%s1 + $0x20] sm:$0xf]
  %v112 = vld [vmem:[%s1 + $0x24] sm:$0xf]
  %v113 = vld [vmem:[%s1 + $0x28] sm:$0xf]
  %v114 = vld [vmem:[%s1 + $0x2c] sm:$0xf]
  %v115 = vld [vmem:[%s1 + $0x30] sm:$0xf]
  %v116 = vld [vmem:[%s1 + $0x34] sm:$0xf]
  %v117 = vld [vmem:[%s1 + $0x38] sm:$0xf]
  %v118 = vld [vmem:[%s1 + $0x3c] sm:$0xf]
  %v119 = vld [vmem:[%s1 + $0x40] sm:$0xf]
  %v120 = vld [vmem:[%s1 + $0x44] sm:$0xf]
  %v121 = vld [vmem:[%s1 + $0x48] sm:$0xf]
  %v122 = vld [vmem:[%s1 + $0x4c] sm:$0xf]
  %v123 = vld [vmem:[%s1 + $0x50] sm:$0xf]
  %v124 = vld [vmem:[%s1 + $0x54] sm:$0xf]
  %v125 = vld [vmem:[%s1 + $0x58] sm:$0xf]
  %v126 = vld [vmem:[%s1 + $0x5c] sm:$0xf]
  %v127 = vld [vmem:[%s1 + $0x60] sm:$0xf]
  %v128 = vld [vmem:[%s1 + $0x64] sm:$0xf]
  %v129 = vld [vmem:[%s1 + $0x68] sm:$0xf]
  %v130 = vld [vmem:[%s1 + $0x6c] sm:$0xf]
  %v131 = vld [vmem:[%s1 + $0x70] sm:$0xf]
  %v132 = vld [vmem:[%s1 + $0x74] sm:$0xf]
  %v133 = vld [vmem:[%s1 + $0x78] sm:$0xf]
  %v134 = vld [vmem:[%s1 + $0x7c] sm:$0xf]
  %v135 = vld [vmem:[%s1 + $0x80] sm:$0xf]
  %v136 = vld [vmem:[%s1 + $0x84] sm:$0xf]
  %v137 = vld [vmem:[%s1 + $0x88] sm:$0xf]
  %v138 = vld [vmem:[%s1 + $0x8c] sm:$0xf]
  %v139 = vld [vmem:[%s1 + $0x90] sm:$0xf]
  %v140 = vld [vmem:[%s1 + $0x94] sm:$0xf]
  %v141 = vld [vmem:[%s1 + $0x98] sm:$0xf]
  %v142 = vld [vmem:[%s1 + $0x9c] sm:$0xf]
  %v143 = vld [vmem:[%s1 + $0xa0] sm:$0xf]
  %v144 = vld [vmem:[%s1 + $0xa4] sm:$0xf]
  %v145 = vld [vmem:[%s1 + $0xa8] sm:$0xf]
  %v146 = vld [vmem:[%s1 + $0xac] sm:$0xf]
  %v147 = vld [vmem:[%s1 + $0xb0] sm:$0xf]
  %v148 = vld [vmem:[%s1 + $0xb4] sm:$0xf]
  %v149 = vld [vmem:[%s1 + $0xb8] sm:$0xf]
  %v150 = vld [vmem:[%s1 + $0xbc] sm:$0xf]
  %v151 = vld [vmem:[%s1 + $0xc0] sm:$0xf]
  %v152 = vld [vmem:[%s1 + $0xc4] sm:$0xf]
  %v153 = vld [vmem:[%s1 + $0xc8] sm:$0xf]
  %v154 = vld [vmem:[%s1 + $0xcc] sm:$0xf]
  %v155 = vld [vmem:[%s1 + $0xd0] sm:$0xf]
  %v156 = vld [vmem:[%s1 + $0xd4] sm:$0xf]
  %v157 = vld [vmem:[%s1 + $0xd8] sm:$0xf]
  %v158 = vld [vmem:[%s1 + $0xdc] sm:$0xf]
  %v159 = vld [vmem:[%s1 + $0xe0] sm:$0xf]
  %v160 = vld [vmem:[%s1 + $0xe4] sm:$0xf]
  %v161 = vld [vmem:[%s1 + $0xe8] sm:$0xf]
  %v162 = vld [vmem:[%s1 + $0xec] sm:$0xf]
  %v163 = vld [vmem:[%s1 + $0xf0] sm:$0xf]
  %v164 = vld [vmem:[%s1 + $0xf4] sm:$0xf]
  %v165 = vld [vmem:[%s1 + $0xf8] sm:$0xf]
  %v166 = vld [vmem:[%s1 + $0xfc] sm:$0xf]
  %v209 = vunpack.c.l.b16 %v61
  %v210 = vunpack.c.h.b16 %v61
  %v211 = vunpack.c.l.b16 %v62
  %v212 = vunpack.c.h.b16 %v62
  %v213 = vunpack.c.l.b16 %v63
  %v214 = vunpack.c.h.b16 %v63
  %v215 = vunpack.c.l.b16 %v64
  %v216 = vunpack.c.h.b16 %v64
  %v217 = vunpack.c.l.b16 %v65
  %v218 = vunpack.c.h.b16 %v65
  %v219 = vunpack.c.l.b16 %v66
  %v220 = vunpack.c.h.b16 %v66
  %v221 = vunpack.c.l.b16 %v67
  %v222 = vunpack.c.h.b16 %v67
  %v223 = vunpack.c.l.b16 %v68
  %v224 = vunpack.c.h.b16 %v68
  %v225 = vunpack.c.l.b16 %v69
  %v226 = vunpack.c.h.b16 %v69
  %v227 = vunpack.c.l.b16 %v70
  %v228 = vunpack.c.h.b16 %v70
  %v229 = vunpack.c.l.b16 %v71
  %v230 = vunpack.c.h.b16 %v71
  %v231 = vunpack.c.l.b16 %v72
  %v232 = vunpack.c.h.b16 %v72
  %v233 = vunpack.c.l.b16 %v73
  %v234 = vunpack.c.h.b16 %v73
  %v235 = vunpack.c.l.b16 %v74
  %v236 = vunpack.c.h.b16 %v74
  %v237 = vunpack.c.l.b16 %v75
  %v238 = vunpack.c.h.b16 %v75
  %v239 = vunpack.c.l.b16 %v76
  %v240 = vunpack.c.h.b16 %v76
  %v241 = vunpack.c.l.b16 %v77
  %v242 = vunpack.c.h.b16 %v77
  %v243 = vunpack.c.l.b16 %v78
  %v244 = vunpack.c.h.b16 %v78
  %v245 = vunpack.c.l.b16 %v79
  %v246 = vunpack.c.h.b16 %v79
  %v247 = vunpack.c.l.b16 %v80
  %v248 = vunpack.c.h.b16 %v80
  %v249 = vunpack.c.l.b16 %v81
  %v250 = vunpack.c.h.b16 %v81
  %v251 = vunpack.c.l.b16 %v82
  %v252 = vunpack.c.h.b16 %v82
  %v253 = vunpack.c.l.b16 %v83
  %v254 = vunpack.c.h.b16 %v83
  %v255 = vunpack.c.l.b16 %v84
  %v256 = vunpack.c.h.b16 %v84
  %v257 = vunpack.c.l.b16 %v85
  %v258 = vunpack.c.h.b16 %v85
  %v259 = vunpack.c.l.b16 %v86
  %v260 = vunpack.c.h.b16 %v86
  %v261 = vunpack.c.l.b16 %v87
  %v262 = vunpack.c.h.b16 %v87
  %v263 = vunpack.c.l.b16 %v88
  %v264 = vunpack.c.h.b16 %v88
  %v265 = vunpack.c.l.b16 %v89
  %v266 = vunpack.c.h.b16 %v89
  %v267 = vunpack.c.l.b16 %v90
  %v268 = vunpack.c.h.b16 %v90
  %v269 = vunpack.c.l.b16 %v91
  %v270 = vunpack.c.h.b16 %v91
  %v271 = vunpack.c.l.b16 %v92
  %v272 = vunpack.c.h.b16 %v92
  %v273 = vunpack.c.l.b16 %v93
  %v274 = vunpack.c.h.b16 %v93
  %v275 = vunpack.c.l.b16 %v94
  %v276 = vunpack.c.h.b16 %v94
  %v277 = vunpack.c.l.b16 %v95
  %v278 = vunpack.c.h.b16 %v95
  %v279 = vunpack.c.l.b16 %v96
  %v280 = vunpack.c.h.b16 %v96
  %v281 = vunpack.c.l.b16 %v97
  %v282 = vunpack.c.h.b16 %v97
  %v283 = vunpack.c.l.b16 %v98
  %v284 = vunpack.c.h.b16 %v98
  %v285 = vunpack.c.l.b16 %v99
  %v286 = vunpack.c.h.b16 %v99
  %v287 = vunpack.c.l.b16 %v100
  %v288 = vunpack.c.h.b16 %v100
  %v289 = vunpack.c.l.b16 %v101
  %v290 = vunpack.c.h.b16 %v101
  %v291 = vunpack.c.l.b16 %v102
  %v292 = vunpack.c.h.b16 %v102
  %v293 = vpack.c.b16 %v213, %v209
  %v294 = vpack.c.b16 %v214, %v210
  %v295 = vpack.c.b16 %v215, %v211
  %v296 = vpack.c.b16 %v216, %v212
  %v297 = vpack.c.b16 %v221, %v217
  %v298 = vpack.c.b16 %v222, %v218
  %v299 = vpack.c.b16 %v223, %v219
  %v300 = vpack.c.b16 %v224, %v220
  %v301 = vpack.c.b16 %v229, %v225
  %v302 = vpack.c.b16 %v230, %v226
  %v303 = vpack.c.b16 %v231, %v227
  %v304 = vpack.c.b16 %v232, %v228
  %v305 = vpack.c.b16 %v237, %v233
  %v306 = vpack.c.b16 %v238, %v234
  %v307 = vpack.c.b16 %v239, %v235
  %v308 = vpack.c.b16 %v240, %v236
  %v309 = vpack.c.b16 %v245, %v241
  %v310 = vpack.c.b16 %v246, %v242
  %v311 = vpack.c.b16 %v247, %v243
  %v312 = vpack.c.b16 %v248, %v244
  %v313 = vpack.c.b16 %v253, %v249
  %v314 = vpack.c.b16 %v254, %v250
  %v315 = vpack.c.b16 %v255, %v251
  %v316 = vpack.c.b16 %v256, %v252
  %v317 = vpack.c.b16 %v261, %v257
  %v318 = vpack.c.b16 %v262, %v258
  %v319 = vpack.c.b16 %v263, %v259
  %v320 = vpack.c.b16 %v264, %v260
  %v321 = vpack.c.b16 %v269, %v265
  %v322 = vpack.c.b16 %v270, %v266
  %v323 = vpack.c.b16 %v271, %v267
  %v324 = vpack.c.b16 %v272, %v268
  %v325 = vpack.c.b16 %v277, %v273
  %v326 = vpack.c.b16 %v278, %v274
  %v327 = vpack.c.b16 %v279, %v275
  %v328 = vpack.c.b16 %v280, %v276
  %v329 = vpack.c.b16 %v285, %v281
  %v330 = vpack.c.b16 %v286, %v282
  %v331 = vpack.c.b16 %v287, %v283
  %v332 = vpack.c.b16 %v288, %v284
  %v333 = vpack.c.b16 %v289, %v289
  %v334 = vpack.c.b16 %v290, %v290
  %v335 = vpack.c.b16 %v291, %v291
  %v336 = vpack.c.b16 %v292, %v292
  %v445 = vunpack.c.l.b16 %v103
  %v446 = vunpack.c.l.b16 %v104
  %v447 = vunpack.c.l.b16 %v105
  %v448 = vunpack.c.l.b16 %v106
  %v449 = vunpack.c.l.b16 %v107
  %v450 = vunpack.c.l.b16 %v108
  %v451 = vunpack.c.l.b16 %v109
  %v452 = vunpack.c.l.b16 %v110
  %v453 = vunpack.c.l.b16 %v111
  %v454 = vunpack.c.l.b16 %v112
  %v455 = vunpack.c.l.b16 %v113
  %v456 = vunpack.c.l.b16 %v114
  %v457 = vunpack.c.l.b16 %v115
  %v458 = vunpack.c.l.b16 %v116
  %v459 = vunpack.c.l.b16 %v117
  %v460 = vunpack.c.l.b16 %v118
  %v461 = vunpack.c.l.b16 %v119
  %v462 = vunpack.c.l.b16 %v120
  %v463 = vunpack.c.l.b16 %v121
  %v464 = vunpack.c.l.b16 %v122
  %v465 = vunpack.c.l.b16 %v123
  %v466 = vunpack.c.l.b16 %v124
  %v467 = vunpack.c.l.b16 %v125
  %v468 = vunpack.c.l.b16 %v126
  %v469 = vunpack.c.l.b16 %v127
  %v470 = vunpack.c.l.b16 %v128
  %v471 = vunpack.c.l.b16 %v129
  %v472 = vunpack.c.l.b16 %v130
  %v473 = vunpack.c.l.b16 %v131
  %v474 = vunpack.c.l.b16 %v132
  %v475 = vunpack.c.l.b16 %v133
  %v476 = vunpack.c.l.b16 %v134
  %v477 = vunpack.c.l.b16 %v135
  %v478 = vunpack.c.l.b16 %v136
  %v479 = vunpack.c.l.b16 %v137
  %v480 = vunpack.c.l.b16 %v138
  %v481 = vunpack.c.l.b16 %v139
  %v482 = vunpack.c.l.b16 %v140
  %v483 = vunpack.c.l.b16 %v141
  %v484 = vunpack.c.l.b16 %v142
  %v485 = vunpack.c.l.b16 %v143
  %v486 = vunpack.c.l.b16 %v144
  %v487 = vunpack.c.l.b16 %v145
  %v488 = vunpack.c.l.b16 %v146
  %v489 = vunpack.c.l.b16 %v147
  %v490 = vunpack.c.l.b16 %v148
  %v491 = vunpack.c.l.b16 %v149
  %v492 = vunpack.c.l.b16 %v150
  %v493 = vunpack.c.l.b16 %v151
  %v494 = vunpack.c.l.b16 %v152
  %v495 = vunpack.c.l.b16 %v153
  %v496 = vunpack.c.l.b16 %v154
  %v497 = vunpack.c.l.b16 %v155
  %v498 = vunpack.c.l.b16 %v156
  %v499 = vunpack.c.l.b16 %v157
  %v500 = vunpack.c.l.b16 %v158
  %v501 = vunpack.c.l.b16 %v159
  %v502 = vunpack.c.l.b16 %v160
  %v503 = vunpack.c.l.b16 %v161
  %v504 = vunpack.c.l.b16 %v162
  %v505 = vunpack.c.l.b16 %v163
  %v506 = vunpack.c.l.b16 %v164
  %v507 = vunpack.c.l.b16 %v165
  %v508 = vunpack.c.l.b16 %v166
  %v509 = vpack.c.b16 %v446, %v445
  %v510 = vpack.c.b16 %v448, %v447
  %v511 = vpack.c.b16 %v450, %v449
  %v512 = vpack.c.b16 %v452, %v451
  %v513 = vpack.c.b16 %v454, %v453
  %v514 = vpack.c.b16 %v456, %v455
  %v515 = vpack.c.b16 %v458, %v457
  %v516 = vpack.c.b16 %v460, %v459
  %v517 = vpack.c.b16 %v462, %v461
  %v518 = vpack.c.b16 %v464, %v463
  %v519 = vpack.c.b16 %v466, %v465
  %v520 = vpack.c.b16 %v468, %v467
  %v521 = vpack.c.b16 %v470, %v469
  %v522 = vpack.c.b16 %v472, %v471
  %v523 = vpack.c.b16 %v474, %v473
  %v524 = vpack.c.b16 %v476, %v475
  %v525 = vpack.c.b16 %v478, %v477
  %v526 = vpack.c.b16 %v480, %v479
  %v527 = vpack.c.b16 %v482, %v481
  %v528 = vpack.c.b16 %v484, %v483
  %v529 = vpack.c.b16 %v486, %v485
  %v530 = vpack.c.b16 %v488, %v487
  %v531 = vpack.c.b16 %v490, %v489
  %v532 = vpack.c.b16 %v492, %v491
  %v533 = vpack.c.b16 %v494, %v493
  %v534 = vpack.c.b16 %v496, %v495
  %v535 = vpack.c.b16 %v498, %v497
  %v536 = vpack.c.b16 %v500, %v499
  %v537 = vpack.c.b16 %v502, %v501
  %v538 = vpack.c.b16 %v504, %v503
  %v539 = vpack.c.b16 %v506, %v505
  %v540 = vpack.c.b16 %v508, %v507
  %573 = vmatpush.bf16.msra.mxu0 %v516
  %574 = vmatpush.bf16.msra.mxu0 %v515
  %575 = vmatpush.bf16.msra.mxu0 %v514
  %576 = vmatpush.bf16.msra.mxu0 %v513
  %577 = vmatpush.bf16.msra.mxu0 %v512
  %578 = vmatpush.bf16.msra.mxu0 %v511
  %579 = vmatpush.bf16.msra.mxu0 %v510
  %580 = vmatpush.bf16.msra.mxu0 %v509
  %581 = vmatmul.bf16.gmra.mxu0 %v293
  %v582 = vpop.f32.mrf.mxu0
  %v583 = vadd.f32 0.0, %v582
  %v584 = vpop.f32.mrf.mxu0
  %v585 = vadd.f32 0.0, %v584
  %586 = vmatmul.bf16.gmra.mxu0 %v297
  %v587 = vpop.f32.mrf.mxu0
  %v588 = vadd.f32 0.0, %v587
  %v589 = vpop.f32.mrf.mxu0
  %v590 = vadd.f32 0.0, %v589
  %591 = vmatmul.bf16.gmra.mxu0 %v301
  %v592 = vpop.f32.mrf.mxu0
  %v593 = vadd.f32 0.0, %v592
  %v594 = vpop.f32.mrf.mxu0
  %v595 = vadd.f32 0.0, %v594
  %596 = vmatmul.bf16.gmra.mxu0 %v305
  %v597 = vpop.f32.mrf.mxu0
  %v598 = vadd.f32 0.0, %v597
  %v599 = vpop.f32.mrf.mxu0
  %v600 = vadd.f32 0.0, %v599
  %601 = vmatmul.bf16.gmra.mxu0 %v309
  %v602 = vpop.f32.mrf.mxu0
  %v603 = vadd.f32 0.0, %v602
  %v604 = vpop.f32.mrf.mxu0
  %v605 = vadd.f32 0.0, %v604
  %606 = vmatmul.bf16.gmra.mxu0 %v313
  %v607 = vpop.f32.mrf.mxu0
  %v608 = vadd.f32 0.0, %v607
  %v609 = vpop.f32.mrf.mxu0
  %v610 = vadd.f32 0.0, %v609
  %611 = vmatmul.bf16.gmra.mxu0 %v317
  %v612 = vpop.f32.mrf.mxu0
  %v613 = vadd.f32 0.0, %v612
  %v614 = vpop.f32.mrf.mxu0
  %v615 = vadd.f32 0.0, %v614
  %616 = vmatmul.bf16.gmra.mxu0 %v321
  %v617 = vpop.f32.mrf.mxu0
  %v618 = vadd.f32 0.0, %v617
  %v619 = vpop.f32.mrf.mxu0
  %v620 = vadd.f32 0.0, %v619
  %621 = vmatmul.bf16.gmra.mxu0 %v325
  %v622 = vpop.f32.mrf.mxu0
  %v623 = vadd.f32 0.0, %v622
  %v624 = vpop.f32.mrf.mxu0
  %v625 = vadd.f32 0.0, %v624
  %626 = vmatmul.bf16.gmra.mxu0 %v329
  %v627 = vpop.f32.mrf.mxu0
  %v628 = vadd.f32 0.0, %v627
  %v629 = vpop.f32.mrf.mxu0
  %v630 = vadd.f32 0.0, %v629
  %631 = vmatmul.bf16.gmra.mxu0 %v333
  %v632 = vpop.f32.mrf.mxu0
  %v633 = vadd.f32 0.0, %v632
  %v634 = vpop.f32.mrf.mxu0
  %635 = vdwg.mxu0
  %636 = vmatpush.bf16.msra.mxu0 %v524
  %637 = vmatpush.bf16.msra.mxu0 %v523
  %638 = vmatpush.bf16.msra.mxu0 %v522
  %639 = vmatpush.bf16.msra.mxu0 %v521
  %640 = vmatpush.bf16.msra.mxu0 %v520
  %641 = vmatpush.bf16.msra.mxu0 %v519
  %642 = vmatpush.bf16.msra.mxu0 %v518
  %643 = vmatpush.bf16.msra.mxu0 %v517
  %644 = vmatmul.bf16.gmra.mxu0 %v294
  %v645 = vpop.f32.mrf.mxu0
  %v646 = vadd.f32 %v583, %v645
  %v647 = vpop.f32.mrf.mxu0
  %v648 = vadd.f32 %v585, %v647
  %649 = vmatmul.bf16.gmra.mxu0 %v298
  %v650 = vpop.f32.mrf.mxu0
  %v651 = vadd.f32 %v588, %v650
  %v652 = vpop.f32.mrf.mxu0
  %v653 = vadd.f32 %v590, %v652
  %654 = vmatmul.bf16.gmra.mxu0 %v302
  %v655 = vpop.f32.mrf.mxu0
  %v656 = vadd.f32 %v593, %v655
  %v657 = vpop.f32.mrf.mxu0
  %v658 = vadd.f32 %v595, %v657
  %659 = vmatmul.bf16.gmra.mxu0 %v306
  %v660 = vpop.f32.mrf.mxu0
  %v661 = vadd.f32 %v598, %v660
  %v662 = vpop.f32.mrf.mxu0
  %v663 = vadd.f32 %v600, %v662
  %664 = vmatmul.bf16.gmra.mxu0 %v310
  %v665 = vpop.f32.mrf.mxu0
  %v666 = vadd.f32 %v603, %v665
  %v667 = vpop.f32.mrf.mxu0
  %v668 = vadd.f32 %v605, %v667
  %669 = vmatmul.bf16.gmra.mxu0 %v314
  %v670 = vpop.f32.mrf.mxu0
  %v671 = vadd.f32 %v608, %v670
  %v672 = vpop.f32.mrf.mxu0
  %v673 = vadd.f32 %v610, %v672
  %674 = vmatmul.bf16.gmra.mxu0 %v318
  %v675 = vpop.f32.mrf.mxu0
  %v676 = vadd.f32 %v613, %v675
  %v677 = vpop.f32.mrf.mxu0
  %v678 = vadd.f32 %v615, %v677
  %679 = vmatmul.bf16.gmra.mxu0 %v322
  %v680 = vpop.f32.mrf.mxu0
  %v681 = vadd.f32 %v618, %v680
  %v682 = vpop.f32.mrf.mxu0
  %v683 = vadd.f32 %v620, %v682
  %684 = vmatmul.bf16.gmra.mxu0 %v326
  %v685 = vpop.f32.mrf.mxu0
  %v686 = vadd.f32 %v623, %v685
  %v687 = vpop.f32.mrf.mxu0
  %v688 = vadd.f32 %v625, %v687
  %689 = vmatmul.bf16.gmra.mxu0 %v330
  %v690 = vpop.f32.mrf.mxu0
  %v691 = vadd.f32 %v628, %v690
  %v692 = vpop.f32.mrf.mxu0
  %v693 = vadd.f32 %v630, %v692
  %694 = vmatmul.bf16.gmra.mxu0 %v334
  %v695 = vpop.f32.mrf.mxu0
  %v696 = vadd.f32 %v633, %v695
  %v697 = vpop.f32.mrf.mxu0
  %698 = vdwg.mxu0
  %699 = vmatpush.bf16.msra.mxu0 %v532
  %700 = vmatpush.bf16.msra.mxu0 %v531
  %701 = vmatpush.bf16.msra.mxu0 %v530
  %702 = vmatpush.bf16.msra.mxu0 %v529
  %703 = vmatpush.bf16.msra.mxu0 %v528
  %704 = vmatpush.bf16.msra.mxu0 %v527
  %705 = vmatpush.bf16.msra.mxu0 %v526
  %706 = vmatpush.bf16.msra.mxu0 %v525
  %707 = vmatmul.bf16.gmra.mxu0 %v295
  %v708 = vpop.f32.mrf.mxu0
  %v709 = vadd.f32 %v646, %v708
  %v710 = vpop.f32.mrf.mxu0
  %v711 = vadd.f32 %v648, %v710
  %712 = vmatmul.bf16.gmra.mxu0 %v299
  %v713 = vpop.f32.mrf.mxu0
  %v714 = vadd.f32 %v651, %v713
  %v715 = vpop.f32.mrf.mxu0
  %v716 = vadd.f32 %v653, %v715
  %717 = vmatmul.bf16.gmra.mxu0 %v303
  %v718 = vpop.f32.mrf.mxu0
  %v719 = vadd.f32 %v656, %v718
  %v720 = vpop.f32.mrf.mxu0
  %v721 = vadd.f32 %v658, %v720
  %722 = vmatmul.bf16.gmra.mxu0 %v307
  %v723 = vpop.f32.mrf.mxu0
  %v724 = vadd.f32 %v661, %v723
  %v725 = vpop.f32.mrf.mxu0
  %v726 = vadd.f32 %v663, %v725
  %727 = vmatmul.bf16.gmra.mxu0 %v311
  %v728 = vpop.f32.mrf.mxu0
  %v729 = vadd.f32 %v666, %v728
  %v730 = vpop.f32.mrf.mxu0
  %v731 = vadd.f32 %v668, %v730
  %732 = vmatmul.bf16.gmra.mxu0 %v315
  %v733 = vpop.f32.mrf.mxu0
  %v734 = vadd.f32 %v671, %v733
  %v735 = vpop.f32.mrf.mxu0
  %v736 = vadd.f32 %v673, %v735
  %737 = vmatmul.bf16.gmra.mxu0 %v319
  %v738 = vpop.f32.mrf.mxu0
  %v739 = vadd.f32 %v676, %v738
  %v740 = vpop.f32.mrf.mxu0
  %v741 = vadd.f32 %v678, %v740
  %742 = vmatmul.bf16.gmra.mxu0 %v323
  %v743 = vpop.f32.mrf.mxu0
  %v744 = vadd.f32 %v681, %v743
  %v745 = vpop.f32.mrf.mxu0
  %v746 = vadd.f32 %v683, %v745
  %747 = vmatmul.bf16.gmra.mxu0 %v327
  %v748 = vpop.f32.mrf.mxu0
  %v749 = vadd.f32 %v686, %v748
  %v750 = vpop.f32.mrf.mxu0
  %v751 = vadd.f32 %v688, %v750
  %752 = vmatmul.bf16.gmra.mxu0 %v331
  %v753 = vpop.f32.mrf.mxu0
  %v754 = vadd.f32 %v691, %v753
  %v755 = vpop.f32.mrf.mxu0
  %v756 = vadd.f32 %v693, %v755
  %757 = vmatmul.bf16.gmra.mxu0 %v335
  %v758 = vpop.f32.mrf.mxu0
  %v759 = vadd.f32 %v696, %v758
  %v760 = vpop.f32.mrf.mxu0
  %761 = vdwg.mxu0
  %762 = vmatpush.bf16.msra.mxu0 %v540
  %763 = vmatpush.bf16.msra.mxu0 %v539
  %764 = vmatpush.bf16.msra.mxu0 %v538
  %765 = vmatpush.bf16.msra.mxu0 %v537
  %766 = vmatpush.bf16.msra.mxu0 %v536
  %767 = vmatpush.bf16.msra.mxu0 %v535
  %768 = vmatpush.bf16.msra.mxu0 %v534
  %769 = vmatpush.bf16.msra.mxu0 %v533
  %770 = vmatmul.bf16.gmra.mxu0 %v296
  %v771 = vpop.f32.mrf.mxu0
  %v772 = vadd.f32 %v709, %v771
  %v773 = vpop.f32.mrf.mxu0
  %v774 = vadd.f32 %v711, %v773
  %775 = vmatmul.bf16.gmra.mxu0 %v300
  %v776 = vpop.f32.mrf.mxu0
  %v777 = vadd.f32 %v714, %v776
  %v778 = vpop.f32.mrf.mxu0
  %v779 = vadd.f32 %v716, %v778
  %780 = vmatmul.bf16.gmra.mxu0 %v304
  %v781 = vpop.f32.mrf.mxu0
  %v782 = vadd.f32 %v719, %v781
  %v783 = vpop.f32.mrf.mxu0
  %v784 = vadd.f32 %v721, %v783
  %785 = vmatmul.bf16.gmra.mxu0 %v308
  %v786 = vpop.f32.mrf.mxu0
  %v787 = vadd.f32 %v724, %v786
  %v788 = vpop.f32.mrf.mxu0
  %v789 = vadd.f32 %v726, %v788
  %790 = vmatmul.bf16.gmra.mxu0 %v312
  %v791 = vpop.f32.mrf.mxu0
  %v792 = vadd.f32 %v729, %v791
  %v793 = vpop.f32.mrf.mxu0
  %v794 = vadd.f32 %v731, %v793
  %795 = vmatmul.bf16.gmra.mxu0 %v316
  %v796 = vpop.f32.mrf.mxu0
  %v797 = vadd.f32 %v734, %v796
  %v798 = vpop.f32.mrf.mxu0
  %v799 = vadd.f32 %v736, %v798
  %800 = vmatmul.bf16.gmra.mxu0 %v320
  %v801 = vpop.f32.mrf.mxu0
  %v802 = vadd.f32 %v739, %v801
  %v803 = vpop.f32.mrf.mxu0
  %v804 = vadd.f32 %v741, %v803
  %805 = vmatmul.bf16.gmra.mxu0 %v324
  %v806 = vpop.f32.mrf.mxu0
  %v807 = vadd.f32 %v744, %v806
  %v808 = vpop.f32.mrf.mxu0
  %v809 = vadd.f32 %v746, %v808
  %810 = vmatmul.bf16.gmra.mxu0 %v328
  %v811 = vpop.f32.mrf.mxu0
  %v812 = vadd.f32 %v749, %v811
  %v813 = vpop.f32.mrf.mxu0
  %v814 = vadd.f32 %v751, %v813
  %815 = vmatmul.bf16.gmra.mxu0 %v332
  %v816 = vpop.f32.mrf.mxu0
  %v817 = vadd.f32 %v754, %v816
  %v818 = vpop.f32.mrf.mxu0
  %v819 = vadd.f32 %v756, %v818
  %820 = vmatmul.bf16.gmra.mxu0 %v336
  %v821 = vpop.f32.mrf.mxu0
  %v822 = vadd.f32 %v759, %v821
  %v823 = vpop.f32.mrf.mxu0
  %824 = vdwg.mxu0
  %v825 = vadd.f32 %v40, %v772
  %v826 = vadd.f32 %v41, %v774
  %v827 = vadd.f32 %v42, %v777
  %v828 = vadd.f32 %v43, %v779
  %v829 = vadd.f32 %v44, %v782
  %v830 = vadd.f32 %v45, %v784
  %v831 = vadd.f32 %v46, %v787
  %v832 = vadd.f32 %v47, %v789
  %v833 = vadd.f32 %v48, %v792
  %v834 = vadd.f32 %v49, %v794
  %v835 = vadd.f32 %v50, %v797
  %v836 = vadd.f32 %v51, %v799
  %v837 = vadd.f32 %v52, %v802
  %v838 = vadd.f32 %v53, %v804
  %v839 = vadd.f32 %v54, %v807
  %v840 = vadd.f32 %v55, %v809
  %v841 = vadd.f32 %v56, %v812
  %v842 = vadd.f32 %v57, %v814
  %v843 = vadd.f32 %v58, %v817
  %v844 = vadd.f32 %v59, %v819
  %v845 = vadd.f32 %v60, %v822
  %vm846 = vcmask 523264
  %847 = vst.msk [vmem:[#allocation2] sm:$0xff] %vm846, %v825
  %848 = vst.msk [vmem:[#allocation2 + $0x8] sm:$0xff] %vm846, %v826
  %849 = vst.msk [vmem:[#allocation2 + $0x10] sm:$0xff] %vm846, %v827
  %850 = vst.msk [vmem:[#allocation2 + $0x18] sm:$0xff] %vm846, %v828
  %851 = vst.msk [vmem:[#allocation2 + $0x20] sm:$0xff] %vm846, %v829
  %852 = vst.msk [vmem:[#allocation2 + $0x28] sm:$0xff] %vm846, %v830
  %853 = vst.msk [vmem:[#allocation2 + $0x30] sm:$0xff] %vm846, %v831
  %854 = vst.msk [vmem:[#allocation2 + $0x38] sm:$0xff] %vm846, %v832
  %855 = vst.msk [vmem:[#allocation2 + $0x40] sm:$0xff] %vm846, %v833
  %856 = vst.msk [vmem:[#allocation2 + $0x48] sm:$0xff] %vm846, %v834
  %857 = vst.msk [vmem:[#allocation2 + $0x50] sm:$0xff] %vm846, %v835
  %858 = vst.msk [vmem:[#allocation2 + $0x58] sm:$0xff] %vm846, %v836
  %859 = vst.msk [vmem:[#allocation2 + $0x60] sm:$0xff] %vm846, %v837
  %860 = vst.msk [vmem:[#allocation2 + $0x68] sm:$0xff] %vm846, %v838
  %861 = vst.msk [vmem:[#allocation2 + $0x70] sm:$0xff] %vm846, %v839
  %862 = vst.msk [vmem:[#allocation2 + $0x78] sm:$0xff] %vm846, %v840
  %863 = vst.msk [vmem:[#allocation2 + $0x80] sm:$0xff] %vm846, %v841
  %864 = vst.msk [vmem:[#allocation2 + $0x88] sm:$0xff] %vm846, %v842
  %865 = vst.msk [vmem:[#allocation2 + $0x90] sm:$0xff] %vm846, %v843
  %866 = vst.msk [vmem:[#allocation2 + $0x98] sm:$0xff] %vm846, %v844
  %867 = vst.msk [vmem:[#allocation2 + $0xa0] sm:$0xff] %vm846, %v845
  // Predicated region
  $region18: #{policy_forward.6} parent=0 // pred_check
    %p868 = pneg %p14
  $region19: #{policy_forward.6} parent=0 // pred_check_branch
    %870 = sbr.rel (%p868) target = $region21
  $region20: #{policy_forward.6} parent=0 // pred_region
    %v871 = vld [vmem:[#allocation2] sm:$0xff]
    %v872 = vld [vmem:[#allocation2 + $0x8] sm:$0xff]
    %v873 = vld [vmem:[#allocation2 + $0x10] sm:$0xff]
    %v874 = vld [vmem:[#allocation2 + $0x18] sm:$0xff]
    %v875 = vld [vmem:[#allocation2 + $0x20] sm:$0xff]
    %v876 = vld [vmem:[#allocation2 + $0x28] sm:$0xff]
    %v877 = vld [vmem:[#allocation2 + $0x30] sm:$0xff]
    %v878 = vld [vmem:[#allocation2 + $0x38] sm:$0xff]
    %v879 = vld [vmem:[#allocation2 + $0x40] sm:$0xff]
    %v880 = vld [vmem:[#allocation2 + $0x48] sm:$0xff]
    %v881 = vld [vmem:[#allocation2 + $0x50] sm:$0xff]
    %v882 = vld [vmem:[#allocation2 + $0x58] sm:$0xff]
    %v883 = vld [vmem:[#allocation2 + $0x60] sm:$0xff]
    %v884 = vld [vmem:[#allocation2 + $0x68] sm:$0xff]
    %v885 = vld [vmem:[#allocation2 + $0x70] sm:$0xff]
    %v886 = vld [vmem:[#allocation2 + $0x78] sm:$0xff]
    %v887 = vld [vmem:[#allocation2 + $0x80] sm:$0xff]
    %v888 = vld [vmem:[#allocation2 + $0x88] sm:$0xff]
    %v889 = vld [vmem:[#allocation2 + $0x90] sm:$0xff]
    %v890 = vld [vmem:[#allocation2 + $0x98] sm:$0xff]
    %v891 = vld [vmem:[#allocation2 + $0xa0] sm:$0xff]
    %v892 = vld [vmem:[%s2] sm:$0x1]
    %v894 = vperm.slane %v892, 0
    %v896 = vadd.f32 %v871, %v894
    %v897 = vadd.f32 %v872, %v894
    %v898 = vadd.f32 %v873, %v894
    %v899 = vadd.f32 %v874, %v894
    %v900 = vadd.f32 %v875, %v894
    %v901 = vadd.f32 %v876, %v894
    %v902 = vadd.f32 %v877, %v894
    %v903 = vadd.f32 %v878, %v894
    %v904 = vadd.f32 %v879, %v894
    %v905 = vadd.f32 %v880, %v894
    %v906 = vadd.f32 %v881, %v894
    %v907 = vadd.f32 %v882, %v894
    %v908 = vadd.f32 %v883, %v894
    %v909 = vadd.f32 %v884, %v894
    %v910 = vadd.f32 %v885, %v894
    %v911 = vadd.f32 %v886, %v894
    %v912 = vadd.f32 %v887, %v894
    %v913 = vadd.f32 %v888, %v894
    %v914 = vadd.f32 %v889, %v894
    %v915 = vadd.f32 %v890, %v894
    %v916 = vadd.f32 %v891, %v894
    %v917 = vmax.f32 %v896, 0.0
    %v918 = vmax.f32 %v897, 0.0
    %v919 = vmax.f32 %v898, 0.0
    %v920 = vmax.f32 %v899, 0.0
    %v921 = vmax.f32 %v900, 0.0
    %v922 = vmax.f32 %v901, 0.0
    %v923 = vmax.f32 %v902, 0.0
    %v924 = vmax.f32 %v903, 0.0
    %v925 = vmax.f32 %v904, 0.0
    %v926 = vmax.f32 %v905, 0.0
    %v927 = vmax.f32 %v906, 0.0
    %v928 = vmax.f32 %v907, 0.0
    %v929 = vmax.f32 %v908, 0.0
    %v930 = vmax.f32 %v909, 0.0
    %v931 = vmax.f32 %v910, 0.0
    %v932 = vmax.f32 %v911, 0.0
    %v933 = vmax.f32 %v912, 0.0
    %v934 = vmax.f32 %v913, 0.0
    %v935 = vmax.f32 %v914, 0.0
    %v936 = vmax.f32 %v915, 0.0
    %v937 = vmax.f32 %v916, 0.0
    %v938 = vpack.c.bf16 %v917, %v917
    %v939 = vpack.c.bf16 %v918, %v918
    %v940 = vpack.c.bf16 %v919, %v919
    %v941 = vpack.c.bf16 %v920, %v920
    %v942 = vpack.c.bf16 %v921, %v921
    %v943 = vpack.c.bf16 %v922, %v922
    %v944 = vpack.c.bf16 %v923, %v923
    %v945 = vpack.c.bf16 %v924, %v924
    %v946 = vpack.c.bf16 %v925, %v925
    %v947 = vpack.c.bf16 %v926, %v926
    %v948 = vpack.c.bf16 %v927, %v927
    %v949 = vpack.c.bf16 %v928, %v928
    %v950 = vpack.c.bf16 %v929, %v929
    %v951 = vpack.c.bf16 %v930, %v930
    %v952 = vpack.c.bf16 %v931, %v931
    %v953 = vpack.c.bf16 %v932, %v932
    %v954 = vpack.c.bf16 %v933, %v933
    %v955 = vpack.c.bf16 %v934, %v934
    %v956 = vpack.c.bf16 %v935, %v935
    %v957 = vpack.c.bf16 %v936, %v936
    %v958 = vpack.c.bf16 %v937, %v937
    %vm959 = vcmask 519168
    %960 = vst.msk [vmem:[%s3] sm:$0xf] %vm959, %v938
    %961 = vst.msk [vmem:[%s3 + $0x4] sm:$0xf] %vm959, %v939
    %962 = vst.msk [vmem:[%s3 + $0x8] sm:$0xf] %vm959, %v940
    %963 = vst.msk [vmem:[%s3 + $0xc] sm:$0xf] %vm959, %v941
    %964 = vst.msk [vmem:[%s3 + $0x10] sm:$0xf] %vm959, %v942
    %965 = vst.msk [vmem:[%s3 + $0x14] sm:$0xf] %vm959, %v943
    %966 = vst.msk [vmem:[%s3 + $0x18] sm:$0xf] %vm959, %v944
    %967 = vst.msk [vmem:[%s3 + $0x1c] sm:$0xf] %vm959, %v945
    %968 = vst.msk [vmem:[%s3 + $0x20] sm:$0xf] %vm959, %v946
    %969 = vst.msk [vmem:[%s3 + $0x24] sm:$0xf] %vm959, %v947
    %970 = vst.msk [vmem:[%s3 + $0x28] sm:$0xf] %vm959, %v948
    %971 = vst.msk [vmem:[%s3 + $0x2c] sm:$0xf] %vm959, %v949
    %972 = vst.msk [vmem:[%s3 + $0x30] sm:$0xf] %vm959, %v950
    %973 = vst.msk [vmem:[%s3 + $0x34] sm:$0xf] %vm959, %v951
    %974 = vst.msk [vmem:[%s3 + $0x38] sm:$0xf] %vm959, %v952
    %975 = vst.msk [vmem:[%s3 + $0x3c] sm:$0xf] %vm959, %v953
    %976 = vst.msk [vmem:[%s3 + $0x40] sm:$0xf] %vm959, %v954
    %977 = vst.msk [vmem:[%s3 + $0x44] sm:$0xf] %vm959, %v955
    %978 = vst.msk [vmem:[%s3 + $0x48] sm:$0xf] %vm959, %v956
    %979 = vst.msk [vmem:[%s3 + $0x4c] sm:$0xf] %vm959, %v957
    %980 = vst.msk [vmem:[%s3 + $0x50] sm:$0xf] %vm959, %v958
  $region21: #{policy_forward.6} parent=0 // pred_fallthru
    _
  // Predicated region
  $region22: #{policy_forward.6} parent=0 // pred_check
    _
  $region23: #{policy_forward.6} parent=0 // pred_check_branch
    %982 = sbr.rel (0) target = $region25
  $region24: #{policy_forward.6} parent=0 // pred_region
    _
  $region25: #{policy_forward.6} parent=0 // pred_fallthru
    _
  // Predicated region
  $region26: #{policy_forward.6} parent=0 // pred_check
    _
  $region27: #{policy_forward.6} parent=0 // pred_check_branch
    %984 = sbr.rel (0) target = $region29
  $region28: #{policy_forward.6} parent=0 // pred_region
    _
  $region29: #{policy_forward.6} parent=0 // pred_fallthru
    _

// kernel: policy_forward.7
$region0: #{policy_forward.7}
  #allocation0 [shape = 'u32[]', space=smem, size = 0x4, offset = 0x4, fixed_abs, tag = 'smem constant byte address 0x4 - core index']
  #allocation1 [shape = 'u32[72,128]{1,0:T(1,128)}', space=vmem, size = 0x9000, scoped, tag = 'internal scratch']
  #allocation2 [shape = 'f32[104,64]{1,0:T(8,128)}', space=vmem, size = 0xd000, scoped, tag = 'scratch operand']
  %s0 = inlined_call_operand.vmem [shape: bf16[104,576], index: 0, kind: input, shape index: {}]
  %s1 = inlined_call_operand.vmem [shape: bf16[576,64], index: 1, kind: input, shape index: {}]
  %s2 = inlined_call_operand.vmem [shape: f32[1,64], index: 2, kind: input, shape index: {}]
  %s3 = inlined_call_operand.vmem [shape: bf16[104,64], index: 3, kind: output, shape index: {}]
  %s4 = sld [smem:[#allocation0]]
  $region30: #{policy_forward.7} parent=0
    _
  %s6 = ssub.s32 1, %s4
  %s7 = scalar_select 0, %s6, %s4
  // Predicated region
  $region2: #{policy_forward.7} parent=0 // pred_check
    _
  $region3: #{policy_forward.7} parent=0 // pred_check_branch
    %9 = sbr.rel (0) target = $region5
  $region4: #{policy_forward.7} parent=0 // pred_region
    _
  $region5: #{policy_forward.7} parent=0 // pred_fallthru
    _
  // Predicated region
  $region6: #{policy_forward.7} parent=0 // pred_check
    _
  $region7: #{policy_forward.7} parent=0 // pred_check_branch
    %11 = sbr.rel (0) target = $region9
  $region8: #{policy_forward.7} parent=0 // pred_region
    _
  $region9: #{policy_forward.7} parent=0 // pred_fallthru
    _
  // Predicated region
  $region10: #{policy_forward.7} parent=0 // pred_check
    _
  $region11: #{policy_forward.7} parent=0 // pred_check_branch
    %13 = sbr.rel (0) target = $region13
  $region12: #{policy_forward.7} parent=0 // pred_region
    _
  $region13: #{policy_forward.7} parent=0 // pred_fallthru
    _
  %p15 = scmp.eq.s32.totalorder 0, 0
  // Predicated region
  $region14: #{policy_forward.7} parent=0 // pred_check
    %p16 = pneg %p15
  $region15: #{policy_forward.7} parent=0 // pred_check_branch
    %18 = sbr.rel (%p16) target = $region17
  $region16: #{policy_forward.7} parent=0 // pred_region
    %vm19 = vcmask 523264
    %20 = vst.msk [vmem:[#allocation2] sm:$0xff] %vm19, 0.0
    %21 = vst.msk [vmem:[#allocation2 + $0x8] sm:$0xff] %vm19, 0.0
    %22 = vst.msk [vmem:[#allocation2 + $0x10] sm:$0xff] %vm19, 0.0
    %23 = vst.msk [vmem:[#allocation2 + $0x18] sm:$0xff] %vm19, 0.0
    %24 = vst.msk [vmem:[#allocation2 + $0x20] sm:$0xff] %vm19, 0.0
    %25 = vst.msk [vmem:[#allocation2 + $0x28] sm:$0xff] %vm19, 0.0
    %26 = vst.msk [vmem:[#allocation2 + $0x30] sm:$0xff] %vm19, 0.0
    %27 = vst.msk [vmem:[#allocation2 + $0x38] sm:$0xff] %vm19, 0.0
    %28 = vst.msk [vmem:[#allocation2 + $0x40] sm:$0xff] %vm19, 0.0
    %29 = vst.msk [vmem:[#allocation2 + $0x48] sm:$0xff] %vm19, 0.0
    %30 = vst.msk [vmem:[#allocation2 + $0x50] sm:$0xff] %vm19, 0.0
    %31 = vst.msk [vmem:[#allocation2 + $0x58] sm:$0xff] %vm19, 0.0
    %32 = vst.msk [vmem:[#allocation2 + $0x60] sm:$0xff] %vm19, 0.0
  $region17: #{policy_forward.7} parent=0 // pred_fallthru
    _
  %v33 = vld [vmem:[#allocation2] sm:$0xff]
  %v34 = vld [vmem:[#allocation2 + $0x8] sm:$0xff]
  %v35 = vld [vmem:[#allocation2 + $0x10] sm:$0xff]
  %v36 = vld [vmem:[#allocation2 + $0x18] sm:$0xff]
  %v37 = vld [vmem:[#allocation2 + $0x20] sm:$0xff]
  %v38 = vld [vmem:[#allocation2 + $0x28] sm:$0xff]
  %v39 = vld [vmem:[#allocation2 + $0x30] sm:$0xff]
  %v40 = vld [vmem:[#allocation2 + $0x38] sm:$0xff]
  %v41 = vld [vmem:[#allocation2 + $0x40] sm:$0xff]
  %v42 = vld [vmem:[#allocation2 + $0x48] sm:$0xff]
  %v43 = vld [vmem:[#allocation2 + $0x50] sm:$0xff]
  %v44 = vld [vmem:[#allocation2 + $0x58] sm:$0xff]
  %v45 = vld [vmem:[#allocation2 + $0x60] sm:$0xff]
  %v46 = vld [vmem:[%s0] sm:$0xff]
  %v47 = vld [vmem:[%s0 + $0x8] sm:$0xff]
  %v48 = vld [vmem:[%s0 + $0x10] sm:$0xf]
  %v49 = vld [vmem:[%s0 + $0x14] sm:$0xff]
  %v50 = vld [vmem:[%s0 + $0x1c] sm:$0xff]
  %v51 = vld [vmem:[%s0 + $0x24] sm:$0xf]
  %v52 = vld [vmem:[%s0 + $0x28] sm:$0xff]
  %v53 = vld [vmem:[%s0 + $0x30] sm:$0xff]
  %v54 = vld [vmem:[%s0 + $0x38] sm:$0xf]
  %v55 = vld [vmem:[%s0 + $0x3c] sm:$0xff]
  %v56 = vld [vmem:[%s0 + $0x44] sm:$0xff]
  %v57 = vld [vmem:[%s0 + $0x4c] sm:$0xf]
  %v58 = vld [vmem:[%s0 + $0x50] sm:$0xff]
  %v59 = vld [vmem:[%s0 + $0x58] sm:$0xff]
  %v60 = vld [vmem:[%s0 + $0x60] sm:$0xf]
  %v61 = vld [vmem:[%s0 + $0x64] sm:$0xff]
  %v62 = vld [vmem:[%s0 + $0x6c] sm:$0xff]
  %v63 = vld [vmem:[%s0 + $0x74] sm:$0xf]
  %v64 = vld [vmem:[%s0 + $0x78] sm:$0xff]
  %v65 = vld [vmem:[%s0 + $0x80] sm:$0xff]
  %v66 = vld [vmem:[%s0 + $0x88] sm:$0xf]
  %v67 = vld [vmem:[%s0 + $0x8c] sm:$0xff]
  %v68 = vld [vmem:[%s0 + $0x94] sm:$0xff]
  %v69 = vld [vmem:[%s0 + $0x9c] sm:$0xf]
  %v70 = vld [vmem:[%s0 + $0xa0] sm:$0xff]
  %v71 = vld [vmem:[%s0 + $0xa8] sm:$0xff]
  %v72 = vld [vmem:[%s0 + $0xb0] sm:$0xf]
  %v73 = vld [vmem:[%s0 + $0xb4] sm:$0xff]
  %v74 = vld [vmem:[%s0 + $0xbc] sm:$0xff]
  %v75 = vld [vmem:[%s0 + $0xc4] sm:$0xf]
  %v76 = vld [vmem:[%s0 + $0xc8] sm:$0xff]
  %v77 = vld [vmem:[%s0 + $0xd0] sm:$0xff]
  %v78 = vld [vmem:[%s0 + $0xd8] sm:$0xf]
  %v79 = vld [vmem:[%s0 + $0xdc] sm:$0xff]
  %v80 = vld [vmem:[%s0 + $0xe4] sm:$0xff]
  %v81 = vld [vmem:[%s0 + $0xec] sm:$0xf]
  %v82 = vld [vmem:[%s0 + $0xf0] sm:$0xff]
  %v83 = vld [vmem:[%s0 + $0xf8] sm:$0xff]
  %v84 = vld [vmem:[%s0 + $0x100] sm:$0xf]
  %v85 = vld [vmem:[%s1] sm:$0xf]
  %v86 = vld [vmem:[%s1 + $0x4] sm:$0xf]
  %v87 = vld [vmem:[%s1 + $0x8] sm:$0xf]
  %v88 = vld [vmem:[%s1 + $0xc] sm:$0xf]
  %v89 = vld [vmem:[%s1 + $0x10] sm:$0xf]
  %v90 = vld [vmem:[%s1 + $0x14] sm:$0xf]
  %v91 = vld [vmem:[%s1 + $0x18] sm:$0xf]
  %v92 = vld [vmem:[%s1 + $0x1c] sm:$0xf]
  %v93 = vld [vmem:[%s1 + $0x20] sm:$0xf]
  %v94 = vld [vmem:[%s1 + $0x24] sm:$0xf]
  %v95 = vld [vmem:[%s1 + $0x28] sm:$0xf]
  %v96 = vld [vmem:[%s1 + $0x2c] sm:$0xf]
  %v97 = vld [vmem:[%s1 + $0x30] sm:$0xf]
  %v98 = vld [vmem:[%s1 + $0x34] sm:$0xf]
  %v99 = vld [vmem:[%s1 + $0x38] sm:$0xf]
  %v100 = vld [vmem:[%s1 + $0x3c] sm:$0xf]
  %v101 = vld [vmem:[%s1 + $0x40] sm:$0xf]
  %v102 = vld [vmem:[%s1 + $0x44] sm:$0xf]
  %v103 = vld [vmem:[%s1 + $0x48] sm:$0xf]
  %v104 = vld [vmem:[%s1 + $0x4c] sm:$0xf]
  %v105 = vld [vmem:[%s1 + $0x50] sm:$0xf]
  %v106 = vld [vmem:[%s1 + $0x54] sm:$0xf]
  %v107 = vld [vmem:[%s1 + $0x58] sm:$0xf]
  %v108 = vld [vmem:[%s1 + $0x5c] sm:$0xf]
  %v109 = vld [vmem:[%s1 + $0x60] sm:$0xf]
  %v110 = vld [vmem:[%s1 + $0x64] sm:$0xf]
  %v111 = vld [vmem:[%s1 + $0x68] sm:$0xf]
  %v112 = vld [vmem:[%s1 + $0x6c] sm:$0xf]
  %v113 = vld [vmem:[%s1 + $0x70] sm:$0xf]
  %v114 = vld [vmem:[%s1 + $0x74] sm:$0xf]
  %v115 = vld [vmem:[%s1 + $0x78] sm:$0xf]
  %v116 = vld [vmem:[%s1 + $0x7c] sm:$0xf]
  %v117 = vld [vmem:[%s1 + $0x80] sm:$0xf]
  %v118 = vld [vmem:[%s1 + $0x84] sm:$0xf]
  %v119 = vld [vmem:[%s1 + $0x88] sm:$0xf]
  %v120 = vld [vmem:[%s1 + $0x8c] sm:$0xf]
  %v121 = vld [vmem:[%s1 + $0x90] sm:$0xf]
  %v122 = vld [vmem:[%s1 + $0x94] sm:$0xf]
  %v123 = vld [vmem:[%s1 + $0x98] sm:$0xf]
  %v124 = vld [vmem:[%s1 + $0x9c] sm:$0xf]
  %v125 = vld [vmem:[%s1 + $0xa0] sm:$0xf]
  %v126 = vld [vmem:[%s1 + $0xa4] sm:$0xf]
  %v127 = vld [vmem:[%s1 + $0xa8] sm:$0xf]
  %v128 = vld [vmem:[%s1 + $0xac] sm:$0xf]
  %v129 = vld [vmem:[%s1 + $0xb0] sm:$0xf]
  %v130 = vld [vmem:[%s1 + $0xb4] sm:$0xf]
  %v131 = vld [vmem:[%s1 + $0xb8] sm:$0xf]
  %v132 = vld [vmem:[%s1 + $0xbc] sm:$0xf]
  %v133 = vld [vmem:[%s1 + $0xc0] sm:$0xf]
  %v134 = vld [vmem:[%s1 + $0xc4] sm:$0xf]
  %v135 = vld [vmem:[%s1 + $0xc8] sm:$0xf]
  %v136 = vld [vmem:[%s1 + $0xcc] sm:$0xf]
  %v137 = vld [vmem:[%s1 + $0xd0] sm:$0xf]
  %v138 = vld [vmem:[%s1 + $0xd4] sm:$0xf]
  %v139 = vld [vmem:[%s1 + $0xd8] sm:$0xf]
  %v140 = vld [vmem:[%s1 + $0xdc] sm:$0xf]
  %v141 = vld [vmem:[%s1 + $0xe0] sm:$0xf]
  %v142 = vld [vmem:[%s1 + $0xe4] sm:$0xf]
  %v143 = vld [vmem:[%s1 + $0xe8] sm:$0xf]
  %v144 = vld [vmem:[%s1 + $0xec] sm:$0xf]
  %v145 = vld [vmem:[%s1 + $0xf0] sm:$0xf]
  %v146 = vld [vmem:[%s1 + $0xf4] sm:$0xf]
  %v147 = vld [vmem:[%s1 + $0xf8] sm:$0xf]
  %v148 = vld [vmem:[%s1 + $0xfc] sm:$0xf]
  %v149 = vld [vmem:[%s1 + $0x100] sm:$0xf]
  %v150 = vld [vmem:[%s1 + $0x104] sm:$0xf]
  %v151 = vld [vmem:[%s1 + $0x108] sm:$0xf]
  %v152 = vld [vmem:[%s1 + $0x10c] sm:$0xf]
  %v153 = vld [vmem:[%s1 + $0x110] sm:$0xf]
  %v154 = vld [vmem:[%s1 + $0x114] sm:$0xf]
  %v155 = vld [vmem:[%s1 + $0x118] sm:$0xf]
  %v156 = vld [vmem:[%s1 + $0x11c] sm:$0xf]
  %v196 = vunpack.c.l.b16 %v46
  %v197 = vunpack.c.h.b16 %v46
  %v198 = vunpack.c.l.b16 %v47
  %v199 = vunpack.c.h.b16 %v47
  %v200 = vunpack.c.l.b16 %v48
  %v201 = vunpack.c.l.b16 %v49
  %v202 = vunpack.c.h.b16 %v49
  %v203 = vunpack.c.l.b16 %v50
  %v204 = vunpack.c.h.b16 %v50
  %v205 = vunpack.c.l.b16 %v51
  %v206 = vunpack.c.l.b16 %v52
  %v207 = vunpack.c.h.b16 %v52
  %v208 = vunpack.c.l.b16 %v53
  %v209 = vunpack.c.h.b16 %v53
  %v210 = vunpack.c.l.b16 %v54
  %v211 = vunpack.c.l.b16 %v55
  %v212 = vunpack.c.h.b16 %v55
  %v213 = vunpack.c.l.b16 %v56
  %v214 = vunpack.c.h.b16 %v56
  %v215 = vunpack.c.l.b16 %v57
  %v216 = vunpack.c.l.b16 %v58
  %v217 = vunpack.c.h.b16 %v58
  %v218 = vunpack.c.l.b16 %v59
  %v219 = vunpack.c.h.b16 %v59
  %v220 = vunpack.c.l.b16 %v60
  %v221 = vunpack.c.l.b16 %v61
  %v222 = vunpack.c.h.b16 %v61
  %v223 = vunpack.c.l.b16 %v62
  %v224 = vunpack.c.h.b16 %v62
  %v225 = vunpack.c.l.b16 %v63
  %v226 = vunpack.c.l.b16 %v64
  %v227 = vunpack.c.h.b16 %v64
  %v228 = vunpack.c.l.b16 %v65
  %v229 = vunpack.c.h.b16 %v65
  %v230 = vunpack.c.l.b16 %v66
  %v231 = vunpack.c.l.b16 %v67
  %v232 = vunpack.c.h.b16 %v67
  %v233 = vunpack.c.l.b16 %v68
  %v234 = vunpack.c.h.b16 %v68
  %v235 = vunpack.c.l.b16 %v69
  %v236 = vunpack.c.l.b16 %v70
  %v237 = vunpack.c.h.b16 %v70
  %v238 = vunpack.c.l.b16 %v71
  %v239 = vunpack.c.h.b16 %v71
  %v240 = vunpack.c.l.b16 %v72
  %v241 = vunpack.c.l.b16 %v73
  %v242 = vunpack.c.h.b16 %v73
  %v243 = vunpack.c.l.b16 %v74
  %v244 = vunpack.c.h.b16 %v74
  %v245 = vunpack.c.l.b16 %v75
  %v246 = vunpack.c.l.b16 %v76
  %v247 = vunpack.c.h.b16 %v76
  %v248 = vunpack.c.l.b16 %v77
  %v249 = vunpack.c.h.b16 %v77
  %v250 = vunpack.c.l.b16 %v78
  %v251 = vunpack.c.l.b16 %v79
  %v252 = vunpack.c.h.b16 %v79
  %v253 = vunpack.c.l.b16 %v80
  %v254 = vunpack.c.h.b16 %v80
  %v255 = vunpack.c.l.b16 %v81
  %v256 = vunpack.c.l.b16 %v82
  %v257 = vunpack.c.h.b16 %v82
  %v258 = vunpack.c.l.b16 %v83
  %v259 = vunpack.c.h.b16 %v83
  %v260 = vunpack.c.l.b16 %v84
  %v261 = vpack.c.b16 %v201, %v196
  %v262 = vpack.c.b16 %v202, %v197
  %v263 = vpack.c.b16 %v203, %v198
  %v264 = vpack.c.b16 %v204, %v199
  %v265 = vpack.c.b16 %v205, %v200
  %v266 = vpack.c.b16 %v211, %v206
  %v267 = vpack.c.b16 %v212, %v207
  %v268 = vpack.c.b16 %v213, %v208
  %v269 = vpack.c.b16 %v214, %v209
  %v270 = vpack.c.b16 %v215, %v210
  %v271 = vpack.c.b16 %v221, %v216
  %v272 = vpack.c.b16 %v222, %v217
  %v273 = vpack.c.b16 %v223, %v218
  %v274 = vpack.c.b16 %v224, %v219
  %v275 = vpack.c.b16 %v225, %v220
  %v276 = vpack.c.b16 %v231, %v226
  %v277 = vpack.c.b16 %v232, %v227
  %v278 = vpack.c.b16 %v233, %v228
  %v279 = vpack.c.b16 %v234, %v229
  %v280 = vpack.c.b16 %v235, %v230
  %v281 = vpack.c.b16 %v241, %v236
  %v282 = vpack.c.b16 %v242, %v237
  %v283 = vpack.c.b16 %v243, %v238
  %v284 = vpack.c.b16 %v244, %v239
  %v285 = vpack.c.b16 %v245, %v240
  %v286 = vpack.c.b16 %v251, %v246
  %v287 = vpack.c.b16 %v252, %v247
  %v288 = vpack.c.b16 %v253, %v248
  %v289 = vpack.c.b16 %v254, %v249
  %v290 = vpack.c.b16 %v255, %v250
  %v291 = vpack.c.b16 %v256, %v256
  %v292 = vpack.c.b16 %v257, %v257
  %v293 = vpack.c.b16 %v258, %v258
  %v294 = vpack.c.b16 %v259, %v259
  %v295 = vpack.c.b16 %v260, %v260
  %v396 = vunpack.c.l.b16 %v85
  %v397 = vunpack.c.l.b16 %v86
  %v398 = vunpack.c.l.b16 %v87
  %v399 = vunpack.c.l.b16 %v88
  %v400 = vunpack.c.l.b16 %v89
  %v401 = vunpack.c.l.b16 %v90
  %v402 = vunpack.c.l.b16 %v91
  %v403 = vunpack.c.l.b16 %v92
  %v404 = vunpack.c.l.b16 %v93
  %v405 = vunpack.c.l.b16 %v94
  %v406 = vunpack.c.l.b16 %v95
  %v407 = vunpack.c.l.b16 %v96
  %v408 = vunpack.c.l.b16 %v97
  %v409 = vunpack.c.l.b16 %v98
  %v410 = vunpack.c.l.b16 %v99
  %v411 = vunpack.c.l.b16 %v100
  %v412 = vunpack.c.l.b16 %v101
  %v413 = vunpack.c.l.b16 %v102
  %v414 = vunpack.c.l.b16 %v103
  %v415 = vunpack.c.l.b16 %v104
  %v416 = vunpack.c.l.b16 %v105
  %v417 = vunpack.c.l.b16 %v106
  %v418 = vunpack.c.l.b16 %v107
  %v419 = vunpack.c.l.b16 %v108
  %v420 = vunpack.c.l.b16 %v109
  %v421 = vunpack.c.l.b16 %v110
  %v422 = vunpack.c.l.b16 %v111
  %v423 = vunpack.c.l.b16 %v112
  %v424 = vunpack.c.l.b16 %v113
  %v425 = vunpack.c.l.b16 %v114
  %v426 = vunpack.c.l.b16 %v115
  %v427 = vunpack.c.l.b16 %v116
  %v428 = vunpack.c.l.b16 %v117
  %v429 = vunpack.c.l.b16 %v118
  %v430 = vunpack.c.l.b16 %v119
  %v431 = vunpack.c.l.b16 %v120
  %v432 = vunpack.c.l.b16 %v121
  %v433 = vunpack.c.l.b16 %v122
  %v434 = vunpack.c.l.b16 %v123
  %v435 = vunpack.c.l.b16 %v124
  %v436 = vunpack.c.l.b16 %v125
  %v437 = vunpack.c.l.b16 %v126
  %v438 = vunpack.c.l.b16 %v127
  %v439 = vunpack.c.l.b16 %v128
  %v440 = vunpack.c.l.b16 %v129
  %v441 = vunpack.c.l.b16 %v130
  %v442 = vunpack.c.l.b16 %v131
  %v443 = vunpack.c.l.b16 %v132
  %v444 = vunpack.c.l.b16 %v133
  %v445 = vunpack.c.l.b16 %v134
  %v446 = vunpack.c.l.b16 %v135
  %v447 = vunpack.c.l.b16 %v136
  %v448 = vunpack.c.l.b16 %v137
  %v449 = vunpack.c.l.b16 %v138
  %v450 = vunpack.c.l.b16 %v139
  %v451 = vunpack.c.l.b16 %v140
  %v452 = vunpack.c.l.b16 %v141
  %v453 = vunpack.c.l.b16 %v142
  %v454 = vunpack.c.l.b16 %v143
  %v455 = vunpack.c.l.b16 %v144
  %v456 = vunpack.c.l.b16 %v145
  %v457 = vunpack.c.l.b16 %v146
  %v458 = vunpack.c.l.b16 %v147
  %v459 = vunpack.c.l.b16 %v148
  %v460 = vunpack.c.l.b16 %v149
  %v461 = vunpack.c.l.b16 %v150
  %v462 = vunpack.c.l.b16 %v151
  %v463 = vunpack.c.l.b16 %v152
  %v464 = vunpack.c.l.b16 %v153
  %v465 = vunpack.c.l.b16 %v154
  %v466 = vunpack.c.l.b16 %v155
  %v467 = vunpack.c.l.b16 %v156
  %v468 = vpack.c.b16 %v397, %v396
  %v469 = vpack.c.b16 %v399, %v398
  %v470 = vpack.c.b16 %v401, %v400
  %v471 = vpack.c.b16 %v403, %v402
  %v472 = vpack.c.b16 %v405, %v404
  %v473 = vpack.c.b16 %v407, %v406
  %v474 = vpack.c.b16 %v409, %v408
  %v475 = vpack.c.b16 %v411, %v410
  %v476 = vpack.c.b16 %v413, %v412
  %v477 = vpack.c.b16 %v415, %v414
  %v478 = vpack.c.b16 %v417, %v416
  %v479 = vpack.c.b16 %v419, %v418
  %v480 = vpack.c.b16 %v421, %v420
  %v481 = vpack.c.b16 %v423, %v422
  %v482 = vpack.c.b16 %v425, %v424
  %v483 = vpack.c.b16 %v427, %v426
  %v484 = vpack.c.b16 %v429, %v428
  %v485 = vpack.c.b16 %v431, %v430
  %v486 = vpack.c.b16 %v433, %v432
  %v487 = vpack.c.b16 %v435, %v434
  %v488 = vpack.c.b16 %v437, %v436
  %v489 = vpack.c.b16 %v439, %v438
  %v490 = vpack.c.b16 %v441, %v440
  %v491 = vpack.c.b16 %v443, %v442
  %v492 = vpack.c.b16 %v445, %v444
  %v493 = vpack.c.b16 %v447, %v446
  %v494 = vpack.c.b16 %v449, %v448
  %v495 = vpack.c.b16 %v451, %v450
  %v496 = vpack.c.b16 %v453, %v452
  %v497 = vpack.c.b16 %v455, %v454
  %v498 = vpack.c.b16 %v457, %v456
  %v499 = vpack.c.b16 %v459, %v458
  %v500 = vpack.c.b16 %v461, %v460
  %v501 = vpack.c.b16 %v463, %v462
  %v502 = vpack.c.b16 %v465, %v464
  %v503 = vpack.c.b16 %v467, %v466
  %vm540 = vcmask 523264
  %v542 = vsel %vm540, %v265, 0
  %v545 = vsel %vm540, %v270, 0
  %v548 = vsel %vm540, %v275, 0
  %v551 = vsel %vm540, %v280, 0
  %v554 = vsel %vm540, %v285, 0
  %v557 = vsel %vm540, %v290, 0
  %v560 = vsel %vm540, %v295, 0
  %562 = vmatpush.bf16.msra.mxu0 %v475
  %563 = vmatpush.bf16.msra.mxu0 %v474
  %564 = vmatpush.bf16.msra.mxu0 %v473
  %565 = vmatpush.bf16.msra.mxu0 %v472
  %566 = vmatpush.bf16.msra.mxu0 %v471
  %567 = vmatpush.bf16.msra.mxu0 %v470
  %568 = vmatpush.bf16.msra.mxu0 %v469
  %569 = vmatpush.bf16.msra.mxu0 %v468
  %570 = vmatmul.bf16.gmra.mxu0 %v261
  %v571 = vpop.f32.mrf.mxu0
  %v572 = vadd.f32 0.0, %v571
  %v573 = vpop.f32.mrf.mxu0
  %v574 = vadd.f32 0.0, %v573
  %575 = vmatmul.bf16.gmra.mxu0 %v266
  %v576 = vpop.f32.mrf.mxu0
  %v577 = vadd.f32 0.0, %v576
  %v578 = vpop.f32.mrf.mxu0
  %v579 = vadd.f32 0.0, %v578
  %580 = vmatmul.bf16.gmra.mxu0 %v271
  %v581 = vpop.f32.mrf.mxu0
  %v582 = vadd.f32 0.0, %v581
  %v583 = vpop.f32.mrf.mxu0
  %v584 = vadd.f32 0.0, %v583
  %585 = vmatmul.bf16.gmra.mxu0 %v276
  %v586 = vpop.f32.mrf.mxu0
  %v587 = vadd.f32 0.0, %v586
  %v588 = vpop.f32.mrf.mxu0
  %v589 = vadd.f32 0.0, %v588
  %590 = vmatmul.bf16.gmra.mxu0 %v281
  %v591 = vpop.f32.mrf.mxu0
  %v592 = vadd.f32 0.0, %v591
  %v593 = vpop.f32.mrf.mxu0
  %v594 = vadd.f32 0.0, %v593
  %595 = vmatmul.bf16.gmra.mxu0 %v286
  %v596 = vpop.f32.mrf.mxu0
  %v597 = vadd.f32 0.0, %v596
  %v598 = vpop.f32.mrf.mxu0
  %v599 = vadd.f32 0.0, %v598
  %600 = vmatmul.bf16.gmra.mxu0 %v291
  %v601 = vpop.f32.mrf.mxu0
  %v602 = vadd.f32 0.0, %v601
  %v603 = vpop.f32.mrf.mxu0
  %604 = vdwg.mxu0
  %605 = vmatpush.bf16.msra.mxu0 %v483
  %606 = vmatpush.bf16.msra.mxu0 %v482
  %607 = vmatpush.bf16.msra.mxu0 %v481
  %608 = vmatpush.bf16.msra.mxu0 %v480
  %609 = vmatpush.bf16.msra.mxu0 %v479
  %610 = vmatpush.bf16.msra.mxu0 %v478
  %611 = vmatpush.bf16.msra.mxu0 %v477
  %612 = vmatpush.bf16.msra.mxu0 %v476
  %613 = vmatmul.bf16.gmra.mxu0 %v262
  %v614 = vpop.f32.mrf.mxu0
  %v615 = vadd.f32 %v572, %v614
  %v616 = vpop.f32.mrf.mxu0
  %v617 = vadd.f32 %v574, %v616
  %618 = vmatmul.bf16.gmra.mxu0 %v267
  %v619 = vpop.f32.mrf.mxu0
  %v620 = vadd.f32 %v577, %v619
  %v621 = vpop.f32.mrf.mxu0
  %v622 = vadd.f32 %v579, %v621
  %623 = vmatmul.bf16.gmra.mxu0 %v272
  %v624 = vpop.f32.mrf.mxu0
  %v625 = vadd.f32 %v582, %v624
  %v626 = vpop.f32.mrf.mxu0
  %v627 = vadd.f32 %v584, %v626
  %628 = vmatmul.bf16.gmra.mxu0 %v277
  %v629 = vpop.f32.mrf.mxu0
  %v630 = vadd.f32 %v587, %v629
  %v631 = vpop.f32.mrf.mxu0
  %v632 = vadd.f32 %v589, %v631
  %633 = vmatmul.bf16.gmra.mxu0 %v282
  %v634 = vpop.f32.mrf.mxu0
  %v635 = vadd.f32 %v592, %v634
  %v636 = vpop.f32.mrf.mxu0
  %v637 = vadd.f32 %v594, %v636
  %638 = vmatmul.bf16.gmra.mxu0 %v287
  %v639 = vpop.f32.mrf.mxu0
  %v640 = vadd.f32 %v597, %v639
  %v641 = vpop.f32.mrf.mxu0
  %v642 = vadd.f32 %v599, %v641
  %643 = vmatmul.bf16.gmra.mxu0 %v292
  %v644 = vpop.f32.mrf.mxu0
  %v645 = vadd.f32 %v602, %v644
  %v646 = vpop.f32.mrf.mxu0
  %647 = vdwg.mxu0
  %648 = vmatpush.bf16.msra.mxu0 %v491
  %649 = vmatpush.bf16.msra.mxu0 %v490
  %650 = vmatpush.bf16.msra.mxu0 %v489
  %651 = vmatpush.bf16.msra.mxu0 %v488
  %652 = vmatpush.bf16.msra.mxu0 %v487
  %653 = vmatpush.bf16.msra.mxu0 %v486
  %654 = vmatpush.bf16.msra.mxu0 %v485
  %655 = vmatpush.bf16.msra.mxu0 %v484
  %656 = vmatmul.bf16.gmra.mxu0 %v263
  %v657 = vpop.f32.mrf.mxu0
  %v658 = vadd.f32 %v615, %v657
  %v659 = vpop.f32.mrf.mxu0
  %v660 = vadd.f32 %v617, %v659
  %661 = vmatmul.bf16.gmra.mxu0 %v268
  %v662 = vpop.f32.mrf.mxu0
  %v663 = vadd.f32 %v620, %v662
  %v664 = vpop.f32.mrf.mxu0
  %v665 = vadd.f32 %v622, %v664
  %666 = vmatmul.bf16.gmra.mxu0 %v273
  %v667 = vpop.f32.mrf.mxu0
  %v668 = vadd.f32 %v625, %v667
  %v669 = vpop.f32.mrf.mxu0
  %v670 = vadd.f32 %v627, %v669
  %671 = vmatmul.bf16.gmra.mxu0 %v278
  %v672 = vpop.f32.mrf.mxu0
  %v673 = vadd.f32 %v630, %v672
  %v674 = vpop.f32.mrf.mxu0
  %v675 = vadd.f32 %v632, %v674
  %676 = vmatmul.bf16.gmra.mxu0 %v283
  %v677 = vpop.f32.mrf.mxu0
  %v678 = vadd.f32 %v635, %v677
  %v679 = vpop.f32.mrf.mxu0
  %v680 = vadd.f32 %v637, %v679
  %681 = vmatmul.bf16.gmra.mxu0 %v288
  %v682 = vpop.f32.mrf.mxu0
  %v683 = vadd.f32 %v640, %v682
  %v684 = vpop.f32.mrf.mxu0
  %v685 = vadd.f32 %v642, %v684
  %686 = vmatmul.bf16.gmra.mxu0 %v293
  %v687 = vpop.f32.mrf.mxu0
  %v688 = vadd.f32 %v645, %v687
  %v689 = vpop.f32.mrf.mxu0
  %690 = vdwg.mxu0
  %691 = vmatpush.bf16.msra.mxu0 %v499
  %692 = vmatpush.bf16.msra.mxu0 %v498
  %693 = vmatpush.bf16.msra.mxu0 %v497
  %694 = vmatpush.bf16.msra.mxu0 %v496
  %695 = vmatpush.bf16.msra.mxu0 %v495
  %696 = vmatpush.bf16.msra.mxu0 %v494
  %697 = vmatpush.bf16.msra.mxu0 %v493
  %698 = vmatpush.bf16.msra.mxu0 %v492
  %699 = vmatmul.bf16.gmra.mxu0 %v264
  %v700 = vpop.f32.mrf.mxu0
  %v701 = vadd.f32 %v658, %v700
  %v702 = vpop.f32.mrf.mxu0
  %v703 = vadd.f32 %v660, %v702
  %704 = vmatmul.bf16.gmra.mxu0 %v269
  %v705 = vpop.f32.mrf.mxu0
  %v706 = vadd.f32 %v663, %v705
  %v707 = vpop.f32.mrf.mxu0
  %v708 = vadd.f32 %v665, %v707
  %709 = vmatmul.bf16.gmra.mxu0 %v274
  %v710 = vpop.f32.mrf.mxu0
  %v711 = vadd.f32 %v668, %v710
  %v712 = vpop.f32.mrf.mxu0
  %v713 = vadd.f32 %v670, %v712
  %714 = vmatmul.bf16.gmra.mxu0 %v279
  %v715 = vpop.f32.mrf.mxu0
  %v716 = vadd.f32 %v673, %v715
  %v717 = vpop.f32.mrf.mxu0
  %v718 = vadd.f32 %v675, %v717
  %719 = vmatmul.bf16.gmra.mxu0 %v284
  %v720 = vpop.f32.mrf.mxu0
  %v721 = vadd.f32 %v678, %v720
  %v722 = vpop.f32.mrf.mxu0
  %v723 = vadd.f32 %v680, %v722
  %724 = vmatmul.bf16.gmra.mxu0 %v289
  %v725 = vpop.f32.mrf.mxu0
  %v726 = vadd.f32 %v683, %v725
  %v727 = vpop.f32.mrf.mxu0
  %v728 = vadd.f32 %v685, %v727
  %729 = vmatmul.bf16.gmra.mxu0 %v294
  %v730 = vpop.f32.mrf.mxu0
  %v731 = vadd.f32 %v688, %v730
  %v732 = vpop.f32.mrf.mxu0
  %733 = vdwg.mxu0
  %734 = vmatpush.bf16.msra.mxu0 0
  %735 = vmatpush.bf16.msra.mxu0 0
  %736 = vmatpush.bf16.msra.mxu0 0
  %737 = vmatpush.bf16.msra.mxu0 0
  %738 = vmatpush.bf16.msra.mxu0 %v503
  %739 = vmatpush.bf16.msra.mxu0 %v502
  %740 = vmatpush.bf16.msra.mxu0 %v501
  %741 = vmatpush.bf16.msra.mxu0 %v500
  %742 = vmatmul.bf16.gmra.mxu0 %v542
  %v743 = vpop.f32.mrf.mxu0
  %v744 = vadd.f32 %v701, %v743
  %v745 = vpop.f32.mrf.mxu0
  %v746 = vadd.f32 %v703, %v745
  %747 = vmatmul.bf16.gmra.mxu0 %v545
  %v748 = vpop.f32.mrf.mxu0
  %v749 = vadd.f32 %v706, %v748
  %v750 = vpop.f32.mrf.mxu0
  %v751 = vadd.f32 %v708, %v750
  %752 = vmatmul.bf16.gmra.mxu0 %v548
  %v753 = vpop.f32.mrf.mxu0
  %v754 = vadd.f32 %v711, %v753
  %v755 = vpop.f32.mrf.mxu0
  %v756 = vadd.f32 %v713, %v755
  %757 = vmatmul.bf16.gmra.mxu0 %v551
  %v758 = vpop.f32.mrf.mxu0
  %v759 = vadd.f32 %v716, %v758
  %v760 = vpop.f32.mrf.mxu0
  %v761 = vadd.f32 %v718, %v760
  %762 = vmatmul.bf16.gmra.mxu0 %v554
  %v763 = vpop.f32.mrf.mxu0
  %v764 = vadd.f32 %v721, %v763
  %v765 = vpop.f32.mrf.mxu0
  %v766 = vadd.f32 %v723, %v765
  %767 = vmatmul.bf16.gmra.mxu0 %v557
  %v768 = vpop.f32.mrf.mxu0
  %v769 = vadd.f32 %v726, %v768
  %v770 = vpop.f32.mrf.mxu0
  %v771 = vadd.f32 %v728, %v770
  %772 = vmatmul.bf16.gmra.mxu0 %v560
  %v773 = vpop.f32.mrf.mxu0
  %v774 = vadd.f32 %v731, %v773
  %v775 = vpop.f32.mrf.mxu0
  %776 = vdwg.mxu0
  %v777 = vadd.f32 %v33, %v744
  %v778 = vadd.f32 %v34, %v746
  %v779 = vadd.f32 %v35, %v749
  %v780 = vadd.f32 %v36, %v751
  %v781 = vadd.f32 %v37, %v754
  %v782 = vadd.f32 %v38, %v756
  %v783 = vadd.f32 %v39, %v759
  %v784 = vadd.f32 %v40, %v761
  %v785 = vadd.f32 %v41, %v764
  %v786 = vadd.f32 %v42, %v766
  %v787 = vadd.f32 %v43, %v769
  %v788 = vadd.f32 %v44, %v771
  %v789 = vadd.f32 %v45, %v774
  %790 = vst.msk [vmem:[#allocation2] sm:$0xff] %vm540, %v777
  %791 = vst.msk [vmem:[#allocation2 + $0x8] sm:$0xff] %vm540, %v778
  %792 = vst.msk [vmem:[#allocation2 + $0x10] sm:$0xff] %vm540, %v779
  %793 = vst.msk [vmem:[#allocation2 + $0x18] sm:$0xff] %vm540, %v780
  %794 = vst.msk [vmem:[#allocation2 + $0x20] sm:$0xff] %vm540, %v781
  %795 = vst.msk [vmem:[#allocation2 + $0x28] sm:$0xff] %vm540, %v782
  %796 = vst.msk [vmem:[#allocation2 + $0x30] sm:$0xff] %vm540, %v783
  %797 = vst.msk [vmem:[#allocation2 + $0x38] sm:$0xff] %vm540, %v784
  %798 = vst.msk [vmem:[#allocation2 + $0x40] sm:$0xff] %vm540, %v785
  %799 = vst.msk [vmem:[#allocation2 + $0x48] sm:$0xff] %vm540, %v786
  %800 = vst.msk [vmem:[#allocation2 + $0x50] sm:$0xff] %vm540, %v787
  %801 = vst.msk [vmem:[#allocation2 + $0x58] sm:$0xff] %vm540, %v788
  %802 = vst.msk [vmem:[#allocation2 + $0x60] sm:$0xff] %vm540, %v789
  // Predicated region
  $region18: #{policy_forward.7} parent=0 // pred_check
    %p803 = pneg %p15
  $region19: #{policy_forward.7} parent=0 // pred_check_branch
    %805 = sbr.rel (%p803) target = $region21
  $region20: #{policy_forward.7} parent=0 // pred_region
    %v806 = vld [vmem:[#allocation2] sm:$0xff]
    %v807 = vld [vmem:[#allocation2 + $0x8] sm:$0xff]
    %v808 = vld [vmem:[#allocation2 + $0x10] sm:$0xff]
    %v809 = vld [vmem:[#allocation2 + $0x18] sm:$0xff]
    %v810 = vld [vmem:[#allocation2 + $0x20] sm:$0xff]
    %v811 = vld [vmem:[#allocation2 + $0x28] sm:$0xff]
    %v812 = vld [vmem:[#allocation2 + $0x30] sm:$0xff]
    %v813 = vld [vmem:[#allocation2 + $0x38] sm:$0xff]
    %v814 = vld [vmem:[#allocation2 + $0x40] sm:$0xff]
    %v815 = vld [vmem:[#allocation2 + $0x48] sm:$0xff]
    %v816 = vld [vmem:[#allocation2 + $0x50] sm:$0xff]
    %v817 = vld [vmem:[#allocation2 + $0x58] sm:$0xff]
    %v818 = vld [vmem:[#allocation2 + $0x60] sm:$0xff]
    %v819 = vld [vmem:[%s2] sm:$0x1]
    %v821 = vperm.slane %v819, 0
    %v823 = vadd.f32 %v806, %v821
    %v824 = vadd.f32 %v807, %v821
    %v825 = vadd.f32 %v808, %v821
    %v826 = vadd.f32 %v809, %v821
    %v827 = vadd.f32 %v810, %v821
    %v828 = vadd.f32 %v811, %v821
    %v829 = vadd.f32 %v812, %v821
    %v830 = vadd.f32 %v813, %v821
    %v831 = vadd.f32 %v814, %v821
    %v832 = vadd.f32 %v815, %v821
    %v833 = vadd.f32 %v816, %v821
    %v834 = vadd.f32 %v817, %v821
    %v835 = vadd.f32 %v818, %v821
    %v836 = vmax.f32 %v823, 0.0
    %v837 = vmax.f32 %v824, 0.0
    %v838 = vmax.f32 %v825, 0.0
    %v839 = vmax.f32 %v826, 0.0
    %v840 = vmax.f32 %v827, 0.0
    %v841 = vmax.f32 %v828, 0.0
    %v842 = vmax.f32 %v829, 0.0
    %v843 = vmax.f32 %v830, 0.0
    %v844 = vmax.f32 %v831, 0.0
    %v845 = vmax.f32 %v832, 0.0
    %v846 = vmax.f32 %v833, 0.0
    %v847 = vmax.f32 %v834, 0.0
    %v848 = vmax.f32 %v835, 0.0
    %v849 = vpack.c.bf16 %v836, %v836
    %v850 = vpack.c.bf16 %v837, %v837
    %v851 = vpack.c.bf16 %v838, %v838
    %v852 = vpack.c.bf16 %v839, %v839
    %v853 = vpack.c.bf16 %v840, %v840
    %v854 = vpack.c.bf16 %v841, %v841
    %v855 = vpack.c.bf16 %v842, %v842
    %v856 = vpack.c.bf16 %v843, %v843
    %v857 = vpack.c.bf16 %v844, %v844
    %v858 = vpack.c.bf16 %v845, %v845
    %v859 = vpack.c.bf16 %v846, %v846
    %v860 = vpack.c.bf16 %v847, %v847
    %v861 = vpack.c.bf16 %v848, %v848
    %vm862 = vcmask 519168
    %863 = vst.msk [vmem:[%s3] sm:$0xf] %vm862, %v849
    %864 = vst.msk [vmem:[%s3 + $0x4] sm:$0xf] %vm862, %v850
    %865 = vst.msk [vmem:[%s3 + $0x8] sm:$0xf] %vm862, %v851
    %866 = vst.msk [vmem:[%s3 + $0xc] sm:$0xf] %vm862, %v852
    %867 = vst.msk [vmem:[%s3 + $0x10] sm:$0xf] %vm862, %v853
    %868 = vst.msk [vmem:[%s3 + $0x14] sm:$0xf] %vm862, %v854
    %869 = vst.msk [vmem:[%s3 + $0x18] sm:$0xf] %vm862, %v855
    %870 = vst.msk [vmem:[%s3 + $0x1c] sm:$0xf] %vm862, %v856
    %871 = vst.msk [vmem:[%s3 + $0x20] sm:$0xf] %vm862, %v857
    %872 = vst.msk [vmem:[%s3 + $0x24] sm:$0xf] %vm862, %v858
    %873 = vst.msk [vmem:[%s3 + $0x28] sm:$0xf] %vm862, %v859
    %874 = vst.msk [vmem:[%s3 + $0x2c] sm:$0xf] %vm862, %v860
    %875 = vst.msk [vmem:[%s3 + $0x30] sm:$0xf] %vm862, %v861
  $region21: #{policy_forward.7} parent=0 // pred_fallthru
    _
  // Predicated region
  $region22: #{policy_forward.7} parent=0 // pred_check
    _
  $region23: #{policy_forward.7} parent=0 // pred_check_branch
    %877 = sbr.rel (0) target = $region25
  $region24: #{policy_forward.7} parent=0 // pred_region
    _
  $region25: #{policy_forward.7} parent=0 // pred_fallthru
    _
  // Predicated region
  $region26: #{policy_forward.7} parent=0 // pred_check
    _
  $region27: #{policy_forward.7} parent=0 // pred_check_branch
    %879 = sbr.rel (0) target = $region29
  $region28: #{policy_forward.7} parent=0 // pred_region
    _
  $region29: #{policy_forward.7} parent=0 // pred_fallthru
    _

// kernel: policy_forward.9
$region0: #{policy_forward.9}
  #allocation0 [shape = 'u32[]', space=smem, size = 0x4, offset = 0x4, fixed_abs, tag = 'smem constant byte address 0x4 - core index']
  #allocation1 [shape = 'u32[72,128]{1,0:T(1,128)}', space=vmem, size = 0x9000, scoped, tag = 'internal scratch']
  %s0 = inlined_call_operand.vmem [shape: bf16[2,512], index: 0, kind: input, shape index: {}]
  %s1 = inlined_call_operand.vmem [shape: bf16[512,6], index: 1, kind: input, shape index: {}]
  %s2 = inlined_call_operand.vmem [shape: f32[1,6], index: 2, kind: input, shape index: {}]
  %s3 = inlined_call_operand.hbm [shape: f32[2,6], index: 3, kind: output, shape index: {}]
  %s4 = sld [smem:[#allocation0]]
  $region22: #{policy_forward.9} parent=0
    _
  %s6 = ssub.s32 1, %s4
  %s7 = scalar_select 0, %s6, %s4
  $region1: #{policy_forward.9} parent=0
    #allocation2 [shape = 'u8[1024]{0}', space=vmem, size = 0x400, scoped, tag = 'output window, operand 0, single buffered']
    #allocation3 [shape = 's32[1]{0}', space=sflag, size = 0x4, scoped, tag = 'scoped memory for policy_forward.9']
    %8 = vsyncpa [#allocation3], 0
    // Predicated region
    $region2: #{policy_forward.9} parent=1 // pred_check
      _
    $region3: #{policy_forward.9} parent=1 // pred_check_branch
      %10 = sbr.rel (0) target = $region5
    $region4: #{policy_forward.9} parent=1 // pred_region
      _
    $region5: #{policy_forward.9} parent=1 // pred_fallthru
      _
    // Predicated region
    $region6: #{policy_forward.9} parent=1 // pred_check
      _
    $region7: #{policy_forward.9} parent=1 // pred_check_branch
      %12 = sbr.rel (0) target = $region9
    $region8: #{policy_forward.9} parent=1 // pred_region
      _
    $region9: #{policy_forward.9} parent=1 // pred_fallthru
      _
    // Predicated region
    $region10: #{policy_forward.9} parent=1 // pred_check
      _
    $region11: #{policy_forward.9} parent=1 // pred_check_branch
      %14 = sbr.rel (0) target = $region13
    $region12: #{policy_forward.9} parent=1 // pred_region
      _
    $region13: #{policy_forward.9} parent=1 // pred_fallthru
      _
    %v15 = vld [vmem:[%s0] sm:$0xf]
    %v16 = vld [vmem:[%s1] sm:$0xf]
    %v17 = vld [vmem:[%s1 + $0x4] sm:$0xf]
    %v18 = vld [vmem:[%s1 + $0x8] sm:$0xf]
    %v19 = vld [vmem:[%s1 + $0xc] sm:$0xf]
    %v20 = vld [vmem:[%s1 + $0x10] sm:$0xf]
    %v21 = vld [vmem:[%s1 + $0x14] sm:$0xf]
    %v22 = vld [vmem:[%s1 + $0x18] sm:$0xf]
    %v23 = vld [vmem:[%s1 + $0x1c] sm:$0xf]
    %v24 = vld [vmem:[%s1 + $0x20] sm:$0xf]
    %v25 = vld [vmem:[%s1 + $0x24] sm:$0xf]
    %v26 = vld [vmem:[%s1 + $0x28] sm:$0xf]
    %v27 = vld [vmem:[%s1 + $0x2c] sm:$0xf]
    %v28 = vld [vmem:[%s1 + $0x30] sm:$0xf]
    %v29 = vld [vmem:[%s1 + $0x34] sm:$0xf]
    %v30 = vld [vmem:[%s1 + $0x38] sm:$0xf]
    %v31 = vld [vmem:[%s1 + $0x3c] sm:$0xf]
    %v32 = vld [vmem:[%s1 + $0x40] sm:$0xf]
    %v33 = vld [vmem:[%s1 + $0x44] sm:$0xf]
    %v34 = vld [vmem:[%s1 + $0x48] sm:$0xf]
    %v35 = vld [vmem:[%s1 + $0x4c] sm:$0xf]
    %v36 = vld [vmem:[%s1 + $0x50] sm:$0xf]
    %v37 = vld [vmem:[%s1 + $0x54] sm:$0xf]
    %v38 = vld [vmem:[%s1 + $0x58] sm:$0xf]
    %v39 = vld [vmem:[%s1 + $0x5c] sm:$0xf]
    %v40 = vld [vmem:[%s1 + $0x60] sm:$0xf]
    %v41 = vld [vmem:[%s1 + $0x64] sm:$0xf]
    %v42 = vld [vmem:[%s1 + $0x68] sm:$0xf]
    %v43 = vld [vmem:[%s1 + $0x6c] sm:$0xf]
    %v44 = vld [vmem:[%s1 + $0x70] sm:$0xf]
    %v45 = vld [vmem:[%s1 + $0x74] sm:$0xf]
    %v46 = vld [vmem:[%s1 + $0x78] sm:$0xf]
    %v47 = vld [vmem:[%s1 + $0x7c] sm:$0xf]
    %v48 = vld [vmem:[%s1 + $0x80] sm:$0xf]
    %v49 = vld [vmem:[%s1 + $0x84] sm:$0xf]
    %v50 = vld [vmem:[%s1 + $0x88] sm:$0xf]
    %v51 = vld [vmem:[%s1 + $0x8c] sm:$0xf]
    %v52 = vld [vmem:[%s1 + $0x90] sm:$0xf]
    %v53 = vld [vmem:[%s1 + $0x94] sm:$0xf]
    %v54 = vld [vmem:[%s1 + $0x98] sm:$0xf]
    %v55 = vld [vmem:[%s1 + $0x9c] sm:$0xf]
    %v56 = vld [vmem:[%s1 + $0xa0] sm:$0xf]
    %v57 = vld [vmem:[%s1 + $0xa4] sm:$0xf]
    %v58 = vld [vmem:[%s1 + $0xa8] sm:$0xf]
    %v59 = vld [vmem:[%s1 + $0xac] sm:$0xf]
    %v60 = vld [vmem:[%s1 + $0xb0] sm:$0xf]
    %v61 = vld [vmem:[%s1 + $0xb4] sm:$0xf]
    %v62 = vld [vmem:[%s1 + $0xb8] sm:$0xf]
    %v63 = vld [vmem:[%s1 + $0xbc] sm:$0xf]
    %v64 = vld [vmem:[%s1 + $0xc0] sm:$0xf]
    %v65 = vld [vmem:[%s1 + $0xc4] sm:$0xf]
    %v66 = vld [vmem:[%s1 + $0xc8] sm:$0xf]
    %v67 = vld [vmem:[%s1 + $0xcc] sm:$0xf]
    %v68 = vld [vmem:[%s1 + $0xd0] sm:$0xf]
    %v69 = vld [vmem:[%s1 + $0xd4] sm:$0xf]
    %v70 = vld [vmem:[%s1 + $0xd8] sm:$0xf]
    %v71 = vld [vmem:[%s1 + $0xdc] sm:$0xf]
    %v72 = vld [vmem:[%s1 + $0xe0] sm:$0xf]
    %v73 = vld [vmem:[%s1 + $0xe4] sm:$0xf]
    %v74 = vld [vmem:[%s1 + $0xe8] sm:$0xf]
    %v75 = vld [vmem:[%s1 + $0xec] sm:$0xf]
    %v76 = vld [vmem:[%s1 + $0xf0] sm:$0xf]
    %v77 = vld [vmem:[%s1 + $0xf4] sm:$0xf]
    %v78 = vld [vmem:[%s1 + $0xf8] sm:$0xf]
    %v79 = vld [vmem:[%s1 + $0xfc] sm:$0xf]
    %v80 = vld [vmem:[%s2] sm:$0x1]
    %v82 = vperm.slane %v80, 0
    %85 = vst [vmem:[#allocation1] ss:$9 sm:$0xff] %v15
    %v86 = vld [vmem:[#allocation1] sm:$0xff]
    %v87 = vld [vmem:[#allocation1 + $0x9] sm:$0xff]
    %v88 = vld [vmem:[#allocation1 + $0x12] sm:$0xff]
    %v89 = vld [vmem:[#allocation1 + $0x1b] sm:$0xff]
    %v158 = vunpack.c.l.b16 %v16
    %v159 = vunpack.c.l.b16 %v17
    %v160 = vunpack.c.l.b16 %v18
    %v161 = vunpack.c.l.b16 %v19
    %v162 = vunpack.c.l.b16 %v20
    %v163 = vunpack.c.l.b16 %v21
    %v164 = vunpack.c.l.b16 %v22
    %v165 = vunpack.c.l.b16 %v23
    %v166 = vunpack.c.l.b16 %v24
    %v167 = vunpack.c.l.b16 %v25
    %v168 = vunpack.c.l.b16 %v26
    %v169 = vunpack.c.l.b16 %v27
    %v170 = vunpack.c.l.b16 %v28
    %v171 = vunpack.c.l.b16 %v29
    %v172 = vunpack.c.l.b16 %v30
    %v173 = vunpack.c.l.b16 %v31
    %v174 = vunpack.c.l.b16 %v32
    %v175 = vunpack.c.l.b16 %v33
    %v176 = vunpack.c.l.b16 %v34
    %v177 = vunpack.c.l.b16 %v35
    %v178 = vunpack.c.l.b16 %v36
    %v179 = vunpack.c.l.b16 %v37
    %v180 = vunpack.c.l.b16 %v38
    %v181 = vunpack.c.l.b16 %v39
    %v182 = vunpack.c.l.b16 %v40
    %v183 = vunpack.c.l.b16 %v41
    %v184 = vunpack.c.l.b16 %v42
    %v185 = vunpack.c.l.b16 %v43
    %v186 = vunpack.c.l.b16 %v44
    %v187 = vunpack.c.l.b16 %v45
    %v188 = vunpack.c.l.b16 %v46
    %v189 = vunpack.c.l.b16 %v47
    %v190 = vunpack.c.l.b16 %v48
    %v191 = vunpack.c.l.b16 %v49
    %v192 = vunpack.c.l.b16 %v50
    %v193 = vunpack.c.l.b16 %v51
    %v194 = vunpack.c.l.b16 %v52
    %v195 = vunpack.c.l.b16 %v53
    %v196 = vunpack.c.l.b16 %v54
    %v197 = vunpack.c.l.b16 %v55
    %v198 = vunpack.c.l.b16 %v56
    %v199 = vunpack.c.l.b16 %v57
    %v200 = vunpack.c.l.b16 %v58
    %v201 = vunpack.c.l.b16 %v59
    %v202 = vunpack.c.l.b16 %v60
    %v203 = vunpack.c.l.b16 %v61
    %v204 = vunpack.c.l.b16 %v62
    %v205 = vunpack.c.l.b16 %v63
    %v206 = vunpack.c.l.b16 %v64
    %v207 = vunpack.c.l.b16 %v65
    %v208 = vunpack.c.l.b16 %v66
    %v209 = vunpack.c.l.b16 %v67
    %v210 = vunpack.c.l.b16 %v68
    %v211 = vunpack.c.l.b16 %v69
    %v212 = vunpack.c.l.b16 %v70
    %v213 = vunpack.c.l.b16 %v71
    %v214 = vunpack.c.l.b16 %v72
    %v215 = vunpack.c.l.b16 %v73
    %v216 = vunpack.c.l.b16 %v74
    %v217 = vunpack.c.l.b16 %v75
    %v218 = vunpack.c.l.b16 %v76
    %v219 = vunpack.c.l.b16 %v77
    %v220 = vunpack.c.l.b16 %v78
    %v221 = vunpack.c.l.b16 %v79
    %v222 = vpack.c.b16 %v159, %v158
    %v223 = vpack.c.b16 %v161, %v160
    %v224 = vpack.c.b16 %v163, %v162
    %v225 = vpack.c.b16 %v165, %v164
    %v226 = vpack.c.b16 %v167, %v166
    %v227 = vpack.c.b16 %v169, %v168
    %v228 = vpack.c.b16 %v171, %v170
    %v229 = vpack.c.b16 %v173, %v172
    %v230 = vpack.c.b16 %v175, %v174
    %v231 = vpack.c.b16 %v177, %v176
    %v232 = vpack.c.b16 %v179, %v178
    %v233 = vpack.c.b16 %v181, %v180
    %v234 = vpack.c.b16 %v183, %v182
    %v235 = vpack.c.b16 %v185, %v184
    %v236 = vpack.c.b16 %v187, %v186
    %v237 = vpack.c.b16 %v189, %v188
    %v238 = vpack.c.b16 %v191, %v190
    %v239 = vpack.c.b16 %v193, %v192
    %v240 = vpack.c.b16 %v195, %v194
    %v241 = vpack.c.b16 %v197, %v196
    %v242 = vpack.c.b16 %v199, %v198
    %v243 = vpack.c.b16 %v201, %v200
    %v244 = vpack.c.b16 %v203, %v202
    %v245 = vpack.c.b16 %v205, %v204
    %v246 = vpack.c.b16 %v207, %v206
    %v247 = vpack.c.b16 %v209, %v208
    %v248 = vpack.c.b16 %v211, %v210
    %v249 = vpack.c.b16 %v213, %v212
    %v250 = vpack.c.b16 %v215, %v214
    %v251 = vpack.c.b16 %v217, %v216
    %v252 = vpack.c.b16 %v219, %v218
    %v253 = vpack.c.b16 %v221, %v220
    %286 = vmatpush.bf16.msra.mxu0 %v229
    %287 = vmatpush.bf16.msra.mxu0 %v228
    %288 = vmatpush.bf16.msra.mxu0 %v227
    %289 = vmatpush.bf16.msra.mxu0 %v226
    %290 = vmatpush.bf16.msra.mxu0 %v225
    %291 = vmatpush.bf16.msra.mxu0 %v224
    %292 = vmatpush.bf16.msra.mxu0 %v223
    %293 = vmatpush.bf16.msra.mxu0 %v222
    %294 = vmatmul.bf16.gmra.mxu0 %v86
    %v295 = vpop.f32.mrf.mxu0
    %v296 = vadd.f32 %v82, %v295
    %v297 = vpop.f32.mrf.mxu0
    %298 = vdwg.mxu0
    %299 = vmatpush.bf16.msra.mxu0 %v237
    %300 = vmatpush.bf16.msra.mxu0 %v236
    %301 = vmatpush.bf16.msra.mxu0 %v235
    %302 = vmatpush.bf16.msra.mxu0 %v234
    %303 = vmatpush.bf16.msra.mxu0 %v233
    %304 = vmatpush.bf16.msra.mxu0 %v232
    %305 = vmatpush.bf16.msra.mxu0 %v231
    %306 = vmatpush.bf16.msra.mxu0 %v230
    %307 = vmatmul.bf16.gmra.mxu0 %v87
    %v308 = vpop.f32.mrf.mxu0
    %v309 = vadd.f32 %v296, %v308
    %v310 = vpop.f32.mrf.mxu0
    %311 = vdwg.mxu0
    %312 = vmatpush.bf16.msra.mxu0 %v245
    %313 = vmatpush.bf16.msra.mxu0 %v244
    %314 = vmatpush.bf16.msra.mxu0 %v243
    %315 = vmatpush.bf16.msra.mxu0 %v242
    %316 = vmatpush.bf16.msra.mxu0 %v241
    %317 = vmatpush.bf16.msra.mxu0 %v240
    %318 = vmatpush.bf16.msra.mxu0 %v239
    %319 = vmatpush.bf16.msra.mxu0 %v238
    %320 = vmatmul.bf16.gmra.mxu0 %v88
    %v321 = vpop.f32.mrf.mxu0
    %v322 = vadd.f32 %v309, %v321
    %v323 = vpop.f32.mrf.mxu0
    %324 = vdwg.mxu0
    %325 = vmatpush.bf16.msra.mxu0 %v253
    %326 = vmatpush.bf16.msra.mxu0 %v252
    %327 = vmatpush.bf16.msra.mxu0 %v251
    %328 = vmatpush.bf16.msra.mxu0 %v250
    %329 = vmatpush.bf16.msra.mxu0 %v249
    %330 = vmatpush.bf16.msra.mxu0 %v248
    %331 = vmatpush.bf16.msra.mxu0 %v247
    %332 = vmatpush.bf16.msra.mxu0 %v246
    %333 = vmatmul.bf16.gmra.mxu0 %v89
    %v334 = vpop.f32.mrf.mxu0
    %v335 = vadd.f32 %v322, %v334
    %v336 = vpop.f32.mrf.mxu0
    %337 = vdwg.mxu0
    %v338 = vmax.f32 %v335, -10.0
    %v339 = vmin.f32 %v338, 10.0
    %vm340 = vcmask 41984
    %v341 = vsel %vm340, %v339, -inf
    %342 = vmax.xlane.f32.xlu0 %v341
    %v343 = vpop.xlane.xlu0 %342
    %v344 = vsub.f32 %v339, %v343
    %v345 = vmul.f32 %v344, 1.442695
    %v346 = vpow.pop %v345
    %v347 = vsel %vm340, %v346, 0.0
    %348 = vadd.xlane.f32.xlu0 %v347
    %v349 = vpop.xlane.xlu0 %348
    %v350 = vrcp.pop %v349
    %v351 = vmul.f32 %v349, %v350
    %v352 = vsub.f32 1.0, %v351
    %v353 = vmul.f32 %v350, %v352
    %v354 = vadd.f32 %v350, %v353
    %vm355 = vweird.f32 %v349
    %vm356 = vweird.f32 %v350
    %vm357 = vmor %vm355, %vm356
    %v358 = vsel %vm357, %v350, %v354
    %v359 = vand.u32 2147483647, %v349
    %vm360 = vcmp.eq.f32.partialorder %v359, 8.507059e+37
    %v361 = vand.u32 %v349, 2147483648
    %v362 = vor.u32 1.1754944e-38, %v361
    %v363 = vsel %vm360, %v362, %v358
    %v364 = vmul.f32 %v346, %v363
    %365 = vst.msk [vmem:[#allocation2] sm:$0x3] %vm340, %v364
    // Predicated region
    $region14: #{policy_forward.9} parent=1 // pred_check
      _
    $region15: #{policy_forward.9} parent=1 // pred_check_branch
      %367 = sbr.rel (0) target = $region17
    $region16: #{policy_forward.9} parent=1 // pred_region
      %369 = vsyncadd [#allocation3], 0
      %s371 = sshll.u32 [#allocation2], 4
      %s372 = int_to_ptr.vmem [resolvable:$true] %s371
      %s373 = sshll.u32 %s3, 4
      %s374 = int_to_ptr.hbm [resolvable:$true] %s373
      %376 = dma.vmem_to_hbm [thread:$0]  %s372, 32, %s374, [#allocation3]
    $region17: #{policy_forward.9} parent=1 // pred_fallthru
      _
    // Predicated region
    $region18: #{policy_forward.9} parent=1 // pred_check
      _
    $region19: #{policy_forward.9} parent=1 // pred_check_branch
      %378 = sbr.rel (0) target = $region21
    $region20: #{policy_forward.9} parent=1 // pred_region
      %380 = dma.done [#allocation3], 32
    $region21: #{policy_forward.9} parent=1 // pred_fallthru
      _
    %381 = vsyncpa [#allocation3], 1

// kernel: policy_forward.8
$region0: #{policy_forward.8}
  #allocation0 [shape = 'u32[]', space=smem, size = 0x4, offset = 0x4, fixed_abs, tag = 'smem constant byte address 0x4 - core index']
  #allocation1 [shape = 'u32[72,128]{1,0:T(1,128)}', space=vmem, size = 0x9000, scoped, tag = 'internal scratch']
  #allocation2 [shape = 'f32[8,256]{1,0:T(8,128)}', space=vmem, size = 0x2000, scoped, tag = 'scratch operand']
  %s0 = inlined_call_operand.vmem [shape: bf16[8,3136], index: 0, kind: input, shape index: {}]
  %s1 = inlined_call_operand.vmem [shape: bf16[3136,512], index: 1, kind: input, shape index: {}]
  %s2 = inlined_call_operand.vmem [shape: f32[1,512], index: 2, kind: input, shape index: {}]
  %s3 = inlined_call_operand.vmem [shape: bf16[8,512], index: 3, kind: output, shape index: {}]
  %s4 = sld [smem:[#allocation0]]
  $region105: #{policy_forward.8} parent=0
    _
  %s6 = ssub.s32 1, %s4
  %s7 = scalar_select 0, %s6, %s4
  $region1: #{policy_forward.8} parent=0
    #allocation3 [shape = 'u8[3211264]{0}', space=vmem, size = 0x310000, scoped, tag = 'input window, operand 1']
    loop: start=0, step=1, limit=4
    $region2: #{policy_forward.8} parent=1 // loop_pre_header
      _
    $region3: #{policy_forward.8} parent=1 // loop_header
      %s9 = sphi 0, %s13
      %p10 = scmp.ge.s32.totalorder %s9, 4
      %s16 = sphi 0, %s35
      %s17 = sphi 0, %s31
      %s18 = sphi 0, %s27
      %s19 = sphi 0, %s16
      %s20 = sphi 0, %s17
      %s21 = sphi 0, %s18
      %s22 = sphi 0, %s19
      %s23 = sphi 0, %s20
      %s24 = sphi 0, %s21
      %s40 = sphi 0, %s42
      %s43 = sphi 0, %s40
      %s44 = sphi 0, %s43
      %s60 = sphi 0, %s44
      %s68 = sphi 0, %s70
      %s71 = sphi 0, %s68
      %s72 = sphi 0, %s71
      %s88 = sphi 0, %s72
      %s94 = sphi 0, %s96
      %s97 = sphi 0, %s94
      %s98 = sphi 0, %s97
      %s114 = sphi 0, %s98
      %s122 = sphi 0, %s124
      %s125 = sphi 0, %s122
      %s126 = sphi 0, %s125
      %s142 = sphi 0, %s126
    $region4: #{policy_forward.8} parent=1 // loop_header_branch
      %12 = sbr.rel (%p10) target = $region8
    $region5: #{policy_forward.8} parent=1 // loop_body
      %s14 = ssub.s32 %s9, 1
      %s15 = ssub.s32 %s9, 2
      %s25 = sadd.s32 1, %s18
      %p26 = scmp.ge.s32.totalorder %s25, 1
      %s27 = scalar_select %p26, 0, %s25
      %s28 = sadd.s32 1, %s17
      %s29 = scalar_select %p26, %s28, %s17
      %p30 = scmp.ge.s32.totalorder %s29, 2
      %s31 = scalar_select %p30, 0, %s29
      %s32 = sadd.s32 1, %s16
      %s33 = scalar_select %p30, %s32, %s16
      %p34 = scmp.ge.s32.totalorder %s33, 1
      %s35 = scalar_select %p34, 0, %s33
      %s36 = ssub.s32 %s16, %s35
      %s37 = ssub.s32 %s18, %s27
      %s38 = sor.u32 %s36, %s37
      %p39 = scmp.eq.s32.totalorder %s38, 0
      %s41 = sadd.s32 %s40, 1
      %s42 = scalar_select %p39, %s40, %s41
      %p45 = pneg %p39
      %p46 = scmp.eq.s32.totalorder %s9, 1
      %p47 = por %p45, %p46
      %p48 = scmp.ne.s32.totalorder %s40, %s43
      %p49 = scmp.eq.s32.totalorder %s9, 0
      %p50 = por %p48, %p49
      %p51 = scmp.ne.s32.totalorder %s40, %s43
      %p52 = scmp.eq.s32.totalorder %s14, 1
      %p53 = por %p51, %p52
      %p54 = scmp.ne.s32.totalorder %s43, %s44
      %p55 = scmp.eq.s32.totalorder %s14, 0
      %p56 = por %p54, %p55
      %p57 = scmp.ne.s32.totalorder %s43, %s44
      %p58 = scmp.eq.s32.totalorder %s15, 1
      %p59 = por %p57, %p58
      %p61 = scmp.ne.s32.totalorder %s44, %s60
      %p62 = scmp.eq.s32.totalorder %s15, 0
      %p63 = por %p61, %p62
      %s64 = ssub.s32 %s18, %s27
      %s65 = ssub.s32 %s17, %s31
      %s66 = sor.u32 %s64, %s65
      %p67 = scmp.eq.s32.totalorder %s66, 0
      %s69 = sadd.s32 %s68, 1
      %s70 = scalar_select %p67, %s68, %s69
      %p73 = pneg %p67
      %p74 = scmp.eq.s32.totalorder %s9, 1
      %p75 = por %p73, %p74
      %p76 = scmp.ne.s32.totalorder %s68, %s71
      %p77 = scmp.eq.s32.totalorder %s9, 0
      %p78 = por %p76, %p77
      %p79 = scmp.ne.s32.totalorder %s68, %s71
      %p80 = scmp.eq.s32.totalorder %s14, 1
      %p81 = por %p79, %p80
      %p82 = scmp.ne.s32.totalorder %s71, %s72
      %p83 = scmp.eq.s32.totalorder %s14, 0
      %p84 = por %p82, %p83
      %p85 = scmp.ne.s32.totalorder %s71, %s72
      %p86 = scmp.eq.s32.totalorder %s15, 1
      %p87 = por %p85, %p86
      %p89 = scmp.ne.s32.totalorder %s72, %s88
      %p90 = scmp.eq.s32.totalorder %s15, 0
      %p91 = por %p89, %p90
      %s92 = ssub.s32 %s17, %s31
      %p93 = scmp.eq.s32.totalorder %s92, 0
      %s95 = sadd.s32 %s94, 1
      %s96 = scalar_select %p93, %s94, %s95
      %p99 = pneg %p93
      %p100 = scmp.eq.s32.totalorder %s9, 1
      %p101 = por %p99, %p100
      %p102 = scmp.ne.s32.totalorder %s94, %s97
      %p103 = scmp.eq.s32.totalorder %s9, 0
      %p104 = por %p102, %p103
      %p105 = scmp.ne.s32.totalorder %s94, %s97
      %p106 = scmp.eq.s32.totalorder %s14, 1
      %p107 = por %p105, %p106
      %p108 = scmp.ne.s32.totalorder %s97, %s98
      %p109 = scmp.eq.s32.totalorder %s14, 0
      %p110 = por %p108, %p109
      %p111 = scmp.ne.s32.totalorder %s97, %s98
      %p112 = scmp.eq.s32.totalorder %s15, 1
      %p113 = por %p111, %p112
      %p115 = scmp.ne.s32.totalorder %s98, %s114
      %p116 = scmp.eq.s32.totalorder %s15, 0
      %p117 = por %p115, %p116
      %s118 = ssub.s32 %s16, %s35
      %s119 = ssub.s32 %s17, %s31
      %s120 = sor.u32 %s118, %s119
      %p121 = scmp.eq.s32.totalorder %s120, 0
      %s123 = sadd.s32 %s122, 1
      %s124 = scalar_select %p121, %s122, %s123
      %p127 = pneg %p121
      %p128 = scmp.eq.s32.totalorder %s9, 1
      %p129 = por %p127, %p128
      %p130 = scmp.ne.s32.totalorder %s122, %s125
      %p131 = scmp.eq.s32.totalorder %s9, 0
      %p132 = por %p130, %p131
      %p133 = scmp.ne.s32.totalorder %s122, %s125
      %p134 = scmp.eq.s32.totalorder %s14, 1
      %p135 = por %p133, %p134
      %p136 = scmp.ne.s32.totalorder %s125, %s126
      %p137 = scmp.eq.s32.totalorder %s14, 0
      %p138 = por %p136, %p137
      %p139 = scmp.ne.s32.totalorder %s125, %s126
      %p140 = scmp.eq.s32.totalorder %s15, 1
      %p141 = por %p139, %p140
      %p143 = scmp.ne.s32.totalorder %s126, %s142
      %p144 = scmp.eq.s32.totalorder %s15, 0
      %p145 = por %p143, %p144
      %p146 = scmp.le.s32.totalorder 1, %s9
      %p147 = scmp.lt.s32.totalorder %s9, 3
      %p148 = pnand %p146, %p147
      %p149 = pneg %p148
      // Predicated region
      $region9: #{policy_forward.8} parent=5 // pred_check
        _
      $region10: #{policy_forward.8} parent=5 // pred_check_branch
        %151 = sbr.rel (%p148) target = $region12
      $region11: #{policy_forward.8} parent=5 // pred_region
        %s152 = ssub.s32 %s9, 1
        // Predicated region
        $region13: #{policy_forward.8} parent=11 // pred_check
          %p153 = pneg %p56
        $region14: #{policy_forward.8} parent=11 // pred_check_branch
          %155 = sbr.rel (%p153) target = $region16
        $region15: #{policy_forward.8} parent=11 // pred_region
          %s156 = smul.u32 25, %s21
          %p157 = scmp.lt.s32.totalorder %s19, 0
          %s158 = scalar_select %p157, %s19, 0
          %p159 = scmp.lt.s32.totalorder %s156, 24
          %s160 = scalar_select %p159, %s156, 24
          %s161 = smul.addr %s158, 25
          %s162 = sadd.s32 %s160, %s161
          %s163 = smul.addr %s162, 4
          %s164 = scalar_lea.vmem %s0, %s163
          %s165 = smul.u32 25, %s21
        $region16: #{policy_forward.8} parent=11 // pred_fallthru
          _
      $region12: #{policy_forward.8} parent=5 // pred_fallthru
        _
      %p166 = scmp.lt.s32.totalorder %s9, 2
      // Predicated region
      $region17: #{policy_forward.8} parent=5 // pred_check
        %p167 = pneg %p166
      $region18: #{policy_forward.8} parent=5 // pred_check_branch
        %169 = sbr.rel (%p167) target = $region20
      $region19: #{policy_forward.8} parent=5 // pred_region
        // Predicated region
        $region21: #{policy_forward.8} parent=19 // pred_check
          %p170 = pneg %p78
        $region22: #{policy_forward.8} parent=19 // pred_check_branch
          %172 = sbr.rel (%p170) target = $region24
        $region23: #{policy_forward.8} parent=19 // pred_region
          %s173 = sand.u32 %s68, 1
          %s174 = sand.u32 %s68, 1
          %s175 = smul.addr %s174, 3136
          %s176 = scalar_lea.vmem [#allocation3], %s175
          %s177 = smul.u32 392, %s18
          %s178 = smul.u32 2, %s17
          %s179 = smul.addr %s177, 4
          %s180 = sadd.s32 %s178, %s179
          %s181 = smul.addr %s180, 4
          %s182 = scalar_lea.vmem %s1, %s181
          // Predicated region
          $region25: #{policy_forward.8} parent=23 // pred_check
            _
          $region26: #{policy_forward.8} parent=23 // pred_check_branch
            %184 = sbr.rel (0) target = $region28
          $region27: #{policy_forward.8} parent=23 // pred_region
            // Predicated region
            $region29: #{policy_forward.8} parent=27 // pred_check
              _
            $region30: #{policy_forward.8} parent=27 // pred_check_branch
              %186 = sbr.rel (0) target = $region32
            $region31: #{policy_forward.8} parent=27 // pred_region
              // Predicated region
              $region44: #{policy_forward.8} parent=31 // pred_check
                _
              $region45: #{policy_forward.8} parent=31 // pred_check_branch
                %984 = sbr.rel (0) target = $region47
              $region46: #{policy_forward.8} parent=31 // pred_region
                loop: start=0, step=1, limit=1
                $region48: #{policy_forward.8} parent=46 // loop_pre_header
                  _
                $region49: #{policy_forward.8} parent=46 // loop_header
                  %s986 = sphi 0, %s990
                  %p987 = scmp.ge.s32.totalorder %s986, 1
                  %s991 = sphi 0, %s1780
                  %s992 = sphi %s182, %s1783
                  %s993 = sphi %s176, %s1784
                $region50: #{policy_forward.8} parent=46 // loop_header_branch
                  %989 = sbr.rel (%p987) target = $region54
                $region51: #{policy_forward.8} parent=46 // loop_body
                  %v994 = vld [vmem:[%s992] sm:$0xff]
                  %995 = vst [vmem:[%s993] sm:$0xff] %v994
                  %v996 = vld [vmem:[%s992 + $0x10] sm:$0xff]
                  %997 = vst [vmem:[%s993 + $0x8] sm:$0xff] %v996
                  %v998 = vld [vmem:[%s992 + $0x20] sm:$0xff]
                  %999 = vst [vmem:[%s993 + $0x10] sm:$0xff] %v998
                  %v1000 = vld [vmem:[%s992 + $0x30] sm:$0xff]
                  %1001 = vst [vmem:[%s993 + $0x18] sm:$0xff] %v1000
                  %v1002 = vld [vmem:[%s992 + $0x40] sm:$0xff]
                  %1003 = vst [vmem:[%s993 + $0x20] sm:$0xff] %v1002
                  %v1004 = vld [vmem:[%s992 + $0x50] sm:$0xff]
                  %1005 = vst [vmem:[%s993 + $0x28] sm:$0xff] %v1004
                  %v1006 = vld [vmem:[%s992 + $0x60] sm:$0xff]
                  %1007 = vst [vmem:[%s993 + $0x30] sm:$0xff] %v1006
                  %v1008 = vld [vmem:[%s992 + $0x70] sm:$0xff]
                  %1009 = vst [vmem:[%s993 + $0x38] sm:$0xff] %v1008
                  %v1010 = vld [vmem:[%s992 + $0x80] sm:$0xff]
                  %1011 = vst [vmem:[%s993 + $0x40] sm:$0xff] %v1010
                  %v1012 = vld [vmem:[%s992 + $0x90] sm:$0xff]
                  %1013 = vst [vmem:[%s993 + $0x48] sm:$0xff] %v1012
                  %v1014 = vld [vmem:[%s992 + $0xa0] sm:$0xff]
                  %1015 = vst [vmem:[%s993 + $0x50] sm:$0xff] %v1014
                  %v1016 = vld [vmem:[%s992 + $0xb0] sm:$0xff]
                  %1017 = vst [vmem:[%s993 + $0x58] sm:$0xff] %v1016
                  %v1018 = vld [vmem:[%s992 + $0xc0] sm:$0xff]
                  %1019 = vst [vmem:[%s993 + $0x60] sm:$0xff] %v1018
                  %v1020 = vld [vmem:[%s992 + $0xd0] sm:$0xff]
                  %1021 = vst [vmem:[%s993 + $0x68] sm:$0xff] %v1020
                  %v1022 = vld [vmem:[%s992 + $0xe0] sm:$0xff]
                  %1023 = vst [vmem:[%s993 + $0x70] sm:$0xff] %v1022
                  %v1024 = vld [vmem:[%s992 + $0xf0] sm:$0xff]
                  %1025 = vst [vmem:[%s993 + $0x78] sm:$0xff] %v1024
                  %v1026 = vld [vmem:[%s992 + $0x100] sm:$0xff]
                  %1027 = vst [vmem:[%s993 + $0x80] sm:$0xff] %v1026
                  %v1028 = vld [vmem:[%s992 + $0x110] sm:$0xff]
                  %1029 = vst [vmem:[%s993 + $0x88] sm:$0xff] %v1028
                  %v1030 = vld [vmem:[%s992 + $0x120] sm:$0xff]
                  %1031 = vst [vmem:[%s993 + $0x90] sm:$0xff] %v1030
                  %v1032 = vld [vmem:[%s992 + $0x130] sm:$0xff]
                  %1033 = vst [vmem:[%s993 + $0x98] sm:$0xff] %v1032
                  %v1034 = vld [vmem:[%s992 + $0x140] sm:$0xff]
                  %1035 = vst [vmem:[%s993 + $0xa0] sm:$0xff] %v1034
                  %v1036 = vld [vmem:[%s992 + $0x150] sm:$0xff]
                  %1037 = vst [vmem:[%s993 + $0xa8] sm:$0xff] %v1036
                  %v1038 = vld [vmem:[%s992 + $0x160] sm:$0xff]
                  %1039 = vst [vmem:[%s993 + $0xb0] sm:$0xff] %v1038
                  %v1040 = vld [vmem:[%s992 + $0x170] sm:$0xff]
                  %1041 = vst [vmem:[%s993 + $0xb8] sm:$0xff] %v1040
                  %v1042 = vld [vmem:[%s992 + $0x180] sm:$0xff]
                  %1043 = vst [vmem:[%s993 + $0xc0] sm:$0xff] %v1042
                  %v1044 = vld [vmem:[%s992 + $0x190] sm:$0xff]
                  %1045 = vst [vmem:[%s993 + $0xc8] sm:$0xff] %v1044
                  %v1046 = vld [vmem:[%s992 + $0x1a0] sm:$0xff]
                  %1047 = vst [vmem:[%s993 + $0xd0] sm:$0xff] %v1046
                  %v1048 = vld [vmem:[%s992 + $0x1b0] sm:$0xff]
                  %1049 = vst [vmem:[%s993 + $0xd8] sm:$0xff] %v1048
                  %v1050 = vld [vmem:[%s992 + $0x1c0] sm:$0xff]
                  %1051 = vst [vmem:[%s993 + $0xe0] sm:$0xff] %v1050
                  %v1052 = vld [vmem:[%s992 + $0x1d0] sm:$0xff]
                  %1053 = vst [vmem:[%s993 + $0xe8] sm:$0xff] %v1052
                  %v1054 = vld [vmem:[%s992 + $0x1e0] sm:$0xff]
                  %1055 = vst [vmem:[%s993 + $0xf0] sm:$0xff] %v1054
                  %v1056 = vld [vmem:[%s992 + $0x1f0] sm:$0xff]
                  %1057 = vst [vmem:[%s993 + $0xf8] sm:$0xff] %v1056
                  %v1058 = vld [vmem:[%s992 + $0x200] sm:$0xff]
                  %1059 = vst [vmem:[%s993 + $0x100] sm:$0xff] %v1058
                  %v1060 = vld [vmem:[%s992 + $0x210] sm:$0xff]
                  %1061 = vst [vmem:[%s993 + $0x108] sm:$0xff] %v1060
                  %v1062 = vld [vmem:[%s992 + $0x220] sm:$0xff]
                  %1063 = vst [vmem:[%s993 + $0x110] sm:$0xff] %v1062
                  %v1064 = vld [vmem:[%s992 + $0x230] sm:$0xff]
                  %1065 = vst [vmem:[%s993 + $0x118] sm:$0xff] %v1064
                  %v1066 = vld [vmem:[%s992 + $0x240] sm:$0xff]
                  %1067 = vst [vmem:[%s993 + $0x120] sm:$0xff] %v1066
                  %v1068 = vld [vmem:[%s992 + $0x250] sm:$0xff]
                  %1069 = vst [vmem:[%s993 + $0x128] sm:$0xff] %v1068
                  %v1070 = vld [vmem:[%s992 + $0x260] sm:$0xff]
                  %1071 = vst [vmem:[%s993 + $0x130] sm:$0xff] %v1070
                  %v1072 = vld [vmem:[%s992 + $0x270] sm:$0xff]
                  %1073 = vst [vmem:[%s993 + $0x138] sm:$0xff] %v1072
                  %v1074 = vld [vmem:[%s992 + $0x280] sm:$0xff]
                  %1075 = vst [vmem:[%s993 + $0x140] sm:$0xff] %v1074
                  %v1076 = vld [vmem:[%s992 + $0x290] sm:$0xff]
                  %1077 = vst [vmem:[%s993 + $0x148] sm:$0xff] %v1076
                  %v1078 = vld [vmem:[%s992 + $0x2a0] sm:$0xff]
                  %1079 = vst [vmem:[%s993 + $0x150] sm:$0xff] %v1078
                  %v1080 = vld [vmem:[%s992 + $0x2b0] sm:$0xff]
                  %1081 = vst [vmem:[%s993 + $0x158] sm:$0xff] %v1080
                  %v1082 = vld [vmem:[%s992 + $0x2c0] sm:$0xff]
                  %1083 = vst [vmem:[%s993 + $0x160] sm:$0xff] %v1082
                  %v1084 = vld [vmem:[%s992 + $0x2d0] sm:$0xff]
                  %1085 = vst [vmem:[%s993 + $0x168] sm:$0xff] %v1084
                  %v1086 = vld [vmem:[%s992 + $0x2e0] sm:$0xff]
                  %1087 = vst [vmem:[%s993 + $0x170] sm:$0xff] %v1086
                  %v1088 = vld [vmem:[%s992 + $0x2f0] sm:$0xff]
                  %1089 = vst [vmem:[%s993 + $0x178] sm:$0xff] %v1088
                  %v1090 = vld [vmem:[%s992 + $0x300] sm:$0xff]
                  %1091 = vst [vmem:[%s993 + $0x180] sm:$0xff] %v1090
                  %v1092 = vld [vmem:[%s992 + $0x310] sm:$0xff]
                  %1093 = vst [vmem:[%s993 + $0x188] sm:$0xff] %v1092
                  %v1094 = vld [vmem:[%s992 + $0x320] sm:$0xff]
                  %1095 = vst [vmem:[%s993 + $0x190] sm:$0xff] %v1094
                  %v1096 = vld [vmem:[%s992 + $0x330] sm:$0xff]
                  %1097 = vst [vmem:[%s993 + $0x198] sm:$0xff] %v1096
                  %v1098 = vld [vmem:[%s992 + $0x340] sm:$0xff]
                  %1099 = vst [vmem:[%s993 + $0x1a0] sm:$0xff] %v1098
                  %v1100 = vld [vmem:[%s992 + $0x350] sm:$0xff]
                  %1101 = vst [vmem:[%s993 + $0x1a8] sm:$0xff] %v1100
                  %v1102 = vld [vmem:[%s992 + $0x360] sm:$0xff]
                  %1103 = vst [vmem:[%s993 + $0x1b0] sm:$0xff] %v1102
                  %v1104 = vld [vmem:[%s992 + $0x370] sm:$0xff]
                  %1105 = vst [vmem:[%s993 + $0x1b8] sm:$0xff] %v1104
                  %v1106 = vld [vmem:[%s992 + $0x380] sm:$0xff]
                  %1107 = vst [vmem:[%s993 + $0x1c0] sm:$0xff] %v1106
                  %v1108 = vld [vmem:[%s992 + $0x390] sm:$0xff]
                  %1109 = vst [vmem:[%s993 + $0x1c8] sm:$0xff] %v1108
                  %v1110 = vld [vmem:[%s992 + $0x3a0] sm:$0xff]
                  %1111 = vst [vmem:[%s993 + $0x1d0] sm:$0xff] %v1110
                  %v1112 = vld [vmem:[%s992 + $0x3b0] sm:$0xff]
                  %1113 = vst [vmem:[%s993 + $0x1d8] sm:$0xff] %v1112
                  %v1114 = vld [vmem:[%s992 + $0x3c0] sm:$0xff]
                  %1115 = vst [vmem:[%s993 + $0x1e0] sm:$0xff] %v1114
                  %v1116 = vld [vmem:[%s992 + $0x3d0] sm:$0xff]
                  %1117 = vst [vmem:[%s993 + $0x1e8] sm:$0xff] %v1116
                  %v1118 = vld [vmem:[%s992 + $0x3e0] sm:$0xff]
                  %1119 = vst [vmem:[%s993 + $0x1f0] sm:$0xff] %v1118
                  %v1120 = vld [vmem:[%s992 + $0x3f0] sm:$0xff]
                  %1121 = vst [vmem:[%s993 + $0x1f8] sm:$0xff] %v1120
                  %v1122 = vld [vmem:[%s992 + $0x400] sm:$0xff]
                  %1123 = vst [vmem:[%s993 + $0x200] sm:$0xff] %v1122
                  %v1124 = vld [vmem:[%s992 + $0x410] sm:$0xff]
                  %1125 = vst [vmem:[%s993 + $0x208] sm:$0xff] %v1124
                  %v1126 = vld [vmem:[%s992 + $0x420] sm:$0xff]
                  %1127 = vst [vmem:[%s993 + $0x210] sm:$0xff] %v1126
                  %v1128 = vld [vmem:[%s992 + $0x430] sm:$0xff]
                  %1129 = vst [vmem:[%s993 + $0x218] sm:$0xff] %v1128
                  %v1130 = vld [vmem:[%s992 + $0x440] sm:$0xff]
                  %1131 = vst [vmem:[%s993 + $0x220] sm:$0xff] %v1130
                  %v1132 = vld [vmem:[%s992 + $0x450] sm:$0xff]
                  %1133 = vst [vmem:[%s993 + $0x228] sm:$0xff] %v1132
                  %v1134 = vld [vmem:[%s992 + $0x460] sm:$0xff]
                  %1135 = vst [vmem:[%s993 + $0x230] sm:$0xff] %v1134
                  %v1136 = vld [vmem:[%s992 + $0x470] sm:$0xff]
                  %1137 = vst [vmem:[%s993 + $0x238] sm:$0xff] %v1136
                  %v1138 = vld [vmem:[%s992 + $0x480] sm:$0xff]
                  %1139 = vst [vmem:[%s993 + $0x240] sm:$0xff] %v1138
                  %v1140 = vld [vmem:[%s992 + $0x490] sm:$0xff]
                  %1141 = vst [vmem:[%s993 + $0x248] sm:$0xff] %v1140
                  %v1142 = vld [vmem:[%s992 + $0x4a0] sm:$0xff]
                  %1143 = vst [vmem:[%s993 + $0x250] sm:$0xff] %v1142
                  %v1144 = vld [vmem:[%s992 + $0x4b0] sm:$0xff]
                  %1145 = vst [vmem:[%s993 + $0x258] sm:$0xff] %v1144
                  %v1146 = vld [vmem:[%s992 + $0x4c0] sm:$0xff]
                  %1147 = vst [vmem:[%s993 + $0x260] sm:$0xff] %v1146
                  %v1148 = vld [vmem:[%s992 + $0x4d0] sm:$0xff]
                  %1149 = vst [vmem:[%s993 + $0x268] sm:$0xff] %v1148
                  %v1150 = vld [vmem:[%s992 + $0x4e0] sm:$0xff]
                  %1151 = vst [vmem:[%s993 + $0x270] sm:$0xff] %v1150
                  %v1152 = vld [vmem:[%s992 + $0x4f0] sm:$0xff]
                  %1153 = vst [vmem:[%s993 + $0x278] sm:$0xff] %v1152
                  %v1154 = vld [vmem:[%s992 + $0x500] sm:$0xff]
                  %1155 = vst [vmem:[%s993 + $0x280] sm:$0xff] %v1154
                  %v1156 = vld [vmem:[%s992 + $0x510] sm:$0xff]
                  %1157 = vst [vmem:[%s993 + $0x288] sm:$0xff] %v1156
                  %v1158 = vld [vmem:[%s992 + $0x520] sm:$0xff]
                  %1159 = vst [vmem:[%s993 + $0x290] sm:$0xff] %v1158
                  %v1160 = vld [vmem:[%s992 + $0x530] sm:$0xff]
                  %1161 = vst [vmem:[%s993 + $0x298] sm:$0xff] %v1160
                  %v1162 = vld [vmem:[%s992 + $0x540] sm:$0xff]
                  %1163 = vst [vmem:[%s993 + $0x2a0] sm:$0xff] %v1162
                  %v1164 = vld [vmem:[%s992 + $0x550] sm:$0xff]
                  %1165 = vst [vmem:[%s993 + $0x2a8] sm:$0xff] %v1164
                  %v1166 = vld [vmem:[%s992 + $0x560] sm:$0xff]
                  %1167 = vst [vmem:[%s993 + $0x2b0] sm:$0xff] %v1166
                  %v1168 = vld [vmem:[%s992 + $0x570] sm:$0xff]
                  %1169 = vst [vmem:[%s993 + $0x2b8] sm:$0xff] %v1168
                  %v1170 = vld [vmem:[%s992 + $0x580] sm:$0xff]
                  %1171 = vst [vmem:[%s993 + $0x2c0] sm:$0xff] %v1170
                  %v1172 = vld [vmem:[%s992 + $0x590] sm:$0xff]
                  %1173 = vst [vmem:[%s993 + $0x2c8] sm:$0xff] %v1172
                  %v1174 = vld [vmem:[%s992 + $0x5a0] sm:$0xff]
                  %1175 = vst [vmem:[%s993 + $0x2d0] sm:$0xff] %v1174
                  %v1176 = vld [vmem:[%s992 + $0x5b0] sm:$0xff]
                  %1177 = vst [vmem:[%s993 + $0x2d8] sm:$0xff] %v1176
                  %v1178 = vld [vmem:[%s992 + $0x5c0] sm:$0xff]
                  %1179 = vst [vmem:[%s993 + $0x2e0] sm:$0xff] %v1178
                  %v1180 = vld [vmem:[%s992 + $0x5d0] sm:$0xff]
                  %1181 = vst [vmem:[%s993 + $0x2e8] sm:$0xff] %v1180
                  %v1182 = vld [vmem:[%s992 + $0x5e0] sm:$0xff]
                  %1183 = vst [vmem:[%s993 + $0x2f0] sm:$0xff] %v1182
                  %v1184 = vld [vmem:[%s992 + $0x5f0] sm:$0xff]
                  %1185 = vst [vmem:[%s993 + $0x2f8] sm:$0xff] %v1184
                  %v1186 = vld [vmem:[%s992 + $0x600] sm:$0xff]
                  %1187 = vst [vmem:[%s993 + $0x300] sm:$0xff] %v1186
                  %v1188 = vld [vmem:[%s992 + $0x610] sm:$0xff]
                  %1189 = vst [vmem:[%s993 + $0x308] sm:$0xff] %v1188
                  %v1190 = vld [vmem:[%s992 + $0x620] sm:$0xff]
                  %1191 = vst [vmem:[%s993 + $0x310] sm:$0xff] %v1190
                  %v1192 = vld [vmem:[%s992 + $0x630] sm:$0xff]
                  %1193 = vst [vmem:[%s993 + $0x318] sm:$0xff] %v1192
                  %v1194 = vld [vmem:[%s992 + $0x640] sm:$0xff]
                  %1195 = vst [vmem:[%s993 + $0x320] sm:$0xff] %v1194
                  %v1196 = vld [vmem:[%s992 + $0x650] sm:$0xff]
                  %1197 = vst [vmem:[%s993 + $0x328] sm:$0xff] %v1196
                  %v1198 = vld [vmem:[%s992 + $0x660] sm:$0xff]
                  %1199 = vst [vmem:[%s993 + $0x330] sm:$0xff] %v1198
                  %v1200 = vld [vmem:[%s992 + $0x670] sm:$0xff]
                  %1201 = vst [vmem:[%s993 + $0x338] sm:$0xff] %v1200
                  %v1202 = vld [vmem:[%s992 + $0x680] sm:$0xff]
                  %1203 = vst [vmem:[%s993 + $0x340] sm:$0xff] %v1202
                  %v1204 = vld [vmem:[%s992 + $0x690] sm:$0xff]
                  %1205 = vst [vmem:[%s993 + $0x348] sm:$0xff] %v1204
                  %v1206 = vld [vmem:[%s992 + $0x6a0] sm:$0xff]
                  %1207 = vst [vmem:[%s993 + $0x350] sm:$0xff] %v1206
                  %v1208 = vld [vmem:[%s992 + $0x6b0] sm:$0xff]
                  %1209 = vst [vmem:[%s993 + $0x358] sm:$0xff] %v1208
                  %v1210 = vld [vmem:[%s992 + $0x6c0] sm:$0xff]
                  %1211 = vst [vmem:[%s993 + $0x360] sm:$0xff] %v1210
                  %v1212 = vld [vmem:[%s992 + $0x6d0] sm:$0xff]
                  %1213 = vst [vmem:[%s993 + $0x368] sm:$0xff] %v1212
                  %v1214 = vld [vmem:[%s992 + $0x6e0] sm:$0xff]
                  %1215 = vst [vmem:[%s993 + $0x370] sm:$0xff] %v1214
                  %v1216 = vld [vmem:[%s992 + $0x6f0] sm:$0xff]
                  %1217 = vst [vmem:[%s993 + $0x378] sm:$0xff] %v1216
                  %v1218 = vld [vmem:[%s992 + $0x700] sm:$0xff]
                  %1219 = vst [vmem:[%s993 + $0x380] sm:$0xff] %v1218
                  %v1220 = vld [vmem:[%s992 + $0x710] sm:$0xff]
                  %1221 = vst [vmem:[%s993 + $0x388] sm:$0xff] %v1220
                  %v1222 = vld [vmem:[%s992 + $0x720] sm:$0xff]
                  %1223 = vst [vmem:[%s993 + $0x390] sm:$0xff] %v1222
                  %v1224 = vld [vmem:[%s992 + $0x730] sm:$0xff]
                  %1225 = vst [vmem:[%s993 + $0x398] sm:$0xff] %v1224
                  %v1226 = vld [vmem:[%s992 + $0x740] sm:$0xff]
                  %1227 = vst [vmem:[%s993 + $0x3a0] sm:$0xff] %v1226
                  %v1228 = vld [vmem:[%s992 + $0x750] sm:$0xff]
                  %1229 = vst [vmem:[%s993 + $0x3a8] sm:$0xff] %v1228
                  %v1230 = vld [vmem:[%s992 + $0x760] sm:$0xff]
                  %1231 = vst [vmem:[%s993 + $0x3b0] sm:$0xff] %v1230
                  %v1232 = vld [vmem:[%s992 + $0x770] sm:$0xff]
                  %1233 = vst [vmem:[%s993 + $0x3b8] sm:$0xff] %v1232
                  %v1234 = vld [vmem:[%s992 + $0x780] sm:$0xff]
                  %1235 = vst [vmem:[%s993 + $0x3c0] sm:$0xff] %v1234
                  %v1236 = vld [vmem:[%s992 + $0x790] sm:$0xff]
                  %1237 = vst [vmem:[%s993 + $0x3c8] sm:$0xff] %v1236
                  %v1238 = vld [vmem:[%s992 + $0x7a0] sm:$0xff]
                  %1239 = vst [vmem:[%s993 + $0x3d0] sm:$0xff] %v1238
                  %v1240 = vld [vmem:[%s992 + $0x7b0] sm:$0xff]
                  %1241 = vst [vmem:[%s993 + $0x3d8] sm:$0xff] %v1240
                  %v1242 = vld [vmem:[%s992 + $0x7c0] sm:$0xff]
                  %1243 = vst [vmem:[%s993 + $0x3e0] sm:$0xff] %v1242
                  %v1244 = vld [vmem:[%s992 + $0x7d0] sm:$0xff]
                  %1245 = vst [vmem:[%s993 + $0x3e8] sm:$0xff] %v1244
                  %v1246 = vld [vmem:[%s992 + $0x7e0] sm:$0xff]
                  %1247 = vst [vmem:[%s993 + $0x3f0] sm:$0xff] %v1246
                  %v1248 = vld [vmem:[%s992 + $0x7f0] sm:$0xff]
                  %1249 = vst [vmem:[%s993 + $0x3f8] sm:$0xff] %v1248
                  %v1250 = vld [vmem:[%s992 + $0x800] sm:$0xff]
                  %1251 = vst [vmem:[%s993 + $0x400] sm:$0xff] %v1250
                  %v1252 = vld [vmem:[%s992 + $0x810] sm:$0xff]
                  %1253 = vst [vmem:[%s993 + $0x408] sm:$0xff] %v1252
                  %v1254 = vld [vmem:[%s992 + $0x820] sm:$0xff]
                  %1255 = vst [vmem:[%s993 + $0x410] sm:$0xff] %v1254
                  %v1256 = vld [vmem:[%s992 + $0x830] sm:$0xff]
                  %1257 = vst [vmem:[%s993 + $0x418] sm:$0xff] %v1256
                  %v1258 = vld [vmem:[%s992 + $0x840] sm:$0xff]
                  %1259 = vst [vmem:[%s993 + $0x420] sm:$0xff] %v1258
                  %v1260 = vld [vmem:[%s992 + $0x850] sm:$0xff]
                  %1261 = vst [vmem:[%s993 + $0x428] sm:$0xff] %v1260
                  %v1262 = vld [vmem:[%s992 + $0x860] sm:$0xff]
                  %1263 = vst [vmem:[%s993 + $0x430] sm:$0xff] %v1262
                  %v1264 = vld [vmem:[%s992 + $0x870] sm:$0xff]
                  %1265 = vst [vmem:[%s993 + $0x438] sm:$0xff] %v1264
                  %v1266 = vld [vmem:[%s992 + $0x880] sm:$0xff]
                  %1267 = vst [vmem:[%s993 + $0x440] sm:$0xff] %v1266
                  %v1268 = vld [vmem:[%s992 + $0x890] sm:$0xff]
                  %1269 = vst [vmem:[%s993 + $0x448] sm:$0xff] %v1268
                  %v1270 = vld [vmem:[%s992 + $0x8a0] sm:$0xff]
                  %1271 = vst [vmem:[%s993 + $0x450] sm:$0xff] %v1270
                  %v1272 = vld [vmem:[%s992 + $0x8b0] sm:$0xff]
                  %1273 = vst [vmem:[%s993 + $0x458] sm:$0xff] %v1272
                  %v1274 = vld [vmem:[%s992 + $0x8c0] sm:$0xff]
                  %1275 = vst [vmem:[%s993 + $0x460] sm:$0xff] %v1274
                  %v1276 = vld [vmem:[%s992 + $0x8d0] sm:$0xff]
                  %1277 = vst [vmem:[%s993 + $0x468] sm:$0xff] %v1276
                  %v1278 = vld [vmem:[%s992 + $0x8e0] sm:$0xff]
                  %1279 = vst [vmem:[%s993 + $0x470] sm:$0xff] %v1278
                  %v1280 = vld [vmem:[%s992 + $0x8f0] sm:$0xff]
                  %1281 = vst [vmem:[%s993 + $0x478] sm:$0xff] %v1280
                  %v1282 = vld [vmem:[%s992 + $0x900] sm:$0xff]
                  %1283 = vst [vmem:[%s993 + $0x480] sm:$0xff] %v1282
                  %v1284 = vld [vmem:[%s992 + $0x910] sm:$0xff]
                  %1285 = vst [vmem:[%s993 + $0x488] sm:$0xff] %v1284
                  %v1286 = vld [vmem:[%s992 + $0x920] sm:$0xff]
                  %1287 = vst [vmem:[%s993 + $0x490] sm:$0xff] %v1286
                  %v1288 = vld [vmem:[%s992 + $0x930] sm:$0xff]
                  %1289 = vst [vmem:[%s993 + $0x498] sm:$0xff] %v1288
                  %v1290 = vld [vmem:[%s992 + $0x940] sm:$0xff]
                  %1291 = vst [vmem:[%s993 + $0x4a0] sm:$0xff] %v1290
                  %v1292 = vld [vmem:[%s992 + $0x950] sm:$0xff]
                  %1293 = vst [vmem:[%s993 + $0x4a8] sm:$0xff] %v1292
                  %v1294 = vld [vmem:[%s992 + $0x960] sm:$0xff]
                  %1295 = vst [vmem:[%s993 + $0x4b0] sm:$0xff] %v1294
                  %v1296 = vld [vmem:[%s992 + $0x970] sm:$0xff]
                  %1297 = vst [vmem:[%s993 + $0x4b8] sm:$0xff] %v1296
                  %v1298 = vld [vmem:[%s992 + $0x980] sm:$0xff]
                  %1299 = vst [vmem:[%s993 + $0x4c0] sm:$0xff] %v1298
                  %v1300 = vld [vmem:[%s992 + $0x990] sm:$0xff]
                  %1301 = vst [vmem:[%s993 + $0x4c8] sm:$0xff] %v1300
                  %v1302 = vld [vmem:[%s992 + $0x9a0] sm:$0xff]
                  %1303 = vst [vmem:[%s993 + $0x4d0] sm:$0xff] %v1302
                  %v1304 = vld [vmem:[%s992 + $0x9b0] sm:$0xff]
                  %1305 = vst [vmem:[%s993 + $0x4d8] sm:$0xff] %v1304
                  %v1306 = vld [vmem:[%s992 + $0x9c0] sm:$0xff]
                  %1307 = vst [vmem:[%s993 + $0x4e0] sm:$0xff] %v1306
                  %v1308 = vld [vmem:[%s992 + $0x9d0] sm:$0xff]
                  %1309 = vst [vmem:[%s993 + $0x4e8] sm:$0xff] %v1308
                  %v1310 = vld [vmem:[%s992 + $0x9e0] sm:$0xff]
                  %1311 = vst [vmem:[%s993 + $0x4f0] sm:$0xff] %v1310
                  %v1312 = vld [vmem:[%s992 + $0x9f0] sm:$0xff]
                  %1313 = vst [vmem:[%s993 + $0x4f8] sm:$0xff] %v1312
                  %v1314 = vld [vmem:[%s992 + $0xa00] sm:$0xff]
                  %1315 = vst [vmem:[%s993 + $0x500] sm:$0xff] %v1314
                  %v1316 = vld [vmem:[%s992 + $0xa10] sm:$0xff]
                  %1317 = vst [vmem:[%s993 + $0x508] sm:$0xff] %v1316
                  %v1318 = vld [vmem:[%s992 + $0xa20] sm:$0xff]
                  %1319 = vst [vmem:[%s993 + $0x510] sm:$0xff] %v1318
                  %v1320 = vld [vmem:[%s992 + $0xa30] sm:$0xff]
                  %1321 = vst [vmem:[%s993 + $0x518] sm:$0xff] %v1320
                  %v1322 = vld [vmem:[%s992 + $0xa40] sm:$0xff]
                  %1323 = vst [vmem:[%s993 + $0x520] sm:$0xff] %v1322
                  %v1324 = vld [vmem:[%s992 + $0xa50] sm:$0xff]
                  %1325 = vst [vmem:[%s993 + $0x528] sm:$0xff] %v1324
                  %v1326 = vld [vmem:[%s992 + $0xa60] sm:$0xff]
                  %1327 = vst [vmem:[%s993 + $0x530] sm:$0xff] %v1326
                  %v1328 = vld [vmem:[%s992 + $0xa70] sm:$0xff]
                  %1329 = vst [vmem:[%s993 + $0x538] sm:$0xff] %v1328
                  %v1330 = vld [vmem:[%s992 + $0xa80] sm:$0xff]
                  %1331 = vst [vmem:[%s993 + $0x540] sm:$0xff] %v1330
                  %v1332 = vld [vmem:[%s992 + $0xa90] sm:$0xff]
                  %1333 = vst [vmem:[%s993 + $0x548] sm:$0xff] %v1332
                  %v1334 = vld [vmem:[%s992 + $0xaa0] sm:$0xff]
                  %1335 = vst [vmem:[%s993 + $0x550] sm:$0xff] %v1334
                  %v1336 = vld [vmem:[%s992 + $0xab0] sm:$0xff]
                  %1337 = vst [vmem:[%s993 + $0x558] sm:$0xff] %v1336
                  %v1338 = vld [vmem:[%s992 + $0xac0] sm:$0xff]
                  %1339 = vst [vmem:[%s993 + $0x560] sm:$0xff] %v1338
                  %v1340 = vld [vmem:[%s992 + $0xad0] sm:$0xff]
                  %1341 = vst [vmem:[%s993 + $0x568] sm:$0xff] %v1340
                  %v1342 = vld [vmem:[%s992 + $0xae0] sm:$0xff]
                  %1343 = vst [vmem:[%s993 + $0x570] sm:$0xff] %v1342
                  %v1344 = vld [vmem:[%s992 + $0xaf0] sm:$0xff]
                  %1345 = vst [vmem:[%s993 + $0x578] sm:$0xff] %v1344
                  %v1346 = vld [vmem:[%s992 + $0xb00] sm:$0xff]
                  %1347 = vst [vmem:[%s993 + $0x580] sm:$0xff] %v1346
                  %v1348 = vld [vmem:[%s992 + $0xb10] sm:$0xff]
                  %1349 = vst [vmem:[%s993 + $0x588] sm:$0xff] %v1348
                  %v1350 = vld [vmem:[%s992 + $0xb20] sm:$0xff]
                  %1351 = vst [vmem:[%s993 + $0x590] sm:$0xff] %v1350
                  %v1352 = vld [vmem:[%s992 + $0xb30] sm:$0xff]
                  %1353 = vst [vmem:[%s993 + $0x598] sm:$0xff] %v1352
                  %v1354 = vld [vmem:[%s992 + $0xb40] sm:$0xff]
                  %1355 = vst [vmem:[%s993 + $0x5a0] sm:$0xff] %v1354
                  %v1356 = vld [vmem:[%s992 + $0xb50] sm:$0xff]
                  %1357 = vst [vmem:[%s993 + $0x5a8] sm:$0xff] %v1356
                  %v1358 = vld [vmem:[%s992 + $0xb60] sm:$0xff]
                  %1359 = vst [vmem:[%s993 + $0x5b0] sm:$0xff] %v1358
                  %v1360 = vld [vmem:[%s992 + $0xb70] sm:$0xff]
                  %1361 = vst [vmem:[%s993 + $0x5b8] sm:$0xff] %v1360
                  %v1362 = vld [vmem:[%s992 + $0xb80] sm:$0xff]
                  %1363 = vst [vmem:[%s993 + $0x5c0] sm:$0xff] %v1362
                  %v1364 = vld [vmem:[%s992 + $0xb90] sm:$0xff]
                  %1365 = vst [vmem:[%s993 + $0x5c8] sm:$0xff] %v1364
                  %v1366 = vld [vmem:[%s992 + $0xba0] sm:$0xff]
                  %1367 = vst [vmem:[%s993 + $0x5d0] sm:$0xff] %v1366
                  %v1368 = vld [vmem:[%s992 + $0xbb0] sm:$0xff]
                  %1369 = vst [vmem:[%s993 + $0x5d8] sm:$0xff] %v1368
                  %v1370 = vld [vmem:[%s992 + $0xbc0] sm:$0xff]
                  %1371 = vst [vmem:[%s993 + $0x5e0] sm:$0xff] %v1370
                  %v1372 = vld [vmem:[%s992 + $0xbd0] sm:$0xff]
                  %1373 = vst [vmem:[%s993 + $0x5e8] sm:$0xff] %v1372
                  %v1374 = vld [vmem:[%s992 + $0xbe0] sm:$0xff]
                  %1375 = vst [vmem:[%s993 + $0x5f0] sm:$0xff] %v1374
                  %v1376 = vld [vmem:[%s992 + $0xbf0] sm:$0xff]
                  %1377 = vst [vmem:[%s993 + $0x5f8] sm:$0xff] %v1376
                  %v1378 = vld [vmem:[%s992 + $0xc00] sm:$0xff]
                  %1379 = vst [vmem:[%s993 + $0x600] sm:$0xff] %v1378
                  %v1380 = vld [vmem:[%s992 + $0xc10] sm:$0xff]
                  %1381 = vst [vmem:[%s993 + $0x608] sm:$0xff] %v1380
                  %v1382 = vld [vmem:[%s992 + $0xc20] sm:$0xff]
                  %1383 = vst [vmem:[%s993 + $0x610] sm:$0xff] %v1382
                  %v1384 = vld [vmem:[%s992 + $0xc30] sm:$0xff]
                  %1385 = vst [vmem:[%s993 + $0x618] sm:$0xff] %v1384
                  %v1386 = vld [vmem:[%s992 + $0xc40] sm:$0xff]
                  %1387 = vst [vmem:[%s993 + $0x620] sm:$0xff] %v1386
                  %v1388 = vld [vmem:[%s992 + $0xc50] sm:$0xff]
                  %1389 = vst [vmem:[%s993 + $0x628] sm:$0xff] %v1388
                  %v1390 = vld [vmem:[%s992 + $0xc60] sm:$0xff]
                  %1391 = vst [vmem:[%s993 + $0x630] sm:$0xff] %v1390
                  %v1392 = vld [vmem:[%s992 + $0xc70] sm:$0xff]
                  %1393 = vst [vmem:[%s993 + $0x638] sm:$0xff] %v1392
                  %v1394 = vld [vmem:[%s992 + $0xc80] sm:$0xff]
                  %1395 = vst [vmem:[%s993 + $0x640] sm:$0xff] %v1394
                  %v1396 = vld [vmem:[%s992 + $0xc90] sm:$0xff]
                  %1397 = vst [vmem:[%s993 + $0x648] sm:$0xff] %v1396
                  %v1398 = vld [vmem:[%s992 + $0xca0] sm:$0xff]
                  %1399 = vst [vmem:[%s993 + $0x650] sm:$0xff] %v1398
                  %v1400 = vld [vmem:[%s992 + $0xcb0] sm:$0xff]
                  %1401 = vst [vmem:[%s993 + $0x658] sm:$0xff] %v1400
                  %v1402 = vld [vmem:[%s992 + $0xcc0] sm:$0xff]
                  %1403 = vst [vmem:[%s993 + $0x660] sm:$0xff] %v1402
                  %v1404 = vld [vmem:[%s992 + $0xcd0] sm:$0xff]
                  %1405 = vst [vmem:[%s993 + $0x668] sm:$0xff] %v1404
                  %v1406 = vld [vmem:[%s992 + $0xce0] sm:$0xff]
                  %1407 = vst [vmem:[%s993 + $0x670] sm:$0xff] %v1406
                  %v1408 = vld [vmem:[%s992 + $0xcf0] sm:$0xff]
                  %1409 = vst [vmem:[%s993 + $0x678] sm:$0xff] %v1408
                  %v1410 = vld [vmem:[%s992 + $0xd00] sm:$0xff]
                  %1411 = vst [vmem:[%s993 + $0x680] sm:$0xff] %v1410
                  %v1412 = vld [vmem:[%s992 + $0xd10] sm:$0xff]
                  %1413 = vst [vmem:[%s993 + $0x688] sm:$0xff] %v1412
                  %v1414 = vld [vmem:[%s992 + $0xd20] sm:$0xff]
                  %1415 = vst [vmem:[%s993 + $0x690] sm:$0xff] %v1414
                  %v1416 = vld [vmem:[%s992 + $0xd30] sm:$0xff]
                  %1417 = vst [vmem:[%s993 + $0x698] sm:$0xff] %v1416
                  %v1418 = vld [vmem:[%s992 + $0xd40] sm:$0xff]
                  %1419 = vst [vmem:[%s993 + $0x6a0] sm:$0xff] %v1418
                  %v1420 = vld [vmem:[%s992 + $0xd50] sm:$0xff]
                  %1421 = vst [vmem:[%s993 + $0x6a8] sm:$0xff] %v1420
                  %v1422 = vld [vmem:[%s992 + $0xd60] sm:$0xff]
                  %1423 = vst [vmem:[%s993 + $0x6b0] sm:$0xff] %v1422
                  %v1424 = vld [vmem:[%s992 + $0xd70] sm:$0xff]
                  %1425 = vst [vmem:[%s993 + $0x6b8] sm:$0xff] %v1424
                  %v1426 = vld [vmem:[%s992 + $0xd80] sm:$0xff]
                  %1427 = vst [vmem:[%s993 + $0x6c0] sm:$0xff] %v1426
                  %v1428 = vld [vmem:[%s992 + $0xd90] sm:$0xff]
                  %1429 = vst [vmem:[%s993 + $0x6c8] sm:$0xff] %v1428
                  %v1430 = vld [vmem:[%s992 + $0xda0] sm:$0xff]
                  %1431 = vst [vmem:[%s993 + $0x6d0] sm:$0xff] %v1430
                  %v1432 = vld [vmem:[%s992 + $0xdb0] sm:$0xff]
                  %1433 = vst [vmem:[%s993 + $0x6d8] sm:$0xff] %v1432
                  %v1434 = vld [vmem:[%s992 + $0xdc0] sm:$0xff]
                  %1435 = vst [vmem:[%s993 + $0x6e0] sm:$0xff] %v1434
                  %v1436 = vld [vmem:[%s992 + $0xdd0] sm:$0xff]
                  %1437 = vst [vmem:[%s993 + $0x6e8] sm:$0xff] %v1436
                  %v1438 = vld [vmem:[%s992 + $0xde0] sm:$0xff]
                  %1439 = vst [vmem:[%s993 + $0x6f0] sm:$0xff] %v1438
                  %v1440 = vld [vmem:[%s992 + $0xdf0] sm:$0xff]
                  %1441 = vst [vmem:[%s993 + $0x6f8] sm:$0xff] %v1440
                  %v1442 = vld [vmem:[%s992 + $0xe00] sm:$0xff]
                  %1443 = vst [vmem:[%s993 + $0x700] sm:$0xff] %v1442
                  %v1444 = vld [vmem:[%s992 + $0xe10] sm:$0xff]
                  %1445 = vst [vmem:[%s993 + $0x708] sm:$0xff] %v1444
                  %v1446 = vld [vmem:[%s992 + $0xe20] sm:$0xff]
                  %1447 = vst [vmem:[%s993 + $0x710] sm:$0xff] %v1446
                  %v1448 = vld [vmem:[%s992 + $0xe30] sm:$0xff]
                  %1449 = vst [vmem:[%s993 + $0x718] sm:$0xff] %v1448
                  %v1450 = vld [vmem:[%s992 + $0xe40] sm:$0xff]
                  %1451 = vst [vmem:[%s993 + $0x720] sm:$0xff] %v1450
                  %v1452 = vld [vmem:[%s992 + $0xe50] sm:$0xff]
                  %1453 = vst [vmem:[%s993 + $0x728] sm:$0xff] %v1452
                  %v1454 = vld [vmem:[%s992 + $0xe60] sm:$0xff]
                  %1455 = vst [vmem:[%s993 + $0x730] sm:$0xff] %v1454
                  %v1456 = vld [vmem:[%s992 + $0xe70] sm:$0xff]
                  %1457 = vst [vmem:[%s993 + $0x738] sm:$0xff] %v1456
                  %v1458 = vld [vmem:[%s992 + $0xe80] sm:$0xff]
                  %1459 = vst [vmem:[%s993 + $0x740] sm:$0xff] %v1458
                  %v1460 = vld [vmem:[%s992 + $0xe90] sm:$0xff]
                  %1461 = vst [vmem:[%s993 + $0x748] sm:$0xff] %v1460
                  %v1462 = vld [vmem:[%s992 + $0xea0] sm:$0xff]
                  %1463 = vst [vmem:[%s993 + $0x750] sm:$0xff] %v1462
                  %v1464 = vld [vmem:[%s992 + $0xeb0] sm:$0xff]
                  %1465 = vst [vmem:[%s993 + $0x758] sm:$0xff] %v1464
                  %v1466 = vld [vmem:[%s992 + $0xec0] sm:$0xff]
                  %1467 = vst [vmem:[%s993 + $0x760] sm:$0xff] %v1466
                  %v1468 = vld [vmem:[%s992 + $0xed0] sm:$0xff]
                  %1469 = vst [vmem:[%s993 + $0x768] sm:$0xff] %v1468
                  %v1470 = vld [vmem:[%s992 + $0xee0] sm:$0xff]
                  %1471 = vst [vmem:[%s993 + $0x770] sm:$0xff] %v1470
                  %v1472 = vld [vmem:[%s992 + $0xef0] sm:$0xff]
                  %1473 = vst [vmem:[%s993 + $0x778] sm:$0xff] %v1472
                  %v1474 = vld [vmem:[%s992 + $0xf00] sm:$0xff]
                  %1475 = vst [vmem:[%s993 + $0x780] sm:$0xff] %v1474
                  %v1476 = vld [vmem:[%s992 + $0xf10] sm:$0xff]
                  %1477 = vst [vmem:[%s993 + $0x788] sm:$0xff] %v1476
                  %v1478 = vld [vmem:[%s992 + $0xf20] sm:$0xff]
                  %1479 = vst [vmem:[%s993 + $0x790] sm:$0xff] %v1478
                  %v1480 = vld [vmem:[%s992 + $0xf30] sm:$0xff]
                  %1481 = vst [vmem:[%s993 + $0x798] sm:$0xff] %v1480
                  %v1482 = vld [vmem:[%s992 + $0xf40] sm:$0xff]
                  %1483 = vst [vmem:[%s993 + $0x7a0] sm:$0xff] %v1482
                  %v1484 = vld [vmem:[%s992 + $0xf50] sm:$0xff]
                  %1485 = vst [vmem:[%s993 + $0x7a8] sm:$0xff] %v1484
                  %v1486 = vld [vmem:[%s992 + $0xf60] sm:$0xff]
                  %1487 = vst [vmem:[%s993 + $0x7b0] sm:$0xff] %v1486
                  %v1488 = vld [vmem:[%s992 + $0xf70] sm:$0xff]
                  %1489 = vst [vmem:[%s993 + $0x7b8] sm:$0xff] %v1488
                  %v1490 = vld [vmem:[%s992 + $0xf80] sm:$0xff]
                  %1491 = vst [vmem:[%s993 + $0x7c0] sm:$0xff] %v1490
                  %v1492 = vld [vmem:[%s992 + $0xf90] sm:$0xff]
                  %1493 = vst [vmem:[%s993 + $0x7c8] sm:$0xff] %v1492
                  %v1494 = vld [vmem:[%s992 + $0xfa0] sm:$0xff]
                  %1495 = vst [vmem:[%s993 + $0x7d0] sm:$0xff] %v1494
                  %v1496 = vld [vmem:[%s992 + $0xfb0] sm:$0xff]
                  %1497 = vst [vmem:[%s993 + $0x7d8] sm:$0xff] %v1496
                  %v1498 = vld [vmem:[%s992 + $0xfc0] sm:$0xff]
                  %1499 = vst [vmem:[%s993 + $0x7e0] sm:$0xff] %v1498
                  %v1500 = vld [vmem:[%s992 + $0xfd0] sm:$0xff]
                  %1501 = vst [vmem:[%s993 + $0x7e8] sm:$0xff] %v1500
                  %v1502 = vld [vmem:[%s992 + $0xfe0] sm:$0xff]
                  %1503 = vst [vmem:[%s993 + $0x7f0] sm:$0xff] %v1502
                  %v1504 = vld [vmem:[%s992 + $0xff0] sm:$0xff]
                  %1505 = vst [vmem:[%s993 + $0x7f8] sm:$0xff] %v1504
                  %v1506 = vld [vmem:[%s992 + $0x1000] sm:$0xff]
                  %1507 = vst [vmem:[%s993 + $0x800] sm:$0xff] %v1506
                  %v1508 = vld [vmem:[%s992 + $0x1010] sm:$0xff]
                  %1509 = vst [vmem:[%s993 + $0x808] sm:$0xff] %v1508
                  %v1510 = vld [vmem:[%s992 + $0x1020] sm:$0xff]
                  %1511 = vst [vmem:[%s993 + $0x810] sm:$0xff] %v1510
                  %v1512 = vld [vmem:[%s992 + $0x1030] sm:$0xff]
                  %1513 = vst [vmem:[%s993 + $0x818] sm:$0xff] %v1512
                  %v1514 = vld [vmem:[%s992 + $0x1040] sm:$0xff]
                  %1515 = vst [vmem:[%s993 + $0x820] sm:$0xff] %v1514
                  %v1516 = vld [vmem:[%s992 + $0x1050] sm:$0xff]
                  %1517 = vst [vmem:[%s993 + $0x828] sm:$0xff] %v1516
                  %v1518 = vld [vmem:[%s992 + $0x1060] sm:$0xff]
                  %1519 = vst [vmem:[%s993 + $0x830] sm:$0xff] %v1518
                  %v1520 = vld [vmem:[%s992 + $0x1070] sm:$0xff]
                  %1521 = vst [vmem:[%s993 + $0x838] sm:$0xff] %v1520
                  %v1522 = vld [vmem:[%s992 + $0x1080] sm:$0xff]
                  %1523 = vst [vmem:[%s993 + $0x840] sm:$0xff] %v1522
                  %v1524 = vld [vmem:[%s992 + $0x1090] sm:$0xff]
                  %1525 = vst [vmem:[%s993 + $0x848] sm:$0xff] %v1524
                  %v1526 = vld [vmem:[%s992 + $0x10a0] sm:$0xff]
                  %1527 = vst [vmem:[%s993 + $0x850] sm:$0xff] %v1526
                  %v1528 = vld [vmem:[%s992 + $0x10b0] sm:$0xff]
                  %1529 = vst [vmem:[%s993 + $0x858] sm:$0xff] %v1528
                  %v1530 = vld [vmem:[%s992 + $0x10c0] sm:$0xff]
                  %1531 = vst [vmem:[%s993 + $0x860] sm:$0xff] %v1530
                  %v1532 = vld [vmem:[%s992 + $0x10d0] sm:$0xff]
                  %1533 = vst [vmem:[%s993 + $0x868] sm:$0xff] %v1532
                  %v1534 = vld [vmem:[%s992 + $0x10e0] sm:$0xff]
                  %1535 = vst [vmem:[%s993 + $0x870] sm:$0xff] %v1534
                  %v1536 = vld [vmem:[%s992 + $0x10f0] sm:$0xff]
                  %1537 = vst [vmem:[%s993 + $0x878] sm:$0xff] %v1536
                  %v1538 = vld [vmem:[%s992 + $0x1100] sm:$0xff]
                  %1539 = vst [vmem:[%s993 + $0x880] sm:$0xff] %v1538
                  %v1540 = vld [vmem:[%s992 + $0x1110] sm:$0xff]
                  %1541 = vst [vmem:[%s993 + $0x888] sm:$0xff] %v1540
                  %v1542 = vld [vmem:[%s992 + $0x1120] sm:$0xff]
                  %1543 = vst [vmem:[%s993 + $0x890] sm:$0xff] %v1542
                  %v1544 = vld [vmem:[%s992 + $0x1130] sm:$0xff]
                  %1545 = vst [vmem:[%s993 + $0x898] sm:$0xff] %v1544
                  %v1546 = vld [vmem:[%s992 + $0x1140] sm:$0xff]
                  %1547 = vst [vmem:[%s993 + $0x8a0] sm:$0xff] %v1546
                  %v1548 = vld [vmem:[%s992 + $0x1150] sm:$0xff]
                  %1549 = vst [vmem:[%s993 + $0x8a8] sm:$0xff] %v1548
                  %v1550 = vld [vmem:[%s992 + $0x1160] sm:$0xff]
                  %1551 = vst [vmem:[%s993 + $0x8b0] sm:$0xff] %v1550
                  %v1552 = vld [vmem:[%s992 + $0x1170] sm:$0xff]
                  %1553 = vst [vmem:[%s993 + $0x8b8] sm:$0xff] %v1552
                  %v1554 = vld [vmem:[%s992 + $0x1180] sm:$0xff]
                  %1555 = vst [vmem:[%s993 + $0x8c0] sm:$0xff] %v1554
                  %v1556 = vld [vmem:[%s992 + $0x1190] sm:$0xff]
                  %1557 = vst [vmem:[%s993 + $0x8c8] sm:$0xff] %v1556
                  %v1558 = vld [vmem:[%s992 + $0x11a0] sm:$0xff]
                  %1559 = vst [vmem:[%s993 + $0x8d0] sm:$0xff] %v1558
                  %v1560 = vld [vmem:[%s992 + $0x11b0] sm:$0xff]
                  %1561 = vst [vmem:[%s993 + $0x8d8] sm:$0xff] %v1560
                  %v1562 = vld [vmem:[%s992 + $0x11c0] sm:$0xff]
                  %1563 = vst [vmem:[%s993 + $0x8e0] sm:$0xff] %v1562
                  %v1564 = vld [vmem:[%s992 + $0x11d0] sm:$0xff]
                  %1565 = vst [vmem:[%s993 + $0x8e8] sm:$0xff] %v1564
                  %v1566 = vld [vmem:[%s992 + $0x11e0] sm:$0xff]
                  %1567 = vst [vmem:[%s993 + $0x8f0] sm:$0xff] %v1566
                  %v1568 = vld [vmem:[%s992 + $0x11f0] sm:$0xff]
                  %1569 = vst [vmem:[%s993 + $0x8f8] sm:$0xff] %v1568
                  %v1570 = vld [vmem:[%s992 + $0x1200] sm:$0xff]
                  %1571 = vst [vmem:[%s993 + $0x900] sm:$0xff] %v1570
                  %v1572 = vld [vmem:[%s992 + $0x1210] sm:$0xff]
                  %1573 = vst [vmem:[%s993 + $0x908] sm:$0xff] %v1572
                  %v1574 = vld [vmem:[%s992 + $0x1220] sm:$0xff]
                  %1575 = vst [vmem:[%s993 + $0x910] sm:$0xff] %v1574
                  %v1576 = vld [vmem:[%s992 + $0x1230] sm:$0xff]
                  %1577 = vst [vmem:[%s993 + $0x918] sm:$0xff] %v1576
                  %v1578 = vld [vmem:[%s992 + $0x1240] sm:$0xff]
                  %1579 = vst [vmem:[%s993 + $0x920] sm:$0xff] %v1578
                  %v1580 = vld [vmem:[%s992 + $0x1250] sm:$0xff]
                  %1581 = vst [vmem:[%s993 + $0x928] sm:$0xff] %v1580
                  %v1582 = vld [vmem:[%s992 + $0x1260] sm:$0xff]
                  %1583 = vst [vmem:[%s993 + $0x930] sm:$0xff] %v1582
                  %v1584 = vld [vmem:[%s992 + $0x1270] sm:$0xff]
                  %1585 = vst [vmem:[%s993 + $0x938] sm:$0xff] %v1584
                  %v1586 = vld [vmem:[%s992 + $0x1280] sm:$0xff]
                  %1587 = vst [vmem:[%s993 + $0x940] sm:$0xff] %v1586
                  %v1588 = vld [vmem:[%s992 + $0x1290] sm:$0xff]
                  %1589 = vst [vmem:[%s993 + $0x948] sm:$0xff] %v1588
                  %v1590 = vld [vmem:[%s992 + $0x12a0] sm:$0xff]
                  %1591 = vst [vmem:[%s993 + $0x950] sm:$0xff] %v1590
                  %v1592 = vld [vmem:[%s992 + $0x12b0] sm:$0xff]
                  %1593 = vst [vmem:[%s993 + $0x958] sm:$0xff] %v1592
                  %v1594 = vld [vmem:[%s992 + $0x12c0] sm:$0xff]
                  %1595 = vst [vmem:[%s993 + $0x960] sm:$0xff] %v1594
                  %v1596 = vld [vmem:[%s992 + $0x12d0] sm:$0xff]
                  %1597 = vst [vmem:[%s993 + $0x968] sm:$0xff] %v1596
                  %v1598 = vld [vmem:[%s992 + $0x12e0] sm:$0xff]
                  %1599 = vst [vmem:[%s993 + $0x970] sm:$0xff] %v1598
                  %v1600 = vld [vmem:[%s992 + $0x12f0] sm:$0xff]
                  %1601 = vst [vmem:[%s993 + $0x978] sm:$0xff] %v1600
                  %v1602 = vld [vmem:[%s992 + $0x1300] sm:$0xff]
                  %1603 = vst [vmem:[%s993 + $0x980] sm:$0xff] %v1602
                  %v1604 = vld [vmem:[%s992 + $0x1310] sm:$0xff]
                  %1605 = vst [vmem:[%s993 + $0x988] sm:$0xff] %v1604
                  %v1606 = vld [vmem:[%s992 + $0x1320] sm:$0xff]
                  %1607 = vst [vmem:[%s993 + $0x990] sm:$0xff] %v1606
                  %v1608 = vld [vmem:[%s992 + $0x1330] sm:$0xff]
                  %1609 = vst [vmem:[%s993 + $0x998] sm:$0xff] %v1608
                  %v1610 = vld [vmem:[%s992 + $0x1340] sm:$0xff]
                  %1611 = vst [vmem:[%s993 + $0x9a0] sm:$0xff] %v1610
                  %v1612 = vld [vmem:[%s992 + $0x1350] sm:$0xff]
                  %1613 = vst [vmem:[%s993 + $0x9a8] sm:$0xff] %v1612
                  %v1614 = vld [vmem:[%s992 + $0x1360] sm:$0xff]
                  %1615 = vst [vmem:[%s993 + $0x9b0] sm:$0xff] %v1614
                  %v1616 = vld [vmem:[%s992 + $0x1370] sm:$0xff]
                  %1617 = vst [vmem:[%s993 + $0x9b8] sm:$0xff] %v1616
                  %v1618 = vld [vmem:[%s992 + $0x1380] sm:$0xff]
                  %1619 = vst [vmem:[%s993 + $0x9c0] sm:$0xff] %v1618
                  %v1620 = vld [vmem:[%s992 + $0x1390] sm:$0xff]
                  %1621 = vst [vmem:[%s993 + $0x9c8] sm:$0xff] %v1620
                  %v1622 = vld [vmem:[%s992 + $0x13a0] sm:$0xff]
                  %1623 = vst [vmem:[%s993 + $0x9d0] sm:$0xff] %v1622
                  %v1624 = vld [vmem:[%s992 + $0x13b0] sm:$0xff]
                  %1625 = vst [vmem:[%s993 + $0x9d8] sm:$0xff] %v1624
                  %v1626 = vld [vmem:[%s992 + $0x13c0] sm:$0xff]
                  %1627 = vst [vmem:[%s993 + $0x9e0] sm:$0xff] %v1626
                  %v1628 = vld [vmem:[%s992 + $0x13d0] sm:$0xff]
                  %1629 = vst [vmem:[%s993 + $0x9e8] sm:$0xff] %v1628
                  %v1630 = vld [vmem:[%s992 + $0x13e0] sm:$0xff]
                  %1631 = vst [vmem:[%s993 + $0x9f0] sm:$0xff] %v1630
                  %v1632 = vld [vmem:[%s992 + $0x13f0] sm:$0xff]
                  %1633 = vst [vmem:[%s993 + $0x9f8] sm:$0xff] %v1632
                  %v1634 = vld [vmem:[%s992 + $0x1400] sm:$0xff]
                  %1635 = vst [vmem:[%s993 + $0xa00] sm:$0xff] %v1634
                  %v1636 = vld [vmem:[%s992 + $0x1410] sm:$0xff]
                  %1637 = vst [vmem:[%s993 + $0xa08] sm:$0xff] %v1636
                  %v1638 = vld [vmem:[%s992 + $0x1420] sm:$0xff]
                  %1639 = vst [vmem:[%s993 + $0xa10] sm:$0xff] %v1638
                  %v1640 = vld [vmem:[%s992 + $0x1430] sm:$0xff]
                  %1641 = vst [vmem:[%s993 + $0xa18] sm:$0xff] %v1640
                  %v1642 = vld [vmem:[%s992 + $0x1440] sm:$0xff]
                  %1643 = vst [vmem:[%s993 + $0xa20] sm:$0xff] %v1642
                  %v1644 = vld [vmem:[%s992 + $0x1450] sm:$0xff]
                  %1645 = vst [vmem:[%s993 + $0xa28] sm:$0xff] %v1644
                  %v1646 = vld [vmem:[%s992 + $0x1460] sm:$0xff]
                  %1647 = vst [vmem:[%s993 + $0xa30] sm:$0xff] %v1646
                  %v1648 = vld [vmem:[%s992 + $0x1470] sm:$0xff]
                  %1649 = vst [vmem:[%s993 + $0xa38] sm:$0xff] %v1648
                  %v1650 = vld [vmem:[%s992 + $0x1480] sm:$0xff]
                  %1651 = vst [vmem:[%s993 + $0xa40] sm:$0xff] %v1650
                  %v1652 = vld [vmem:[%s992 + $0x1490] sm:$0xff]
                  %1653 = vst [vmem:[%s993 + $0xa48] sm:$0xff] %v1652
                  %v1654 = vld [vmem:[%s992 + $0x14a0] sm:$0xff]
                  %1655 = vst [vmem:[%s993 + $0xa50] sm:$0xff] %v1654
                  %v1656 = vld [vmem:[%s992 + $0x14b0] sm:$0xff]
                  %1657 = vst [vmem:[%s993 + $0xa58] sm:$0xff] %v1656
                  %v1658 = vld [vmem:[%s992 + $0x14c0] sm:$0xff]
                  %1659 = vst [vmem:[%s993 + $0xa60] sm:$0xff] %v1658
                  %v1660 = vld [vmem:[%s992 + $0x14d0] sm:$0xff]
                  %1661 = vst [vmem:[%s993 + $0xa68] sm:$0xff] %v1660
                  %v1662 = vld [vmem:[%s992 + $0x14e0] sm:$0xff]
                  %1663 = vst [vmem:[%s993 + $0xa70] sm:$0xff] %v1662
                  %v1664 = vld [vmem:[%s992 + $0x14f0] sm:$0xff]
                  %1665 = vst [vmem:[%s993 + $0xa78] sm:$0xff] %v1664
                  %v1666 = vld [vmem:[%s992 + $0x1500] sm:$0xff]
                  %1667 = vst [vmem:[%s993 + $0xa80] sm:$0xff] %v1666
                  %v1668 = vld [vmem:[%s992 + $0x1510] sm:$0xff]
                  %1669 = vst [vmem:[%s993 + $0xa88] sm:$0xff] %v1668
                  %v1670 = vld [vmem:[%s992 + $0x1520] sm:$0xff]
                  %1671 = vst [vmem:[%s993 + $0xa90] sm:$0xff] %v1670
                  %v1672 = vld [vmem:[%s992 + $0x1530] sm:$0xff]
                  %1673 = vst [vmem:[%s993 + $0xa98] sm:$0xff] %v1672
                  %v1674 = vld [vmem:[%s992 + $0x1540] sm:$0xff]
                  %1675 = vst [vmem:[%s993 + $0xaa0] sm:$0xff] %v1674
                  %v1676 = vld [vmem:[%s992 + $0x1550] sm:$0xff]
                  %1677 = vst [vmem:[%s993 + $0xaa8] sm:$0xff] %v1676
                  %v1678 = vld [vmem:[%s992 + $0x1560] sm:$0xff]
                  %1679 = vst [vmem:[%s993 + $0xab0] sm:$0xff] %v1678
                  %v1680 = vld [vmem:[%s992 + $0x1570] sm:$0xff]
                  %1681 = vst [vmem:[%s993 + $0xab8] sm:$0xff] %v1680
                  %v1682 = vld [vmem:[%s992 + $0x1580] sm:$0xff]
                  %1683 = vst [vmem:[%s993 + $0xac0] sm:$0xff] %v1682
                  %v1684 = vld [vmem:[%s992 + $0x1590] sm:$0xff]
                  %1685 = vst [vmem:[%s993 + $0xac8] sm:$0xff] %v1684
                  %v1686 = vld [vmem:[%s992 + $0x15a0] sm:$0xff]
                  %1687 = vst [vmem:[%s993 + $0xad0] sm:$0xff] %v1686
                  %v1688 = vld [vmem:[%s992 + $0x15b0] sm:$0xff]
                  %1689 = vst [vmem:[%s993 + $0xad8] sm:$0xff] %v1688
                  %v1690 = vld [vmem:[%s992 + $0x15c0] sm:$0xff]
                  %1691 = vst [vmem:[%s993 + $0xae0] sm:$0xff] %v1690
                  %v1692 = vld [vmem:[%s992 + $0x15d0] sm:$0xff]
                  %1693 = vst [vmem:[%s993 + $0xae8] sm:$0xff] %v1692
                  %v1694 = vld [vmem:[%s992 + $0x15e0] sm:$0xff]
                  %1695 = vst [vmem:[%s993 + $0xaf0] sm:$0xff] %v1694
                  %v1696 = vld [vmem:[%s992 + $0x15f0] sm:$0xff]
                  %1697 = vst [vmem:[%s993 + $0xaf8] sm:$0xff] %v1696
                  %v1698 = vld [vmem:[%s992 + $0x1600] sm:$0xff]
                  %1699 = vst [vmem:[%s993 + $0xb00] sm:$0xff] %v1698
                  %v1700 = vld [vmem:[%s992 + $0x1610] sm:$0xff]
                  %1701 = vst [vmem:[%s993 + $0xb08] sm:$0xff] %v1700
                  %v1702 = vld [vmem:[%s992 + $0x1620] sm:$0xff]
                  %1703 = vst [vmem:[%s993 + $0xb10] sm:$0xff] %v1702
                  %v1704 = vld [vmem:[%s992 + $0x1630] sm:$0xff]
                  %1705 = vst [vmem:[%s993 + $0xb18] sm:$0xff] %v1704
                  %v1706 = vld [vmem:[%s992 + $0x1640] sm:$0xff]
                  %1707 = vst [vmem:[%s993 + $0xb20] sm:$0xff] %v1706
                  %v1708 = vld [vmem:[%s992 + $0x1650] sm:$0xff]
                  %1709 = vst [vmem:[%s993 + $0xb28] sm:$0xff] %v1708
                  %v1710 = vld [vmem:[%s992 + $0x1660] sm:$0xff]
                  %1711 = vst [vmem:[%s993 + $0xb30] sm:$0xff] %v1710
                  %v1712 = vld [vmem:[%s992 + $0x1670] sm:$0xff]
                  %1713 = vst [vmem:[%s993 + $0xb38] sm:$0xff] %v1712
                  %v1714 = vld [vmem:[%s992 + $0x1680] sm:$0xff]
                  %1715 = vst [vmem:[%s993 + $0xb40] sm:$0xff] %v1714
                  %v1716 = vld [vmem:[%s992 + $0x1690] sm:$0xff]
                  %1717 = vst [vmem:[%s993 + $0xb48] sm:$0xff] %v1716
                  %v1718 = vld [vmem:[%s992 + $0x16a0] sm:$0xff]
                  %1719 = vst [vmem:[%s993 + $0xb50] sm:$0xff] %v1718
                  %v1720 = vld [vmem:[%s992 + $0x16b0] sm:$0xff]
                  %1721 = vst [vmem:[%s993 + $0xb58] sm:$0xff] %v1720
                  %v1722 = vld [vmem:[%s992 + $0x16c0] sm:$0xff]
                  %1723 = vst [vmem:[%s993 + $0xb60] sm:$0xff] %v1722
                  %v1724 = vld [vmem:[%s992 + $0x16d0] sm:$0xff]
                  %1725 = vst [vmem:[%s993 + $0xb68] sm:$0xff] %v1724
                  %v1726 = vld [vmem:[%s992 + $0x16e0] sm:$0xff]
                  %1727 = vst [vmem:[%s993 + $0xb70] sm:$0xff] %v1726
                  %v1728 = vld [vmem:[%s992 + $0x16f0] sm:$0xff]
                  %1729 = vst [vmem:[%s993 + $0xb78] sm:$0xff] %v1728
                  %v1730 = vld [vmem:[%s992 + $0x1700] sm:$0xff]
                  %1731 = vst [vmem:[%s993 + $0xb80] sm:$0xff] %v1730
                  %v1732 = vld [vmem:[%s992 + $0x1710] sm:$0xff]
                  %1733 = vst [vmem:[%s993 + $0xb88] sm:$0xff] %v1732
                  %v1734 = vld [vmem:[%s992 + $0x1720] sm:$0xff]
                  %1735 = vst [vmem:[%s993 + $0xb90] sm:$0xff] %v1734
                  %v1736 = vld [vmem:[%s992 + $0x1730] sm:$0xff]
                  %1737 = vst [vmem:[%s993 + $0xb98] sm:$0xff] %v1736
                  %v1738 = vld [vmem:[%s992 + $0x1740] sm:$0xff]
                  %1739 = vst [vmem:[%s993 + $0xba0] sm:$0xff] %v1738
                  %v1740 = vld [vmem:[%s992 + $0x1750] sm:$0xff]
                  %1741 = vst [vmem:[%s993 + $0xba8] sm:$0xff] %v1740
                  %v1742 = vld [vmem:[%s992 + $0x1760] sm:$0xff]
                  %1743 = vst [vmem:[%s993 + $0xbb0] sm:$0xff] %v1742
                  %v1744 = vld [vmem:[%s992 + $0x1770] sm:$0xff]
                  %1745 = vst [vmem:[%s993 + $0xbb8] sm:$0xff] %v1744
                  %v1746 = vld [vmem:[%s992 + $0x1780] sm:$0xff]
                  %1747 = vst [vmem:[%s993 + $0xbc0] sm:$0xff] %v1746
                  %v1748 = vld [vmem:[%s992 + $0x1790] sm:$0xff]
                  %1749 = vst [vmem:[%s993 + $0xbc8] sm:$0xff] %v1748
                  %v1750 = vld [vmem:[%s992 + $0x17a0] sm:$0xff]
                  %1751 = vst [vmem:[%s993 + $0xbd0] sm:$0xff] %v1750
                  %v1752 = vld [vmem:[%s992 + $0x17b0] sm:$0xff]
                  %1753 = vst [vmem:[%s993 + $0xbd8] sm:$0xff] %v1752
                  %v1754 = vld [vmem:[%s992 + $0x17c0] sm:$0xff]
                  %1755 = vst [vmem:[%s993 + $0xbe0] sm:$0xff] %v1754
                  %v1756 = vld [vmem:[%s992 + $0x17d0] sm:$0xff]
                  %1757 = vst [vmem:[%s993 + $0xbe8] sm:$0xff] %v1756
                  %v1758 = vld [vmem:[%s992 + $0x17e0] sm:$0xff]
                  %1759 = vst [vmem:[%s993 + $0xbf0] sm:$0xff] %v1758
                  %v1760 = vld [vmem:[%s992 + $0x17f0] sm:$0xff]
                  %1761 = vst [vmem:[%s993 + $0xbf8] sm:$0xff] %v1760
                  %v1762 = vld [vmem:[%s992 + $0x1800] sm:$0xff]
                  %1763 = vst [vmem:[%s993 + $0xc00] sm:$0xff] %v1762
                  %v1764 = vld [vmem:[%s992 + $0x1810] sm:$0xff]
                  %1765 = vst [vmem:[%s993 + $0xc08] sm:$0xff] %v1764
                  %v1766 = vld [vmem:[%s992 + $0x1820] sm:$0xff]
                  %1767 = vst [vmem:[%s993 + $0xc10] sm:$0xff] %v1766
                  %v1768 = vld [vmem:[%s992 + $0x1830] sm:$0xff]
                  %1769 = vst [vmem:[%s993 + $0xc18] sm:$0xff] %v1768
                  %v1770 = vld [vmem:[%s992 + $0x1840] sm:$0xff]
                  %1771 = vst [vmem:[%s993 + $0xc20] sm:$0xff] %v1770
                  %v1772 = vld [vmem:[%s992 + $0x1850] sm:$0xff]
                  %1773 = vst [vmem:[%s993 + $0xc28] sm:$0xff] %v1772
                  %v1774 = vld [vmem:[%s992 + $0x1860] sm:$0xff]
                  %1775 = vst [vmem:[%s993 + $0xc30] sm:$0xff] %v1774
                  %v1776 = vld [vmem:[%s992 + $0x1870] sm:$0xff]
                  %1777 = vst [vmem:[%s993 + $0xc38] sm:$0xff] %v1776
                  %s1778 = sadd.s32 1, %s991
                  %p1779 = scmp.ge.s32.totalorder %s1778, 1
                  %s1780 = scalar_select %p1779, 0, %s1778
                  %s1781 = smul.u32 %s1780, 8
                  %s1782 = smul.u32 %s1780, 8
                  %s1783 = scalar_lea.vmem %s182, %s1781
                  %s1784 = scalar_lea.vmem %s176, %s1782 [#allocation3]
                $region52: #{policy_forward.8} parent=46 // loop_footer
                  %s990 = sadd.s32 1, %s986
                $region53: #{policy_forward.8} parent=46 // loop_footer_branch
                  %985 = sbr.rel target = $region49
                $region54: #{policy_forward.8} parent=46 // loop_exit
                  _
              $region47: #{policy_forward.8} parent=31 // pred_fallthru
                _
              // Predicated region
              $region55: #{policy_forward.8} parent=31 // pred_check
                _
              $region56: #{policy_forward.8} parent=31 // pred_check_branch
                %1786 = sbr.rel target = $region58
              $region57: #{policy_forward.8} parent=31 // pred_region
                %s1787 = scalar_lea.vmem %s182, 8
                %s1788 = scalar_lea.vmem %s176, 8 [#allocation3]
                loop: start=0, step=1, limit=1
                $region59: #{policy_forward.8} parent=57 // loop_pre_header
                  _
                $region60: #{policy_forward.8} parent=57 // loop_header
                  %s1790 = sphi 0, %s1794
                  %p1791 = scmp.ge.s32.totalorder %s1790, 1
                  %s1795 = sphi 0, %s2584
                  %s1796 = sphi %s182, %s2587
                  %s1797 = sphi %s176, %s2588
                $region61: #{policy_forward.8} parent=57 // loop_header_branch
                  %1793 = sbr.rel (%p1791) target = $region65
                $region62: #{policy_forward.8} parent=57 // loop_body
                  %v1798 = vld [vmem:[%s1796] sm:$0xff]
                  %1799 = vst [vmem:[%s1797] sm:$0xff] %v1798
                  %v1800 = vld [vmem:[%s1796 + $0x10] sm:$0xff]
                  %1801 = vst [vmem:[%s1797 + $0x8] sm:$0xff] %v1800
                  %v1802 = vld [vmem:[%s1796 + $0x20] sm:$0xff]
                  %1803 = vst [vmem:[%s1797 + $0x10] sm:$0xff] %v1802
                  %v1804 = vld [vmem:[%s1796 + $0x30] sm:$0xff]
                  %1805 = vst [vmem:[%s1797 + $0x18] sm:$0xff] %v1804
                  %v1806 = vld [vmem:[%s1796 + $0x40] sm:$0xff]
                  %1807 = vst [vmem:[%s1797 + $0x20] sm:$0xff] %v1806
                  %v1808 = vld [vmem:[%s1796 + $0x50] sm:$0xff]
                  %1809 = vst [vmem:[%s1797 + $0x28] sm:$0xff] %v1808
                  %v1810 = vld [vmem:[%s1796 + $0x60] sm:$0xff]
                  %1811 = vst [vmem:[%s1797 + $0x30] sm:$0xff] %v1810
                  %v1812 = vld [vmem:[%s1796 + $0x70] sm:$0xff]
                  %1813 = vst [vmem:[%s1797 + $0x38] sm:$0xff] %v1812
                  %v1814 = vld [vmem:[%s1796 + $0x80] sm:$0xff]
                  %1815 = vst [vmem:[%s1797 + $0x40] sm:$0xff] %v1814
                  %v1816 = vld [vmem:[%s1796 + $0x90] sm:$0xff]
                  %1817 = vst [vmem:[%s1797 + $0x48] sm:$0xff] %v1816
                  %v1818 = vld [vmem:[%s1796 + $0xa0] sm:$0xff]
                  %1819 = vst [vmem:[%s1797 + $0x50] sm:$0xff] %v1818
                  %v1820 = vld [vmem:[%s1796 + $0xb0] sm:$0xff]
                  %1821 = vst [vmem:[%s1797 + $0x58] sm:$0xff] %v1820
                  %v1822 = vld [vmem:[%s1796 + $0xc0] sm:$0xff]
                  %1823 = vst [vmem:[%s1797 + $0x60] sm:$0xff] %v1822
                  %v1824 = vld [vmem:[%s1796 + $0xd0] sm:$0xff]
                  %1825 = vst [vmem:[%s1797 + $0x68] sm:$0xff] %v1824
                  %v1826 = vld [vmem:[%s1796 + $0xe0] sm:$0xff]
                  %1827 = vst [vmem:[%s1797 + $0x70] sm:$0xff] %v1826
                  %v1828 = vld [vmem:[%s1796 + $0xf0] sm:$0xff]
                  %1829 = vst [vmem:[%s1797 + $0x78] sm:$0xff] %v1828
                  %v1830 = vld [vmem:[%s1796 + $0x100] sm:$0xff]
                  %1831 = vst [vmem:[%s1797 + $0x80] sm:$0xff] %v1830
                  %v1832 = vld [vmem:[%s1796 + $0x110] sm:$0xff]
                  %1833 = vst [vmem:[%s1797 + $0x88] sm:$0xff] %v1832
                  %v1834 = vld [vmem:[%s1796 + $0x120] sm:$0xff]
                  %1835 = vst [vmem:[%s1797 + $0x90] sm:$0xff] %v1834
                  %v1836 = vld [vmem:[%s1796 + $0x130] sm:$0xff]
                  %1837 = vst [vmem:[%s1797 + $0x98] sm:$0xff] %v1836
                  %v1838 = vld [vmem:[%s1796 + $0x140] sm:$0xff]
                  %1839 = vst [vmem:[%s1797 + $0xa0] sm:$0xff] %v1838
                  %v1840 = vld [vmem:[%s1796 + $0x150] sm:$0xff]
                  %1841 = vst [vmem:[%s1797 + $0xa8] sm:$0xff] %v1840
                  %v1842 = vld [vmem:[%s1796 + $0x160] sm:$0xff]
                  %1843 = vst [vmem:[%s1797 + $0xb0] sm:$0xff] %v1842
                  %v1844 = vld [vmem:[%s1796 + $0x170] sm:$0xff]
                  %1845 = vst [vmem:[%s1797 + $0xb8] sm:$0xff] %v1844
                  %v1846 = vld [vmem:[%s1796 + $0x180] sm:$0xff]
                  %1847 = vst [vmem:[%s1797 + $0xc0] sm:$0xff] %v1846
                  %v1848 = vld [vmem:[%s1796 + $0x190] sm:$0xff]
                  %1849 = vst [vmem:[%s1797 + $0xc8] sm:$0xff] %v1848
                  %v1850 = vld [vmem:[%s1796 + $0x1a0] sm:$0xff]
                  %1851 = vst [vmem:[%s1797 + $0xd0] sm:$0xff] %v1850
                  %v1852 = vld [vmem:[%s1796 + $0x1b0] sm:$0xff]
                  %1853 = vst [vmem:[%s1797 + $0xd8] sm:$0xff] %v1852
                  %v1854 = vld [vmem:[%s1796 + $0x1c0] sm:$0xff]
                  %1855 = vst [vmem:[%s1797 + $0xe0] sm:$0xff] %v1854
                  %v1856 = vld [vmem:[%s1796 + $0x1d0] sm:$0xff]
                  %1857 = vst [vmem:[%s1797 + $0xe8] sm:$0xff] %v1856
                  %v1858 = vld [vmem:[%s1796 + $0x1e0] sm:$0xff]
                  %1859 = vst [vmem:[%s1797 + $0xf0] sm:$0xff] %v1858
                  %v1860 = vld [vmem:[%s1796 + $0x1f0] sm:$0xff]
                  %1861 = vst [vmem:[%s1797 + $0xf8] sm:$0xff] %v1860
                  %v1862 = vld [vmem:[%s1796 + $0x200] sm:$0xff]
                  %1863 = vst [vmem:[%s1797 + $0x100] sm:$0xff] %v1862
                  %v1864 = vld [vmem:[%s1796 + $0x210] sm:$0xff]
                  %1865 = vst [vmem:[%s1797 + $0x108] sm:$0xff] %v1864
                  %v1866 = vld [vmem:[%s1796 + $0x220] sm:$0xff]
                  %1867 = vst [vmem:[%s1797 + $0x110] sm:$0xff] %v1866
                  %v1868 = vld [vmem:[%s1796 + $0x230] sm:$0xff]
                  %1869 = vst [vmem:[%s1797 + $0x118] sm:$0xff] %v1868
                  %v1870 = vld [vmem:[%s1796 + $0x240] sm:$0xff]
                  %1871 = vst [vmem:[%s1797 + $0x120] sm:$0xff] %v1870
                  %v1872 = vld [vmem:[%s1796 + $0x250] sm:$0xff]
                  %1873 = vst [vmem:[%s1797 + $0x128] sm:$0xff] %v1872
                  %v1874 = vld [vmem:[%s1796 + $0x260] sm:$0xff]
                  %1875 = vst [vmem:[%s1797 + $0x130] sm:$0xff] %v1874
                  %v1876 = vld [vmem:[%s1796 + $0x270] sm:$0xff]
                  %1877 = vst [vmem:[%s1797 + $0x138] sm:$0xff] %v1876
                  %v1878 = vld [vmem:[%s1796 + $0x280] sm:$0xff]
                  %1879 = vst [vmem:[%s1797 + $0x140] sm:$0xff] %v1878
                  %v1880 = vld [vmem:[%s1796 + $0x290] sm:$0xff]
                  %1881 = vst [vmem:[%s1797 + $0x148] sm:$0xff] %v1880
                  %v1882 = vld [vmem:[%s1796 + $0x2a0] sm:$0xff]
                  %1883 = vst [vmem:[%s1797 + $0x150] sm:$0xff] %v1882
                  %v1884 = vld [vmem:[%s1796 + $0x2b0] sm:$0xff]
                  %1885 = vst [vmem:[%s1797 + $0x158] sm:$0xff] %v1884
                  %v1886 = vld [vmem:[%s1796 + $0x2c0] sm:$0xff]
                  %1887 = vst [vmem:[%s1797 + $0x160] sm:$0xff] %v1886
                  %v1888 = vld [vmem:[%s1796 + $0x2d0] sm:$0xff]
                  %1889 = vst [vmem:[%s1797 + $0x168] sm:$0xff] %v1888
                  %v1890 = vld [vmem:[%s1796 + $0x2e0] sm:$0xff]
                  %1891 = vst [vmem:[%s1797 + $0x170] sm:$0xff] %v1890
                  %v1892 = vld [vmem:[%s1796 + $0x2f0] sm:$0xff]
                  %1893 = vst [vmem:[%s1797 + $0x178] sm:$0xff] %v1892
                  %v1894 = vld [vmem:[%s1796 + $0x300] sm:$0xff]
                  %1895 = vst [vmem:[%s1797 + $0x180] sm:$0xff] %v1894
                  %v1896 = vld [vmem:[%s1796 + $0x310] sm:$0xff]
                  %1897 = vst [vmem:[%s1797 + $0x188] sm:$0xff] %v1896
                  %v1898 = vld [vmem:[%s1796 + $0x320] sm:$0xff]
                  %1899 = vst [vmem:[%s1797 + $0x190] sm:$0xff] %v1898
                  %v1900 = vld [vmem:[%s1796 + $0x330] sm:$0xff]
                  %1901 = vst [vmem:[%s1797 + $0x198] sm:$0xff] %v1900
                  %v1902 = vld [vmem:[%s1796 + $0x340] sm:$0xff]
                  %1903 = vst [vmem:[%s1797 + $0x1a0] sm:$0xff] %v1902
                  %v1904 = vld [vmem:[%s1796 + $0x350] sm:$0xff]
                  %1905 = vst [vmem:[%s1797 + $0x1a8] sm:$0xff] %v1904
                  %v1906 = vld [vmem:[%s1796 + $0x360] sm:$0xff]
                  %1907 = vst [vmem:[%s1797 + $0x1b0] sm:$0xff] %v1906
                  %v1908 = vld [vmem:[%s1796 + $0x370] sm:$0xff]
                  %1909 = vst [vmem:[%s1797 + $0x1b8] sm:$0xff] %v1908
                  %v1910 = vld [vmem:[%s1796 + $0x380] sm:$0xff]
                  %1911 = vst [vmem:[%s1797 + $0x1c0] sm:$0xff] %v1910
                  %v1912 = vld [vmem:[%s1796 + $0x390] sm:$0xff]
                  %1913 = vst [vmem:[%s1797 + $0x1c8] sm:$0xff] %v1912
                  %v1914 = vld [vmem:[%s1796 + $0x3a0] sm:$0xff]
                  %1915 = vst [vmem:[%s1797 + $0x1d0] sm:$0xff] %v1914
                  %v1916 = vld [vmem:[%s1796 + $0x3b0] sm:$0xff]
                  %1917 = vst [vmem:[%s1797 + $0x1d8] sm:$0xff] %v1916
                  %v1918 = vld [vmem:[%s1796 + $0x3c0] sm:$0xff]
                  %1919 = vst [vmem:[%s1797 + $0x1e0] sm:$0xff] %v1918
                  %v1920 = vld [vmem:[%s1796 + $0x3d0] sm:$0xff]
                  %1921 = vst [vmem:[%s1797 + $0x1e8] sm:$0xff] %v1920
                  %v1922 = vld [vmem:[%s1796 + $0x3e0] sm:$0xff]
                  %1923 = vst [vmem:[%s1797 + $0x1f0] sm:$0xff] %v1922
                  %v1924 = vld [vmem:[%s1796 + $0x3f0] sm:$0xff]
                  %1925 = vst [vmem:[%s1797 + $0x1f8] sm:$0xff] %v1924
                  %v1926 = vld [vmem:[%s1796 + $0x400] sm:$0xff]
                  %1927 = vst [vmem:[%s1797 + $0x200] sm:$0xff] %v1926
                  %v1928 = vld [vmem:[%s1796 + $0x410] sm:$0xff]
                  %1929 = vst [vmem:[%s1797 + $0x208] sm:$0xff] %v1928
                  %v1930 = vld [vmem:[%s1796 + $0x420] sm:$0xff]
                  %1931 = vst [vmem:[%s1797 + $0x210] sm:$0xff] %v1930
                  %v1932 = vld [vmem:[%s1796 + $0x430] sm:$0xff]
                  %1933 = vst [vmem:[%s1797 + $0x218] sm:$0xff] %v1932
                  %v1934 = vld [vmem:[%s1796 + $0x440] sm:$0xff]
                  %1935 = vst [vmem:[%s1797 + $0x220] sm:$0xff] %v1934
                  %v1936 = vld [vmem:[%s1796 + $0x450] sm:$0xff]
                  %1937 = vst [vmem:[%s1797 + $0x228] sm:$0xff] %v1936
                  %v1938 = vld [vmem:[%s1796 + $0x460] sm:$0xff]
                  %1939 = vst [vmem:[%s1797 + $0x230] sm:$0xff] %v1938
                  %v1940 = vld [vmem:[%s1796 + $0x470] sm:$0xff]
                  %1941 = vst [vmem:[%s1797 + $0x238] sm:$0xff] %v1940
                  %v1942 = vld [vmem:[%s1796 + $0x480] sm:$0xff]
                  %1943 = vst [vmem:[%s1797 + $0x240] sm:$0xff] %v1942
                  %v1944 = vld [vmem:[%s1796 + $0x490] sm:$0xff]
                  %1945 = vst [vmem:[%s1797 + $0x248] sm:$0xff] %v1944
                  %v1946 = vld [vmem:[%s1796 + $0x4a0] sm:$0xff]
                  %1947 = vst [vmem:[%s1797 + $0x250] sm:$0xff] %v1946
                  %v1948 = vld [vmem:[%s1796 + $0x4b0] sm:$0xff]
                  %1949 = vst [vmem:[%s1797 + $0x258] sm:$0xff] %v1948
                  %v1950 = vld [vmem:[%s1796 + $0x4c0] sm:$0xff]
                  %1951 = vst [vmem:[%s1797 + $0x260] sm:$0xff] %v1950
                  %v1952 = vld [vmem:[%s1796 + $0x4d0] sm:$0xff]
                  %1953 = vst [vmem:[%s1797 + $0x268] sm:$0xff] %v1952
                  %v1954 = vld [vmem:[%s1796 + $0x4e0] sm:$0xff]
                  %1955 = vst [vmem:[%s1797 + $0x270] sm:$0xff] %v1954
                  %v1956 = vld [vmem:[%s1796 + $0x4f0] sm:$0xff]
                  %1957 = vst [vmem:[%s1797 + $0x278] sm:$0xff] %v1956
                  %v1958 = vld [vmem:[%s1796 + $0x500] sm:$0xff]
                  %1959 = vst [vmem:[%s1797 + $0x280] sm:$0xff] %v1958
                  %v1960 = vld [vmem:[%s1796 + $0x510] sm:$0xff]
                  %1961 = vst [vmem:[%s1797 + $0x288] sm:$0xff] %v1960
                  %v1962 = vld [vmem:[%s1796 + $0x520] sm:$0xff]
                  %1963 = vst [vmem:[%s1797 + $0x290] sm:$0xff] %v1962
                  %v1964 = vld [vmem:[%s1796 + $0x530] sm:$0xff]
                  %1965 = vst [vmem:[%s1797 + $0x298] sm:$0xff] %v1964
                  %v1966 = vld [vmem:[%s1796 + $0x540] sm:$0xff]
                  %1967 = vst [vmem:[%s1797 + $0x2a0] sm:$0xff] %v1966
                  %v1968 = vld [vmem:[%s1796 + $0x550] sm:$0xff]
                  %1969 = vst [vmem:[%s1797 + $0x2a8] sm:$0xff] %v1968
                  %v1970 = vld [vmem:[%s1796 + $0x560] sm:$0xff]
                  %1971 = vst [vmem:[%s1797 + $0x2b0] sm:$0xff] %v1970
                  %v1972 = vld [vmem:[%s1796 + $0x570] sm:$0xff]
                  %1973 = vst [vmem:[%s1797 + $0x2b8] sm:$0xff] %v1972
                  %v1974 = vld [vmem:[%s1796 + $0x580] sm:$0xff]
                  %1975 = vst [vmem:[%s1797 + $0x2c0] sm:$0xff] %v1974
                  %v1976 = vld [vmem:[%s1796 + $0x590] sm:$0xff]
                  %1977 = vst [vmem:[%s1797 + $0x2c8] sm:$0xff] %v1976
                  %v1978 = vld [vmem:[%s1796 + $0x5a0] sm:$0xff]
                  %1979 = vst [vmem:[%s1797 + $0x2d0] sm:$0xff] %v1978
                  %v1980 = vld [vmem:[%s1796 + $0x5b0] sm:$0xff]
                  %1981 = vst [vmem:[%s1797 + $0x2d8] sm:$0xff] %v1980
                  %v1982 = vld [vmem:[%s1796 + $0x5c0] sm:$0xff]
                  %1983 = vst [vmem:[%s1797 + $0x2e0] sm:$0xff] %v1982
                  %v1984 = vld [vmem:[%s1796 + $0x5d0] sm:$0xff]
                  %1985 = vst [vmem:[%s1797 + $0x2e8] sm:$0xff] %v1984
                  %v1986 = vld [vmem:[%s1796 + $0x5e0] sm:$0xff]
                  %1987 = vst [vmem:[%s1797 + $0x2f0] sm:$0xff] %v1986
                  %v1988 = vld [vmem:[%s1796 + $0x5f0] sm:$0xff]
                  %1989 = vst [vmem:[%s1797 + $0x2f8] sm:$0xff] %v1988
                  %v1990 = vld [vmem:[%s1796 + $0x600] sm:$0xff]
                  %1991 = vst [vmem:[%s1797 + $0x300] sm:$0xff] %v1990
                  %v1992 = vld [vmem:[%s1796 + $0x610] sm:$0xff]
                  %1993 = vst [vmem:[%s1797 + $0x308] sm:$0xff] %v1992
                  %v1994 = vld [vmem:[%s1796 + $0x620] sm:$0xff]
                  %1995 = vst [vmem:[%s1797 + $0x310] sm:$0xff] %v1994
                  %v1996 = vld [vmem:[%s1796 + $0x630] sm:$0xff]
                  %1997 = vst [vmem:[%s1797 + $0x318] sm:$0xff] %v1996
                  %v1998 = vld [vmem:[%s1796 + $0x640] sm:$0xff]
                  %1999 = vst [vmem:[%s1797 + $0x320] sm:$0xff] %v1998
                  %v2000 = vld [vmem:[%s1796 + $0x650] sm:$0xff]
                  %2001 = vst [vmem:[%s1797 + $0x328] sm:$0xff] %v2000
                  %v2002 = vld [vmem:[%s1796 + $0x660] sm:$0xff]
                  %2003 = vst [vmem:[%s1797 + $0x330] sm:$0xff] %v2002
                  %v2004 = vld [vmem:[%s1796 + $0x670] sm:$0xff]
                  %2005 = vst [vmem:[%s1797 + $0x338] sm:$0xff] %v2004
                  %v2006 = vld [vmem:[%s1796 + $0x680] sm:$0xff]
                  %2007 = vst [vmem:[%s1797 + $0x340] sm:$0xff] %v2006
                  %v2008 = vld [vmem:[%s1796 + $0x690] sm:$0xff]
                  %2009 = vst [vmem:[%s1797 + $0x348] sm:$0xff] %v2008
                  %v2010 = vld [vmem:[%s1796 + $0x6a0] sm:$0xff]
                  %2011 = vst [vmem:[%s1797 + $0x350] sm:$0xff] %v2010
                  %v2012 = vld [vmem:[%s1796 + $0x6b0] sm:$0xff]
                  %2013 = vst [vmem:[%s1797 + $0x358] sm:$0xff] %v2012
                  %v2014 = vld [vmem:[%s1796 + $0x6c0] sm:$0xff]
                  %2015 = vst [vmem:[%s1797 + $0x360] sm:$0xff] %v2014
                  %v2016 = vld [vmem:[%s1796 + $0x6d0] sm:$0xff]
                  %2017 = vst [vmem:[%s1797 + $0x368] sm:$0xff] %v2016
                  %v2018 = vld [vmem:[%s1796 + $0x6e0] sm:$0xff]
                  %2019 = vst [vmem:[%s1797 + $0x370] sm:$0xff] %v2018
                  %v2020 = vld [vmem:[%s1796 + $0x6f0] sm:$0xff]
                  %2021 = vst [vmem:[%s1797 + $0x378] sm:$0xff] %v2020
                  %v2022 = vld [vmem:[%s1796 + $0x700] sm:$0xff]
                  %2023 = vst [vmem:[%s1797 + $0x380] sm:$0xff] %v2022
                  %v2024 = vld [vmem:[%s1796 + $0x710] sm:$0xff]
                  %2025 = vst [vmem:[%s1797 + $0x388] sm:$0xff] %v2024
                  %v2026 = vld [vmem:[%s1796 + $0x720] sm:$0xff]
                  %2027 = vst [vmem:[%s1797 + $0x390] sm:$0xff] %v2026
                  %v2028 = vld [vmem:[%s1796 + $0x730] sm:$0xff]
                  %2029 = vst [vmem:[%s1797 + $0x398] sm:$0xff] %v2028
                  %v2030 = vld [vmem:[%s1796 + $0x740] sm:$0xff]
                  %2031 = vst [vmem:[%s1797 + $0x3a0] sm:$0xff] %v2030
                  %v2032 = vld [vmem:[%s1796 + $0x750] sm:$0xff]
                  %2033 = vst [vmem:[%s1797 + $0x3a8] sm:$0xff] %v2032
                  %v2034 = vld [vmem:[%s1796 + $0x760] sm:$0xff]
                  %2035 = vst [vmem:[%s1797 + $0x3b0] sm:$0xff] %v2034
                  %v2036 = vld [vmem:[%s1796 + $0x770] sm:$0xff]
                  %2037 = vst [vmem:[%s1797 + $0x3b8] sm:$0xff] %v2036
                  %v2038 = vld [vmem:[%s1796 + $0x780] sm:$0xff]
                  %2039 = vst [vmem:[%s1797 + $0x3c0] sm:$0xff] %v2038
                  %v2040 = vld [vmem:[%s1796 + $0x790] sm:$0xff]
                  %2041 = vst [vmem:[%s1797 + $0x3c8] sm:$0xff] %v2040
                  %v2042 = vld [vmem:[%s1796 + $0x7a0] sm:$0xff]
                  %2043 = vst [vmem:[%s1797 + $0x3d0] sm:$0xff] %v2042
                  %v2044 = vld [vmem:[%s1796 + $0x7b0] sm:$0xff]
                  %2045 = vst [vmem:[%s1797 + $0x3d8] sm:$0xff] %v2044
                  %v2046 = vld [vmem:[%s1796 + $0x7c0] sm:$0xff]
                  %2047 = vst [vmem:[%s1797 + $0x3e0] sm:$0xff] %v2046
                  %v2048 = vld [vmem:[%s1796 + $0x7d0] sm:$0xff]
                  %2049 = vst [vmem:[%s1797 + $0x3e8] sm:$0xff] %v2048
                  %v2050 = vld [vmem:[%s1796 + $0x7e0] sm:$0xff]
                  %2051 = vst [vmem:[%s1797 + $0x3f0] sm:$0xff] %v2050
                  %v2052 = vld [vmem:[%s1796 + $0x7f0] sm:$0xff]
                  %2053 = vst [vmem:[%s1797 + $0x3f8] sm:$0xff] %v2052
                  %v2054 = vld [vmem:[%s1796 + $0x800] sm:$0xff]
                  %2055 = vst [vmem:[%s1797 + $0x400] sm:$0xff] %v2054
                  %v2056 = vld [vmem:[%s1796 + $0x810] sm:$0xff]
                  %2057 = vst [vmem:[%s1797 + $0x408] sm:$0xff] %v2056
                  %v2058 = vld [vmem:[%s1796 + $0x820] sm:$0xff]
                  %2059 = vst [vmem:[%s1797 + $0x410] sm:$0xff] %v2058
                  %v2060 = vld [vmem:[%s1796 + $0x830] sm:$0xff]
                  %2061 = vst [vmem:[%s1797 + $0x418] sm:$0xff] %v2060
                  %v2062 = vld [vmem:[%s1796 + $0x840] sm:$0xff]
                  %2063 = vst [vmem:[%s1797 + $0x420] sm:$0xff] %v2062
                  %v2064 = vld [vmem:[%s1796 + $0x850] sm:$0xff]
                  %2065 = vst [vmem:[%s1797 + $0x428] sm:$0xff] %v2064
                  %v2066 = vld [vmem:[%s1796 + $0x860] sm:$0xff]
                  %2067 = vst [vmem:[%s1797 + $0x430] sm:$0xff] %v2066
                  %v2068 = vld [vmem:[%s1796 + $0x870] sm:$0xff]
                  %2069 = vst [vmem:[%s1797 + $0x438] sm:$0xff] %v2068
                  %v2070 = vld [vmem:[%s1796 + $0x880] sm:$0xff]
                  %2071 = vst [vmem:[%s1797 + $0x440] sm:$0xff] %v2070
                  %v2072 = vld [vmem:[%s1796 + $0x890] sm:$0xff]
                  %2073 = vst [vmem:[%s1797 + $0x448] sm:$0xff] %v2072
                  %v2074 = vld [vmem:[%s1796 + $0x8a0] sm:$0xff]
                  %2075 = vst [vmem:[%s1797 + $0x450] sm:$0xff] %v2074
                  %v2076 = vld [vmem:[%s1796 + $0x8b0] sm:$0xff]
                  %2077 = vst [vmem:[%s1797 + $0x458] sm:$0xff] %v2076
                  %v2078 = vld [vmem:[%s1796 + $0x8c0] sm:$0xff]
                  %2079 = vst [vmem:[%s1797 + $0x460] sm:$0xff] %v2078
                  %v2080 = vld [vmem:[%s1796 + $0x8d0] sm:$0xff]
                  %2081 = vst [vmem:[%s1797 + $0x468] sm:$0xff] %v2080
                  %v2082 = vld [vmem:[%s1796 + $0x8e0] sm:$0xff]
                  %2083 = vst [vmem:[%s1797 + $0x470] sm:$0xff] %v2082
                  %v2084 = vld [vmem:[%s1796 + $0x8f0] sm:$0xff]
                  %2085 = vst [vmem:[%s1797 + $0x478] sm:$0xff] %v2084
                  %v2086 = vld [vmem:[%s1796 + $0x900] sm:$0xff]
                  %2087 = vst [vmem:[%s1797 + $0x480] sm:$0xff] %v2086
                  %v2088 = vld [vmem:[%s1796 + $0x910] sm:$0xff]
                  %2089 = vst [vmem:[%s1797 + $0x488] sm:$0xff] %v2088
                  %v2090 = vld [vmem:[%s1796 + $0x920] sm:$0xff]
                  %2091 = vst [vmem:[%s1797 + $0x490] sm:$0xff] %v2090
                  %v2092 = vld [vmem:[%s1796 + $0x930] sm:$0xff]
                  %2093 = vst [vmem:[%s1797 + $0x498] sm:$0xff] %v2092
                  %v2094 = vld [vmem:[%s1796 + $0x940] sm:$0xff]
                  %2095 = vst [vmem:[%s1797 + $0x4a0] sm:$0xff] %v2094
                  %v2096 = vld [vmem:[%s1796 + $0x950] sm:$0xff]
                  %2097 = vst [vmem:[%s1797 + $0x4a8] sm:$0xff] %v2096
                  %v2098 = vld [vmem:[%s1796 + $0x960] sm:$0xff]
                  %2099 = vst [vmem:[%s1797 + $0x4b0] sm:$0xff] %v2098
                  %v2100 = vld [vmem:[%s1796 + $0x970] sm:$0xff]
                  %2101 = vst [vmem:[%s1797 + $0x4b8] sm:$0xff] %v2100
                  %v2102 = vld [vmem:[%s1796 + $0x980] sm:$0xff]
                  %2103 = vst [vmem:[%s1797 + $0x4c0] sm:$0xff] %v2102
                  %v2104 = vld [vmem:[%s1796 + $0x990] sm:$0xff]
                  %2105 = vst [vmem:[%s1797 + $0x4c8] sm:$0xff] %v2104
                  %v2106 = vld [vmem:[%s1796 + $0x9a0] sm:$0xff]
                  %2107 = vst [vmem:[%s1797 + $0x4d0] sm:$0xff] %v2106
                  %v2108 = vld [vmem:[%s1796 + $0x9b0] sm:$0xff]
                  %2109 = vst [vmem:[%s1797 + $0x4d8] sm:$0xff] %v2108
                  %v2110 = vld [vmem:[%s1796 + $0x9c0] sm:$0xff]
                  %2111 = vst [vmem:[%s1797 + $0x4e0] sm:$0xff] %v2110
                  %v2112 = vld [vmem:[%s1796 + $0x9d0] sm:$0xff]
                  %2113 = vst [vmem:[%s1797 + $0x4e8] sm:$0xff] %v2112
                  %v2114 = vld [vmem:[%s1796 + $0x9e0] sm:$0xff]
                  %2115 = vst [vmem:[%s1797 + $0x4f0] sm:$0xff] %v2114
                  %v2116 = vld [vmem:[%s1796 + $0x9f0] sm:$0xff]
                  %2117 = vst [vmem:[%s1797 + $0x4f8] sm:$0xff] %v2116
                  %v2118 = vld [vmem:[%s1796 + $0xa00] sm:$0xff]
                  %2119 = vst [vmem:[%s1797 + $0x500] sm:$0xff] %v2118
                  %v2120 = vld [vmem:[%s1796 + $0xa10] sm:$0xff]
                  %2121 = vst [vmem:[%s1797 + $0x508] sm:$0xff] %v2120
                  %v2122 = vld [vmem:[%s1796 + $0xa20] sm:$0xff]
                  %2123 = vst [vmem:[%s1797 + $0x510] sm:$0xff] %v2122
                  %v2124 = vld [vmem:[%s1796 + $0xa30] sm:$0xff]
                  %2125 = vst [vmem:[%s1797 + $0x518] sm:$0xff] %v2124
                  %v2126 = vld [vmem:[%s1796 + $0xa40] sm:$0xff]
                  %2127 = vst [vmem:[%s1797 + $0x520] sm:$0xff] %v2126
                  %v2128 = vld [vmem:[%s1796 + $0xa50] sm:$0xff]
                  %2129 = vst [vmem:[%s1797 + $0x528] sm:$0xff] %v2128
                  %v2130 = vld [vmem:[%s1796 + $0xa60] sm:$0xff]
                  %2131 = vst [vmem:[%s1797 + $0x530] sm:$0xff] %v2130
                  %v2132 = vld [vmem:[%s1796 + $0xa70] sm:$0xff]
                  %2133 = vst [vmem:[%s1797 + $0x538] sm:$0xff] %v2132
                  %v2134 = vld [vmem:[%s1796 + $0xa80] sm:$0xff]
                  %2135 = vst [vmem:[%s1797 + $0x540] sm:$0xff] %v2134
                  %v2136 = vld [vmem:[%s1796 + $0xa90] sm:$0xff]
                  %2137 = vst [vmem:[%s1797 + $0x548] sm:$0xff] %v2136
                  %v2138 = vld [vmem:[%s1796 + $0xaa0] sm:$0xff]
                  %2139 = vst [vmem:[%s1797 + $0x550] sm:$0xff] %v2138
                  %v2140 = vld [vmem:[%s1796 + $0xab0] sm:$0xff]
                  %2141 = vst [vmem:[%s1797 + $0x558] sm:$0xff] %v2140
                  %v2142 = vld [vmem:[%s1796 + $0xac0] sm:$0xff]
                  %2143 = vst [vmem:[%s1797 + $0x560] sm:$0xff] %v2142
                  %v2144 = vld [vmem:[%s1796 + $0xad0] sm:$0xff]
                  %2145 = vst [vmem:[%s1797 + $0x568] sm:$0xff] %v2144
                  %v2146 = vld [vmem:[%s1796 + $0xae0] sm:$0xff]
                  %2147 = vst [vmem:[%s1797 + $0x570] sm:$0xff] %v2146
                  %v2148 = vld [vmem:[%s1796 + $0xaf0] sm:$0xff]
                  %2149 = vst [vmem:[%s1797 + $0x578] sm:$0xff] %v2148
                  %v2150 = vld [vmem:[%s1796 + $0xb00] sm:$0xff]
                  %2151 = vst [vmem:[%s1797 + $0x580] sm:$0xff] %v2150
                  %v2152 = vld [vmem:[%s1796 + $0xb10] sm:$0xff]
                  %2153 = vst [vmem:[%s1797 + $0x588] sm:$0xff] %v2152
                  %v2154 = vld [vmem:[%s1796 + $0xb20] sm:$0xff]
                  %2155 = vst [vmem:[%s1797 + $0x590] sm:$0xff] %v2154
                  %v2156 = vld [vmem:[%s1796 + $0xb30] sm:$0xff]
                  %2157 = vst [vmem:[%s1797 + $0x598] sm:$0xff] %v2156
                  %v2158 = vld [vmem:[%s1796 + $0xb40] sm:$0xff]
                  %2159 = vst [vmem:[%s1797 + $0x5a0] sm:$0xff] %v2158
                  %v2160 = vld [vmem:[%s1796 + $0xb50] sm:$0xff]
                  %2161 = vst [vmem:[%s1797 + $0x5a8] sm:$0xff] %v2160
                  %v2162 = vld [vmem:[%s1796 + $0xb60] sm:$0xff]
                  %2163 = vst [vmem:[%s1797 + $0x5b0] sm:$0xff] %v2162
                  %v2164 = vld [vmem:[%s1796 + $0xb70] sm:$0xff]
                  %2165 = vst [vmem:[%s1797 + $0x5b8] sm:$0xff] %v2164
                  %v2166 = vld [vmem:[%s1796 + $0xb80] sm:$0xff]
                  %2167 = vst [vmem:[%s1797 + $0x5c0] sm:$0xff] %v2166
                  %v2168 = vld [vmem:[%s1796 + $0xb90] sm:$0xff]
                  %2169 = vst [vmem:[%s1797 + $0x5c8] sm:$0xff] %v2168
                  %v2170 = vld [vmem:[%s1796 + $0xba0] sm:$0xff]
                  %2171 = vst [vmem:[%s1797 + $0x5d0] sm:$0xff] %v2170
                  %v2172 = vld [vmem:[%s1796 + $0xbb0] sm:$0xff]
                  %2173 = vst [vmem:[%s1797 + $0x5d8] sm:$0xff] %v2172
                  %v2174 = vld [vmem:[%s1796 + $0xbc0] sm:$0xff]
                  %2175 = vst [vmem:[%s1797 + $0x5e0] sm:$0xff] %v2174
                  %v2176 = vld [vmem:[%s1796 + $0xbd0] sm:$0xff]
                  %2177 = vst [vmem:[%s1797 + $0x5e8] sm:$0xff] %v2176
                  %v2178 = vld [vmem:[%s1796 + $0xbe0] sm:$0xff]
                  %2179 = vst [vmem:[%s1797 + $0x5f0] sm:$0xff] %v2178
                  %v2180 = vld [vmem:[%s1796 + $0xbf0] sm:$0xff]
                  %2181 = vst [vmem:[%s1797 + $0x5f8] sm:$0xff] %v2180
                  %v2182 = vld [vmem:[%s1796 + $0xc00] sm:$0xff]
                  %2183 = vst [vmem:[%s1797 + $0x600] sm:$0xff] %v2182
                  %v2184 = vld [vmem:[%s1796 + $0xc10] sm:$0xff]
                  %2185 = vst [vmem:[%s1797 + $0x608] sm:$0xff] %v2184
                  %v2186 = vld [vmem:[%s1796 + $0xc20] sm:$0xff]
                  %2187 = vst [vmem:[%s1797 + $0x610] sm:$0xff] %v2186
                  %v2188 = vld [vmem:[%s1796 + $0xc30] sm:$0xff]
                  %2189 = vst [vmem:[%s1797 + $0x618] sm:$0xff] %v2188
                  %v2190 = vld [vmem:[%s1796 + $0xc40] sm:$0xff]
                  %2191 = vst [vmem:[%s1797 + $0x620] sm:$0xff] %v2190
                  %v2192 = vld [vmem:[%s1796 + $0xc50] sm:$0xff]
                  %2193 = vst [vmem:[%s1797 + $0x628] sm:$0xff] %v2192
                  %v2194 = vld [vmem:[%s1796 + $0xc60] sm:$0xff]
                  %2195 = vst [vmem:[%s1797 + $0x630] sm:$0xff] %v2194
                  %v2196 = vld [vmem:[%s1796 + $0xc70] sm:$0xff]
                  %2197 = vst [vmem:[%s1797 + $0x638] sm:$0xff] %v2196
                  %v2198 = vld [vmem:[%s1796 + $0xc80] sm:$0xff]
                  %2199 = vst [vmem:[%s1797 + $0x640] sm:$0xff] %v2198
                  %v2200 = vld [vmem:[%s1796 + $0xc90] sm:$0xff]
                  %2201 = vst [vmem:[%s1797 + $0x648] sm:$0xff] %v2200
                  %v2202 = vld [vmem:[%s1796 + $0xca0] sm:$0xff]
                  %2203 = vst [vmem:[%s1797 + $0x650] sm:$0xff] %v2202
                  %v2204 = vld [vmem:[%s1796 + $0xcb0] sm:$0xff]
                  %2205 = vst [vmem:[%s1797 + $0x658] sm:$0xff] %v2204
                  %v2206 = vld [vmem:[%s1796 + $0xcc0] sm:$0xff]
                  %2207 = vst [vmem:[%s1797 + $0x660] sm:$0xff] %v2206
                  %v2208 = vld [vmem:[%s1796 + $0xcd0] sm:$0xff]
                  %2209 = vst [vmem:[%s1797 + $0x668] sm:$0xff] %v2208
                  %v2210 = vld [vmem:[%s1796 + $0xce0] sm:$0xff]
                  %2211 = vst [vmem:[%s1797 + $0x670] sm:$0xff] %v2210
                  %v2212 = vld [vmem:[%s1796 + $0xcf0] sm:$0xff]
                  %2213 = vst [vmem:[%s1797 + $0x678] sm:$0xff] %v2212
                  %v2214 = vld [vmem:[%s1796 + $0xd00] sm:$0xff]
                  %2215 = vst [vmem:[%s1797 + $0x680] sm:$0xff] %v2214
                  %v2216 = vld [vmem:[%s1796 + $0xd10] sm:$0xff]
                  %2217 = vst [vmem:[%s1797 + $0x688] sm:$0xff] %v2216
                  %v2218 = vld [vmem:[%s1796 + $0xd20] sm:$0xff]
                  %2219 = vst [vmem:[%s1797 + $0x690] sm:$0xff] %v2218
                  %v2220 = vld [vmem:[%s1796 + $0xd30] sm:$0xff]
                  %2221 = vst [vmem:[%s1797 + $0x698] sm:$0xff] %v2220
                  %v2222 = vld [vmem:[%s1796 + $0xd40] sm:$0xff]
                  %2223 = vst [vmem:[%s1797 + $0x6a0] sm:$0xff] %v2222
                  %v2224 = vld [vmem:[%s1796 + $0xd50] sm:$0xff]
                  %2225 = vst [vmem:[%s1797 + $0x6a8] sm:$0xff] %v2224
                  %v2226 = vld [vmem:[%s1796 + $0xd60] sm:$0xff]
                  %2227 = vst [vmem:[%s1797 + $0x6b0] sm:$0xff] %v2226
                  %v2228 = vld [vmem:[%s1796 + $0xd70] sm:$0xff]
                  %2229 = vst [vmem:[%s1797 + $0x6b8] sm:$0xff] %v2228
                  %v2230 = vld [vmem:[%s1796 + $0xd80] sm:$0xff]
                  %2231 = vst [vmem:[%s1797 + $0x6c0] sm:$0xff] %v2230
                  %v2232 = vld [vmem:[%s1796 + $0xd90] sm:$0xff]
                  %2233 = vst [vmem:[%s1797 + $0x6c8] sm:$0xff] %v2232
                  %v2234 = vld [vmem:[%s1796 + $0xda0] sm:$0xff]
                  %2235 = vst [vmem:[%s1797 + $0x6d0] sm:$0xff] %v2234
                  %v2236 = vld [vmem:[%s1796 + $0xdb0] sm:$0xff]
                  %2237 = vst [vmem:[%s1797 + $0x6d8] sm:$0xff] %v2236
                  %v2238 = vld [vmem:[%s1796 + $0xdc0] sm:$0xff]
                  %2239 = vst [vmem:[%s1797 + $0x6e0] sm:$0xff] %v2238
                  %v2240 = vld [vmem:[%s1796 + $0xdd0] sm:$0xff]
                  %2241 = vst [vmem:[%s1797 + $0x6e8] sm:$0xff] %v2240
                  %v2242 = vld [vmem:[%s1796 + $0xde0] sm:$0xff]
                  %2243 = vst [vmem:[%s1797 + $0x6f0] sm:$0xff] %v2242
                  %v2244 = vld [vmem:[%s1796 + $0xdf0] sm:$0xff]
                  %2245 = vst [vmem:[%s1797 + $0x6f8] sm:$0xff] %v2244
                  %v2246 = vld [vmem:[%s1796 + $0xe00] sm:$0xff]
                  %2247 = vst [vmem:[%s1797 + $0x700] sm:$0xff] %v2246
                  %v2248 = vld [vmem:[%s1796 + $0xe10] sm:$0xff]
                  %2249 = vst [vmem:[%s1797 + $0x708] sm:$0xff] %v2248
                  %v2250 = vld [vmem:[%s1796 + $0xe20] sm:$0xff]
                  %2251 = vst [vmem:[%s1797 + $0x710] sm:$0xff] %v2250
                  %v2252 = vld [vmem:[%s1796 + $0xe30] sm:$0xff]
                  %2253 = vst [vmem:[%s1797 + $0x718] sm:$0xff] %v2252
                  %v2254 = vld [vmem:[%s1796 + $0xe40] sm:$0xff]
                  %2255 = vst [vmem:[%s1797 + $0x720] sm:$0xff] %v2254
                  %v2256 = vld [vmem:[%s1796 + $0xe50] sm:$0xff]
                  %2257 = vst [vmem:[%s1797 + $0x728] sm:$0xff] %v2256
                  %v2258 = vld [vmem:[%s1796 + $0xe60] sm:$0xff]
                  %2259 = vst [vmem:[%s1797 + $0x730] sm:$0xff] %v2258
                  %v2260 = vld [vmem:[%s1796 + $0xe70] sm:$0xff]
                  %2261 = vst [vmem:[%s1797 + $0x738] sm:$0xff] %v2260
                  %v2262 = vld [vmem:[%s1796 + $0xe80] sm:$0xff]
                  %2263 = vst [vmem:[%s1797 + $0x740] sm:$0xff] %v2262
                  %v2264 = vld [vmem:[%s1796 + $0xe90] sm:$0xff]
                  %2265 = vst [vmem:[%s1797 + $0x748] sm:$0xff] %v2264
                  %v2266 = vld [vmem:[%s1796 + $0xea0] sm:$0xff]
                  %2267 = vst [vmem:[%s1797 + $0x750] sm:$0xff] %v2266
                  %v2268 = vld [vmem:[%s1796 + $0xeb0] sm:$0xff]
                  %2269 = vst [vmem:[%s1797 + $0x758] sm:$0xff] %v2268
                  %v2270 = vld [vmem:[%s1796 + $0xec0] sm:$0xff]
                  %2271 = vst [vmem:[%s1797 + $0x760] sm:$0xff] %v2270
                  %v2272 = vld [vmem:[%s1796 + $0xed0] sm:$0xff]
                  %2273 = vst [vmem:[%s1797 + $0x768] sm:$0xff] %v2272
                  %v2274 = vld [vmem:[%s1796 + $0xee0] sm:$0xff]
                  %2275 = vst [vmem:[%s1797 + $0x770] sm:$0xff] %v2274
                  %v2276 = vld [vmem:[%s1796 + $0xef0] sm:$0xff]
                  %2277 = vst [vmem:[%s1797 + $0x778] sm:$0xff] %v2276
                  %v2278 = vld [vmem:[%s1796 + $0xf00] sm:$0xff]
                  %2279 = vst [vmem:[%s1797 + $0x780] sm:$0xff] %v2278
                  %v2280 = vld [vmem:[%s1796 + $0xf10] sm:$0xff]
                  %2281 = vst [vmem:[%s1797 + $0x788] sm:$0xff] %v2280
                  %v2282 = vld [vmem:[%s1796 + $0xf20] sm:$0xff]
                  %2283 = vst [vmem:[%s1797 + $0x790] sm:$0xff] %v2282
                  %v2284 = vld [vmem:[%s1796 + $0xf30] sm:$0xff]
                  %2285 = vst [vmem:[%s1797 + $0x798] sm:$0xff] %v2284
                  %v2286 = vld [vmem:[%s1796 + $0xf40] sm:$0xff]
                  %2287 = vst [vmem:[%s1797 + $0x7a0] sm:$0xff] %v2286
                  %v2288 = vld [vmem:[%s1796 + $0xf50] sm:$0xff]
                  %2289 = vst [vmem:[%s1797 + $0x7a8] sm:$0xff] %v2288
                  %v2290 = vld [vmem:[%s1796 + $0xf60] sm:$0xff]
                  %2291 = vst [vmem:[%s1797 + $0x7b0] sm:$0xff] %v2290
                  %v2292 = vld [vmem:[%s1796 + $0xf70] sm:$0xff]
                  %2293 = vst [vmem:[%s1797 + $0x7b8] sm:$0xff] %v2292
                  %v2294 = vld [vmem:[%s1796 + $0xf80] sm:$0xff]
                  %2295 = vst [vmem:[%s1797 + $0x7c0] sm:$0xff] %v2294
                  %v2296 = vld [vmem:[%s1796 + $0xf90] sm:$0xff]
                  %2297 = vst [vmem:[%s1797 + $0x7c8] sm:$0xff] %v2296
                  %v2298 = vld [vmem:[%s1796 + $0xfa0] sm:$0xff]
                  %2299 = vst [vmem:[%s1797 + $0x7d0] sm:$0xff] %v2298
                  %v2300 = vld [vmem:[%s1796 + $0xfb0] sm:$0xff]
                  %2301 = vst [vmem:[%s1797 + $0x7d8] sm:$0xff] %v2300
                  %v2302 = vld [vmem:[%s1796 + $0xfc0] sm:$0xff]
                  %2303 = vst [vmem:[%s1797 + $0x7e0] sm:$0xff] %v2302
                  %v2304 = vld [vmem:[%s1796 + $0xfd0] sm:$0xff]
                  %2305 = vst [vmem:[%s1797 + $0x7e8] sm:$0xff] %v2304
                  %v2306 = vld [vmem:[%s1796 + $0xfe0] sm:$0xff]
                  %2307 = vst [vmem:[%s1797 + $0x7f0] sm:$0xff] %v2306
                  %v2308 = vld [vmem:[%s1796 + $0xff0] sm:$0xff]
                  %2309 = vst [vmem:[%s1797 + $0x7f8] sm:$0xff] %v2308
                  %v2310 = vld [vmem:[%s1796 + $0x1000] sm:$0xff]
                  %2311 = vst [vmem:[%s1797 + $0x800] sm:$0xff] %v2310
                  %v2312 = vld [vmem:[%s1796 + $0x1010] sm:$0xff]
                  %2313 = vst [vmem:[%s1797 + $0x808] sm:$0xff] %v2312
                  %v2314 = vld [vmem:[%s1796 + $0x1020] sm:$0xff]
                  %2315 = vst [vmem:[%s1797 + $0x810] sm:$0xff] %v2314
                  %v2316 = vld [vmem:[%s1796 + $0x1030] sm:$0xff]
                  %2317 = vst [vmem:[%s1797 + $0x818] sm:$0xff] %v2316
                  %v2318 = vld [vmem:[%s1796 + $0x1040] sm:$0xff]
                  %2319 = vst [vmem:[%s1797 + $0x820] sm:$0xff] %v2318
                  %v2320 = vld [vmem:[%s1796 + $0x1050] sm:$0xff]
                  %2321 = vst [vmem:[%s1797 + $0x828] sm:$0xff] %v2320
                  %v2322 = vld [vmem:[%s1796 + $0x1060] sm:$0xff]
                  %2323 = vst [vmem:[%s1797 + $0x830] sm:$0xff] %v2322
                  %v2324 = vld [vmem:[%s1796 + $0x1070] sm:$0xff]
                  %2325 = vst [vmem:[%s1797 + $0x838] sm:$0xff] %v2324
                  %v2326 = vld [vmem:[%s1796 + $0x1080] sm:$0xff]
                  %2327 = vst [vmem:[%s1797 + $0x840] sm:$0xff] %v2326
                  %v2328 = vld [vmem:[%s1796 + $0x1090] sm:$0xff]
                  %2329 = vst [vmem:[%s1797 + $0x848] sm:$0xff] %v2328
                  %v2330 = vld [vmem:[%s1796 + $0x10a0] sm:$0xff]
                  %2331 = vst [vmem:[%s1797 + $0x850] sm:$0xff] %v2330
                  %v2332 = vld [vmem:[%s1796 + $0x10b0] sm:$0xff]
                  %2333 = vst [vmem:[%s1797 + $0x858] sm:$0xff] %v2332
                  %v2334 = vld [vmem:[%s1796 + $0x10c0] sm:$0xff]
                  %2335 = vst [vmem:[%s1797 + $0x860] sm:$0xff] %v2334
                  %v2336 = vld [vmem:[%s1796 + $0x10d0] sm:$0xff]
                  %2337 = vst [vmem:[%s1797 + $0x868] sm:$0xff] %v2336
                  %v2338 = vld [vmem:[%s1796 + $0x10e0] sm:$0xff]
                  %2339 = vst [vmem:[%s1797 + $0x870] sm:$0xff] %v2338
                  %v2340 = vld [vmem:[%s1796 + $0x10f0] sm:$0xff]
                  %2341 = vst [vmem:[%s1797 + $0x878] sm:$0xff] %v2340
                  %v2342 = vld [vmem:[%s1796 + $0x1100] sm:$0xff]
                  %2343 = vst [vmem:[%s1797 + $0x880] sm:$0xff] %v2342
                  %v2344 = vld [vmem:[%s1796 + $0x1110] sm:$0xff]
                  %2345 = vst [vmem:[%s1797 + $0x888] sm:$0xff] %v2344
                  %v2346 = vld [vmem:[%s1796 + $0x1120] sm:$0xff]
                  %2347 = vst [vmem:[%s1797 + $0x890] sm:$0xff] %v2346
                  %v2348 = vld [vmem:[%s1796 + $0x1130] sm:$0xff]
                  %2349 = vst [vmem:[%s1797 + $0x898] sm:$0xff] %v2348
                  %v2350 = vld [vmem:[%s1796 + $0x1140] sm:$0xff]
                  %2351 = vst [vmem:[%s1797 + $0x8a0] sm:$0xff] %v2350
                  %v2352 = vld [vmem:[%s1796 + $0x1150] sm:$0xff]
                  %2353 = vst [vmem:[%s1797 + $0x8a8] sm:$0xff] %v2352
                  %v2354 = vld [vmem:[%s1796 + $0x1160] sm:$0xff]
                  %2355 = vst [vmem:[%s1797 + $0x8b0] sm:$0xff] %v2354
                  %v2356 = vld [vmem:[%s1796 + $0x1170] sm:$0xff]
                  %2357 = vst [vmem:[%s1797 + $0x8b8] sm:$0xff] %v2356
                  %v2358 = vld [vmem:[%s1796 + $0x1180] sm:$0xff]
                  %2359 = vst [vmem:[%s1797 + $0x8c0] sm:$0xff] %v2358
                  %v2360 = vld [vmem:[%s1796 + $0x1190] sm:$0xff]
                  %2361 = vst [vmem:[%s1797 + $0x8c8] sm:$0xff] %v2360
                  %v2362 = vld [vmem:[%s1796 + $0x11a0] sm:$0xff]
                  %2363 = vst [vmem:[%s1797 + $0x8d0] sm:$0xff] %v2362
                  %v2364 = vld [vmem:[%s1796 + $0x11b0] sm:$0xff]
                  %2365 = vst [vmem:[%s1797 + $0x8d8] sm:$0xff] %v2364
                  %v2366 = vld [vmem:[%s1796 + $0x11c0] sm:$0xff]
                  %2367 = vst [vmem:[%s1797 + $0x8e0] sm:$0xff] %v2366
                  %v2368 = vld [vmem:[%s1796 + $0x11d0] sm:$0xff]
                  %2369 = vst [vmem:[%s1797 + $0x8e8] sm:$0xff] %v2368
                  %v2370 = vld [vmem:[%s1796 + $0x11e0] sm:$0xff]
                  %2371 = vst [vmem:[%s1797 + $0x8f0] sm:$0xff] %v2370
                  %v2372 = vld [vmem:[%s1796 + $0x11f0] sm:$0xff]
                  %2373 = vst [vmem:[%s1797 + $0x8f8] sm:$0xff] %v2372
                  %v2374 = vld [vmem:[%s1796 + $0x1200] sm:$0xff]
                  %2375 = vst [vmem:[%s1797 + $0x900] sm:$0xff] %v2374
                  %v2376 = vld [vmem:[%s1796 + $0x1210] sm:$0xff]
                  %2377 = vst [vmem:[%s1797 + $0x908] sm:$0xff] %v2376
                  %v2378 = vld [vmem:[%s1796 + $0x1220] sm:$0xff]
                  %2379 = vst [vmem:[%s1797 + $0x910] sm:$0xff] %v2378
                  %v2380 = vld [vmem:[%s1796 + $0x1230] sm:$0xff]
                  %2381 = vst [vmem:[%s1797 + $0x918] sm:$0xff] %v2380
                  %v2382 = vld [vmem:[%s1796 + $0x1240] sm:$0xff]
                  %2383 = vst [vmem:[%s1797 + $0x920] sm:$0xff] %v2382
                  %v2384 = vld [vmem:[%s1796 + $0x1250] sm:$0xff]
                  %2385 = vst [vmem:[%s1797 + $0x928] sm:$0xff] %v2384
                  %v2386 = vld [vmem:[%s1796 + $0x1260] sm:$0xff]
                  %2387 = vst [vmem:[%s1797 + $0x930] sm:$0xff] %v2386
                  %v2388 = vld [vmem:[%s1796 + $0x1270] sm:$0xff]
                  %2389 = vst [vmem:[%s1797 + $0x938] sm:$0xff] %v2388
                  %v2390 = vld [vmem:[%s1796 + $0x1280] sm:$0xff]
                  %2391 = vst [vmem:[%s1797 + $0x940] sm:$0xff] %v2390
                  %v2392 = vld [vmem:[%s1796 + $0x1290] sm:$0xff]
                  %2393 = vst [vmem:[%s1797 + $0x948] sm:$0xff] %v2392
                  %v2394 = vld [vmem:[%s1796 + $0x12a0] sm:$0xff]
                  %2395 = vst [vmem:[%s1797 + $0x950] sm:$0xff] %v2394
                  %v2396 = vld [vmem:[%s1796 + $0x12b0] sm:$0xff]
                  %2397 = vst [vmem:[%s1797 + $0x958] sm:$0xff] %v2396
                  %v2398 = vld [vmem:[%s1796 + $0x12c0] sm:$0xff]
                  %2399 = vst [vmem:[%s1797 + $0x960] sm:$0xff] %v2398
                  %v2400 = vld [vmem:[%s1796 + $0x12d0] sm:$0xff]
                  %2401 = vst [vmem:[%s1797 + $0x968] sm:$0xff] %v2400
                  %v2402 = vld [vmem:[%s1796 + $0x12e0] sm:$0xff]
                  %2403 = vst [vmem:[%s1797 + $0x970] sm:$0xff] %v2402
                  %v2404 = vld [vmem:[%s1796 + $0x12f0] sm:$0xff]
                  %2405 = vst [vmem:[%s1797 + $0x978] sm:$0xff] %v2404
                  %v2406 = vld [vmem:[%s1796 + $0x1300] sm:$0xff]
                  %2407 = vst [vmem:[%s1797 + $0x980] sm:$0xff] %v2406
                  %v2408 = vld [vmem:[%s1796 + $0x1310] sm:$0xff]
                  %2409 = vst [vmem:[%s1797 + $0x988] sm:$0xff] %v2408
                  %v2410 = vld [vmem:[%s1796 + $0x1320] sm:$0xff]
                  %2411 = vst [vmem:[%s1797 + $0x990] sm:$0xff] %v2410
                  %v2412 = vld [vmem:[%s1796 + $0x1330] sm:$0xff]
                  %2413 = vst [vmem:[%s1797 + $0x998] sm:$0xff] %v2412
                  %v2414 = vld [vmem:[%s1796 + $0x1340] sm:$0xff]
                  %2415 = vst [vmem:[%s1797 + $0x9a0] sm:$0xff] %v2414
                  %v2416 = vld [vmem:[%s1796 + $0x1350] sm:$0xff]
                  %2417 = vst [vmem:[%s1797 + $0x9a8] sm:$0xff] %v2416
                  %v2418 = vld [vmem:[%s1796 + $0x1360] sm:$0xff]
                  %2419 = vst [vmem:[%s1797 + $0x9b0] sm:$0xff] %v2418
                  %v2420 = vld [vmem:[%s1796 + $0x1370] sm:$0xff]
                  %2421 = vst [vmem:[%s1797 + $0x9b8] sm:$0xff] %v2420
                  %v2422 = vld [vmem:[%s1796 + $0x1380] sm:$0xff]
                  %2423 = vst [vmem:[%s1797 + $0x9c0] sm:$0xff] %v2422
                  %v2424 = vld [vmem:[%s1796 + $0x1390] sm:$0xff]
                  %2425 = vst [vmem:[%s1797 + $0x9c8] sm:$0xff] %v2424
                  %v2426 = vld [vmem:[%s1796 + $0x13a0] sm:$0xff]
                  %2427 = vst [vmem:[%s1797 + $0x9d0] sm:$0xff] %v2426
                  %v2428 = vld [vmem:[%s1796 + $0x13b0] sm:$0xff]
                  %2429 = vst [vmem:[%s1797 + $0x9d8] sm:$0xff] %v2428
                  %v2430 = vld [vmem:[%s1796 + $0x13c0] sm:$0xff]
                  %2431 = vst [vmem:[%s1797 + $0x9e0] sm:$0xff] %v2430
                  %v2432 = vld [vmem:[%s1796 + $0x13d0] sm:$0xff]
                  %2433 = vst [vmem:[%s1797 + $0x9e8] sm:$0xff] %v2432
                  %v2434 = vld [vmem:[%s1796 + $0x13e0] sm:$0xff]
                  %2435 = vst [vmem:[%s1797 + $0x9f0] sm:$0xff] %v2434
                  %v2436 = vld [vmem:[%s1796 + $0x13f0] sm:$0xff]
                  %2437 = vst [vmem:[%s1797 + $0x9f8] sm:$0xff] %v2436
                  %v2438 = vld [vmem:[%s1796 + $0x1400] sm:$0xff]
                  %2439 = vst [vmem:[%s1797 + $0xa00] sm:$0xff] %v2438
                  %v2440 = vld [vmem:[%s1796 + $0x1410] sm:$0xff]
                  %2441 = vst [vmem:[%s1797 + $0xa08] sm:$0xff] %v2440
                  %v2442 = vld [vmem:[%s1796 + $0x1420] sm:$0xff]
                  %2443 = vst [vmem:[%s1797 + $0xa10] sm:$0xff] %v2442
                  %v2444 = vld [vmem:[%s1796 + $0x1430] sm:$0xff]
                  %2445 = vst [vmem:[%s1797 + $0xa18] sm:$0xff] %v2444
                  %v2446 = vld [vmem:[%s1796 + $0x1440] sm:$0xff]
                  %2447 = vst [vmem:[%s1797 + $0xa20] sm:$0xff] %v2446
                  %v2448 = vld [vmem:[%s1796 + $0x1450] sm:$0xff]
                  %2449 = vst [vmem:[%s1797 + $0xa28] sm:$0xff] %v2448
                  %v2450 = vld [vmem:[%s1796 + $0x1460] sm:$0xff]
                  %2451 = vst [vmem:[%s1797 + $0xa30] sm:$0xff] %v2450
                  %v2452 = vld [vmem:[%s1796 + $0x1470] sm:$0xff]
                  %2453 = vst [vmem:[%s1797 + $0xa38] sm:$0xff] %v2452
                  %v2454 = vld [vmem:[%s1796 + $0x1480] sm:$0xff]
                  %2455 = vst [vmem:[%s1797 + $0xa40] sm:$0xff] %v2454
                  %v2456 = vld [vmem:[%s1796 + $0x1490] sm:$0xff]
                  %2457 = vst [vmem:[%s1797 + $0xa48] sm:$0xff] %v2456
                  %v2458 = vld [vmem:[%s1796 + $0x14a0] sm:$0xff]
                  %2459 = vst [vmem:[%s1797 + $0xa50] sm:$0xff] %v2458
                  %v2460 = vld [vmem:[%s1796 + $0x14b0] sm:$0xff]
                  %2461 = vst [vmem:[%s1797 + $0xa58] sm:$0xff] %v2460
                  %v2462 = vld [vmem:[%s1796 + $0x14c0] sm:$0xff]
                  %2463 = vst [vmem:[%s1797 + $0xa60] sm:$0xff] %v2462
                  %v2464 = vld [vmem:[%s1796 + $0x14d0] sm:$0xff]
                  %2465 = vst [vmem:[%s1797 + $0xa68] sm:$0xff] %v2464
                  %v2466 = vld [vmem:[%s1796 + $0x14e0] sm:$0xff]
                  %2467 = vst [vmem:[%s1797 + $0xa70] sm:$0xff] %v2466
                  %v2468 = vld [vmem:[%s1796 + $0x14f0] sm:$0xff]
                  %2469 = vst [vmem:[%s1797 + $0xa78] sm:$0xff] %v2468
                  %v2470 = vld [vmem:[%s1796 + $0x1500] sm:$0xff]
                  %2471 = vst [vmem:[%s1797 + $0xa80] sm:$0xff] %v2470
                  %v2472 = vld [vmem:[%s1796 + $0x1510] sm:$0xff]
                  %2473 = vst [vmem:[%s1797 + $0xa88] sm:$0xff] %v2472
                  %v2474 = vld [vmem:[%s1796 + $0x1520] sm:$0xff]
                  %2475 = vst [vmem:[%s1797 + $0xa90] sm:$0xff] %v2474
                  %v2476 = vld [vmem:[%s1796 + $0x1530] sm:$0xff]
                  %2477 = vst [vmem:[%s1797 + $0xa98] sm:$0xff] %v2476
                  %v2478 = vld [vmem:[%s1796 + $0x1540] sm:$0xff]
                  %2479 = vst [vmem:[%s1797 + $0xaa0] sm:$0xff] %v2478
                  %v2480 = vld [vmem:[%s1796 + $0x1550] sm:$0xff]
                  %2481 = vst [vmem:[%s1797 + $0xaa8] sm:$0xff] %v2480
                  %v2482 = vld [vmem:[%s1796 + $0x1560] sm:$0xff]
                  %2483 = vst [vmem:[%s1797 + $0xab0] sm:$0xff] %v2482
                  %v2484 = vld [vmem:[%s1796 + $0x1570] sm:$0xff]
                  %2485 = vst [vmem:[%s1797 + $0xab8] sm:$0xff] %v2484
                  %v2486 = vld [vmem:[%s1796 + $0x1580] sm:$0xff]
                  %2487 = vst [vmem:[%s1797 + $0xac0] sm:$0xff] %v2486
                  %v2488 = vld [vmem:[%s1796 + $0x1590] sm:$0xff]
                  %2489 = vst [vmem:[%s1797 + $0xac8] sm:$0xff] %v2488
                  %v2490 = vld [vmem:[%s1796 + $0x15a0] sm:$0xff]
                  %2491 = vst [vmem:[%s1797 + $0xad0] sm:$0xff] %v2490
                  %v2492 = vld [vmem:[%s1796 + $0x15b0] sm:$0xff]
                  %2493 = vst [vmem:[%s1797 + $0xad8] sm:$0xff] %v2492
                  %v2494 = vld [vmem:[%s1796 + $0x15c0] sm:$0xff]
                  %2495 = vst [vmem:[%s1797 + $0xae0] sm:$0xff] %v2494
                  %v2496 = vld [vmem:[%s1796 + $0x15d0] sm:$0xff]
                  %2497 = vst [vmem:[%s1797 + $0xae8] sm:$0xff] %v2496
                  %v2498 = vld [vmem:[%s1796 + $0x15e0] sm:$0xff]
                  %2499 = vst [vmem:[%s1797 + $0xaf0] sm:$0xff] %v2498
                  %v2500 = vld [vmem:[%s1796 + $0x15f0] sm:$0xff]
                  %2501 = vst [vmem:[%s1797 + $0xaf8] sm:$0xff] %v2500
                  %v2502 = vld [vmem:[%s1796 + $0x1600] sm:$0xff]
                  %2503 = vst [vmem:[%s1797 + $0xb00] sm:$0xff] %v2502
                  %v2504 = vld [vmem:[%s1796 + $0x1610] sm:$0xff]
                  %2505 = vst [vmem:[%s1797 + $0xb08] sm:$0xff] %v2504
                  %v2506 = vld [vmem:[%s1796 + $0x1620] sm:$0xff]
                  %2507 = vst [vmem:[%s1797 + $0xb10] sm:$0xff] %v2506
                  %v2508 = vld [vmem:[%s1796 + $0x1630] sm:$0xff]
                  %2509 = vst [vmem:[%s1797 + $0xb18] sm:$0xff] %v2508
                  %v2510 = vld [vmem:[%s1796 + $0x1640] sm:$0xff]
                  %2511 = vst [vmem:[%s1797 + $0xb20] sm:$0xff] %v2510
                  %v2512 = vld [vmem:[%s1796 + $0x1650] sm:$0xff]
                  %2513 = vst [vmem:[%s1797 + $0xb28] sm:$0xff] %v2512
                  %v2514 = vld [vmem:[%s1796 + $0x1660] sm:$0xff]
                  %2515 = vst [vmem:[%s1797 + $0xb30] sm:$0xff] %v2514
                  %v2516 = vld [vmem:[%s1796 + $0x1670] sm:$0xff]
                  %2517 = vst [vmem:[%s1797 + $0xb38] sm:$0xff] %v2516
                  %v2518 = vld [vmem:[%s1796 + $0x1680] sm:$0xff]
                  %2519 = vst [vmem:[%s1797 + $0xb40] sm:$0xff] %v2518
                  %v2520 = vld [vmem:[%s1796 + $0x1690] sm:$0xff]
                  %2521 = vst [vmem:[%s1797 + $0xb48] sm:$0xff] %v2520
                  %v2522 = vld [vmem:[%s1796 + $0x16a0] sm:$0xff]
                  %2523 = vst [vmem:[%s1797 + $0xb50] sm:$0xff] %v2522
                  %v2524 = vld [vmem:[%s1796 + $0x16b0] sm:$0xff]
                  %2525 = vst [vmem:[%s1797 + $0xb58] sm:$0xff] %v2524
                  %v2526 = vld [vmem:[%s1796 + $0x16c0] sm:$0xff]
                  %2527 = vst [vmem:[%s1797 + $0xb60] sm:$0xff] %v2526
                  %v2528 = vld [vmem:[%s1796 + $0x16d0] sm:$0xff]
                  %2529 = vst [vmem:[%s1797 + $0xb68] sm:$0xff] %v2528
                  %v2530 = vld [vmem:[%s1796 + $0x16e0] sm:$0xff]
                  %2531 = vst [vmem:[%s1797 + $0xb70] sm:$0xff] %v2530
                  %v2532 = vld [vmem:[%s1796 + $0x16f0] sm:$0xff]
                  %2533 = vst [vmem:[%s1797 + $0xb78] sm:$0xff] %v2532
                  %v2534 = vld [vmem:[%s1796 + $0x1700] sm:$0xff]
                  %2535 = vst [vmem:[%s1797 + $0xb80] sm:$0xff] %v2534
                  %v2536 = vld [vmem:[%s1796 + $0x1710] sm:$0xff]
                  %2537 = vst [vmem:[%s1797 + $0xb88] sm:$0xff] %v2536
                  %v2538 = vld [vmem:[%s1796 + $0x1720] sm:$0xff]
                  %2539 = vst [vmem:[%s1797 + $0xb90] sm:$0xff] %v2538
                  %v2540 = vld [vmem:[%s1796 + $0x1730] sm:$0xff]
                  %2541 = vst [vmem:[%s1797 + $0xb98] sm:$0xff] %v2540
                  %v2542 = vld [vmem:[%s1796 + $0x1740] sm:$0xff]
                  %2543 = vst [vmem:[%s1797 + $0xba0] sm:$0xff] %v2542
                  %v2544 = vld [vmem:[%s1796 + $0x1750] sm:$0xff]
                  %2545 = vst [vmem:[%s1797 + $0xba8] sm:$0xff] %v2544
                  %v2546 = vld [vmem:[%s1796 + $0x1760] sm:$0xff]
                  %2547 = vst [vmem:[%s1797 + $0xbb0] sm:$0xff] %v2546
                  %v2548 = vld [vmem:[%s1796 + $0x1770] sm:$0xff]
                  %2549 = vst [vmem:[%s1797 + $0xbb8] sm:$0xff] %v2548
                  %v2550 = vld [vmem:[%s1796 + $0x1780] sm:$0xff]
                  %2551 = vst [vmem:[%s1797 + $0xbc0] sm:$0xff] %v2550
                  %v2552 = vld [vmem:[%s1796 + $0x1790] sm:$0xff]
                  %2553 = vst [vmem:[%s1797 + $0xbc8] sm:$0xff] %v2552
                  %v2554 = vld [vmem:[%s1796 + $0x17a0] sm:$0xff]
                  %2555 = vst [vmem:[%s1797 + $0xbd0] sm:$0xff] %v2554
                  %v2556 = vld [vmem:[%s1796 + $0x17b0] sm:$0xff]
                  %2557 = vst [vmem:[%s1797 + $0xbd8] sm:$0xff] %v2556
                  %v2558 = vld [vmem:[%s1796 + $0x17c0] sm:$0xff]
                  %2559 = vst [vmem:[%s1797 + $0xbe0] sm:$0xff] %v2558
                  %v2560 = vld [vmem:[%s1796 + $0x17d0] sm:$0xff]
                  %2561 = vst [vmem:[%s1797 + $0xbe8] sm:$0xff] %v2560
                  %v2562 = vld [vmem:[%s1796 + $0x17e0] sm:$0xff]
                  %2563 = vst [vmem:[%s1797 + $0xbf0] sm:$0xff] %v2562
                  %v2564 = vld [vmem:[%s1796 + $0x17f0] sm:$0xff]
                  %2565 = vst [vmem:[%s1797 + $0xbf8] sm:$0xff] %v2564
                  %v2566 = vld [vmem:[%s1796 + $0x1800] sm:$0xff]
                  %2567 = vst [vmem:[%s1797 + $0xc00] sm:$0xff] %v2566
                  %v2568 = vld [vmem:[%s1796 + $0x1810] sm:$0xff]
                  %2569 = vst [vmem:[%s1797 + $0xc08] sm:$0xff] %v2568
                  %v2570 = vld [vmem:[%s1796 + $0x1820] sm:$0xff]
                  %2571 = vst [vmem:[%s1797 + $0xc10] sm:$0xff] %v2570
                  %v2572 = vld [vmem:[%s1796 + $0x1830] sm:$0xff]
                  %2573 = vst [vmem:[%s1797 + $0xc18] sm:$0xff] %v2572
                  %v2574 = vld [vmem:[%s1796 + $0x1840] sm:$0xff]
                  %2575 = vst [vmem:[%s1797 + $0xc20] sm:$0xff] %v2574
                  %v2576 = vld [vmem:[%s1796 + $0x1850] sm:$0xff]
                  %2577 = vst [vmem:[%s1797 + $0xc28] sm:$0xff] %v2576
                  %v2578 = vld [vmem:[%s1796 + $0x1860] sm:$0xff]
                  %2579 = vst [vmem:[%s1797 + $0xc30] sm:$0xff] %v2578
                  %v2580 = vld [vmem:[%s1796 + $0x1870] sm:$0xff]
                  %2581 = vst [vmem:[%s1797 + $0xc38] sm:$0xff] %v2580
                  %s2582 = sadd.s32 1, %s1795
                  %p2583 = scmp.ge.s32.totalorder %s2582, 1
                  %s2584 = scalar_select %p2583, 0, %s2582
                  %s2585 = smul.u32 %s2584, 8
                  %s2586 = smul.u32 %s2584, 8
                  %s2587 = scalar_lea.vmem %s182, %s2585
                  %s2588 = scalar_lea.vmem %s176, %s2586 [#allocation3]
                $region63: #{policy_forward.8} parent=57 // loop_footer
                  %s1794 = sadd.s32 1, %s1790
                $region64: #{policy_forward.8} parent=57 // loop_footer_branch
                  %1789 = sbr.rel target = $region60
                $region65: #{policy_forward.8} parent=57 // loop_exit
                  _
                %s2590 = ssub.s32 1, 1
                loop: start=0, step=1, limit=1
                $region66: #{policy_forward.8} parent=57 // loop_pre_header
                  _
                $region67: #{policy_forward.8} parent=57 // loop_header
                  %s2592 = sphi 0, %s2596
                  %p2593 = scmp.ge.s32.totalorder %s2592, 1
                  %s2597 = sphi %s1787, %s1787
                  %s2598 = sphi %s1788, %s1788
                $region68: #{policy_forward.8} parent=57 // loop_header_branch
                  %2595 = sbr.rel (%p2593) target = $region72
                $region69: #{policy_forward.8} parent=57 // loop_body
                  %v2599 = vld [vmem:[%s2597] sm:%s2590]
                  %2600 = vst [vmem:[%s2598] sm:%s2590] %v2599
                  %v2601 = vld [vmem:[%s2597 + $0x10] sm:%s2590]
                  %2602 = vst [vmem:[%s2598 + $0x8] sm:%s2590] %v2601
                  %v2603 = vld [vmem:[%s2597 + $0x20] sm:%s2590]
                  %2604 = vst [vmem:[%s2598 + $0x10] sm:%s2590] %v2603
                  %v2605 = vld [vmem:[%s2597 + $0x30] sm:%s2590]
                  %2606 = vst [vmem:[%s2598 + $0x18] sm:%s2590] %v2605
                  %v2607 = vld [vmem:[%s2597 + $0x40] sm:%s2590]
                  %2608 = vst [vmem:[%s2598 + $0x20] sm:%s2590] %v2607
                  %v2609 = vld [vmem:[%s2597 + $0x50] sm:%s2590]
                  %2610 = vst [vmem:[%s2598 + $0x28] sm:%s2590] %v2609
                  %v2611 = vld [vmem:[%s2597 + $0x60] sm:%s2590]
                  %2612 = vst [vmem:[%s2598 + $0x30] sm:%s2590] %v2611
                  %v2613 = vld [vmem:[%s2597 + $0x70] sm:%s2590]
                  %2614 = vst [vmem:[%s2598 + $0x38] sm:%s2590] %v2613
                  %v2615 = vld [vmem:[%s2597 + $0x80] sm:%s2590]
                  %2616 = vst [vmem:[%s2598 + $0x40] sm:%s2590] %v2615
                  %v2617 = vld [vmem:[%s2597 + $0x90] sm:%s2590]
                  %2618 = vst [vmem:[%s2598 + $0x48] sm:%s2590] %v2617
                  %v2619 = vld [vmem:[%s2597 + $0xa0] sm:%s2590]
                  %2620 = vst [vmem:[%s2598 + $0x50] sm:%s2590] %v2619
                  %v2621 = vld [vmem:[%s2597 + $0xb0] sm:%s2590]
                  %2622 = vst [vmem:[%s2598 + $0x58] sm:%s2590] %v2621
                  %v2623 = vld [vmem:[%s2597 + $0xc0] sm:%s2590]
                  %2624 = vst [vmem:[%s2598 + $0x60] sm:%s2590] %v2623
                  %v2625 = vld [vmem:[%s2597 + $0xd0] sm:%s2590]
                  %2626 = vst [vmem:[%s2598 + $0x68] sm:%s2590] %v2625
                  %v2627 = vld [vmem:[%s2597 + $0xe0] sm:%s2590]
                  %2628 = vst [vmem:[%s2598 + $0x70] sm:%s2590] %v2627
                  %v2629 = vld [vmem:[%s2597 + $0xf0] sm:%s2590]
                  %2630 = vst [vmem:[%s2598 + $0x78] sm:%s2590] %v2629
                  %v2631 = vld [vmem:[%s2597 + $0x100] sm:%s2590]
                  %2632 = vst [vmem:[%s2598 + $0x80] sm:%s2590] %v2631
                  %v2633 = vld [vmem:[%s2597 + $0x110] sm:%s2590]
                  %2634 = vst [vmem:[%s2598 + $0x88] sm:%s2590] %v2633
                  %v2635 = vld [vmem:[%s2597 + $0x120] sm:%s2590]
                  %2636 = vst [vmem:[%s2598 + $0x90] sm:%s2590] %v2635
                  %v2637 = vld [vmem:[%s2597 + $0x130] sm:%s2590]
                  %2638 = vst [vmem:[%s2598 + $0x98] sm:%s2590] %v2637
                  %v2639 = vld [vmem:[%s2597 + $0x140] sm:%s2590]
                  %2640 = vst [vmem:[%s2598 + $0xa0] sm:%s2590] %v2639
                  %v2641 = vld [vmem:[%s2597 + $0x150] sm:%s2590]
                  %2642 = vst [vmem:[%s2598 + $0xa8] sm:%s2590] %v2641
                  %v2643 = vld [vmem:[%s2597 + $0x160] sm:%s2590]
                  %2644 = vst [vmem:[%s2598 + $0xb0] sm:%s2590] %v2643
                  %v2645 = vld [vmem:[%s2597 + $0x170] sm:%s2590]
                  %2646 = vst [vmem:[%s2598 + $0xb8] sm:%s2590] %v2645
                  %v2647 = vld [vmem:[%s2597 + $0x180] sm:%s2590]
                  %2648 = vst [vmem:[%s2598 + $0xc0] sm:%s2590] %v2647
                  %v2649 = vld [vmem:[%s2597 + $0x190] sm:%s2590]
                  %2650 = vst [vmem:[%s2598 + $0xc8] sm:%s2590] %v2649
                  %v2651 = vld [vmem:[%s2597 + $0x1a0] sm:%s2590]
                  %2652 = vst [vmem:[%s2598 + $0xd0] sm:%s2590] %v2651
                  %v2653 = vld [vmem:[%s2597 + $0x1b0] sm:%s2590]
                  %2654 = vst [vmem:[%s2598 + $0xd8] sm:%s2590] %v2653
                  %v2655 = vld [vmem:[%s2597 + $0x1c0] sm:%s2590]
                  %2656 = vst [vmem:[%s2598 + $0xe0] sm:%s2590] %v2655
                  %v2657 = vld [vmem:[%s2597 + $0x1d0] sm:%s2590]
                  %2658 = vst [vmem:[%s2598 + $0xe8] sm:%s2590] %v2657
                  %v2659 = vld [vmem:[%s2597 + $0x1e0] sm:%s2590]
                  %2660 = vst [vmem:[%s2598 + $0xf0] sm:%s2590] %v2659
                  %v2661 = vld [vmem:[%s2597 + $0x1f0] sm:%s2590]
                  %2662 = vst [vmem:[%s2598 + $0xf8] sm:%s2590] %v2661
                  %v2663 = vld [vmem:[%s2597 + $0x200] sm:%s2590]
                  %2664 = vst [vmem:[%s2598 + $0x100] sm:%s2590] %v2663
                  %v2665 = vld [vmem:[%s2597 + $0x210] sm:%s2590]
                  %2666 = vst [vmem:[%s2598 + $0x108] sm:%s2590] %v2665
                  %v2667 = vld [vmem:[%s2597 + $0x220] sm:%s2590]
                  %2668 = vst [vmem:[%s2598 + $0x110] sm:%s2590] %v2667
                  %v2669 = vld [vmem:[%s2597 + $0x230] sm:%s2590]
                  %2670 = vst [vmem:[%s2598 + $0x118] sm:%s2590] %v2669
                  %v2671 = vld [vmem:[%s2597 + $0x240] sm:%s2590]
                  %2672 = vst [vmem:[%s2598 + $0x120] sm:%s2590] %v2671
                  %v2673 = vld [vmem:[%s2597 + $0x250] sm:%s2590]
                  %2674 = vst [vmem:[%s2598 + $0x128] sm:%s2590] %v2673
                  %v2675 = vld [vmem:[%s2597 + $0x260] sm:%s2590]
                  %2676 = vst [vmem:[%s2598 + $0x130] sm:%s2590] %v2675
                  %v2677 = vld [vmem:[%s2597 + $0x270] sm:%s2590]
                  %2678 = vst [vmem:[%s2598 + $0x138] sm:%s2590] %v2677
                  %v2679 = vld [vmem:[%s2597 + $0x280] sm:%s2590]
                  %2680 = vst [vmem:[%s2598 + $0x140] sm:%s2590] %v2679
                  %v2681 = vld [vmem:[%s2597 + $0x290] sm:%s2590]
                  %2682 = vst [vmem:[%s2598 + $0x148] sm:%s2590] %v2681
                  %v2683 = vld [vmem:[%s2597 + $0x2a0] sm:%s2590]
                  %2684 = vst [vmem:[%s2598 + $0x150] sm:%s2590] %v2683
                  %v2685 = vld [vmem:[%s2597 + $0x2b0] sm:%s2590]
                  %2686 = vst [vmem:[%s2598 + $0x158] sm:%s2590] %v2685
                  %v2687 = vld [vmem:[%s2597 + $0x2c0] sm:%s2590]
                  %2688 = vst [vmem:[%s2598 + $0x160] sm:%s2590] %v2687
                  %v2689 = vld [vmem:[%s2597 + $0x2d0] sm:%s2590]
                  %2690 = vst [vmem:[%s2598 + $0x168] sm:%s2590] %v2689
                  %v2691 = vld [vmem:[%s2597 + $0x2e0] sm:%s2590]
                  %2692 = vst [vmem:[%s2598 + $0x170] sm:%s2590] %v2691
                  %v2693 = vld [vmem:[%s2597 + $0x2f0] sm:%s2590]
                  %2694 = vst [vmem:[%s2598 + $0x178] sm:%s2590] %v2693
                  %v2695 = vld [vmem:[%s2597 + $0x300] sm:%s2590]
                  %2696 = vst [vmem:[%s2598 + $0x180] sm:%s2590] %v2695
                  %v2697 = vld [vmem:[%s2597 + $0x310] sm:%s2590]
                  %2698 = vst [vmem:[%s2598 + $0x188] sm:%s2590] %v2697
                  %v2699 = vld [vmem:[%s2597 + $0x320] sm:%s2590]
                  %2700 = vst [vmem:[%s2598 + $0x190] sm:%s2590] %v2699
                  %v2701 = vld [vmem:[%s2597 + $0x330] sm:%s2590]
                  %2702 = vst [vmem:[%s2598 + $0x198] sm:%s2590] %v2701
                  %v2703 = vld [vmem:[%s2597 + $0x340] sm:%s2590]
                  %2704 = vst [vmem:[%s2598 + $0x1a0] sm:%s2590] %v2703
                  %v2705 = vld [vmem:[%s2597 + $0x350] sm:%s2590]
                  %2706 = vst [vmem:[%s2598 + $0x1a8] sm:%s2590] %v2705
                  %v2707 = vld [vmem:[%s2597 + $0x360] sm:%s2590]
                  %2708 = vst [vmem:[%s2598 + $0x1b0] sm:%s2590] %v2707
                  %v2709 = vld [vmem:[%s2597 + $0x370] sm:%s2590]
                  %2710 = vst [vmem:[%s2598 + $0x1b8] sm:%s2590] %v2709
                  %v2711 = vld [vmem:[%s2597 + $0x380] sm:%s2590]
                  %2712 = vst [vmem:[%s2598 + $0x1c0] sm:%s2590] %v2711
                  %v2713 = vld [vmem:[%s2597 + $0x390] sm:%s2590]
                  %2714 = vst [vmem:[%s2598 + $0x1c8] sm:%s2590] %v2713
                  %v2715 = vld [vmem:[%s2597 + $0x3a0] sm:%s2590]
                  %2716 = vst [vmem:[%s2598 + $0x1d0] sm:%s2590] %v2715
                  %v2717 = vld [vmem:[%s2597 + $0x3b0] sm:%s2590]
                  %2718 = vst [vmem:[%s2598 + $0x1d8] sm:%s2590] %v2717
                  %v2719 = vld [vmem:[%s2597 + $0x3c0] sm:%s2590]
                  %2720 = vst [vmem:[%s2598 + $0x1e0] sm:%s2590] %v2719
                  %v2721 = vld [vmem:[%s2597 + $0x3d0] sm:%s2590]
                  %2722 = vst [vmem:[%s2598 + $0x1e8] sm:%s2590] %v2721
                  %v2723 = vld [vmem:[%s2597 + $0x3e0] sm:%s2590]
                  %2724 = vst [vmem:[%s2598 + $0x1f0] sm:%s2590] %v2723
                  %v2725 = vld [vmem:[%s2597 + $0x3f0] sm:%s2590]
                  %2726 = vst [vmem:[%s2598 + $0x1f8] sm:%s2590] %v2725
                  %v2727 = vld [vmem:[%s2597 + $0x400] sm:%s2590]
                  %2728 = vst [vmem:[%s2598 + $0x200] sm:%s2590] %v2727
                  %v2729 = vld [vmem:[%s2597 + $0x410] sm:%s2590]
                  %2730 = vst [vmem:[%s2598 + $0x208] sm:%s2590] %v2729
                  %v2731 = vld [vmem:[%s2597 + $0x420] sm:%s2590]
                  %2732 = vst [vmem:[%s2598 + $0x210] sm:%s2590] %v2731
                  %v2733 = vld [vmem:[%s2597 + $0x430] sm:%s2590]
                  %2734 = vst [vmem:[%s2598 + $0x218] sm:%s2590] %v2733
                  %v2735 = vld [vmem:[%s2597 + $0x440] sm:%s2590]
                  %2736 = vst [vmem:[%s2598 + $0x220] sm:%s2590] %v2735
                  %v2737 = vld [vmem:[%s2597 + $0x450] sm:%s2590]
                  %2738 = vst [vmem:[%s2598 + $0x228] sm:%s2590] %v2737
                  %v2739 = vld [vmem:[%s2597 + $0x460] sm:%s2590]
                  %2740 = vst [vmem:[%s2598 + $0x230] sm:%s2590] %v2739
                  %v2741 = vld [vmem:[%s2597 + $0x470] sm:%s2590]
                  %2742 = vst [vmem:[%s2598 + $0x238] sm:%s2590] %v2741
                  %v2743 = vld [vmem:[%s2597 + $0x480] sm:%s2590]
                  %2744 = vst [vmem:[%s2598 + $0x240] sm:%s2590] %v2743
                  %v2745 = vld [vmem:[%s2597 + $0x490] sm:%s2590]
                  %2746 = vst [vmem:[%s2598 + $0x248] sm:%s2590] %v2745
                  %v2747 = vld [vmem:[%s2597 + $0x4a0] sm:%s2590]
                  %2748 = vst [vmem:[%s2598 + $0x250] sm:%s2590] %v2747
                  %v2749 = vld [vmem:[%s2597 + $0x4b0] sm:%s2590]
                  %2750 = vst [vmem:[%s2598 + $0x258] sm:%s2590] %v2749
                  %v2751 = vld [vmem:[%s2597 + $0x4c0] sm:%s2590]
                  %2752 = vst [vmem:[%s2598 + $0x260] sm:%s2590] %v2751
                  %v2753 = vld [vmem:[%s2597 + $0x4d0] sm:%s2590]
                  %2754 = vst [vmem:[%s2598 + $0x268] sm:%s2590] %v2753
                  %v2755 = vld [vmem:[%s2597 + $0x4e0] sm:%s2590]
                  %2756 = vst [vmem:[%s2598 + $0x270] sm:%s2590] %v2755
                  %v2757 = vld [vmem:[%s2597 + $0x4f0] sm:%s2590]
                  %2758 = vst [vmem:[%s2598 + $0x278] sm:%s2590] %v2757
                  %v2759 = vld [vmem:[%s2597 + $0x500] sm:%s2590]
                  %2760 = vst [vmem:[%s2598 + $0x280] sm:%s2590] %v2759
                  %v2761 = vld [vmem:[%s2597 + $0x510] sm:%s2590]
                  %2762 = vst [vmem:[%s2598 + $0x288] sm:%s2590] %v2761
                  %v2763 = vld [vmem:[%s2597 + $0x520] sm:%s2590]
                  %2764 = vst [vmem:[%s2598 + $0x290] sm:%s2590] %v2763
                  %v2765 = vld [vmem:[%s2597 + $0x530] sm:%s2590]
                  %2766 = vst [vmem:[%s2598 + $0x298] sm:%s2590] %v2765
                  %v2767 = vld [vmem:[%s2597 + $0x540] sm:%s2590]
                  %2768 = vst [vmem:[%s2598 + $0x2a0] sm:%s2590] %v2767
                  %v2769 = vld [vmem:[%s2597 + $0x550] sm:%s2590]
                  %2770 = vst [vmem:[%s2598 + $0x2a8] sm:%s2590] %v2769
                  %v2771 = vld [vmem:[%s2597 + $0x560] sm:%s2590]
                  %2772 = vst [vmem:[%s2598 + $0x2b0] sm:%s2590] %v2771
                  %v2773 = vld [vmem:[%s2597 + $0x570] sm:%s2590]
                  %2774 = vst [vmem:[%s2598 + $0x2b8] sm:%s2590] %v2773
                  %v2775 = vld [vmem:[%s2597 + $0x580] sm:%s2590]
                  %2776 = vst [vmem:[%s2598 + $0x2c0] sm:%s2590] %v2775
                  %v2777 = vld [vmem:[%s2597 + $0x590] sm:%s2590]
                  %2778 = vst [vmem:[%s2598 + $0x2c8] sm:%s2590] %v2777
                  %v2779 = vld [vmem:[%s2597 + $0x5a0] sm:%s2590]
                  %2780 = vst [vmem:[%s2598 + $0x2d0] sm:%s2590] %v2779
                  %v2781 = vld [vmem:[%s2597 + $0x5b0] sm:%s2590]
                  %2782 = vst [vmem:[%s2598 + $0x2d8] sm:%s2590] %v2781
                  %v2783 = vld [vmem:[%s2597 + $0x5c0] sm:%s2590]
                  %2784 = vst [vmem:[%s2598 + $0x2e0] sm:%s2590] %v2783
                  %v2785 = vld [vmem:[%s2597 + $0x5d0] sm:%s2590]
                  %2786 = vst [vmem:[%s2598 + $0x2e8] sm:%s2590] %v2785
                  %v2787 = vld [vmem:[%s2597 + $0x5e0] sm:%s2590]
                  %2788 = vst [vmem:[%s2598 + $0x2f0] sm:%s2590] %v2787
                  %v2789 = vld [vmem:[%s2597 + $0x5f0] sm:%s2590]
                  %2790 = vst [vmem:[%s2598 + $0x2f8] sm:%s2590] %v2789
                  %v2791 = vld [vmem:[%s2597 + $0x600] sm:%s2590]
                  %2792 = vst [vmem:[%s2598 + $0x300] sm:%s2590] %v2791
                  %v2793 = vld [vmem:[%s2597 + $0x610] sm:%s2590]
                  %2794 = vst [vmem:[%s2598 + $0x308] sm:%s2590] %v2793
                  %v2795 = vld [vmem:[%s2597 + $0x620] sm:%s2590]
                  %2796 = vst [vmem:[%s2598 + $0x310] sm:%s2590] %v2795
                  %v2797 = vld [vmem:[%s2597 + $0x630] sm:%s2590]
                  %2798 = vst [vmem:[%s2598 + $0x318] sm:%s2590] %v2797
                  %v2799 = vld [vmem:[%s2597 + $0x640] sm:%s2590]
                  %2800 = vst [vmem:[%s2598 + $0x320] sm:%s2590] %v2799
                  %v2801 = vld [vmem:[%s2597 + $0x650] sm:%s2590]
                  %2802 = vst [vmem:[%s2598 + $0x328] sm:%s2590] %v2801
                  %v2803 = vld [vmem:[%s2597 + $0x660] sm:%s2590]
                  %2804 = vst [vmem:[%s2598 + $0x330] sm:%s2590] %v2803
                  %v2805 = vld [vmem:[%s2597 + $0x670] sm:%s2590]
                  %2806 = vst [vmem:[%s2598 + $0x338] sm:%s2590] %v2805
                  %v2807 = vld [vmem:[%s2597 + $0x680] sm:%s2590]
                  %2808 = vst [vmem:[%s2598 + $0x340] sm:%s2590] %v2807
                  %v2809 = vld [vmem:[%s2597 + $0x690] sm:%s2590]
                  %2810 = vst [vmem:[%s2598 + $0x348] sm:%s2590] %v2809
                  %v2811 = vld [vmem:[%s2597 + $0x6a0] sm:%s2590]
                  %2812 = vst [vmem:[%s2598 + $0x350] sm:%s2590] %v2811
                  %v2813 = vld [vmem:[%s2597 + $0x6b0] sm:%s2590]
                  %2814 = vst [vmem:[%s2598 + $0x358] sm:%s2590] %v2813
                  %v2815 = vld [vmem:[%s2597 + $0x6c0] sm:%s2590]
                  %2816 = vst [vmem:[%s2598 + $0x360] sm:%s2590] %v2815
                  %v2817 = vld [vmem:[%s2597 + $0x6d0] sm:%s2590]
                  %2818 = vst [vmem:[%s2598 + $0x368] sm:%s2590] %v2817
                  %v2819 = vld [vmem:[%s2597 + $0x6e0] sm:%s2590]
                  %2820 = vst [vmem:[%s2598 + $0x370] sm:%s2590] %v2819
                  %v2821 = vld [vmem:[%s2597 + $0x6f0] sm:%s2590]
                  %2822 = vst [vmem:[%s2598 + $0x378] sm:%s2590] %v2821
                  %v2823 = vld [vmem:[%s2597 + $0x700] sm:%s2590]
                  %2824 = vst [vmem:[%s2598 + $0x380] sm:%s2590] %v2823
                  %v2825 = vld [vmem:[%s2597 + $0x710] sm:%s2590]
                  %2826 = vst [vmem:[%s2598 + $0x388] sm:%s2590] %v2825
                  %v2827 = vld [vmem:[%s2597 + $0x720] sm:%s2590]
                  %2828 = vst [vmem:[%s2598 + $0x390] sm:%s2590] %v2827
                  %v2829 = vld [vmem:[%s2597 + $0x730] sm:%s2590]
                  %2830 = vst [vmem:[%s2598 + $0x398] sm:%s2590] %v2829
                  %v2831 = vld [vmem:[%s2597 + $0x740] sm:%s2590]
                  %2832 = vst [vmem:[%s2598 + $0x3a0] sm:%s2590] %v2831
                  %v2833 = vld [vmem:[%s2597 + $0x750] sm:%s2590]
                  %2834 = vst [vmem:[%s2598 + $0x3a8] sm:%s2590] %v2833
                  %v2835 = vld [vmem:[%s2597 + $0x760] sm:%s2590]
                  %2836 = vst [vmem:[%s2598 + $0x3b0] sm:%s2590] %v2835
                  %v2837 = vld [vmem:[%s2597 + $0x770] sm:%s2590]
                  %2838 = vst [vmem:[%s2598 + $0x3b8] sm:%s2590] %v2837
                  %v2839 = vld [vmem:[%s2597 + $0x780] sm:%s2590]
                  %2840 = vst [vmem:[%s2598 + $0x3c0] sm:%s2590] %v2839
                  %v2841 = vld [vmem:[%s2597 + $0x790] sm:%s2590]
                  %2842 = vst [vmem:[%s2598 + $0x3c8] sm:%s2590] %v2841
                  %v2843 = vld [vmem:[%s2597 + $0x7a0] sm:%s2590]
                  %2844 = vst [vmem:[%s2598 + $0x3d0] sm:%s2590] %v2843
                  %v2845 = vld [vmem:[%s2597 + $0x7b0] sm:%s2590]
                  %2846 = vst [vmem:[%s2598 + $0x3d8] sm:%s2590] %v2845
                  %v2847 = vld [vmem:[%s2597 + $0x7c0] sm:%s2590]
                  %2848 = vst [vmem:[%s2598 + $0x3e0] sm:%s2590] %v2847
                  %v2849 = vld [vmem:[%s2597 + $0x7d0] sm:%s2590]
                  %2850 = vst [vmem:[%s2598 + $0x3e8] sm:%s2590] %v2849
                  %v2851 = vld [vmem:[%s2597 + $0x7e0] sm:%s2590]
                  %2852 = vst [vmem:[%s2598 + $0x3f0] sm:%s2590] %v2851
                  %v2853 = vld [vmem:[%s2597 + $0x7f0] sm:%s2590]
                  %2854 = vst [vmem:[%s2598 + $0x3f8] sm:%s2590] %v2853
                  %v2855 = vld [vmem:[%s2597 + $0x800] sm:%s2590]
                  %2856 = vst [vmem:[%s2598 + $0x400] sm:%s2590] %v2855
                  %v2857 = vld [vmem:[%s2597 + $0x810] sm:%s2590]
                  %2858 = vst [vmem:[%s2598 + $0x408] sm:%s2590] %v2857
                  %v2859 = vld [vmem:[%s2597 + $0x820] sm:%s2590]
                  %2860 = vst [vmem:[%s2598 + $0x410] sm:%s2590] %v2859
                  %v2861 = vld [vmem:[%s2597 + $0x830] sm:%s2590]
                  %2862 = vst [vmem:[%s2598 + $0x418] sm:%s2590] %v2861
                  %v2863 = vld [vmem:[%s2597 + $0x840] sm:%s2590]
                  %2864 = vst [vmem:[%s2598 + $0x420] sm:%s2590] %v2863
                  %v2865 = vld [vmem:[%s2597 + $0x850] sm:%s2590]
                  %2866 = vst [vmem:[%s2598 + $0x428] sm:%s2590] %v2865
                  %v2867 = vld [vmem:[%s2597 + $0x860] sm:%s2590]
                  %2868 = vst [vmem:[%s2598 + $0x430] sm:%s2590] %v2867
                  %v2869 = vld [vmem:[%s2597 + $0x870] sm:%s2590]
                  %2870 = vst [vmem:[%s2598 + $0x438] sm:%s2590] %v2869
                  %v2871 = vld [vmem:[%s2597 + $0x880] sm:%s2590]
                  %2872 = vst [vmem:[%s2598 + $0x440] sm:%s2590] %v2871
                  %v2873 = vld [vmem:[%s2597 + $0x890] sm:%s2590]
                  %2874 = vst [vmem:[%s2598 + $0x448] sm:%s2590] %v2873
                  %v2875 = vld [vmem:[%s2597 + $0x8a0] sm:%s2590]
                  %2876 = vst [vmem:[%s2598 + $0x450] sm:%s2590] %v2875
                  %v2877 = vld [vmem:[%s2597 + $0x8b0] sm:%s2590]
                  %2878 = vst [vmem:[%s2598 + $0x458] sm:%s2590] %v2877
                  %v2879 = vld [vmem:[%s2597 + $0x8c0] sm:%s2590]
                  %2880 = vst [vmem:[%s2598 + $0x460] sm:%s2590] %v2879
                  %v2881 = vld [vmem:[%s2597 + $0x8d0] sm:%s2590]
                  %2882 = vst [vmem:[%s2598 + $0x468] sm:%s2590] %v2881
                  %v2883 = vld [vmem:[%s2597 + $0x8e0] sm:%s2590]
                  %2884 = vst [vmem:[%s2598 + $0x470] sm:%s2590] %v2883
                  %v2885 = vld [vmem:[%s2597 + $0x8f0] sm:%s2590]
                  %2886 = vst [vmem:[%s2598 + $0x478] sm:%s2590] %v2885
                  %v2887 = vld [vmem:[%s2597 + $0x900] sm:%s2590]
                  %2888 = vst [vmem:[%s2598 + $0x480] sm:%s2590] %v2887
                  %v2889 = vld [vmem:[%s2597 + $0x910] sm:%s2590]
                  %2890 = vst [vmem:[%s2598 + $0x488] sm:%s2590] %v2889
                  %v2891 = vld [vmem:[%s2597 + $0x920] sm:%s2590]
                  %2892 = vst [vmem:[%s2598 + $0x490] sm:%s2590] %v2891
                  %v2893 = vld [vmem:[%s2597 + $0x930] sm:%s2590]
                  %2894 = vst [vmem:[%s2598 + $0x498] sm:%s2590] %v2893
                  %v2895 = vld [vmem:[%s2597 + $0x940] sm:%s2590]
                  %2896 = vst [vmem:[%s2598 + $0x4a0] sm:%s2590] %v2895
                  %v2897 = vld [vmem:[%s2597 + $0x950] sm:%s2590]
                  %2898 = vst [vmem:[%s2598 + $0x4a8] sm:%s2590] %v2897
                  %v2899 = vld [vmem:[%s2597 + $0x960] sm:%s2590]
                  %2900 = vst [vmem:[%s2598 + $0x4b0] sm:%s2590] %v2899
                  %v2901 = vld [vmem:[%s2597 + $0x970] sm:%s2590]
                  %2902 = vst [vmem:[%s2598 + $0x4b8] sm:%s2590] %v2901
                  %v2903 = vld [vmem:[%s2597 + $0x980] sm:%s2590]
                  %2904 = vst [vmem:[%s2598 + $0x4c0] sm:%s2590] %v2903
                  %v2905 = vld [vmem:[%s2597 + $0x990] sm:%s2590]
                  %2906 = vst [vmem:[%s2598 + $0x4c8] sm:%s2590] %v2905
                  %v2907 = vld [vmem:[%s2597 + $0x9a0] sm:%s2590]
                  %2908 = vst [vmem:[%s2598 + $0x4d0] sm:%s2590] %v2907
                  %v2909 = vld [vmem:[%s2597 + $0x9b0] sm:%s2590]
                  %2910 = vst [vmem:[%s2598 + $0x4d8] sm:%s2590] %v2909
                  %v2911 = vld [vmem:[%s2597 + $0x9c0] sm:%s2590]
                  %2912 = vst [vmem:[%s2598 + $0x4e0] sm:%s2590] %v2911
                  %v2913 = vld [vmem:[%s2597 + $0x9d0] sm:%s2590]
                  %2914 = vst [vmem:[%s2598 + $0x4e8] sm:%s2590] %v2913
                  %v2915 = vld [vmem:[%s2597 + $0x9e0] sm:%s2590]
                  %2916 = vst [vmem:[%s2598 + $0x4f0] sm:%s2590] %v2915
                  %v2917 = vld [vmem:[%s2597 + $0x9f0] sm:%s2590]
                  %2918 = vst [vmem:[%s2598 + $0x4f8] sm:%s2590] %v2917
                  %v2919 = vld [vmem:[%s2597 + $0xa00] sm:%s2590]
                  %2920 = vst [vmem:[%s2598 + $0x500] sm:%s2590] %v2919
                  %v2921 = vld [vmem:[%s2597 + $0xa10] sm:%s2590]
                  %2922 = vst [vmem:[%s2598 + $0x508] sm:%s2590] %v2921
                  %v2923 = vld [vmem:[%s2597 + $0xa20] sm:%s2590]
                  %2924 = vst [vmem:[%s2598 + $0x510] sm:%s2590] %v2923
                  %v2925 = vld [vmem:[%s2597 + $0xa30] sm:%s2590]
                  %2926 = vst [vmem:[%s2598 + $0x518] sm:%s2590] %v2925
                  %v2927 = vld [vmem:[%s2597 + $0xa40] sm:%s2590]
                  %2928 = vst [vmem:[%s2598 + $0x520] sm:%s2590] %v2927
                  %v2929 = vld [vmem:[%s2597 + $0xa50] sm:%s2590]
                  %2930 = vst [vmem:[%s2598 + $0x528] sm:%s2590] %v2929
                  %v2931 = vld [vmem:[%s2597 + $0xa60] sm:%s2590]
                  %2932 = vst [vmem:[%s2598 + $0x530] sm:%s2590] %v2931
                  %v2933 = vld [vmem:[%s2597 + $0xa70] sm:%s2590]
                  %2934 = vst [vmem:[%s2598 + $0x538] sm:%s2590] %v2933
                  %v2935 = vld [vmem:[%s2597 + $0xa80] sm:%s2590]
                  %2936 = vst [vmem:[%s2598 + $0x540] sm:%s2590] %v2935
                  %v2937 = vld [vmem:[%s2597 + $0xa90] sm:%s2590]
                  %2938 = vst [vmem:[%s2598 + $0x548] sm:%s2590] %v2937
                  %v2939 = vld [vmem:[%s2597 + $0xaa0] sm:%s2590]
                  %2940 = vst [vmem:[%s2598 + $0x550] sm:%s2590] %v2939
                  %v2941 = vld [vmem:[%s2597 + $0xab0] sm:%s2590]
                  %2942 = vst [vmem:[%s2598 + $0x558] sm:%s2590] %v2941
                  %v2943 = vld [vmem:[%s2597 + $0xac0] sm:%s2590]
                  %2944 = vst [vmem:[%s2598 + $0x560] sm:%s2590] %v2943
                  %v2945 = vld [vmem:[%s2597 + $0xad0] sm:%s2590]
                  %2946 = vst [vmem:[%s2598 + $0x568] sm:%s2590] %v2945
                  %v2947 = vld [vmem:[%s2597 + $0xae0] sm:%s2590]
                  %2948 = vst [vmem:[%s2598 + $0x570] sm:%s2590] %v2947
                  %v2949 = vld [vmem:[%s2597 + $0xaf0] sm:%s2590]
                  %2950 = vst [vmem:[%s2598 + $0x578] sm:%s2590] %v2949
                  %v2951 = vld [vmem:[%s2597 + $0xb00] sm:%s2590]
                  %2952 = vst [vmem:[%s2598 + $0x580] sm:%s2590] %v2951
                  %v2953 = vld [vmem:[%s2597 + $0xb10] sm:%s2590]
                  %2954 = vst [vmem:[%s2598 + $0x588] sm:%s2590] %v2953
                  %v2955 = vld [vmem:[%s2597 + $0xb20] sm:%s2590]
                  %2956 = vst [vmem:[%s2598 + $0x590] sm:%s2590] %v2955
                  %v2957 = vld [vmem:[%s2597 + $0xb30] sm:%s2590]
                  %2958 = vst [vmem:[%s2598 + $0x598] sm:%s2590] %v2957
                  %v2959 = vld [vmem:[%s2597 + $0xb40] sm:%s2590]
                  %2960 = vst [vmem:[%s2598 + $0x5a0] sm:%s2590] %v2959
                  %v2961 = vld [vmem:[%s2597 + $0xb50] sm:%s2590]
                  %2962 = vst [vmem:[%s2598 + $0x5a8] sm:%s2590] %v2961
                  %v2963 = vld [vmem:[%s2597 + $0xb60] sm:%s2590]
                  %2964 = vst [vmem:[%s2598 + $0x5b0] sm:%s2590] %v2963
                  %v2965 = vld [vmem:[%s2597 + $0xb70] sm:%s2590]
                  %2966 = vst [vmem:[%s2598 + $0x5b8] sm:%s2590] %v2965
                  %v2967 = vld [vmem:[%s2597 + $0xb80] sm:%s2590]
                  %2968 = vst [vmem:[%s2598 + $0x5c0] sm:%s2590] %v2967
                  %v2969 = vld [vmem:[%s2597 + $0xb90] sm:%s2590]
                  %2970 = vst [vmem:[%s2598 + $0x5c8] sm:%s2590] %v2969
                  %v2971 = vld [vmem:[%s2597 + $0xba0] sm:%s2590]
                  %2972 = vst [vmem:[%s2598 + $0x5d0] sm:%s2590] %v2971
                  %v2973 = vld [vmem:[%s2597 + $0xbb0] sm:%s2590]
                  %2974 = vst [vmem:[%s2598 + $0x5d8] sm:%s2590] %v2973
                  %v2975 = vld [vmem:[%s2597 + $0xbc0] sm:%s2590]
                  %2976 = vst [vmem:[%s2598 + $0x5e0] sm:%s2590] %v2975
                  %v2977 = vld [vmem:[%s2597 + $0xbd0] sm:%s2590]
                  %2978 = vst [vmem:[%s2598 + $0x5e8] sm:%s2590] %v2977
                  %v2979 = vld [vmem:[%s2597 + $0xbe0] sm:%s2590]
                  %2980 = vst [vmem:[%s2598 + $0x5f0] sm:%s2590] %v2979
                  %v2981 = vld [vmem:[%s2597 + $0xbf0] sm:%s2590]
                  %2982 = vst [vmem:[%s2598 + $0x5f8] sm:%s2590] %v2981
                  %v2983 = vld [vmem:[%s2597 + $0xc00] sm:%s2590]
                  %2984 = vst [vmem:[%s2598 + $0x600] sm:%s2590] %v2983
                  %v2985 = vld [vmem:[%s2597 + $0xc10] sm:%s2590]
                  %2986 = vst [vmem:[%s2598 + $0x608] sm:%s2590] %v2985
                  %v2987 = vld [vmem:[%s2597 + $0xc20] sm:%s2590]
                  %2988 = vst [vmem:[%s2598 + $0x610] sm:%s2590] %v2987
                  %v2989 = vld [vmem:[%s2597 + $0xc30] sm:%s2590]
                  %2990 = vst [vmem:[%s2598 + $0x618] sm:%s2590] %v2989
                  %v2991 = vld [vmem:[%s2597 + $0xc40] sm:%s2590]
                  %2992 = vst [vmem:[%s2598 + $0x620] sm:%s2590] %v2991
                  %v2993 = vld [vmem:[%s2597 + $0xc50] sm:%s2590]
                  %2994 = vst [vmem:[%s2598 + $0x628] sm:%s2590] %v2993
                  %v2995 = vld [vmem:[%s2597 + $0xc60] sm:%s2590]
                  %2996 = vst [vmem:[%s2598 + $0x630] sm:%s2590] %v2995
                  %v2997 = vld [vmem:[%s2597 + $0xc70] sm:%s2590]
                  %2998 = vst [vmem:[%s2598 + $0x638] sm:%s2590] %v2997
                  %v2999 = vld [vmem:[%s2597 + $0xc80] sm:%s2590]
                  %3000 = vst [vmem:[%s2598 + $0x640] sm:%s2590] %v2999
                  %v3001 = vld [vmem:[%s2597 + $0xc90] sm:%s2590]
                  %3002 = vst [vmem:[%s2598 + $0x648] sm:%s2590] %v3001
                  %v3003 = vld [vmem:[%s2597 + $0xca0] sm:%s2590]
                  %3004 = vst [vmem:[%s2598 + $0x650] sm:%s2590] %v3003
                  %v3005 = vld [vmem:[%s2597 + $0xcb0] sm:%s2590]
                  %3006 = vst [vmem:[%s2598 + $0x658] sm:%s2590] %v3005
                  %v3007 = vld [vmem:[%s2597 + $0xcc0] sm:%s2590]
                  %3008 = vst [vmem:[%s2598 + $0x660] sm:%s2590] %v3007
                  %v3009 = vld [vmem:[%s2597 + $0xcd0] sm:%s2590]
                  %3010 = vst [vmem:[%s2598 + $0x668] sm:%s2590] %v3009
                  %v3011 = vld [vmem:[%s2597 + $0xce0] sm:%s2590]
                  %3012 = vst [vmem:[%s2598 + $0x670] sm:%s2590] %v3011
                  %v3013 = vld [vmem:[%s2597 + $0xcf0] sm:%s2590]
                  %3014 = vst [vmem:[%s2598 + $0x678] sm:%s2590] %v3013
                  %v3015 = vld [vmem:[%s2597 + $0xd00] sm:%s2590]
                  %3016 = vst [vmem:[%s2598 + $0x680] sm:%s2590] %v3015
                  %v3017 = vld [vmem:[%s2597 + $0xd10] sm:%s2590]
                  %3018 = vst [vmem:[%s2598 + $0x688] sm:%s2590] %v3017
                  %v3019 = vld [vmem:[%s2597 + $0xd20] sm:%s2590]
                  %3020 = vst [vmem:[%s2598 + $0x690] sm:%s2590] %v3019
                  %v3021 = vld [vmem:[%s2597 + $0xd30] sm:%s2590]
                  %3022 = vst [vmem:[%s2598 + $0x698] sm:%s2590] %v3021
                  %v3023 = vld [vmem:[%s2597 + $0xd40] sm:%s2590]
                  %3024 = vst [vmem:[%s2598 + $0x6a0] sm:%s2590] %v3023
                  %v3025 = vld [vmem:[%s2597 + $0xd50] sm:%s2590]
                  %3026 = vst [vmem:[%s2598 + $0x6a8] sm:%s2590] %v3025
                  %v3027 = vld [vmem:[%s2597 + $0xd60] sm:%s2590]
                  %3028 = vst [vmem:[%s2598 + $0x6b0] sm:%s2590] %v3027
                  %v3029 = vld [vmem:[%s2597 + $0xd70] sm:%s2590]
                  %3030 = vst [vmem:[%s2598 + $0x6b8] sm:%s2590] %v3029
                  %v3031 = vld [vmem:[%s2597 + $0xd80] sm:%s2590]
                  %3032 = vst [vmem:[%s2598 + $0x6c0] sm:%s2590] %v3031
                  %v3033 = vld [vmem:[%s2597 + $0xd90] sm:%s2590]
                  %3034 = vst [vmem:[%s2598 + $0x6c8] sm:%s2590] %v3033
                  %v3035 = vld [vmem:[%s2597 + $0xda0] sm:%s2590]
                  %3036 = vst [vmem:[%s2598 + $0x6d0] sm:%s2590] %v3035
                  %v3037 = vld [vmem:[%s2597 + $0xdb0] sm:%s2590]
                  %3038 = vst [vmem:[%s2598 + $0x6d8] sm:%s2590] %v3037
                  %v3039 = vld [vmem:[%s2597 + $0xdc0] sm:%s2590]
                  %3040 = vst [vmem:[%s2598 + $0x6e0] sm:%s2590] %v3039
                  %v3041 = vld [vmem:[%s2597 + $0xdd0] sm:%s2590]
                  %3042 = vst [vmem:[%s2598 + $0x6e8] sm:%s2590] %v3041
                  %v3043 = vld [vmem:[%s2597 + $0xde0] sm:%s2590]
                  %3044 = vst [vmem:[%s2598 + $0x6f0] sm:%s2590] %v3043
                  %v3045 = vld [vmem:[%s2597 + $0xdf0] sm:%s2590]
                  %3046 = vst [vmem:[%s2598 + $0x6f8] sm:%s2590] %v3045
                  %v3047 = vld [vmem:[%s2597 + $0xe00] sm:%s2590]
                  %3048 = vst [vmem:[%s2598 + $0x700] sm:%s2590] %v3047
                  %v3049 = vld [vmem:[%s2597 + $0xe10] sm:%s2590]
                  %3050 = vst [vmem:[%s2598 + $0x708] sm:%s2590] %v3049
                  %v3051 = vld [vmem:[%s2597 + $0xe20] sm:%s2590]
                  %3052 = vst [vmem:[%s2598 + $0x710] sm:%s2590] %v3051
                  %v3053 = vld [vmem:[%s2597 + $0xe30] sm:%s2590]
                  %3054 = vst [vmem:[%s2598 + $0x718] sm:%s2590] %v3053
                  %v3055 = vld [vmem:[%s2597 + $0xe40] sm:%s2590]
                  %3056 = vst [vmem:[%s2598 + $0x720] sm:%s2590] %v3055
                  %v3057 = vld [vmem:[%s2597 + $0xe50] sm:%s2590]
                  %3058 = vst [vmem:[%s2598 + $0x728] sm:%s2590] %v3057
                  %v3059 = vld [vmem:[%s2597 + $0xe60] sm:%s2590]
                  %3060 = vst [vmem:[%s2598 + $0x730] sm:%s2590] %v3059
                  %v3061 = vld [vmem:[%s2597 + $0xe70] sm:%s2590]
                  %3062 = vst [vmem:[%s2598 + $0x738] sm:%s2590] %v3061
                  %v3063 = vld [vmem:[%s2597 + $0xe80] sm:%s2590]
                  %3064 = vst [vmem:[%s2598 + $0x740] sm:%s2590] %v3063
                  %v3065 = vld [vmem:[%s2597 + $0xe90] sm:%s2590]
                  %3066 = vst [vmem:[%s2598 + $0x748] sm:%s2590] %v3065
                  %v3067 = vld [vmem:[%s2597 + $0xea0] sm:%s2590]
                  %3068 = vst [vmem:[%s2598 + $0x750] sm:%s2590] %v3067
                  %v3069 = vld [vmem:[%s2597 + $0xeb0] sm:%s2590]
                  %3070 = vst [vmem:[%s2598 + $0x758] sm:%s2590] %v3069
                  %v3071 = vld [vmem:[%s2597 + $0xec0] sm:%s2590]
                  %3072 = vst [vmem:[%s2598 + $0x760] sm:%s2590] %v3071
                  %v3073 = vld [vmem:[%s2597 + $0xed0] sm:%s2590]
                  %3074 = vst [vmem:[%s2598 + $0x768] sm:%s2590] %v3073
                  %v3075 = vld [vmem:[%s2597 + $0xee0] sm:%s2590]
                  %3076 = vst [vmem:[%s2598 + $0x770] sm:%s2590] %v3075
                  %v3077 = vld [vmem:[%s2597 + $0xef0] sm:%s2590]
                  %3078 = vst [vmem:[%s2598 + $0x778] sm:%s2590] %v3077
                  %v3079 = vld [vmem:[%s2597 + $0xf00] sm:%s2590]
                  %3080 = vst [vmem:[%s2598 + $0x780] sm:%s2590] %v3079
                  %v3081 = vld [vmem:[%s2597 + $0xf10] sm:%s2590]
                  %3082 = vst [vmem:[%s2598 + $0x788] sm:%s2590] %v3081
                  %v3083 = vld [vmem:[%s2597 + $0xf20] sm:%s2590]
                  %3084 = vst [vmem:[%s2598 + $0x790] sm:%s2590] %v3083
                  %v3085 = vld [vmem:[%s2597 + $0xf30] sm:%s2590]
                  %3086 = vst [vmem:[%s2598 + $0x798] sm:%s2590] %v3085
                  %v3087 = vld [vmem:[%s2597 + $0xf40] sm:%s2590]
                  %3088 = vst [vmem:[%s2598 + $0x7a0] sm:%s2590] %v3087
                  %v3089 = vld [vmem:[%s2597 + $0xf50] sm:%s2590]
                  %3090 = vst [vmem:[%s2598 + $0x7a8] sm:%s2590] %v3089
                  %v3091 = vld [vmem:[%s2597 + $0xf60] sm:%s2590]
                  %3092 = vst [vmem:[%s2598 + $0x7b0] sm:%s2590] %v3091
                  %v3093 = vld [vmem:[%s2597 + $0xf70] sm:%s2590]
                  %3094 = vst [vmem:[%s2598 + $0x7b8] sm:%s2590] %v3093
                  %v3095 = vld [vmem:[%s2597 + $0xf80] sm:%s2590]
                  %3096 = vst [vmem:[%s2598 + $0x7c0] sm:%s2590] %v3095
                  %v3097 = vld [vmem:[%s2597 + $0xf90] sm:%s2590]
                  %3098 = vst [vmem:[%s2598 + $0x7c8] sm:%s2590] %v3097
                  %v3099 = vld [vmem:[%s2597 + $0xfa0] sm:%s2590]
                  %3100 = vst [vmem:[%s2598 + $0x7d0] sm:%s2590] %v3099
                  %v3101 = vld [vmem:[%s2597 + $0xfb0] sm:%s2590]
                  %3102 = vst [vmem:[%s2598 + $0x7d8] sm:%s2590] %v3101
                  %v3103 = vld [vmem:[%s2597 + $0xfc0] sm:%s2590]
                  %3104 = vst [vmem:[%s2598 + $0x7e0] sm:%s2590] %v3103
                  %v3105 = vld [vmem:[%s2597 + $0xfd0] sm:%s2590]
                  %3106 = vst [vmem:[%s2598 + $0x7e8] sm:%s2590] %v3105
                  %v3107 = vld [vmem:[%s2597 + $0xfe0] sm:%s2590]
                  %3108 = vst [vmem:[%s2598 + $0x7f0] sm:%s2590] %v3107
                  %v3109 = vld [vmem:[%s2597 + $0xff0] sm:%s2590]
                  %3110 = vst [vmem:[%s2598 + $0x7f8] sm:%s2590] %v3109
                  %v3111 = vld [vmem:[%s2597 + $0x1000] sm:%s2590]
                  %3112 = vst [vmem:[%s2598 + $0x800] sm:%s2590] %v3111
                  %v3113 = vld [vmem:[%s2597 + $0x1010] sm:%s2590]
                  %3114 = vst [vmem:[%s2598 + $0x808] sm:%s2590] %v3113
                  %v3115 = vld [vmem:[%s2597 + $0x1020] sm:%s2590]
                  %3116 = vst [vmem:[%s2598 + $0x810] sm:%s2590] %v3115
                  %v3117 = vld [vmem:[%s2597 + $0x1030] sm:%s2590]
                  %3118 = vst [vmem:[%s2598 + $0x818] sm:%s2590] %v3117
                  %v3119 = vld [vmem:[%s2597 + $0x1040] sm:%s2590]
                  %3120 = vst [vmem:[%s2598 + $0x820] sm:%s2590] %v3119
                  %v3121 = vld [vmem:[%s2597 + $0x1050] sm:%s2590]
                  %3122 = vst [vmem:[%s2598 + $0x828] sm:%s2590] %v3121
                  %v3123 = vld [vmem:[%s2597 + $0x1060] sm:%s2590]
                  %3124 = vst [vmem:[%s2598 + $0x830] sm:%s2590] %v3123
                  %v3125 = vld [vmem:[%s2597 + $0x1070] sm:%s2590]
                  %3126 = vst [vmem:[%s2598 + $0x838] sm:%s2590] %v3125
                  %v3127 = vld [vmem:[%s2597 + $0x1080] sm:%s2590]
                  %3128 = vst [vmem:[%s2598 + $0x840] sm:%s2590] %v3127
                  %v3129 = vld [vmem:[%s2597 + $0x1090] sm:%s2590]
                  %3130 = vst [vmem:[%s2598 + $0x848] sm:%s2590] %v3129
                  %v3131 = vld [vmem:[%s2597 + $0x10a0] sm:%s2590]
                  %3132 = vst [vmem:[%s2598 + $0x850] sm:%s2590] %v3131
                  %v3133 = vld [vmem:[%s2597 + $0x10b0] sm:%s2590]
                  %3134 = vst [vmem:[%s2598 + $0x858] sm:%s2590] %v3133
                  %v3135 = vld [vmem:[%s2597 + $0x10c0] sm:%s2590]
                  %3136 = vst [vmem:[%s2598 + $0x860] sm:%s2590] %v3135
                  %v3137 = vld [vmem:[%s2597 + $0x10d0] sm:%s2590]
                  %3138 = vst [vmem:[%s2598 + $0x868] sm:%s2590] %v3137
                  %v3139 = vld [vmem:[%s2597 + $0x10e0] sm:%s2590]
                  %3140 = vst [vmem:[%s2598 + $0x870] sm:%s2590] %v3139
                  %v3141 = vld [vmem:[%s2597 + $0x10f0] sm:%s2590]
                  %3142 = vst [vmem:[%s2598 + $0x878] sm:%s2590] %v3141
                  %v3143 = vld [vmem:[%s2597 + $0x1100] sm:%s2590]
                  %3144 = vst [vmem:[%s2598 + $0x880] sm:%s2590] %v3143
                  %v3145 = vld [vmem:[%s2597 + $0x1110] sm:%s2590]
                  %3146 = vst [vmem:[%s2598 + $0x888] sm:%s2590] %v3145
                  %v3147 = vld [vmem:[%s2597 + $0x1120] sm:%s2590]
                  %3148 = vst [vmem:[%s2598 + $0x890] sm:%s2590] %v3147
                  %v3149 = vld [vmem:[%s2597 + $0x1130] sm:%s2590]
                  %3150 = vst [vmem:[%s2598 + $0x898] sm:%s2590] %v3149
                  %v3151 = vld [vmem:[%s2597 + $0x1140] sm:%s2590]
                  %3152 = vst [vmem:[%s2598 + $0x8a0] sm:%s2590] %v3151
                  %v3153 = vld [vmem:[%s2597 + $0x1150] sm:%s2590]
                  %3154 = vst [vmem:[%s2598 + $0x8a8] sm:%s2590] %v3153
                  %v3155 = vld [vmem:[%s2597 + $0x1160] sm:%s2590]
                  %3156 = vst [vmem:[%s2598 + $0x8b0] sm:%s2590] %v3155
                  %v3157 = vld [vmem:[%s2597 + $0x1170] sm:%s2590]
                  %3158 = vst [vmem:[%s2598 + $0x8b8] sm:%s2590] %v3157
                  %v3159 = vld [vmem:[%s2597 + $0x1180] sm:%s2590]
                  %3160 = vst [vmem:[%s2598 + $0x8c0] sm:%s2590] %v3159
                  %v3161 = vld [vmem:[%s2597 + $0x1190] sm:%s2590]
                  %3162 = vst [vmem:[%s2598 + $0x8c8] sm:%s2590] %v3161
                  %v3163 = vld [vmem:[%s2597 + $0x11a0] sm:%s2590]
                  %3164 = vst [vmem:[%s2598 + $0x8d0] sm:%s2590] %v3163
                  %v3165 = vld [vmem:[%s2597 + $0x11b0] sm:%s2590]
                  %3166 = vst [vmem:[%s2598 + $0x8d8] sm:%s2590] %v3165
                  %v3167 = vld [vmem:[%s2597 + $0x11c0] sm:%s2590]
                  %3168 = vst [vmem:[%s2598 + $0x8e0] sm:%s2590] %v3167
                  %v3169 = vld [vmem:[%s2597 + $0x11d0] sm:%s2590]
                  %3170 = vst [vmem:[%s2598 + $0x8e8] sm:%s2590] %v3169
                  %v3171 = vld [vmem:[%s2597 + $0x11e0] sm:%s2590]
                  %3172 = vst [vmem:[%s2598 + $0x8f0] sm:%s2590] %v3171
                  %v3173 = vld [vmem:[%s2597 + $0x11f0] sm:%s2590]
                  %3174 = vst [vmem:[%s2598 + $0x8f8] sm:%s2590] %v3173
                  %v3175 = vld [vmem:[%s2597 + $0x1200] sm:%s2590]
                  %3176 = vst [vmem:[%s2598 + $0x900] sm:%s2590] %v3175
                  %v3177 = vld [vmem:[%s2597 + $0x1210] sm:%s2590]
                  %3178 = vst [vmem:[%s2598 + $0x908] sm:%s2590] %v3177
                  %v3179 = vld [vmem:[%s2597 + $0x1220] sm:%s2590]
                  %3180 = vst [vmem:[%s2598 + $0x910] sm:%s2590] %v3179
                  %v3181 = vld [vmem:[%s2597 + $0x1230] sm:%s2590]
                  %3182 = vst [vmem:[%s2598 + $0x918] sm:%s2590] %v3181
                  %v3183 = vld [vmem:[%s2597 + $0x1240] sm:%s2590]
                  %3184 = vst [vmem:[%s2598 + $0x920] sm:%s2590] %v3183
                  %v3185 = vld [vmem:[%s2597 + $0x1250] sm:%s2590]
                  %3186 = vst [vmem:[%s2598 + $0x928] sm:%s2590] %v3185
                  %v3187 = vld [vmem:[%s2597 + $0x1260] sm:%s2590]
                  %3188 = vst [vmem:[%s2598 + $0x930] sm:%s2590] %v3187
                  %v3189 = vld [vmem:[%s2597 + $0x1270] sm:%s2590]
                  %3190 = vst [vmem:[%s2598 + $0x938] sm:%s2590] %v3189
                  %v3191 = vld [vmem:[%s2597 + $0x1280] sm:%s2590]
                  %3192 = vst [vmem:[%s2598 + $0x940] sm:%s2590] %v3191
                  %v3193 = vld [vmem:[%s2597 + $0x1290] sm:%s2590]
                  %3194 = vst [vmem:[%s2598 + $0x948] sm:%s2590] %v3193
                  %v3195 = vld [vmem:[%s2597 + $0x12a0] sm:%s2590]
                  %3196 = vst [vmem:[%s2598 + $0x950] sm:%s2590] %v3195
                  %v3197 = vld [vmem:[%s2597 + $0x12b0] sm:%s2590]
                  %3198 = vst [vmem:[%s2598 + $0x958] sm:%s2590] %v3197
                  %v3199 = vld [vmem:[%s2597 + $0x12c0] sm:%s2590]
                  %3200 = vst [vmem:[%s2598 + $0x960] sm:%s2590] %v3199
                  %v3201 = vld [vmem:[%s2597 + $0x12d0] sm:%s2590]
                  %3202 = vst [vmem:[%s2598 + $0x968] sm:%s2590] %v3201
                  %v3203 = vld [vmem:[%s2597 + $0x12e0] sm:%s2590]
                  %3204 = vst [vmem:[%s2598 + $0x970] sm:%s2590] %v3203
                  %v3205 = vld [vmem:[%s2597 + $0x12f0] sm:%s2590]
                  %3206 = vst [vmem:[%s2598 + $0x978] sm:%s2590] %v3205
                  %v3207 = vld [vmem:[%s2597 + $0x1300] sm:%s2590]
                  %3208 = vst [vmem:[%s2598 + $0x980] sm:%s2590] %v3207
                  %v3209 = vld [vmem:[%s2597 + $0x1310] sm:%s2590]
                  %3210 = vst [vmem:[%s2598 + $0x988] sm:%s2590] %v3209
                  %v3211 = vld [vmem:[%s2597 + $0x1320] sm:%s2590]
                  %3212 = vst [vmem:[%s2598 + $0x990] sm:%s2590] %v3211
                  %v3213 = vld [vmem:[%s2597 + $0x1330] sm:%s2590]
                  %3214 = vst [vmem:[%s2598 + $0x998] sm:%s2590] %v3213
                  %v3215 = vld [vmem:[%s2597 + $0x1340] sm:%s2590]
                  %3216 = vst [vmem:[%s2598 + $0x9a0] sm:%s2590] %v3215
                  %v3217 = vld [vmem:[%s2597 + $0x1350] sm:%s2590]
                  %3218 = vst [vmem:[%s2598 + $0x9a8] sm:%s2590] %v3217
                  %v3219 = vld [vmem:[%s2597 + $0x1360] sm:%s2590]
                  %3220 = vst [vmem:[%s2598 + $0x9b0] sm:%s2590] %v3219
                  %v3221 = vld [vmem:[%s2597 + $0x1370] sm:%s2590]
                  %3222 = vst [vmem:[%s2598 + $0x9b8] sm:%s2590] %v3221
                  %v3223 = vld [vmem:[%s2597 + $0x1380] sm:%s2590]
                  %3224 = vst [vmem:[%s2598 + $0x9c0] sm:%s2590] %v3223
                  %v3225 = vld [vmem:[%s2597 + $0x1390] sm:%s2590]
                  %3226 = vst [vmem:[%s2598 + $0x9c8] sm:%s2590] %v3225
                  %v3227 = vld [vmem:[%s2597 + $0x13a0] sm:%s2590]
                  %3228 = vst [vmem:[%s2598 + $0x9d0] sm:%s2590] %v3227
                  %v3229 = vld [vmem:[%s2597 + $0x13b0] sm:%s2590]
                  %3230 = vst [vmem:[%s2598 + $0x9d8] sm:%s2590] %v3229
                  %v3231 = vld [vmem:[%s2597 + $0x13c0] sm:%s2590]
                  %3232 = vst [vmem:[%s2598 + $0x9e0] sm:%s2590] %v3231
                  %v3233 = vld [vmem:[%s2597 + $0x13d0] sm:%s2590]
                  %3234 = vst [vmem:[%s2598 + $0x9e8] sm:%s2590] %v3233
                  %v3235 = vld [vmem:[%s2597 + $0x13e0] sm:%s2590]
                  %3236 = vst [vmem:[%s2598 + $0x9f0] sm:%s2590] %v3235
                  %v3237 = vld [vmem:[%s2597 + $0x13f0] sm:%s2590]
                  %3238 = vst [vmem:[%s2598 + $0x9f8] sm:%s2590] %v3237
                  %v3239 = vld [vmem:[%s2597 + $0x1400] sm:%s2590]
                  %3240 = vst [vmem:[%s2598 + $0xa00] sm:%s2590] %v3239
                  %v3241 = vld [vmem:[%s2597 + $0x1410] sm:%s2590]
                  %3242 = vst [vmem:[%s2598 + $0xa08] sm:%s2590] %v3241
                  %v3243 = vld [vmem:[%s2597 + $0x1420] sm:%s2590]
                  %3244 = vst [vmem:[%s2598 + $0xa10] sm:%s2590] %v3243
                  %v3245 = vld [vmem:[%s2597 + $0x1430] sm:%s2590]
                  %3246 = vst [vmem:[%s2598 + $0xa18] sm:%s2590] %v3245
                  %v3247 = vld [vmem:[%s2597 + $0x1440] sm:%s2590]
                  %3248 = vst [vmem:[%s2598 + $0xa20] sm:%s2590] %v3247
                  %v3249 = vld [vmem:[%s2597 + $0x1450] sm:%s2590]
                  %3250 = vst [vmem:[%s2598 + $0xa28] sm:%s2590] %v3249
                  %v3251 = vld [vmem:[%s2597 + $0x1460] sm:%s2590]
                  %3252 = vst [vmem:[%s2598 + $0xa30] sm:%s2590] %v3251
                  %v3253 = vld [vmem:[%s2597 + $0x1470] sm:%s2590]
                  %3254 = vst [vmem:[%s2598 + $0xa38] sm:%s2590] %v3253
                  %v3255 = vld [vmem:[%s2597 + $0x1480] sm:%s2590]
                  %3256 = vst [vmem:[%s2598 + $0xa40] sm:%s2590] %v3255
                  %v3257 = vld [vmem:[%s2597 + $0x1490] sm:%s2590]
                  %3258 = vst [vmem:[%s2598 + $0xa48] sm:%s2590] %v3257
                  %v3259 = vld [vmem:[%s2597 + $0x14a0] sm:%s2590]
                  %3260 = vst [vmem:[%s2598 + $0xa50] sm:%s2590] %v3259
                  %v3261 = vld [vmem:[%s2597 + $0x14b0] sm:%s2590]
                  %3262 = vst [vmem:[%s2598 + $0xa58] sm:%s2590] %v3261
                  %v3263 = vld [vmem:[%s2597 + $0x14c0] sm:%s2590]
                  %3264 = vst [vmem:[%s2598 + $0xa60] sm:%s2590] %v3263
                  %v3265 = vld [vmem:[%s2597 + $0x14d0] sm:%s2590]
                  %3266 = vst [vmem:[%s2598 + $0xa68] sm:%s2590] %v3265
                  %v3267 = vld [vmem:[%s2597 + $0x14e0] sm:%s2590]
                  %3268 = vst [vmem:[%s2598 + $0xa70] sm:%s2590] %v3267
                  %v3269 = vld [vmem:[%s2597 + $0x14f0] sm:%s2590]
                  %3270 = vst [vmem:[%s2598 + $0xa78] sm:%s2590] %v3269
                  %v3271 = vld [vmem:[%s2597 + $0x1500] sm:%s2590]
                  %3272 = vst [vmem:[%s2598 + $0xa80] sm:%s2590] %v3271
                  %v3273 = vld [vmem:[%s2597 + $0x1510] sm:%s2590]
                  %3274 = vst [vmem:[%s2598 + $0xa88] sm:%s2590] %v3273
                  %v3275 = vld [vmem:[%s2597 + $0x1520] sm:%s2590]
                  %3276 = vst [vmem:[%s2598 + $0xa90] sm:%s2590] %v3275
                  %v3277 = vld [vmem:[%s2597 + $0x1530] sm:%s2590]
                  %3278 = vst [vmem:[%s2598 + $0xa98] sm:%s2590] %v3277
                  %v3279 = vld [vmem:[%s2597 + $0x1540] sm:%s2590]
                  %3280 = vst [vmem:[%s2598 + $0xaa0] sm:%s2590] %v3279
                  %v3281 = vld [vmem:[%s2597 + $0x1550] sm:%s2590]
                  %3282 = vst [vmem:[%s2598 + $0xaa8] sm:%s2590] %v3281
                  %v3283 = vld [vmem:[%s2597 + $0x1560] sm:%s2590]
                  %3284 = vst [vmem:[%s2598 + $0xab0] sm:%s2590] %v3283
                  %v3285 = vld [vmem:[%s2597 + $0x1570] sm:%s2590]
                  %3286 = vst [vmem:[%s2598 + $0xab8] sm:%s2590] %v3285
                  %v3287 = vld [vmem:[%s2597 + $0x1580] sm:%s2590]
                  %3288 = vst [vmem:[%s2598 + $0xac0] sm:%s2590] %v3287
                  %v3289 = vld [vmem:[%s2597 + $0x1590] sm:%s2590]
                  %3290 = vst [vmem:[%s2598 + $0xac8] sm:%s2590] %v3289
                  %v3291 = vld [vmem:[%s2597 + $0x15a0] sm:%s2590]
                  %3292 = vst [vmem:[%s2598 + $0xad0] sm:%s2590] %v3291
                  %v3293 = vld [vmem:[%s2597 + $0x15b0] sm:%s2590]
                  %3294 = vst [vmem:[%s2598 + $0xad8] sm:%s2590] %v3293
                  %v3295 = vld [vmem:[%s2597 + $0x15c0] sm:%s2590]
                  %3296 = vst [vmem:[%s2598 + $0xae0] sm:%s2590] %v3295
                  %v3297 = vld [vmem:[%s2597 + $0x15d0] sm:%s2590]
                  %3298 = vst [vmem:[%s2598 + $0xae8] sm:%s2590] %v3297
                  %v3299 = vld [vmem:[%s2597 + $0x15e0] sm:%s2590]
                  %3300 = vst [vmem:[%s2598 + $0xaf0] sm:%s2590] %v3299
                  %v3301 = vld [vmem:[%s2597 + $0x15f0] sm:%s2590]
                  %3302 = vst [vmem:[%s2598 + $0xaf8] sm:%s2590] %v3301
                  %v3303 = vld [vmem:[%s2597 + $0x1600] sm:%s2590]
                  %3304 = vst [vmem:[%s2598 + $0xb00] sm:%s2590] %v3303
                  %v3305 = vld [vmem:[%s2597 + $0x1610] sm:%s2590]
                  %3306 = vst [vmem:[%s2598 + $0xb08] sm:%s2590] %v3305
                  %v3307 = vld [vmem:[%s2597 + $0x1620] sm:%s2590]
                  %3308 = vst [vmem:[%s2598 + $0xb10] sm:%s2590] %v3307
                  %v3309 = vld [vmem:[%s2597 + $0x1630] sm:%s2590]
                  %3310 = vst [vmem:[%s2598 + $0xb18] sm:%s2590] %v3309
                  %v3311 = vld [vmem:[%s2597 + $0x1640] sm:%s2590]
                  %3312 = vst [vmem:[%s2598 + $0xb20] sm:%s2590] %v3311
                  %v3313 = vld [vmem:[%s2597 + $0x1650] sm:%s2590]
                  %3314 = vst [vmem:[%s2598 + $0xb28] sm:%s2590] %v3313
                  %v3315 = vld [vmem:[%s2597 + $0x1660] sm:%s2590]
                  %3316 = vst [vmem:[%s2598 + $0xb30] sm:%s2590] %v3315
                  %v3317 = vld [vmem:[%s2597 + $0x1670] sm:%s2590]
                  %3318 = vst [vmem:[%s2598 + $0xb38] sm:%s2590] %v3317
                  %v3319 = vld [vmem:[%s2597 + $0x1680] sm:%s2590]
                  %3320 = vst [vmem:[%s2598 + $0xb40] sm:%s2590] %v3319
                  %v3321 = vld [vmem:[%s2597 + $0x1690] sm:%s2590]
                  %3322 = vst [vmem:[%s2598 + $0xb48] sm:%s2590] %v3321
                  %v3323 = vld [vmem:[%s2597 + $0x16a0] sm:%s2590]
                  %3324 = vst [vmem:[%s2598 + $0xb50] sm:%s2590] %v3323
                  %v3325 = vld [vmem:[%s2597 + $0x16b0] sm:%s2590]
                  %3326 = vst [vmem:[%s2598 + $0xb58] sm:%s2590] %v3325
                  %v3327 = vld [vmem:[%s2597 + $0x16c0] sm:%s2590]
                  %3328 = vst [vmem:[%s2598 + $0xb60] sm:%s2590] %v3327
                  %v3329 = vld [vmem:[%s2597 + $0x16d0] sm:%s2590]
                  %3330 = vst [vmem:[%s2598 + $0xb68] sm:%s2590] %v3329
                  %v3331 = vld [vmem:[%s2597 + $0x16e0] sm:%s2590]
                  %3332 = vst [vmem:[%s2598 + $0xb70] sm:%s2590] %v3331
                  %v3333 = vld [vmem:[%s2597 + $0x16f0] sm:%s2590]
                  %3334 = vst [vmem:[%s2598 + $0xb78] sm:%s2590] %v3333
                  %v3335 = vld [vmem:[%s2597 + $0x1700] sm:%s2590]
                  %3336 = vst [vmem:[%s2598 + $0xb80] sm:%s2590] %v3335
                  %v3337 = vld [vmem:[%s2597 + $0x1710] sm:%s2590]
                  %3338 = vst [vmem:[%s2598 + $0xb88] sm:%s2590] %v3337
                  %v3339 = vld [vmem:[%s2597 + $0x1720] sm:%s2590]
                  %3340 = vst [vmem:[%s2598 + $0xb90] sm:%s2590] %v3339
                  %v3341 = vld [vmem:[%s2597 + $0x1730] sm:%s2590]
                  %3342 = vst [vmem:[%s2598 + $0xb98] sm:%s2590] %v3341
                  %v3343 = vld [vmem:[%s2597 + $0x1740] sm:%s2590]
                  %3344 = vst [vmem:[%s2598 + $0xba0] sm:%s2590] %v3343
                  %v3345 = vld [vmem:[%s2597 + $0x1750] sm:%s2590]
                  %3346 = vst [vmem:[%s2598 + $0xba8] sm:%s2590] %v3345
                  %v3347 = vld [vmem:[%s2597 + $0x1760] sm:%s2590]
                  %3348 = vst [vmem:[%s2598 + $0xbb0] sm:%s2590] %v3347
                  %v3349 = vld [vmem:[%s2597 + $0x1770] sm:%s2590]
                  %3350 = vst [vmem:[%s2598 + $0xbb8] sm:%s2590] %v3349
                  %v3351 = vld [vmem:[%s2597 + $0x1780] sm:%s2590]
                  %3352 = vst [vmem:[%s2598 + $0xbc0] sm:%s2590] %v3351
                  %v3353 = vld [vmem:[%s2597 + $0x1790] sm:%s2590]
                  %3354 = vst [vmem:[%s2598 + $0xbc8] sm:%s2590] %v3353
                  %v3355 = vld [vmem:[%s2597 + $0x17a0] sm:%s2590]
                  %3356 = vst [vmem:[%s2598 + $0xbd0] sm:%s2590] %v3355
                  %v3357 = vld [vmem:[%s2597 + $0x17b0] sm:%s2590]
                  %3358 = vst [vmem:[%s2598 + $0xbd8] sm:%s2590] %v3357
                  %v3359 = vld [vmem:[%s2597 + $0x17c0] sm:%s2590]
                  %3360 = vst [vmem:[%s2598 + $0xbe0] sm:%s2590] %v3359
                  %v3361 = vld [vmem:[%s2597 + $0x17d0] sm:%s2590]
                  %3362 = vst [vmem:[%s2598 + $0xbe8] sm:%s2590] %v3361
                  %v3363 = vld [vmem:[%s2597 + $0x17e0] sm:%s2590]
                  %3364 = vst [vmem:[%s2598 + $0xbf0] sm:%s2590] %v3363
                  %v3365 = vld [vmem:[%s2597 + $0x17f0] sm:%s2590]
                  %3366 = vst [vmem:[%s2598 + $0xbf8] sm:%s2590] %v3365
                  %v3367 = vld [vmem:[%s2597 + $0x1800] sm:%s2590]
                  %3368 = vst [vmem:[%s2598 + $0xc00] sm:%s2590] %v3367
                  %v3369 = vld [vmem:[%s2597 + $0x1810] sm:%s2590]
                  %3370 = vst [vmem:[%s2598 + $0xc08] sm:%s2590] %v3369
                  %v3371 = vld [vmem:[%s2597 + $0x1820] sm:%s2590]
                  %3372 = vst [vmem:[%s2598 + $0xc10] sm:%s2590] %v3371
                  %v3373 = vld [vmem:[%s2597 + $0x1830] sm:%s2590]
                  %3374 = vst [vmem:[%s2598 + $0xc18] sm:%s2590] %v3373
                  %v3375 = vld [vmem:[%s2597 + $0x1840] sm:%s2590]
                  %3376 = vst [vmem:[%s2598 + $0xc20] sm:%s2590] %v3375
                  %v3377 = vld [vmem:[%s2597 + $0x1850] sm:%s2590]
                  %3378 = vst [vmem:[%s2598 + $0xc28] sm:%s2590] %v3377
                  %v3379 = vld [vmem:[%s2597 + $0x1860] sm:%s2590]
                  %3380 = vst [vmem:[%s2598 + $0xc30] sm:%s2590] %v3379
                  %v3381 = vld [vmem:[%s2597 + $0x1870] sm:%s2590]
                  %3382 = vst [vmem:[%s2598 + $0xc38] sm:%s2590] %v3381
                $region70: #{policy_forward.8} parent=57 // loop_footer
                  %s2596 = sadd.s32 1, %s2592
                $region71: #{policy_forward.8} parent=57 // loop_footer_branch
                  %2591 = sbr.rel target = $region67
                $region72: #{policy_forward.8} parent=57 // loop_exit
                  _
              $region58: #{policy_forward.8} parent=31 // pred_fallthru
                _
            $region32: #{policy_forward.8} parent=27 // pred_fallthru
              _
            // Predicated region
            $region33: #{policy_forward.8} parent=27 // pred_check
              _
            $region34: #{policy_forward.8} parent=27 // pred_check_branch
              %188 = sbr.rel target = $region36
            $region35: #{policy_forward.8} parent=27 // pred_region
              %s190 = ssub.s32 256, 1
              loop: start=0, step=1, limit=1
              $region37: #{policy_forward.8} parent=35 // loop_pre_header
                _
              $region38: #{policy_forward.8} parent=35 // loop_header
                %s192 = sphi 0, %s196
                %p193 = scmp.ge.s32.totalorder %s192, 1
                %s197 = sphi %s182, %s182
                %s198 = sphi %s176, %s176
              $region39: #{policy_forward.8} parent=35 // loop_header_branch
                %195 = sbr.rel (%p193) target = $region43
              $region40: #{policy_forward.8} parent=35 // loop_body
                %v199 = vld [vmem:[%s197] sm:%s190]
                %200 = vst [vmem:[%s198] sm:%s190] %v199
                %v201 = vld [vmem:[%s197 + $0x10] sm:%s190]
                %202 = vst [vmem:[%s198 + $0x8] sm:%s190] %v201
                %v203 = vld [vmem:[%s197 + $0x20] sm:%s190]
                %204 = vst [vmem:[%s198 + $0x10] sm:%s190] %v203
                %v205 = vld [vmem:[%s197 + $0x30] sm:%s190]
                %206 = vst [vmem:[%s198 + $0x18] sm:%s190] %v205
                %v207 = vld [vmem:[%s197 + $0x40] sm:%s190]
                %208 = vst [vmem:[%s198 + $0x20] sm:%s190] %v207
                %v209 = vld [vmem:[%s197 + $0x50] sm:%s190]
                %210 = vst [vmem:[%s198 + $0x28] sm:%s190] %v209
                %v211 = vld [vmem:[%s197 + $0x60] sm:%s190]
                %212 = vst [vmem:[%s198 + $0x30] sm:%s190] %v211
                %v213 = vld [vmem:[%s197 + $0x70] sm:%s190]
                %214 = vst [vmem:[%s198 + $0x38] sm:%s190] %v213
                %v215 = vld [vmem:[%s197 + $0x80] sm:%s190]
                %216 = vst [vmem:[%s198 + $0x40] sm:%s190] %v215
                %v217 = vld [vmem:[%s197 + $0x90] sm:%s190]
                %218 = vst [vmem:[%s198 + $0x48] sm:%s190] %v217
                %v219 = vld [vmem:[%s197 + $0xa0] sm:%s190]
                %220 = vst [vmem:[%s198 + $0x50] sm:%s190] %v219
                %v221 = vld [vmem:[%s197 + $0xb0] sm:%s190]
                %222 = vst [vmem:[%s198 + $0x58] sm:%s190] %v221
                %v223 = vld [vmem:[%s197 + $0xc0] sm:%s190]
                %224 = vst [vmem:[%s198 + $0x60] sm:%s190] %v223
                %v225 = vld [vmem:[%s197 + $0xd0] sm:%s190]
                %226 = vst [vmem:[%s198 + $0x68] sm:%s190] %v225
                %v227 = vld [vmem:[%s197 + $0xe0] sm:%s190]
                %228 = vst [vmem:[%s198 + $0x70] sm:%s190] %v227
                %v229 = vld [vmem:[%s197 + $0xf0] sm:%s190]
                %230 = vst [vmem:[%s198 + $0x78] sm:%s190] %v229
                %v231 = vld [vmem:[%s197 + $0x100] sm:%s190]
                %232 = vst [vmem:[%s198 + $0x80] sm:%s190] %v231
                %v233 = vld [vmem:[%s197 + $0x110] sm:%s190]
                %234 = vst [vmem:[%s198 + $0x88] sm:%s190] %v233
                %v235 = vld [vmem:[%s197 + $0x120] sm:%s190]
                %236 = vst [vmem:[%s198 + $0x90] sm:%s190] %v235
                %v237 = vld [vmem:[%s197 + $0x130] sm:%s190]
                %238 = vst [vmem:[%s198 + $0x98] sm:%s190] %v237
                %v239 = vld [vmem:[%s197 + $0x140] sm:%s190]
                %240 = vst [vmem:[%s198 + $0xa0] sm:%s190] %v239
                %v241 = vld [vmem:[%s197 + $0x150] sm:%s190]
                %242 = vst [vmem:[%s198 + $0xa8] sm:%s190] %v241
                %v243 = vld [vmem:[%s197 + $0x160] sm:%s190]
                %244 = vst [vmem:[%s198 + $0xb0] sm:%s190] %v243
                %v245 = vld [vmem:[%s197 + $0x170] sm:%s190]
                %246 = vst [vmem:[%s198 + $0xb8] sm:%s190] %v245
                %v247 = vld [vmem:[%s197 + $0x180] sm:%s190]
                %248 = vst [vmem:[%s198 + $0xc0] sm:%s190] %v247
                %v249 = vld [vmem:[%s197 + $0x190] sm:%s190]
                %250 = vst [vmem:[%s198 + $0xc8] sm:%s190] %v249
                %v251 = vld [vmem:[%s197 + $0x1a0] sm:%s190]
                %252 = vst [vmem:[%s198 + $0xd0] sm:%s190] %v251
                %v253 = vld [vmem:[%s197 + $0x1b0] sm:%s190]
                %254 = vst [vmem:[%s198 + $0xd8] sm:%s190] %v253
                %v255 = vld [vmem:[%s197 + $0x1c0] sm:%s190]
                %256 = vst [vmem:[%s198 + $0xe0] sm:%s190] %v255
                %v257 = vld [vmem:[%s197 + $0x1d0] sm:%s190]
                %258 = vst [vmem:[%s198 + $0xe8] sm:%s190] %v257
                %v259 = vld [vmem:[%s197 + $0x1e0] sm:%s190]
                %260 = vst [vmem:[%s198 + $0xf0] sm:%s190] %v259
                %v261 = vld [vmem:[%s197 + $0x1f0] sm:%s190]
                %262 = vst [vmem:[%s198 + $0xf8] sm:%s190] %v261
                %v263 = vld [vmem:[%s197 + $0x200] sm:%s190]
                %264 = vst [vmem:[%s198 + $0x100] sm:%s190] %v263
                %v265 = vld [vmem:[%s197 + $0x210] sm:%s190]
                %266 = vst [vmem:[%s198 + $0x108] sm:%s190] %v265
                %v267 = vld [vmem:[%s197 + $0x220] sm:%s190]
                %268 = vst [vmem:[%s198 + $0x110] sm:%s190] %v267
                %v269 = vld [vmem:[%s197 + $0x230] sm:%s190]
                %270 = vst [vmem:[%s198 + $0x118] sm:%s190] %v269
                %v271 = vld [vmem:[%s197 + $0x240] sm:%s190]
                %272 = vst [vmem:[%s198 + $0x120] sm:%s190] %v271
                %v273 = vld [vmem:[%s197 + $0x250] sm:%s190]
                %274 = vst [vmem:[%s198 + $0x128] sm:%s190] %v273
                %v275 = vld [vmem:[%s197 + $0x260] sm:%s190]
                %276 = vst [vmem:[%s198 + $0x130] sm:%s190] %v275
                %v277 = vld [vmem:[%s197 + $0x270] sm:%s190]
                %278 = vst [vmem:[%s198 + $0x138] sm:%s190] %v277
                %v279 = vld [vmem:[%s197 + $0x280] sm:%s190]
                %280 = vst [vmem:[%s198 + $0x140] sm:%s190] %v279
                %v281 = vld [vmem:[%s197 + $0x290] sm:%s190]
                %282 = vst [vmem:[%s198 + $0x148] sm:%s190] %v281
                %v283 = vld [vmem:[%s197 + $0x2a0] sm:%s190]
                %284 = vst [vmem:[%s198 + $0x150] sm:%s190] %v283
                %v285 = vld [vmem:[%s197 + $0x2b0] sm:%s190]
                %286 = vst [vmem:[%s198 + $0x158] sm:%s190] %v285
                %v287 = vld [vmem:[%s197 + $0x2c0] sm:%s190]
                %288 = vst [vmem:[%s198 + $0x160] sm:%s190] %v287
                %v289 = vld [vmem:[%s197 + $0x2d0] sm:%s190]
                %290 = vst [vmem:[%s198 + $0x168] sm:%s190] %v289
                %v291 = vld [vmem:[%s197 + $0x2e0] sm:%s190]
                %292 = vst [vmem:[%s198 + $0x170] sm:%s190] %v291
                %v293 = vld [vmem:[%s197 + $0x2f0] sm:%s190]
                %294 = vst [vmem:[%s198 + $0x178] sm:%s190] %v293
                %v295 = vld [vmem:[%s197 + $0x300] sm:%s190]
                %296 = vst [vmem:[%s198 + $0x180] sm:%s190] %v295
                %v297 = vld [vmem:[%s197 + $0x310] sm:%s190]
                %298 = vst [vmem:[%s198 + $0x188] sm:%s190] %v297
                %v299 = vld [vmem:[%s197 + $0x320] sm:%s190]
                %300 = vst [vmem:[%s198 + $0x190] sm:%s190] %v299
                %v301 = vld [vmem:[%s197 + $0x330] sm:%s190]
                %302 = vst [vmem:[%s198 + $0x198] sm:%s190] %v301
                %v303 = vld [vmem:[%s197 + $0x340] sm:%s190]
                %304 = vst [vmem:[%s198 + $0x1a0] sm:%s190] %v303
                %v305 = vld [vmem:[%s197 + $0x350] sm:%s190]
                %306 = vst [vmem:[%s198 + $0x1a8] sm:%s190] %v305
                %v307 = vld [vmem:[%s197 + $0x360] sm:%s190]
                %308 = vst [vmem:[%s198 + $0x1b0] sm:%s190] %v307
                %v309 = vld [vmem:[%s197 + $0x370] sm:%s190]
                %310 = vst [vmem:[%s198 + $0x1b8] sm:%s190] %v309
                %v311 = vld [vmem:[%s197 + $0x380] sm:%s190]
                %312 = vst [vmem:[%s198 + $0x1c0] sm:%s190] %v311
                %v313 = vld [vmem:[%s197 + $0x390] sm:%s190]
                %314 = vst [vmem:[%s198 + $0x1c8] sm:%s190] %v313
                %v315 = vld [vmem:[%s197 + $0x3a0] sm:%s190]
                %316 = vst [vmem:[%s198 + $0x1d0] sm:%s190] %v315
                %v317 = vld [vmem:[%s197 + $0x3b0] sm:%s190]
                %318 = vst [vmem:[%s198 + $0x1d8] sm:%s190] %v317
                %v319 = vld [vmem:[%s197 + $0x3c0] sm:%s190]
                %320 = vst [vmem:[%s198 + $0x1e0] sm:%s190] %v319
                %v321 = vld [vmem:[%s197 + $0x3d0] sm:%s190]
                %322 = vst [vmem:[%s198 + $0x1e8] sm:%s190] %v321
                %v323 = vld [vmem:[%s197 + $0x3e0] sm:%s190]
                %324 = vst [vmem:[%s198 + $0x1f0] sm:%s190] %v323
                %v325 = vld [vmem:[%s197 + $0x3f0] sm:%s190]
                %326 = vst [vmem:[%s198 + $0x1f8] sm:%s190] %v325
                %v327 = vld [vmem:[%s197 + $0x400] sm:%s190]
                %328 = vst [vmem:[%s198 + $0x200] sm:%s190] %v327
                %v329 = vld [vmem:[%s197 + $0x410] sm:%s190]
                %330 = vst [vmem:[%s198 + $0x208] sm:%s190] %v329
                %v331 = vld [vmem:[%s197 + $0x420] sm:%s190]
                %332 = vst [vmem:[%s198 + $0x210] sm:%s190] %v331
                %v333 = vld [vmem:[%s197 + $0x430] sm:%s190]
                %334 = vst [vmem:[%s198 + $0x218] sm:%s190] %v333
                %v335 = vld [vmem:[%s197 + $0x440] sm:%s190]
                %336 = vst [vmem:[%s198 + $0x220] sm:%s190] %v335
                %v337 = vld [vmem:[%s197 + $0x450] sm:%s190]
                %338 = vst [vmem:[%s198 + $0x228] sm:%s190] %v337
                %v339 = vld [vmem:[%s197 + $0x460] sm:%s190]
                %340 = vst [vmem:[%s198 + $0x230] sm:%s190] %v339
                %v341 = vld [vmem:[%s197 + $0x470] sm:%s190]
                %342 = vst [vmem:[%s198 + $0x238] sm:%s190] %v341
                %v343 = vld [vmem:[%s197 + $0x480] sm:%s190]
                %344 = vst [vmem:[%s198 + $0x240] sm:%s190] %v343
                %v345 = vld [vmem:[%s197 + $0x490] sm:%s190]
                %346 = vst [vmem:[%s198 + $0x248] sm:%s190] %v345
                %v347 = vld [vmem:[%s197 + $0x4a0] sm:%s190]
                %348 = vst [vmem:[%s198 + $0x250] sm:%s190] %v347
                %v349 = vld [vmem:[%s197 + $0x4b0] sm:%s190]
                %350 = vst [vmem:[%s198 + $0x258] sm:%s190] %v349
                %v351 = vld [vmem:[%s197 + $0x4c0] sm:%s190]
                %352 = vst [vmem:[%s198 + $0x260] sm:%s190] %v351
                %v353 = vld [vmem:[%s197 + $0x4d0] sm:%s190]
                %354 = vst [vmem:[%s198 + $0x268] sm:%s190] %v353
                %v355 = vld [vmem:[%s197 + $0x4e0] sm:%s190]
                %356 = vst [vmem:[%s198 + $0x270] sm:%s190] %v355
                %v357 = vld [vmem:[%s197 + $0x4f0] sm:%s190]
                %358 = vst [vmem:[%s198 + $0x278] sm:%s190] %v357
                %v359 = vld [vmem:[%s197 + $0x500] sm:%s190]
                %360 = vst [vmem:[%s198 + $0x280] sm:%s190] %v359
                %v361 = vld [vmem:[%s197 + $0x510] sm:%s190]
                %362 = vst [vmem:[%s198 + $0x288] sm:%s190] %v361
                %v363 = vld [vmem:[%s197 + $0x520] sm:%s190]
                %364 = vst [vmem:[%s198 + $0x290] sm:%s190] %v363
                %v365 = vld [vmem:[%s197 + $0x530] sm:%s190]
                %366 = vst [vmem:[%s198 + $0x298] sm:%s190] %v365
                %v367 = vld [vmem:[%s197 + $0x540] sm:%s190]
                %368 = vst [vmem:[%s198 + $0x2a0] sm:%s190] %v367
                %v369 = vld [vmem:[%s197 + $0x550] sm:%s190]
                %370 = vst [vmem:[%s198 + $0x2a8] sm:%s190] %v369
                %v371 = vld [vmem:[%s197 + $0x560] sm:%s190]
                %372 = vst [vmem:[%s198 + $0x2b0] sm:%s190] %v371
                %v373 = vld [vmem:[%s197 + $0x570] sm:%s190]
                %374 = vst [vmem:[%s198 + $0x2b8] sm:%s190] %v373
                %v375 = vld [vmem:[%s197 + $0x580] sm:%s190]
                %376 = vst [vmem:[%s198 + $0x2c0] sm:%s190] %v375
                %v377 = vld [vmem:[%s197 + $0x590] sm:%s190]
                %378 = vst [vmem:[%s198 + $0x2c8] sm:%s190] %v377
                %v379 = vld [vmem:[%s197 + $0x5a0] sm:%s190]
                %380 = vst [vmem:[%s198 + $0x2d0] sm:%s190] %v379
                %v381 = vld [vmem:[%s197 + $0x5b0] sm:%s190]
                %382 = vst [vmem:[%s198 + $0x2d8] sm:%s190] %v381
                %v383 = vld [vmem:[%s197 + $0x5c0] sm:%s190]
                %384 = vst [vmem:[%s198 + $0x2e0] sm:%s190] %v383
                %v385 = vld [vmem:[%s197 + $0x5d0] sm:%s190]
                %386 = vst [vmem:[%s198 + $0x2e8] sm:%s190] %v385
                %v387 = vld [vmem:[%s197 + $0x5e0] sm:%s190]
                %388 = vst [vmem:[%s198 + $0x2f0] sm:%s190] %v387
                %v389 = vld [vmem:[%s197 + $0x5f0] sm:%s190]
                %390 = vst [vmem:[%s198 + $0x2f8] sm:%s190] %v389
                %v391 = vld [vmem:[%s197 + $0x600] sm:%s190]
                %392 = vst [vmem:[%s198 + $0x300] sm:%s190] %v391
                %v393 = vld [vmem:[%s197 + $0x610] sm:%s190]
                %394 = vst [vmem:[%s198 + $0x308] sm:%s190] %v393
                %v395 = vld [vmem:[%s197 + $0x620] sm:%s190]
                %396 = vst [vmem:[%s198 + $0x310] sm:%s190] %v395
                %v397 = vld [vmem:[%s197 + $0x630] sm:%s190]
                %398 = vst [vmem:[%s198 + $0x318] sm:%s190] %v397
                %v399 = vld [vmem:[%s197 + $0x640] sm:%s190]
                %400 = vst [vmem:[%s198 + $0x320] sm:%s190] %v399
                %v401 = vld [vmem:[%s197 + $0x650] sm:%s190]
                %402 = vst [vmem:[%s198 + $0x328] sm:%s190] %v401
                %v403 = vld [vmem:[%s197 + $0x660] sm:%s190]
                %404 = vst [vmem:[%s198 + $0x330] sm:%s190] %v403
                %v405 = vld [vmem:[%s197 + $0x670] sm:%s190]
                %406 = vst [vmem:[%s198 + $0x338] sm:%s190] %v405
                %v407 = vld [vmem:[%s197 + $0x680] sm:%s190]
                %408 = vst [vmem:[%s198 + $0x340] sm:%s190] %v407
                %v409 = vld [vmem:[%s197 + $0x690] sm:%s190]
                %410 = vst [vmem:[%s198 + $0x348] sm:%s190] %v409
                %v411 = vld [vmem:[%s197 + $0x6a0] sm:%s190]
                %412 = vst [vmem:[%s198 + $0x350] sm:%s190] %v411
                %v413 = vld [vmem:[%s197 + $0x6b0] sm:%s190]
                %414 = vst [vmem:[%s198 + $0x358] sm:%s190] %v413
                %v415 = vld [vmem:[%s197 + $0x6c0] sm:%s190]
                %416 = vst [vmem:[%s198 + $0x360] sm:%s190] %v415
                %v417 = vld [vmem:[%s197 + $0x6d0] sm:%s190]
                %418 = vst [vmem:[%s198 + $0x368] sm:%s190] %v417
                %v419 = vld [vmem:[%s197 + $0x6e0] sm:%s190]
                %420 = vst [vmem:[%s198 + $0x370] sm:%s190] %v419
                %v421 = vld [vmem:[%s197 + $0x6f0] sm:%s190]
                %422 = vst [vmem:[%s198 + $0x378] sm:%s190] %v421
                %v423 = vld [vmem:[%s197 + $0x700] sm:%s190]
                %424 = vst [vmem:[%s198 + $0x380] sm:%s190] %v423
                %v425 = vld [vmem:[%s197 + $0x710] sm:%s190]
                %426 = vst [vmem:[%s198 + $0x388] sm:%s190] %v425
                %v427 = vld [vmem:[%s197 + $0x720] sm:%s190]
                %428 = vst [vmem:[%s198 + $0x390] sm:%s190] %v427
                %v429 = vld [vmem:[%s197 + $0x730] sm:%s190]
                %430 = vst [vmem:[%s198 + $0x398] sm:%s190] %v429
                %v431 = vld [vmem:[%s197 + $0x740] sm:%s190]
                %432 = vst [vmem:[%s198 + $0x3a0] sm:%s190] %v431
                %v433 = vld [vmem:[%s197 + $0x750] sm:%s190]
                %434 = vst [vmem:[%s198 + $0x3a8] sm:%s190] %v433
                %v435 = vld [vmem:[%s197 + $0x760] sm:%s190]
                %436 = vst [vmem:[%s198 + $0x3b0] sm:%s190] %v435
                %v437 = vld [vmem:[%s197 + $0x770] sm:%s190]
                %438 = vst [vmem:[%s198 + $0x3b8] sm:%s190] %v437
                %v439 = vld [vmem:[%s197 + $0x780] sm:%s190]
                %440 = vst [vmem:[%s198 + $0x3c0] sm:%s190] %v439
                %v441 = vld [vmem:[%s197 + $0x790] sm:%s190]
                %442 = vst [vmem:[%s198 + $0x3c8] sm:%s190] %v441
                %v443 = vld [vmem:[%s197 + $0x7a0] sm:%s190]
                %444 = vst [vmem:[%s198 + $0x3d0] sm:%s190] %v443
                %v445 = vld [vmem:[%s197 + $0x7b0] sm:%s190]
                %446 = vst [vmem:[%s198 + $0x3d8] sm:%s190] %v445
                %v447 = vld [vmem:[%s197 + $0x7c0] sm:%s190]
                %448 = vst [vmem:[%s198 + $0x3e0] sm:%s190] %v447
                %v449 = vld [vmem:[%s197 + $0x7d0] sm:%s190]
                %450 = vst [vmem:[%s198 + $0x3e8] sm:%s190] %v449
                %v451 = vld [vmem:[%s197 + $0x7e0] sm:%s190]
                %452 = vst [vmem:[%s198 + $0x3f0] sm:%s190] %v451
                %v453 = vld [vmem:[%s197 + $0x7f0] sm:%s190]
                %454 = vst [vmem:[%s198 + $0x3f8] sm:%s190] %v453
                %v455 = vld [vmem:[%s197 + $0x800] sm:%s190]
                %456 = vst [vmem:[%s198 + $0x400] sm:%s190] %v455
                %v457 = vld [vmem:[%s197 + $0x810] sm:%s190]
                %458 = vst [vmem:[%s198 + $0x408] sm:%s190] %v457
                %v459 = vld [vmem:[%s197 + $0x820] sm:%s190]
                %460 = vst [vmem:[%s198 + $0x410] sm:%s190] %v459
                %v461 = vld [vmem:[%s197 + $0x830] sm:%s190]
                %462 = vst [vmem:[%s198 + $0x418] sm:%s190] %v461
                %v463 = vld [vmem:[%s197 + $0x840] sm:%s190]
                %464 = vst [vmem:[%s198 + $0x420] sm:%s190] %v463
                %v465 = vld [vmem:[%s197 + $0x850] sm:%s190]
                %466 = vst [vmem:[%s198 + $0x428] sm:%s190] %v465
                %v467 = vld [vmem:[%s197 + $0x860] sm:%s190]
                %468 = vst [vmem:[%s198 + $0x430] sm:%s190] %v467
                %v469 = vld [vmem:[%s197 + $0x870] sm:%s190]
                %470 = vst [vmem:[%s198 + $0x438] sm:%s190] %v469
                %v471 = vld [vmem:[%s197 + $0x880] sm:%s190]
                %472 = vst [vmem:[%s198 + $0x440] sm:%s190] %v471
                %v473 = vld [vmem:[%s197 + $0x890] sm:%s190]
                %474 = vst [vmem:[%s198 + $0x448] sm:%s190] %v473
                %v475 = vld [vmem:[%s197 + $0x8a0] sm:%s190]
                %476 = vst [vmem:[%s198 + $0x450] sm:%s190] %v475
                %v477 = vld [vmem:[%s197 + $0x8b0] sm:%s190]
                %478 = vst [vmem:[%s198 + $0x458] sm:%s190] %v477
                %v479 = vld [vmem:[%s197 + $0x8c0] sm:%s190]
                %480 = vst [vmem:[%s198 + $0x460] sm:%s190] %v479
                %v481 = vld [vmem:[%s197 + $0x8d0] sm:%s190]
                %482 = vst [vmem:[%s198 + $0x468] sm:%s190] %v481
                %v483 = vld [vmem:[%s197 + $0x8e0] sm:%s190]
                %484 = vst [vmem:[%s198 + $0x470] sm:%s190] %v483
                %v485 = vld [vmem:[%s197 + $0x8f0] sm:%s190]
                %486 = vst [vmem:[%s198 + $0x478] sm:%s190] %v485
                %v487 = vld [vmem:[%s197 + $0x900] sm:%s190]
                %488 = vst [vmem:[%s198 + $0x480] sm:%s190] %v487
                %v489 = vld [vmem:[%s197 + $0x910] sm:%s190]
                %490 = vst [vmem:[%s198 + $0x488] sm:%s190] %v489
                %v491 = vld [vmem:[%s197 + $0x920] sm:%s190]
                %492 = vst [vmem:[%s198 + $0x490] sm:%s190] %v491
                %v493 = vld [vmem:[%s197 + $0x930] sm:%s190]
                %494 = vst [vmem:[%s198 + $0x498] sm:%s190] %v493
                %v495 = vld [vmem:[%s197 + $0x940] sm:%s190]
                %496 = vst [vmem:[%s198 + $0x4a0] sm:%s190] %v495
                %v497 = vld [vmem:[%s197 + $0x950] sm:%s190]
                %498 = vst [vmem:[%s198 + $0x4a8] sm:%s190] %v497
                %v499 = vld [vmem:[%s197 + $0x960] sm:%s190]
                %500 = vst [vmem:[%s198 + $0x4b0] sm:%s190] %v499
                %v501 = vld [vmem:[%s197 + $0x970] sm:%s190]
                %502 = vst [vmem:[%s198 + $0x4b8] sm:%s190] %v501
                %v503 = vld [vmem:[%s197 + $0x980] sm:%s190]
                %504 = vst [vmem:[%s198 + $0x4c0] sm:%s190] %v503
                %v505 = vld [vmem:[%s197 + $0x990] sm:%s190]
                %506 = vst [vmem:[%s198 + $0x4c8] sm:%s190] %v505
                %v507 = vld [vmem:[%s197 + $0x9a0] sm:%s190]
                %508 = vst [vmem:[%s198 + $0x4d0] sm:%s190] %v507
                %v509 = vld [vmem:[%s197 + $0x9b0] sm:%s190]
                %510 = vst [vmem:[%s198 + $0x4d8] sm:%s190] %v509
                %v511 = vld [vmem:[%s197 + $0x9c0] sm:%s190]
                %512 = vst [vmem:[%s198 + $0x4e0] sm:%s190] %v511
                %v513 = vld [vmem:[%s197 + $0x9d0] sm:%s190]
                %514 = vst [vmem:[%s198 + $0x4e8] sm:%s190] %v513
                %v515 = vld [vmem:[%s197 + $0x9e0] sm:%s190]
                %516 = vst [vmem:[%s198 + $0x4f0] sm:%s190] %v515
                %v517 = vld [vmem:[%s197 + $0x9f0] sm:%s190]
                %518 = vst [vmem:[%s198 + $0x4f8] sm:%s190] %v517
                %v519 = vld [vmem:[%s197 + $0xa00] sm:%s190]
                %520 = vst [vmem:[%s198 + $0x500] sm:%s190] %v519
                %v521 = vld [vmem:[%s197 + $0xa10] sm:%s190]
                %522 = vst [vmem:[%s198 + $0x508] sm:%s190] %v521
                %v523 = vld [vmem:[%s197 + $0xa20] sm:%s190]
                %524 = vst [vmem:[%s198 + $0x510] sm:%s190] %v523
                %v525 = vld [vmem:[%s197 + $0xa30] sm:%s190]
                %526 = vst [vmem:[%s198 + $0x518] sm:%s190] %v525
                %v527 = vld [vmem:[%s197 + $0xa40] sm:%s190]
                %528 = vst [vmem:[%s198 + $0x520] sm:%s190] %v527
                %v529 = vld [vmem:[%s197 + $0xa50] sm:%s190]
                %530 = vst [vmem:[%s198 + $0x528] sm:%s190] %v529
                %v531 = vld [vmem:[%s197 + $0xa60] sm:%s190]
                %532 = vst [vmem:[%s198 + $0x530] sm:%s190] %v531
                %v533 = vld [vmem:[%s197 + $0xa70] sm:%s190]
                %534 = vst [vmem:[%s198 + $0x538] sm:%s190] %v533
                %v535 = vld [vmem:[%s197 + $0xa80] sm:%s190]
                %536 = vst [vmem:[%s198 + $0x540] sm:%s190] %v535
                %v537 = vld [vmem:[%s197 + $0xa90] sm:%s190]
                %538 = vst [vmem:[%s198 + $0x548] sm:%s190] %v537
                %v539 = vld [vmem:[%s197 + $0xaa0] sm:%s190]
                %540 = vst [vmem:[%s198 + $0x550] sm:%s190] %v539
                %v541 = vld [vmem:[%s197 + $0xab0] sm:%s190]
                %542 = vst [vmem:[%s198 + $0x558] sm:%s190] %v541
                %v543 = vld [vmem:[%s197 + $0xac0] sm:%s190]
                %544 = vst [vmem:[%s198 + $0x560] sm:%s190] %v543
                %v545 = vld [vmem:[%s197 + $0xad0] sm:%s190]
                %546 = vst [vmem:[%s198 + $0x568] sm:%s190] %v545
                %v547 = vld [vmem:[%s197 + $0xae0] sm:%s190]
                %548 = vst [vmem:[%s198 + $0x570] sm:%s190] %v547
                %v549 = vld [vmem:[%s197 + $0xaf0] sm:%s190]
                %550 = vst [vmem:[%s198 + $0x578] sm:%s190] %v549
                %v551 = vld [vmem:[%s197 + $0xb00] sm:%s190]
                %552 = vst [vmem:[%s198 + $0x580] sm:%s190] %v551
                %v553 = vld [vmem:[%s197 + $0xb10] sm:%s190]
                %554 = vst [vmem:[%s198 + $0x588] sm:%s190] %v553
                %v555 = vld [vmem:[%s197 + $0xb20] sm:%s190]
                %556 = vst [vmem:[%s198 + $0x590] sm:%s190] %v555
                %v557 = vld [vmem:[%s197 + $0xb30] sm:%s190]
                %558 = vst [vmem:[%s198 + $0x598] sm:%s190] %v557
                %v559 = vld [vmem:[%s197 + $0xb40] sm:%s190]
                %560 = vst [vmem:[%s198 + $0x5a0] sm:%s190] %v559
                %v561 = vld [vmem:[%s197 + $0xb50] sm:%s190]
                %562 = vst [vmem:[%s198 + $0x5a8] sm:%s190] %v561
                %v563 = vld [vmem:[%s197 + $0xb60] sm:%s190]
                %564 = vst [vmem:[%s198 + $0x5b0] sm:%s190] %v563
                %v565 = vld [vmem:[%s197 + $0xb70] sm:%s190]
                %566 = vst [vmem:[%s198 + $0x5b8] sm:%s190] %v565
                %v567 = vld [vmem:[%s197 + $0xb80] sm:%s190]
                %568 = vst [vmem:[%s198 + $0x5c0] sm:%s190] %v567
                %v569 = vld [vmem:[%s197 + $0xb90] sm:%s190]
                %570 = vst [vmem:[%s198 + $0x5c8] sm:%s190] %v569
                %v571 = vld [vmem:[%s197 + $0xba0] sm:%s190]
                %572 = vst [vmem:[%s198 + $0x5d0] sm:%s190] %v571
                %v573 = vld [vmem:[%s197 + $0xbb0] sm:%s190]
                %574 = vst [vmem:[%s198 + $0x5d8] sm:%s190] %v573
                %v575 = vld [vmem:[%s197 + $0xbc0] sm:%s190]
                %576 = vst [vmem:[%s198 + $0x5e0] sm:%s190] %v575
                %v577 = vld [vmem:[%s197 + $0xbd0] sm:%s190]
                %578 = vst [vmem:[%s198 + $0x5e8] sm:%s190] %v577
                %v579 = vld [vmem:[%s197 + $0xbe0] sm:%s190]
                %580 = vst [vmem:[%s198 + $0x5f0] sm:%s190] %v579
                %v581 = vld [vmem:[%s197 + $0xbf0] sm:%s190]
                %582 = vst [vmem:[%s198 + $0x5f8] sm:%s190] %v581
                %v583 = vld [vmem:[%s197 + $0xc00] sm:%s190]
                %584 = vst [vmem:[%s198 + $0x600] sm:%s190] %v583
                %v585 = vld [vmem:[%s197 + $0xc10] sm:%s190]
                %586 = vst [vmem:[%s198 + $0x608] sm:%s190] %v585
                %v587 = vld [vmem:[%s197 + $0xc20] sm:%s190]
                %588 = vst [vmem:[%s198 + $0x610] sm:%s190] %v587
                %v589 = vld [vmem:[%s197 + $0xc30] sm:%s190]
                %590 = vst [vmem:[%s198 + $0x618] sm:%s190] %v589
                %v591 = vld [vmem:[%s197 + $0xc40] sm:%s190]
                %592 = vst [vmem:[%s198 + $0x620] sm:%s190] %v591
                %v593 = vld [vmem:[%s197 + $0xc50] sm:%s190]
                %594 = vst [vmem:[%s198 + $0x628] sm:%s190] %v593
                %v595 = vld [vmem:[%s197 + $0xc60] sm:%s190]
                %596 = vst [vmem:[%s198 + $0x630] sm:%s190] %v595
                %v597 = vld [vmem:[%s197 + $0xc70] sm:%s190]
                %598 = vst [vmem:[%s198 + $0x638] sm:%s190] %v597
                %v599 = vld [vmem:[%s197 + $0xc80] sm:%s190]
                %600 = vst [vmem:[%s198 + $0x640] sm:%s190] %v599
                %v601 = vld [vmem:[%s197 + $0xc90] sm:%s190]
                %602 = vst [vmem:[%s198 + $0x648] sm:%s190] %v601
                %v603 = vld [vmem:[%s197 + $0xca0] sm:%s190]
                %604 = vst [vmem:[%s198 + $0x650] sm:%s190] %v603
                %v605 = vld [vmem:[%s197 + $0xcb0] sm:%s190]
                %606 = vst [vmem:[%s198 + $0x658] sm:%s190] %v605
                %v607 = vld [vmem:[%s197 + $0xcc0] sm:%s190]
                %608 = vst [vmem:[%s198 + $0x660] sm:%s190] %v607
                %v609 = vld [vmem:[%s197 + $0xcd0] sm:%s190]
                %610 = vst [vmem:[%s198 + $0x668] sm:%s190] %v609
                %v611 = vld [vmem:[%s197 + $0xce0] sm:%s190]
                %612 = vst [vmem:[%s198 + $0x670] sm:%s190] %v611
                %v613 = vld [vmem:[%s197 + $0xcf0] sm:%s190]
                %614 = vst [vmem:[%s198 + $0x678] sm:%s190] %v613
                %v615 = vld [vmem:[%s197 + $0xd00] sm:%s190]
                %616 = vst [vmem:[%s198 + $0x680] sm:%s190] %v615
                %v617 = vld [vmem:[%s197 + $0xd10] sm:%s190]
                %618 = vst [vmem:[%s198 + $0x688] sm:%s190] %v617
                %v619 = vld [vmem:[%s197 + $0xd20] sm:%s190]
                %620 = vst [vmem:[%s198 + $0x690] sm:%s190] %v619
                %v621 = vld [vmem:[%s197 + $0xd30] sm:%s190]
                %622 = vst [vmem:[%s198 + $0x698] sm:%s190] %v621
                %v623 = vld [vmem:[%s197 + $0xd40] sm:%s190]
                %624 = vst [vmem:[%s198 + $0x6a0] sm:%s190] %v623
                %v625 = vld [vmem:[%s197 + $0xd50] sm:%s190]
                %626 = vst [vmem:[%s198 + $0x6a8] sm:%s190] %v625
                %v627 = vld [vmem:[%s197 + $0xd60] sm:%s190]
                %628 = vst [vmem:[%s198 + $0x6b0] sm:%s190] %v627
                %v629 = vld [vmem:[%s197 + $0xd70] sm:%s190]
                %630 = vst [vmem:[%s198 + $0x6b8] sm:%s190] %v629
                %v631 = vld [vmem:[%s197 + $0xd80] sm:%s190]
                %632 = vst [vmem:[%s198 + $0x6c0] sm:%s190] %v631
                %v633 = vld [vmem:[%s197 + $0xd90] sm:%s190]
                %634 = vst [vmem:[%s198 + $0x6c8] sm:%s190] %v633
                %v635 = vld [vmem:[%s197 + $0xda0] sm:%s190]
                %636 = vst [vmem:[%s198 + $0x6d0] sm:%s190] %v635
                %v637 = vld [vmem:[%s197 + $0xdb0] sm:%s190]
                %638 = vst [vmem:[%s198 + $0x6d8] sm:%s190] %v637
                %v639 = vld [vmem:[%s197 + $0xdc0] sm:%s190]
                %640 = vst [vmem:[%s198 + $0x6e0] sm:%s190] %v639
                %v641 = vld [vmem:[%s197 + $0xdd0] sm:%s190]
                %642 = vst [vmem:[%s198 + $0x6e8] sm:%s190] %v641
                %v643 = vld [vmem:[%s197 + $0xde0] sm:%s190]
                %644 = vst [vmem:[%s198 + $0x6f0] sm:%s190] %v643
                %v645 = vld [vmem:[%s197 + $0xdf0] sm:%s190]
                %646 = vst [vmem:[%s198 + $0x6f8] sm:%s190] %v645
                %v647 = vld [vmem:[%s197 + $0xe00] sm:%s190]
                %648 = vst [vmem:[%s198 + $0x700] sm:%s190] %v647
                %v649 = vld [vmem:[%s197 + $0xe10] sm:%s190]
                %650 = vst [vmem:[%s198 + $0x708] sm:%s190] %v649
                %v651 = vld [vmem:[%s197 + $0xe20] sm:%s190]
                %652 = vst [vmem:[%s198 + $0x710] sm:%s190] %v651
                %v653 = vld [vmem:[%s197 + $0xe30] sm:%s190]
                %654 = vst [vmem:[%s198 + $0x718] sm:%s190] %v653
                %v655 = vld [vmem:[%s197 + $0xe40] sm:%s190]
                %656 = vst [vmem:[%s198 + $0x720] sm:%s190] %v655
                %v657 = vld [vmem:[%s197 + $0xe50] sm:%s190]
                %658 = vst [vmem:[%s198 + $0x728] sm:%s190] %v657
                %v659 = vld [vmem:[%s197 + $0xe60] sm:%s190]
                %660 = vst [vmem:[%s198 + $0x730] sm:%s190] %v659
                %v661 = vld [vmem:[%s197 + $0xe70] sm:%s190]
                %662 = vst [vmem:[%s198 + $0x738] sm:%s190] %v661
                %v663 = vld [vmem:[%s197 + $0xe80] sm:%s190]
                %664 = vst [vmem:[%s198 + $0x740] sm:%s190] %v663
                %v665 = vld [vmem:[%s197 + $0xe90] sm:%s190]
                %666 = vst [vmem:[%s198 + $0x748] sm:%s190] %v665
                %v667 = vld [vmem:[%s197 + $0xea0] sm:%s190]
                %668 = vst [vmem:[%s198 + $0x750] sm:%s190] %v667
                %v669 = vld [vmem:[%s197 + $0xeb0] sm:%s190]
                %670 = vst [vmem:[%s198 + $0x758] sm:%s190] %v669
                %v671 = vld [vmem:[%s197 + $0xec0] sm:%s190]
                %672 = vst [vmem:[%s198 + $0x760] sm:%s190] %v671
                %v673 = vld [vmem:[%s197 + $0xed0] sm:%s190]
                %674 = vst [vmem:[%s198 + $0x768] sm:%s190] %v673
                %v675 = vld [vmem:[%s197 + $0xee0] sm:%s190]
                %676 = vst [vmem:[%s198 + $0x770] sm:%s190] %v675
                %v677 = vld [vmem:[%s197 + $0xef0] sm:%s190]
                %678 = vst [vmem:[%s198 + $0x778] sm:%s190] %v677
                %v679 = vld [vmem:[%s197 + $0xf00] sm:%s190]
                %680 = vst [vmem:[%s198 + $0x780] sm:%s190] %v679
                %v681 = vld [vmem:[%s197 + $0xf10] sm:%s190]
                %682 = vst [vmem:[%s198 + $0x788] sm:%s190] %v681
                %v683 = vld [vmem:[%s197 + $0xf20] sm:%s190]
                %684 = vst [vmem:[%s198 + $0x790] sm:%s190] %v683
                %v685 = vld [vmem:[%s197 + $0xf30] sm:%s190]
                %686 = vst [vmem:[%s198 + $0x798] sm:%s190] %v685
                %v687 = vld [vmem:[%s197 + $0xf40] sm:%s190]
                %688 = vst [vmem:[%s198 + $0x7a0] sm:%s190] %v687
                %v689 = vld [vmem:[%s197 + $0xf50] sm:%s190]
                %690 = vst [vmem:[%s198 + $0x7a8] sm:%s190] %v689
                %v691 = vld [vmem:[%s197 + $0xf60] sm:%s190]
                %692 = vst [vmem:[%s198 + $0x7b0] sm:%s190] %v691
                %v693 = vld [vmem:[%s197 + $0xf70] sm:%s190]
                %694 = vst [vmem:[%s198 + $0x7b8] sm:%s190] %v693
                %v695 = vld [vmem:[%s197 + $0xf80] sm:%s190]
                %696 = vst [vmem:[%s198 + $0x7c0] sm:%s190] %v695
                %v697 = vld [vmem:[%s197 + $0xf90] sm:%s190]
                %698 = vst [vmem:[%s198 + $0x7c8] sm:%s190] %v697
                %v699 = vld [vmem:[%s197 + $0xfa0] sm:%s190]
                %700 = vst [vmem:[%s198 + $0x7d0] sm:%s190] %v699
                %v701 = vld [vmem:[%s197 + $0xfb0] sm:%s190]
                %702 = vst [vmem:[%s198 + $0x7d8] sm:%s190] %v701
                %v703 = vld [vmem:[%s197 + $0xfc0] sm:%s190]
                %704 = vst [vmem:[%s198 + $0x7e0] sm:%s190] %v703
                %v705 = vld [vmem:[%s197 + $0xfd0] sm:%s190]
                %706 = vst [vmem:[%s198 + $0x7e8] sm:%s190] %v705
                %v707 = vld [vmem:[%s197 + $0xfe0] sm:%s190]
                %708 = vst [vmem:[%s198 + $0x7f0] sm:%s190] %v707
                %v709 = vld [vmem:[%s197 + $0xff0] sm:%s190]
                %710 = vst [vmem:[%s198 + $0x7f8] sm:%s190] %v709
                %v711 = vld [vmem:[%s197 + $0x1000] sm:%s190]
                %712 = vst [vmem:[%s198 + $0x800] sm:%s190] %v711
                %v713 = vld [vmem:[%s197 + $0x1010] sm:%s190]
                %714 = vst [vmem:[%s198 + $0x808] sm:%s190] %v713
                %v715 = vld [vmem:[%s197 + $0x1020] sm:%s190]
                %716 = vst [vmem:[%s198 + $0x810] sm:%s190] %v715
                %v717 = vld [vmem:[%s197 + $0x1030] sm:%s190]
                %718 = vst [vmem:[%s198 + $0x818] sm:%s190] %v717
                %v719 = vld [vmem:[%s197 + $0x1040] sm:%s190]
                %720 = vst [vmem:[%s198 + $0x820] sm:%s190] %v719
                %v721 = vld [vmem:[%s197 + $0x1050] sm:%s190]
                %722 = vst [vmem:[%s198 + $0x828] sm:%s190] %v721
                %v723 = vld [vmem:[%s197 + $0x1060] sm:%s190]
                %724 = vst [vmem:[%s198 + $0x830] sm:%s190] %v723
                %v725 = vld [vmem:[%s197 + $0x1070] sm:%s190]
                %726 = vst [vmem:[%s198 + $0x838] sm:%s190] %v725
                %v727 = vld [vmem:[%s197 + $0x1080] sm:%s190]
                %728 = vst [vmem:[%s198 + $0x840] sm:%s190] %v727
                %v729 = vld [vmem:[%s197 + $0x1090] sm:%s190]
                %730 = vst [vmem:[%s198 + $0x848] sm:%s190] %v729
                %v731 = vld [vmem:[%s197 + $0x10a0] sm:%s190]
                %732 = vst [vmem:[%s198 + $0x850] sm:%s190] %v731
                %v733 = vld [vmem:[%s197 + $0x10b0] sm:%s190]
                %734 = vst [vmem:[%s198 + $0x858] sm:%s190] %v733
                %v735 = vld [vmem:[%s197 + $0x10c0] sm:%s190]
                %736 = vst [vmem:[%s198 + $0x860] sm:%s190] %v735
                %v737 = vld [vmem:[%s197 + $0x10d0] sm:%s190]
                %738 = vst [vmem:[%s198 + $0x868] sm:%s190] %v737
                %v739 = vld [vmem:[%s197 + $0x10e0] sm:%s190]
                %740 = vst [vmem:[%s198 + $0x870] sm:%s190] %v739
                %v741 = vld [vmem:[%s197 + $0x10f0] sm:%s190]
                %742 = vst [vmem:[%s198 + $0x878] sm:%s190] %v741
                %v743 = vld [vmem:[%s197 + $0x1100] sm:%s190]
                %744 = vst [vmem:[%s198 + $0x880] sm:%s190] %v743
                %v745 = vld [vmem:[%s197 + $0x1110] sm:%s190]
                %746 = vst [vmem:[%s198 + $0x888] sm:%s190] %v745
                %v747 = vld [vmem:[%s197 + $0x1120] sm:%s190]
                %748 = vst [vmem:[%s198 + $0x890] sm:%s190] %v747
                %v749 = vld [vmem:[%s197 + $0x1130] sm:%s190]
                %750 = vst [vmem:[%s198 + $0x898] sm:%s190] %v749
                %v751 = vld [vmem:[%s197 + $0x1140] sm:%s190]
                %752 = vst [vmem:[%s198 + $0x8a0] sm:%s190] %v751
                %v753 = vld [vmem:[%s197 + $0x1150] sm:%s190]
                %754 = vst [vmem:[%s198 + $0x8a8] sm:%s190] %v753
                %v755 = vld [vmem:[%s197 + $0x1160] sm:%s190]
                %756 = vst [vmem:[%s198 + $0x8b0] sm:%s190] %v755
                %v757 = vld [vmem:[%s197 + $0x1170] sm:%s190]
                %758 = vst [vmem:[%s198 + $0x8b8] sm:%s190] %v757
                %v759 = vld [vmem:[%s197 + $0x1180] sm:%s190]
                %760 = vst [vmem:[%s198 + $0x8c0] sm:%s190] %v759
                %v761 = vld [vmem:[%s197 + $0x1190] sm:%s190]
                %762 = vst [vmem:[%s198 + $0x8c8] sm:%s190] %v761
                %v763 = vld [vmem:[%s197 + $0x11a0] sm:%s190]
                %764 = vst [vmem:[%s198 + $0x8d0] sm:%s190] %v763
                %v765 = vld [vmem:[%s197 + $0x11b0] sm:%s190]
                %766 = vst [vmem:[%s198 + $0x8d8] sm:%s190] %v765
                %v767 = vld [vmem:[%s197 + $0x11c0] sm:%s190]
                %768 = vst [vmem:[%s198 + $0x8e0] sm:%s190] %v767
                %v769 = vld [vmem:[%s197 + $0x11d0] sm:%s190]
                %770 = vst [vmem:[%s198 + $0x8e8] sm:%s190] %v769
                %v771 = vld [vmem:[%s197 + $0x11e0] sm:%s190]
                %772 = vst [vmem:[%s198 + $0x8f0] sm:%s190] %v771
                %v773 = vld [vmem:[%s197 + $0x11f0] sm:%s190]
                %774 = vst [vmem:[%s198 + $0x8f8] sm:%s190] %v773
                %v775 = vld [vmem:[%s197 + $0x1200] sm:%s190]
                %776 = vst [vmem:[%s198 + $0x900] sm:%s190] %v775
                %v777 = vld [vmem:[%s197 + $0x1210] sm:%s190]
                %778 = vst [vmem:[%s198 + $0x908] sm:%s190] %v777
                %v779 = vld [vmem:[%s197 + $0x1220] sm:%s190]
                %780 = vst [vmem:[%s198 + $0x910] sm:%s190] %v779
                %v781 = vld [vmem:[%s197 + $0x1230] sm:%s190]
                %782 = vst [vmem:[%s198 + $0x918] sm:%s190] %v781
                %v783 = vld [vmem:[%s197 + $0x1240] sm:%s190]
                %784 = vst [vmem:[%s198 + $0x920] sm:%s190] %v783
                %v785 = vld [vmem:[%s197 + $0x1250] sm:%s190]
                %786 = vst [vmem:[%s198 + $0x928] sm:%s190] %v785
                %v787 = vld [vmem:[%s197 + $0x1260] sm:%s190]
                %788 = vst [vmem:[%s198 + $0x930] sm:%s190] %v787
                %v789 = vld [vmem:[%s197 + $0x1270] sm:%s190]
                %790 = vst [vmem:[%s198 + $0x938] sm:%s190] %v789
                %v791 = vld [vmem:[%s197 + $0x1280] sm:%s190]
                %792 = vst [vmem:[%s198 + $0x940] sm:%s190] %v791
                %v793 = vld [vmem:[%s197 + $0x1290] sm:%s190]
                %794 = vst [vmem:[%s198 + $0x948] sm:%s190] %v793
                %v795 = vld [vmem:[%s197 + $0x12a0] sm:%s190]
                %796 = vst [vmem:[%s198 + $0x950] sm:%s190] %v795
                %v797 = vld [vmem:[%s197 + $0x12b0] sm:%s190]
                %798 = vst [vmem:[%s198 + $0x958] sm:%s190] %v797
                %v799 = vld [vmem:[%s197 + $0x12c0] sm:%s190]
                %800 = vst [vmem:[%s198 + $0x960] sm:%s190] %v799
                %v801 = vld [vmem:[%s197 + $0x12d0] sm:%s190]
                %802 = vst [vmem:[%s198 + $0x968] sm:%s190] %v801
                %v803 = vld [vmem:[%s197 + $0x12e0] sm:%s190]
                %804 = vst [vmem:[%s198 + $0x970] sm:%s190] %v803
                %v805 = vld [vmem:[%s197 + $0x12f0] sm:%s190]
                %806 = vst [vmem:[%s198 + $0x978] sm:%s190] %v805
                %v807 = vld [vmem:[%s197 + $0x1300] sm:%s190]
                %808 = vst [vmem:[%s198 + $0x980] sm:%s190] %v807
                %v809 = vld [vmem:[%s197 + $0x1310] sm:%s190]
                %810 = vst [vmem:[%s198 + $0x988] sm:%s190] %v809
                %v811 = vld [vmem:[%s197 + $0x1320] sm:%s190]
                %812 = vst [vmem:[%s198 + $0x990] sm:%s190] %v811
                %v813 = vld [vmem:[%s197 + $0x1330] sm:%s190]
                %814 = vst [vmem:[%s198 + $0x998] sm:%s190] %v813
                %v815 = vld [vmem:[%s197 + $0x1340] sm:%s190]
                %816 = vst [vmem:[%s198 + $0x9a0] sm:%s190] %v815
                %v817 = vld [vmem:[%s197 + $0x1350] sm:%s190]
                %818 = vst [vmem:[%s198 + $0x9a8] sm:%s190] %v817
                %v819 = vld [vmem:[%s197 + $0x1360] sm:%s190]
                %820 = vst [vmem:[%s198 + $0x9b0] sm:%s190] %v819
                %v821 = vld [vmem:[%s197 + $0x1370] sm:%s190]
                %822 = vst [vmem:[%s198 + $0x9b8] sm:%s190] %v821
                %v823 = vld [vmem:[%s197 + $0x1380] sm:%s190]
                %824 = vst [vmem:[%s198 + $0x9c0] sm:%s190] %v823
                %v825 = vld [vmem:[%s197 + $0x1390] sm:%s190]
                %826 = vst [vmem:[%s198 + $0x9c8] sm:%s190] %v825
                %v827 = vld [vmem:[%s197 + $0x13a0] sm:%s190]
                %828 = vst [vmem:[%s198 + $0x9d0] sm:%s190] %v827
                %v829 = vld [vmem:[%s197 + $0x13b0] sm:%s190]
                %830 = vst [vmem:[%s198 + $0x9d8] sm:%s190] %v829
                %v831 = vld [vmem:[%s197 + $0x13c0] sm:%s190]
                %832 = vst [vmem:[%s198 + $0x9e0] sm:%s190] %v831
                %v833 = vld [vmem:[%s197 + $0x13d0] sm:%s190]
                %834 = vst [vmem:[%s198 + $0x9e8] sm:%s190] %v833
                %v835 = vld [vmem:[%s197 + $0x13e0] sm:%s190]
                %836 = vst [vmem:[%s198 + $0x9f0] sm:%s190] %v835
                %v837 = vld [vmem:[%s197 + $0x13f0] sm:%s190]
                %838 = vst [vmem:[%s198 + $0x9f8] sm:%s190] %v837
                %v839 = vld [vmem:[%s197 + $0x1400] sm:%s190]
                %840 = vst [vmem:[%s198 + $0xa00] sm:%s190] %v839
                %v841 = vld [vmem:[%s197 + $0x1410] sm:%s190]
                %842 = vst [vmem:[%s198 + $0xa08] sm:%s190] %v841
                %v843 = vld [vmem:[%s197 + $0x1420] sm:%s190]
                %844 = vst [vmem:[%s198 + $0xa10] sm:%s190] %v843
                %v845 = vld [vmem:[%s197 + $0x1430] sm:%s190]
                %846 = vst [vmem:[%s198 + $0xa18] sm:%s190] %v845
                %v847 = vld [vmem:[%s197 + $0x1440] sm:%s190]
                %848 = vst [vmem:[%s198 + $0xa20] sm:%s190] %v847
                %v849 = vld [vmem:[%s197 + $0x1450] sm:%s190]
                %850 = vst [vmem:[%s198 + $0xa28] sm:%s190] %v849
                %v851 = vld [vmem:[%s197 + $0x1460] sm:%s190]
                %852 = vst [vmem:[%s198 + $0xa30] sm:%s190] %v851
                %v853 = vld [vmem:[%s197 + $0x1470] sm:%s190]
                %854 = vst [vmem:[%s198 + $0xa38] sm:%s190] %v853
                %v855 = vld [vmem:[%s197 + $0x1480] sm:%s190]
                %856 = vst [vmem:[%s198 + $0xa40] sm:%s190] %v855
                %v857 = vld [vmem:[%s197 + $0x1490] sm:%s190]
                %858 = vst [vmem:[%s198 + $0xa48] sm:%s190] %v857
                %v859 = vld [vmem:[%s197 + $0x14a0] sm:%s190]
                %860 = vst [vmem:[%s198 + $0xa50] sm:%s190] %v859
                %v861 = vld [vmem:[%s197 + $0x14b0] sm:%s190]
                %862 = vst [vmem:[%s198 + $0xa58] sm:%s190] %v861
                %v863 = vld [vmem:[%s197 + $0x14c0] sm:%s190]
                %864 = vst [vmem:[%s198 + $0xa60] sm:%s190] %v863
                %v865 = vld [vmem:[%s197 + $0x14d0] sm:%s190]
                %866 = vst [vmem:[%s198 + $0xa68] sm:%s190] %v865
                %v867 = vld [vmem:[%s197 + $0x14e0] sm:%s190]
                %868 = vst [vmem:[%s198 + $0xa70] sm:%s190] %v867
                %v869 = vld [vmem:[%s197 + $0x14f0] sm:%s190]
                %870 = vst [vmem:[%s198 + $0xa78] sm:%s190] %v869
                %v871 = vld [vmem:[%s197 + $0x1500] sm:%s190]
                %872 = vst [vmem:[%s198 + $0xa80] sm:%s190] %v871
                %v873 = vld [vmem:[%s197 + $0x1510] sm:%s190]
                %874 = vst [vmem:[%s198 + $0xa88] sm:%s190] %v873
                %v875 = vld [vmem:[%s197 + $0x1520] sm:%s190]
                %876 = vst [vmem:[%s198 + $0xa90] sm:%s190] %v875
                %v877 = vld [vmem:[%s197 + $0x1530] sm:%s190]
                %878 = vst [vmem:[%s198 + $0xa98] sm:%s190] %v877
                %v879 = vld [vmem:[%s197 + $0x1540] sm:%s190]
                %880 = vst [vmem:[%s198 + $0xaa0] sm:%s190] %v879
                %v881 = vld [vmem:[%s197 + $0x1550] sm:%s190]
                %882 = vst [vmem:[%s198 + $0xaa8] sm:%s190] %v881
                %v883 = vld [vmem:[%s197 + $0x1560] sm:%s190]
                %884 = vst [vmem:[%s198 + $0xab0] sm:%s190] %v883
                %v885 = vld [vmem:[%s197 + $0x1570] sm:%s190]
                %886 = vst [vmem:[%s198 + $0xab8] sm:%s190] %v885
                %v887 = vld [vmem:[%s197 + $0x1580] sm:%s190]
                %888 = vst [vmem:[%s198 + $0xac0] sm:%s190] %v887
                %v889 = vld [vmem:[%s197 + $0x1590] sm:%s190]
                %890 = vst [vmem:[%s198 + $0xac8] sm:%s190] %v889
                %v891 = vld [vmem:[%s197 + $0x15a0] sm:%s190]
                %892 = vst [vmem:[%s198 + $0xad0] sm:%s190] %v891
                %v893 = vld [vmem:[%s197 + $0x15b0] sm:%s190]
                %894 = vst [vmem:[%s198 + $0xad8] sm:%s190] %v893
                %v895 = vld [vmem:[%s197 + $0x15c0] sm:%s190]
                %896 = vst [vmem:[%s198 + $0xae0] sm:%s190] %v895
                %v897 = vld [vmem:[%s197 + $0x15d0] sm:%s190]
                %898 = vst [vmem:[%s198 + $0xae8] sm:%s190] %v897
                %v899 = vld [vmem:[%s197 + $0x15e0] sm:%s190]
                %900 = vst [vmem:[%s198 + $0xaf0] sm:%s190] %v899
                %v901 = vld [vmem:[%s197 + $0x15f0] sm:%s190]
                %902 = vst [vmem:[%s198 + $0xaf8] sm:%s190] %v901
                %v903 = vld [vmem:[%s197 + $0x1600] sm:%s190]
                %904 = vst [vmem:[%s198 + $0xb00] sm:%s190] %v903
                %v905 = vld [vmem:[%s197 + $0x1610] sm:%s190]
                %906 = vst [vmem:[%s198 + $0xb08] sm:%s190] %v905
                %v907 = vld [vmem:[%s197 + $0x1620] sm:%s190]
                %908 = vst [vmem:[%s198 + $0xb10] sm:%s190] %v907
                %v909 = vld [vmem:[%s197 + $0x1630] sm:%s190]
                %910 = vst [vmem:[%s198 + $0xb18] sm:%s190] %v909
                %v911 = vld [vmem:[%s197 + $0x1640] sm:%s190]
                %912 = vst [vmem:[%s198 + $0xb20] sm:%s190] %v911
                %v913 = vld [vmem:[%s197 + $0x1650] sm:%s190]
                %914 = vst [vmem:[%s198 + $0xb28] sm:%s190] %v913
                %v915 = vld [vmem:[%s197 + $0x1660] sm:%s190]
                %916 = vst [vmem:[%s198 + $0xb30] sm:%s190] %v915
                %v917 = vld [vmem:[%s197 + $0x1670] sm:%s190]
                %918 = vst [vmem:[%s198 + $0xb38] sm:%s190] %v917
                %v919 = vld [vmem:[%s197 + $0x1680] sm:%s190]
                %920 = vst [vmem:[%s198 + $0xb40] sm:%s190] %v919
                %v921 = vld [vmem:[%s197 + $0x1690] sm:%s190]
                %922 = vst [vmem:[%s198 + $0xb48] sm:%s190] %v921
                %v923 = vld [vmem:[%s197 + $0x16a0] sm:%s190]
                %924 = vst [vmem:[%s198 + $0xb50] sm:%s190] %v923
                %v925 = vld [vmem:[%s197 + $0x16b0] sm:%s190]
                %926 = vst [vmem:[%s198 + $0xb58] sm:%s190] %v925
                %v927 = vld [vmem:[%s197 + $0x16c0] sm:%s190]
                %928 = vst [vmem:[%s198 + $0xb60] sm:%s190] %v927
                %v929 = vld [vmem:[%s197 + $0x16d0] sm:%s190]
                %930 = vst [vmem:[%s198 + $0xb68] sm:%s190] %v929
                %v931 = vld [vmem:[%s197 + $0x16e0] sm:%s190]
                %932 = vst [vmem:[%s198 + $0xb70] sm:%s190] %v931
                %v933 = vld [vmem:[%s197 + $0x16f0] sm:%s190]
                %934 = vst [vmem:[%s198 + $0xb78] sm:%s190] %v933
                %v935 = vld [vmem:[%s197 + $0x1700] sm:%s190]
                %936 = vst [vmem:[%s198 + $0xb80] sm:%s190] %v935
                %v937 = vld [vmem:[%s197 + $0x1710] sm:%s190]
                %938 = vst [vmem:[%s198 + $0xb88] sm:%s190] %v937
                %v939 = vld [vmem:[%s197 + $0x1720] sm:%s190]
                %940 = vst [vmem:[%s198 + $0xb90] sm:%s190] %v939
                %v941 = vld [vmem:[%s197 + $0x1730] sm:%s190]
                %942 = vst [vmem:[%s198 + $0xb98] sm:%s190] %v941
                %v943 = vld [vmem:[%s197 + $0x1740] sm:%s190]
                %944 = vst [vmem:[%s198 + $0xba0] sm:%s190] %v943
                %v945 = vld [vmem:[%s197 + $0x1750] sm:%s190]
                %946 = vst [vmem:[%s198 + $0xba8] sm:%s190] %v945
                %v947 = vld [vmem:[%s197 + $0x1760] sm:%s190]
                %948 = vst [vmem:[%s198 + $0xbb0] sm:%s190] %v947
                %v949 = vld [vmem:[%s197 + $0x1770] sm:%s190]
                %950 = vst [vmem:[%s198 + $0xbb8] sm:%s190] %v949
                %v951 = vld [vmem:[%s197 + $0x1780] sm:%s190]
                %952 = vst [vmem:[%s198 + $0xbc0] sm:%s190] %v951
                %v953 = vld [vmem:[%s197 + $0x1790] sm:%s190]
                %954 = vst [vmem:[%s198 + $0xbc8] sm:%s190] %v953
                %v955 = vld [vmem:[%s197 + $0x17a0] sm:%s190]
                %956 = vst [vmem:[%s198 + $0xbd0] sm:%s190] %v955
                %v957 = vld [vmem:[%s197 + $0x17b0] sm:%s190]
                %958 = vst [vmem:[%s198 + $0xbd8] sm:%s190] %v957
                %v959 = vld [vmem:[%s197 + $0x17c0] sm:%s190]
                %960 = vst [vmem:[%s198 + $0xbe0] sm:%s190] %v959
                %v961 = vld [vmem:[%s197 + $0x17d0] sm:%s190]
                %962 = vst [vmem:[%s198 + $0xbe8] sm:%s190] %v961
                %v963 = vld [vmem:[%s197 + $0x17e0] sm:%s190]
                %964 = vst [vmem:[%s198 + $0xbf0] sm:%s190] %v963
                %v965 = vld [vmem:[%s197 + $0x17f0] sm:%s190]
                %966 = vst [vmem:[%s198 + $0xbf8] sm:%s190] %v965
                %v967 = vld [vmem:[%s197 + $0x1800] sm:%s190]
                %968 = vst [vmem:[%s198 + $0xc00] sm:%s190] %v967
                %v969 = vld [vmem:[%s197 + $0x1810] sm:%s190]
                %970 = vst [vmem:[%s198 + $0xc08] sm:%s190] %v969
                %v971 = vld [vmem:[%s197 + $0x1820] sm:%s190]
                %972 = vst [vmem:[%s198 + $0xc10] sm:%s190] %v971
                %v973 = vld [vmem:[%s197 + $0x1830] sm:%s190]
                %974 = vst [vmem:[%s198 + $0xc18] sm:%s190] %v973
                %v975 = vld [vmem:[%s197 + $0x1840] sm:%s190]
                %976 = vst [vmem:[%s198 + $0xc20] sm:%s190] %v975
                %v977 = vld [vmem:[%s197 + $0x1850] sm:%s190]
                %978 = vst [vmem:[%s198 + $0xc28] sm:%s190] %v977
                %v979 = vld [vmem:[%s197 + $0x1860] sm:%s190]
                %980 = vst [vmem:[%s198 + $0xc30] sm:%s190] %v979
                %v981 = vld [vmem:[%s197 + $0x1870] sm:%s190]
                %982 = vst [vmem:[%s198 + $0xc38] sm:%s190] %v981
              $region41: #{policy_forward.8} parent=35 // loop_footer
                %s196 = sadd.s32 1, %s192
              $region42: #{policy_forward.8} parent=35 // loop_footer_branch
                %191 = sbr.rel target = $region38
              $region43: #{policy_forward.8} parent=35 // loop_exit
                _
            $region36: #{policy_forward.8} parent=27 // pred_fallthru
              _
          $region28: #{policy_forward.8} parent=23 // pred_fallthru
            _
          %3383 = vnop
        $region24: #{policy_forward.8} parent=19 // pred_fallthru
          _
        // Predicated region
        $region73: #{policy_forward.8} parent=19 // pred_check
          %p3384 = pneg %p104
        $region74: #{policy_forward.8} parent=19 // pred_check_branch
          %3386 = sbr.rel (%p3384) target = $region76
        $region75: #{policy_forward.8} parent=19 // pred_region
          %s3387 = smul.u32 2, %s17
          %p3388 = scmp.lt.s32.totalorder %s3387, 3
          %s3389 = scalar_select %p3388, %s3387, 3
          %s3390 = scalar_lea.vmem %s2, %s3389
          %s3391 = smul.u32 2, %s17
        $region76: #{policy_forward.8} parent=19 // pred_fallthru
          _
      $region20: #{policy_forward.8} parent=5 // pred_fallthru
        _
      %p3392 = scmp.le.s32.totalorder 1, %s9
      %p3393 = scmp.lt.s32.totalorder %s9, 3
      %p3394 = pnand %p3392, %p3393
      %p3395 = pneg %p3394
      // Predicated region
      $region77: #{policy_forward.8} parent=5 // pred_check
        _
      $region78: #{policy_forward.8} parent=5 // pred_check_branch
        %3397 = sbr.rel (%p3394) target = $region80
      $region79: #{policy_forward.8} parent=5 // pred_region
        %s3398 = ssub.s32 %s9, 1
        %s3399 = sand.u32 %s71, 1
        %s3400 = sand.u32 %s71, 1
        %s3401 = smul.addr %s3400, 3136
        %s3402 = scalar_lea.vmem [#allocation3], %s3401
        // Predicated region
        $region81: #{policy_forward.8} parent=79 // pred_check
          %p3403 = pneg %p84
        $region82: #{policy_forward.8} parent=79 // pred_check_branch
          %3405 = sbr.rel (%p3403) target = $region84
        $region83: #{policy_forward.8} parent=79 // pred_region
          _
        $region84: #{policy_forward.8} parent=79 // pred_fallthru
          _
        %s3406 = smul.u32 25, %s21
        %p3407 = scmp.lt.s32.totalorder %s19, 0
        %s3408 = scalar_select %p3407, %s19, 0
        %p3409 = scmp.lt.s32.totalorder %s3406, 24
        %s3410 = scalar_select %p3409, %s3406, 24
        %s3411 = smul.addr %s3408, 25
        %s3412 = sadd.s32 %s3410, %s3411
        %s3413 = smul.addr %s3412, 4
        %s3414 = scalar_lea.vmem %s0, %s3413
        %p3415 = pneg %p56
        %p3416 = pneg %p53
        %s3417 = sand.u32 %s71, 1
        %s3418 = sand.u32 %s71, 1
        %s3419 = smul.addr %s3418, 3136
        %s3420 = scalar_lea.vmem [#allocation3], %s3419
        %p3421 = pneg %p84
        %p3422 = pneg %p81
        %s3423 = smul.u32 2, %s20
        %p3424 = scmp.lt.s32.totalorder %s3423, 3
        %s3425 = scalar_select %p3424, %s3423, 3
        %s3426 = scalar_lea.vmem %s2, %s3425
        %p3427 = pneg %p110
        %p3428 = pneg %p107
        %p3429 = pneg %p138
        %p3430 = pneg %p135
        %s3431 = smul.u32 2, %s20
        %p3432 = scmp.lt.s32.totalorder %s19, 0
        %s3433 = scalar_select %p3432, %s19, 0
        %p3434 = scmp.lt.s32.totalorder %s3431, 3
        %s3435 = scalar_select %p3434, %s3431, 3
        %s3436 = smul.addr %s3433, 4
        %s3437 = sadd.s32 %s3435, %s3436
        %s3438 = smul.addr %s3437, 4
        %s3439 = scalar_lea.vmem %s3, %s3438
        %s3440 = smul.u32 25, %s21
        %p3441 = scmp.lt.s32.totalorder %s19, 0
        %s3442 = scalar_select %p3441, %s19, 0
        %p3443 = scmp.lt.s32.totalorder %s3440, 24
        %s3444 = scalar_select %p3443, %s3440, 24
        %s3445 = smul.addr %s3442, 25
        %s3446 = sadd.s32 %s3444, %s3445
        %s3447 = smul.addr %s3446, 4
        %s3448 = scalar_lea.vmem %s0, %s3447
        %s3449 = smul.u32 25, %s21
        %s3450 = smul.u32 392, %s21
        %s3451 = smul.u32 2, %s20
        %s3452 = smul.u32 2, %s20
        %p3453 = scmp.lt.s32.totalorder %s3452, 3
        %s3454 = scalar_select %p3453, %s3452, 3
        %s3455 = scalar_lea.vmem %s2, %s3454
        %s3456 = smul.u32 2, %s20
        %s3457 = smul.u32 2, %s20
        %p3458 = scmp.lt.s32.totalorder %s19, 0
        %s3459 = scalar_select %p3458, %s19, 0
        %p3460 = scmp.lt.s32.totalorder %s3457, 3
        %s3461 = scalar_select %p3460, %s3457, 3
        %s3462 = smul.addr %s3459, 4
        %s3463 = sadd.s32 %s3461, %s3462
        %s3464 = smul.addr %s3463, 4
        %s3465 = scalar_lea.vmem %s3, %s3464
        %s3466 = smul.u32 2, %s20
        %p3468 = scmp.eq.s32.totalorder %s21, 0
        // Predicated region
        $region85: #{policy_forward.8} parent=79 // pred_check
          %p3469 = pneg %p3468
        $region86: #{policy_forward.8} parent=79 // pred_check_branch
          %3471 = sbr.rel (%p3469) target = $region88
        $region87: #{policy_forward.8} parent=79 // pred_region
          %3472 = vst [vmem:[#allocation2] sm:$0xff] 0.0
          %3473 = vst [vmem:[#allocation2 + $0x8] sm:$0xff] 0.0
        $region88: #{policy_forward.8} parent=79 // pred_fallthru
          _
        %v3474 = vld [vmem:[#allocation2] sm:$0xff]
        %v3475 = vld [vmem:[#allocation2 + $0x8] sm:$0xff]
        %v3476 = vld [vmem:[%s3448] sm:$0xff]
        %v3477 = vld [vmem:[%s3448 + $0x8] sm:$0xff]
        %v3478 = vld [vmem:[%s3448 + $0x10] sm:$0xff]
        %v3479 = vld [vmem:[%s3448 + $0x18] sm:$0xff]
        %v3480 = vld [vmem:[%s3448 + $0x20] sm:$0xff]
        %v3481 = vld [vmem:[%s3448 + $0x28] sm:$0xff]
        %v3482 = vld [vmem:[%s3448 + $0x30] sm:$0xff]
        %v3483 = vld [vmem:[%s3448 + $0x38] sm:$0xff]
        %v3484 = vld [vmem:[%s3448 + $0x40] sm:$0xff]
        %v3485 = vld [vmem:[%s3448 + $0x48] sm:$0xff]
        %v3486 = vld [vmem:[%s3448 + $0x50] sm:$0xff]
        %v3487 = vld [vmem:[%s3448 + $0x58] sm:$0xff]
        %v3488 = vld [vmem:[%s3448 + $0x60] sm:$0xf]
        %v3489 = vld [vmem:[%s3402] sm:$0xff]
        %v3490 = vld [vmem:[%s3402 + $0x8] sm:$0xff]
        %v3491 = vld [vmem:[%s3402 + $0x10] sm:$0xff]
        %v3492 = vld [vmem:[%s3402 + $0x18] sm:$0xff]
        %v3493 = vld [vmem:[%s3402 + $0x20] sm:$0xff]
        %v3494 = vld [vmem:[%s3402 + $0x28] sm:$0xff]
        %v3495 = vld [vmem:[%s3402 + $0x30] sm:$0xff]
        %v3496 = vld [vmem:[%s3402 + $0x38] sm:$0xff]
        %v3497 = vld [vmem:[%s3402 + $0x40] sm:$0xff]
        %v3498 = vld [vmem:[%s3402 + $0x48] sm:$0xff]
        %v3499 = vld [vmem:[%s3402 + $0x50] sm:$0xff]
        %v3500 = vld [vmem:[%s3402 + $0x58] sm:$0xff]
        %v3501 = vld [vmem:[%s3402 + $0x60] sm:$0xff]
        %v3502 = vld [vmem:[%s3402 + $0x68] sm:$0xff]
        %v3503 = vld [vmem:[%s3402 + $0x70] sm:$0xff]
        %v3504 = vld [vmem:[%s3402 + $0x78] sm:$0xff]
        %v3505 = vld [vmem:[%s3402 + $0x80] sm:$0xff]
        %v3506 = vld [vmem:[%s3402 + $0x88] sm:$0xff]
        %v3507 = vld [vmem:[%s3402 + $0x90] sm:$0xff]
        %v3508 = vld [vmem:[%s3402 + $0x98] sm:$0xff]
        %v3509 = vld [vmem:[%s3402 + $0xa0] sm:$0xff]
        %v3510 = vld [vmem:[%s3402 + $0xa8] sm:$0xff]
        %v3511 = vld [vmem:[%s3402 + $0xb0] sm:$0xff]
        %v3512 = vld [vmem:[%s3402 + $0xb8] sm:$0xff]
        %v3513 = vld [vmem:[%s3402 + $0xc0] sm:$0xff]
        %v3514 = vld [vmem:[%s3402 + $0xc8] sm:$0xff]
        %v3515 = vld [vmem:[%s3402 + $0xd0] sm:$0xff]
        %v3516 = vld [vmem:[%s3402 + $0xd8] sm:$0xff]
        %v3517 = vld [vmem:[%s3402 + $0xe0] sm:$0xff]
        %v3518 = vld [vmem:[%s3402 + $0xe8] sm:$0xff]
        %v3519 = vld [vmem:[%s3402 + $0xf0] sm:$0xff]
        %v3520 = vld [vmem:[%s3402 + $0xf8] sm:$0xff]
        %v3521 = vld [vmem:[%s3402 + $0x100] sm:$0xff]
        %v3522 = vld [vmem:[%s3402 + $0x108] sm:$0xff]
        %v3523 = vld [vmem:[%s3402 + $0x110] sm:$0xff]
        %v3524 = vld [vmem:[%s3402 + $0x118] sm:$0xff]
        %v3525 = vld [vmem:[%s3402 + $0x120] sm:$0xff]
        %v3526 = vld [vmem:[%s3402 + $0x128] sm:$0xff]
        %v3527 = vld [vmem:[%s3402 + $0x130] sm:$0xff]
        %v3528 = vld [vmem:[%s3402 + $0x138] sm:$0xff]
        %v3529 = vld [vmem:[%s3402 + $0x140] sm:$0xff]
        %v3530 = vld [vmem:[%s3402 + $0x148] sm:$0xff]
        %v3531 = vld [vmem:[%s3402 + $0x150] sm:$0xff]
        %v3532 = vld [vmem:[%s3402 + $0x158] sm:$0xff]
        %v3533 = vld [vmem:[%s3402 + $0x160] sm:$0xff]
        %v3534 = vld [vmem:[%s3402 + $0x168] sm:$0xff]
        %v3535 = vld [vmem:[%s3402 + $0x170] sm:$0xff]
        %v3536 = vld [vmem:[%s3402 + $0x178] sm:$0xff]
        %v3537 = vld [vmem:[%s3402 + $0x180] sm:$0xff]
        %v3538 = vld [vmem:[%s3402 + $0x188] sm:$0xff]
        %v3539 = vld [vmem:[%s3402 + $0x190] sm:$0xff]
        %v3540 = vld [vmem:[%s3402 + $0x198] sm:$0xff]
        %v3541 = vld [vmem:[%s3402 + $0x1a0] sm:$0xff]
        %v3542 = vld [vmem:[%s3402 + $0x1a8] sm:$0xff]
        %v3543 = vld [vmem:[%s3402 + $0x1b0] sm:$0xff]
        %v3544 = vld [vmem:[%s3402 + $0x1b8] sm:$0xff]
        %v3545 = vld [vmem:[%s3402 + $0x1c0] sm:$0xff]
        %v3546 = vld [vmem:[%s3402 + $0x1c8] sm:$0xff]
        %v3547 = vld [vmem:[%s3402 + $0x1d0] sm:$0xff]
        %v3548 = vld [vmem:[%s3402 + $0x1d8] sm:$0xff]
        %v3549 = vld [vmem:[%s3402 + $0x1e0] sm:$0xff]
        %v3550 = vld [vmem:[%s3402 + $0x1e8] sm:$0xff]
        %v3551 = vld [vmem:[%s3402 + $0x1f0] sm:$0xff]
        %v3552 = vld [vmem:[%s3402 + $0x1f8] sm:$0xff]
        %v3553 = vld [vmem:[%s3402 + $0x200] sm:$0xff]
        %v3554 = vld [vmem:[%s3402 + $0x208] sm:$0xff]
        %v3555 = vld [vmem:[%s3402 + $0x210] sm:$0xff]
        %v3556 = vld [vmem:[%s3402 + $0x218] sm:$0xff]
        %v3557 = vld [vmem:[%s3402 + $0x220] sm:$0xff]
        %v3558 = vld [vmem:[%s3402 + $0x228] sm:$0xff]
        %v3559 = vld [vmem:[%s3402 + $0x230] sm:$0xff]
        %v3560 = vld [vmem:[%s3402 + $0x238] sm:$0xff]
        %v3561 = vld [vmem:[%s3402 + $0x240] sm:$0xff]
        %v3562 = vld [vmem:[%s3402 + $0x248] sm:$0xff]
        %v3563 = vld [vmem:[%s3402 + $0x250] sm:$0xff]
        %v3564 = vld [vmem:[%s3402 + $0x258] sm:$0xff]
        %v3565 = vld [vmem:[%s3402 + $0x260] sm:$0xff]
        %v3566 = vld [vmem:[%s3402 + $0x268] sm:$0xff]
        %v3567 = vld [vmem:[%s3402 + $0x270] sm:$0xff]
        %v3568 = vld [vmem:[%s3402 + $0x278] sm:$0xff]
        %v3569 = vld [vmem:[%s3402 + $0x280] sm:$0xff]
        %v3570 = vld [vmem:[%s3402 + $0x288] sm:$0xff]
        %v3571 = vld [vmem:[%s3402 + $0x290] sm:$0xff]
        %v3572 = vld [vmem:[%s3402 + $0x298] sm:$0xff]
        %v3573 = vld [vmem:[%s3402 + $0x2a0] sm:$0xff]
        %v3574 = vld [vmem:[%s3402 + $0x2a8] sm:$0xff]
        %v3575 = vld [vmem:[%s3402 + $0x2b0] sm:$0xff]
        %v3576 = vld [vmem:[%s3402 + $0x2b8] sm:$0xff]
        %v3577 = vld [vmem:[%s3402 + $0x2c0] sm:$0xff]
        %v3578 = vld [vmem:[%s3402 + $0x2c8] sm:$0xff]
        %v3579 = vld [vmem:[%s3402 + $0x2d0] sm:$0xff]
        %v3580 = vld [vmem:[%s3402 + $0x2d8] sm:$0xff]
        %v3581 = vld [vmem:[%s3402 + $0x2e0] sm:$0xff]
        %v3582 = vld [vmem:[%s3402 + $0x2e8] sm:$0xff]
        %v3583 = vld [vmem:[%s3402 + $0x2f0] sm:$0xff]
        %v3584 = vld [vmem:[%s3402 + $0x2f8] sm:$0xff]
        %v3585 = vld [vmem:[%s3402 + $0x300] sm:$0xff]
        %v3586 = vld [vmem:[%s3402 + $0x308] sm:$0xff]
        %v3587 = vld [vmem:[%s3402 + $0x310] sm:$0xff]
        %v3588 = vld [vmem:[%s3402 + $0x318] sm:$0xff]
        %v3589 = vld [vmem:[%s3402 + $0x320] sm:$0xff]
        %v3590 = vld [vmem:[%s3402 + $0x328] sm:$0xff]
        %v3591 = vld [vmem:[%s3402 + $0x330] sm:$0xff]
        %v3592 = vld [vmem:[%s3402 + $0x338] sm:$0xff]
        %v3593 = vld [vmem:[%s3402 + $0x340] sm:$0xff]
        %v3594 = vld [vmem:[%s3402 + $0x348] sm:$0xff]
        %v3595 = vld [vmem:[%s3402 + $0x350] sm:$0xff]
        %v3596 = vld [vmem:[%s3402 + $0x358] sm:$0xff]
        %v3597 = vld [vmem:[%s3402 + $0x360] sm:$0xff]
        %v3598 = vld [vmem:[%s3402 + $0x368] sm:$0xff]
        %v3599 = vld [vmem:[%s3402 + $0x370] sm:$0xff]
        %v3600 = vld [vmem:[%s3402 + $0x378] sm:$0xff]
        %v3601 = vld [vmem:[%s3402 + $0x380] sm:$0xff]
        %v3602 = vld [vmem:[%s3402 + $0x388] sm:$0xff]
        %v3603 = vld [vmem:[%s3402 + $0x390] sm:$0xff]
        %v3604 = vld [vmem:[%s3402 + $0x398] sm:$0xff]
        %v3605 = vld [vmem:[%s3402 + $0x3a0] sm:$0xff]
        %v3606 = vld [vmem:[%s3402 + $0x3a8] sm:$0xff]
        %v3607 = vld [vmem:[%s3402 + $0x3b0] sm:$0xff]
        %v3608 = vld [vmem:[%s3402 + $0x3b8] sm:$0xff]
        %v3609 = vld [vmem:[%s3402 + $0x3c0] sm:$0xff]
        %v3610 = vld [vmem:[%s3402 + $0x3c8] sm:$0xff]
        %v3611 = vld [vmem:[%s3402 + $0x3d0] sm:$0xff]
        %v3612 = vld [vmem:[%s3402 + $0x3d8] sm:$0xff]
        %v3613 = vld [vmem:[%s3402 + $0x3e0] sm:$0xff]
        %v3614 = vld [vmem:[%s3402 + $0x3e8] sm:$0xff]
        %v3615 = vld [vmem:[%s3402 + $0x3f0] sm:$0xff]
        %v3616 = vld [vmem:[%s3402 + $0x3f8] sm:$0xff]
        %v3617 = vld [vmem:[%s3402 + $0x400] sm:$0xff]
        %v3618 = vld [vmem:[%s3402 + $0x408] sm:$0xff]
        %v3619 = vld [vmem:[%s3402 + $0x410] sm:$0xff]
        %v3620 = vld [vmem:[%s3402 + $0x418] sm:$0xff]
        %v3621 = vld [vmem:[%s3402 + $0x420] sm:$0xff]
        %v3622 = vld [vmem:[%s3402 + $0x428] sm:$0xff]
        %v3623 = vld [vmem:[%s3402 + $0x430] sm:$0xff]
        %v3624 = vld [vmem:[%s3402 + $0x438] sm:$0xff]
        %v3625 = vld [vmem:[%s3402 + $0x440] sm:$0xff]
        %v3626 = vld [vmem:[%s3402 + $0x448] sm:$0xff]
        %v3627 = vld [vmem:[%s3402 + $0x450] sm:$0xff]
        %v3628 = vld [vmem:[%s3402 + $0x458] sm:$0xff]
        %v3629 = vld [vmem:[%s3402 + $0x460] sm:$0xff]
        %v3630 = vld [vmem:[%s3402 + $0x468] sm:$0xff]
        %v3631 = vld [vmem:[%s3402 + $0x470] sm:$0xff]
        %v3632 = vld [vmem:[%s3402 + $0x478] sm:$0xff]
        %v3633 = vld [vmem:[%s3402 + $0x480] sm:$0xff]
        %v3634 = vld [vmem:[%s3402 + $0x488] sm:$0xff]
        %v3635 = vld [vmem:[%s3402 + $0x490] sm:$0xff]
        %v3636 = vld [vmem:[%s3402 + $0x498] sm:$0xff]
        %v3637 = vld [vmem:[%s3402 + $0x4a0] sm:$0xff]
        %v3638 = vld [vmem:[%s3402 + $0x4a8] sm:$0xff]
        %v3639 = vld [vmem:[%s3402 + $0x4b0] sm:$0xff]
        %v3640 = vld [vmem:[%s3402 + $0x4b8] sm:$0xff]
        %v3641 = vld [vmem:[%s3402 + $0x4c0] sm:$0xff]
        %v3642 = vld [vmem:[%s3402 + $0x4c8] sm:$0xff]
        %v3643 = vld [vmem:[%s3402 + $0x4d0] sm:$0xff]
        %v3644 = vld [vmem:[%s3402 + $0x4d8] sm:$0xff]
        %v3645 = vld [vmem:[%s3402 + $0x4e0] sm:$0xff]
        %v3646 = vld [vmem:[%s3402 + $0x4e8] sm:$0xff]
        %v3647 = vld [vmem:[%s3402 + $0x4f0] sm:$0xff]
        %v3648 = vld [vmem:[%s3402 + $0x4f8] sm:$0xff]
        %v3649 = vld [vmem:[%s3402 + $0x500] sm:$0xff]
        %v3650 = vld [vmem:[%s3402 + $0x508] sm:$0xff]
        %v3651 = vld [vmem:[%s3402 + $0x510] sm:$0xff]
        %v3652 = vld [vmem:[%s3402 + $0x518] sm:$0xff]
        %v3653 = vld [vmem:[%s3402 + $0x520] sm:$0xff]
        %v3654 = vld [vmem:[%s3402 + $0x528] sm:$0xff]
        %v3655 = vld [vmem:[%s3402 + $0x530] sm:$0xff]
        %v3656 = vld [vmem:[%s3402 + $0x538] sm:$0xff]
        %v3657 = vld [vmem:[%s3402 + $0x540] sm:$0xff]
        %v3658 = vld [vmem:[%s3402 + $0x548] sm:$0xff]
        %v3659 = vld [vmem:[%s3402 + $0x550] sm:$0xff]
        %v3660 = vld [vmem:[%s3402 + $0x558] sm:$0xff]
        %v3661 = vld [vmem:[%s3402 + $0x560] sm:$0xff]
        %v3662 = vld [vmem:[%s3402 + $0x568] sm:$0xff]
        %v3663 = vld [vmem:[%s3402 + $0x570] sm:$0xff]
        %v3664 = vld [vmem:[%s3402 + $0x578] sm:$0xff]
        %v3665 = vld [vmem:[%s3402 + $0x580] sm:$0xff]
        %v3666 = vld [vmem:[%s3402 + $0x588] sm:$0xff]
        %v3667 = vld [vmem:[%s3402 + $0x590] sm:$0xff]
        %v3668 = vld [vmem:[%s3402 + $0x598] sm:$0xff]
        %v3669 = vld [vmem:[%s3402 + $0x5a0] sm:$0xff]
        %v3670 = vld [vmem:[%s3402 + $0x5a8] sm:$0xff]
        %v3671 = vld [vmem:[%s3402 + $0x5b0] sm:$0xff]
        %v3672 = vld [vmem:[%s3402 + $0x5b8] sm:$0xff]
        %v3673 = vld [vmem:[%s3402 + $0x5c0] sm:$0xff]
        %v3674 = vld [vmem:[%s3402 + $0x5c8] sm:$0xff]
        %v3675 = vld [vmem:[%s3402 + $0x5d0] sm:$0xff]
        %v3676 = vld [vmem:[%s3402 + $0x5d8] sm:$0xff]
        %v3677 = vld [vmem:[%s3402 + $0x5e0] sm:$0xff]
        %v3678 = vld [vmem:[%s3402 + $0x5e8] sm:$0xff]
        %v3679 = vld [vmem:[%s3402 + $0x5f0] sm:$0xff]
        %v3680 = vld [vmem:[%s3402 + $0x5f8] sm:$0xff]
        %v3681 = vld [vmem:[%s3402 + $0x600] sm:$0xff]
        %v3682 = vld [vmem:[%s3402 + $0x608] sm:$0xff]
        %v3683 = vld [vmem:[%s3402 + $0x610] sm:$0xff]
        %v3684 = vld [vmem:[%s3402 + $0x618] sm:$0xff]
        %v3685 = vld [vmem:[%s3402 + $0x620] sm:$0xff]
        %v3686 = vld [vmem:[%s3402 + $0x628] sm:$0xff]
        %v3687 = vld [vmem:[%s3402 + $0x630] sm:$0xff]
        %v3688 = vld [vmem:[%s3402 + $0x638] sm:$0xff]
        %v3689 = vld [vmem:[%s3402 + $0x640] sm:$0xff]
        %v3690 = vld [vmem:[%s3402 + $0x648] sm:$0xff]
        %v3691 = vld [vmem:[%s3402 + $0x650] sm:$0xff]
        %v3692 = vld [vmem:[%s3402 + $0x658] sm:$0xff]
        %v3693 = vld [vmem:[%s3402 + $0x660] sm:$0xff]
        %v3694 = vld [vmem:[%s3402 + $0x668] sm:$0xff]
        %v3695 = vld [vmem:[%s3402 + $0x670] sm:$0xff]
        %v3696 = vld [vmem:[%s3402 + $0x678] sm:$0xff]
        %v3697 = vld [vmem:[%s3402 + $0x680] sm:$0xff]
        %v3698 = vld [vmem:[%s3402 + $0x688] sm:$0xff]
        %v3699 = vld [vmem:[%s3402 + $0x690] sm:$0xff]
        %v3700 = vld [vmem:[%s3402 + $0x698] sm:$0xff]
        %v3701 = vld [vmem:[%s3402 + $0x6a0] sm:$0xff]
        %v3702 = vld [vmem:[%s3402 + $0x6a8] sm:$0xff]
        %v3703 = vld [vmem:[%s3402 + $0x6b0] sm:$0xff]
        %v3704 = vld [vmem:[%s3402 + $0x6b8] sm:$0xff]
        %v3705 = vld [vmem:[%s3402 + $0x6c0] sm:$0xff]
        %v3706 = vld [vmem:[%s3402 + $0x6c8] sm:$0xff]
        %v3707 = vld [vmem:[%s3402 + $0x6d0] sm:$0xff]
        %v3708 = vld [vmem:[%s3402 + $0x6d8] sm:$0xff]
        %v3709 = vld [vmem:[%s3402 + $0x6e0] sm:$0xff]
        %v3710 = vld [vmem:[%s3402 + $0x6e8] sm:$0xff]
        %v3711 = vld [vmem:[%s3402 + $0x6f0] sm:$0xff]
        %v3712 = vld [vmem:[%s3402 + $0x6f8] sm:$0xff]
        %v3713 = vld [vmem:[%s3402 + $0x700] sm:$0xff]
        %v3714 = vld [vmem:[%s3402 + $0x708] sm:$0xff]
        %v3715 = vld [vmem:[%s3402 + $0x710] sm:$0xff]
        %v3716 = vld [vmem:[%s3402 + $0x718] sm:$0xff]
        %v3717 = vld [vmem:[%s3402 + $0x720] sm:$0xff]
        %v3718 = vld [vmem:[%s3402 + $0x728] sm:$0xff]
        %v3719 = vld [vmem:[%s3402 + $0x730] sm:$0xff]
        %v3720 = vld [vmem:[%s3402 + $0x738] sm:$0xff]
        %v3721 = vld [vmem:[%s3402 + $0x740] sm:$0xff]
        %v3722 = vld [vmem:[%s3402 + $0x748] sm:$0xff]
        %v3723 = vld [vmem:[%s3402 + $0x750] sm:$0xff]
        %v3724 = vld [vmem:[%s3402 + $0x758] sm:$0xff]
        %v3725 = vld [vmem:[%s3402 + $0x760] sm:$0xff]
        %v3726 = vld [vmem:[%s3402 + $0x768] sm:$0xff]
        %v3727 = vld [vmem:[%s3402 + $0x770] sm:$0xff]
        %v3728 = vld [vmem:[%s3402 + $0x778] sm:$0xff]
        %v3729 = vld [vmem:[%s3402 + $0x780] sm:$0xff]
        %v3730 = vld [vmem:[%s3402 + $0x788] sm:$0xff]
        %v3731 = vld [vmem:[%s3402 + $0x790] sm:$0xff]
        %v3732 = vld [vmem:[%s3402 + $0x798] sm:$0xff]
        %v3733 = vld [vmem:[%s3402 + $0x7a0] sm:$0xff]
        %v3734 = vld [vmem:[%s3402 + $0x7a8] sm:$0xff]
        %v3735 = vld [vmem:[%s3402 + $0x7b0] sm:$0xff]
        %v3736 = vld [vmem:[%s3402 + $0x7b8] sm:$0xff]
        %v3737 = vld [vmem:[%s3402 + $0x7c0] sm:$0xff]
        %v3738 = vld [vmem:[%s3402 + $0x7c8] sm:$0xff]
        %v3739 = vld [vmem:[%s3402 + $0x7d0] sm:$0xff]
        %v3740 = vld [vmem:[%s3402 + $0x7d8] sm:$0xff]
        %v3741 = vld [vmem:[%s3402 + $0x7e0] sm:$0xff]
        %v3742 = vld [vmem:[%s3402 + $0x7e8] sm:$0xff]
        %v3743 = vld [vmem:[%s3402 + $0x7f0] sm:$0xff]
        %v3744 = vld [vmem:[%s3402 + $0x7f8] sm:$0xff]
        %v3745 = vld [vmem:[%s3402 + $0x800] sm:$0xff]
        %v3746 = vld [vmem:[%s3402 + $0x808] sm:$0xff]
        %v3747 = vld [vmem:[%s3402 + $0x810] sm:$0xff]
        %v3748 = vld [vmem:[%s3402 + $0x818] sm:$0xff]
        %v3749 = vld [vmem:[%s3402 + $0x820] sm:$0xff]
        %v3750 = vld [vmem:[%s3402 + $0x828] sm:$0xff]
        %v3751 = vld [vmem:[%s3402 + $0x830] sm:$0xff]
        %v3752 = vld [vmem:[%s3402 + $0x838] sm:$0xff]
        %v3753 = vld [vmem:[%s3402 + $0x840] sm:$0xff]
        %v3754 = vld [vmem:[%s3402 + $0x848] sm:$0xff]
        %v3755 = vld [vmem:[%s3402 + $0x850] sm:$0xff]
        %v3756 = vld [vmem:[%s3402 + $0x858] sm:$0xff]
        %v3757 = vld [vmem:[%s3402 + $0x860] sm:$0xff]
        %v3758 = vld [vmem:[%s3402 + $0x868] sm:$0xff]
        %v3759 = vld [vmem:[%s3402 + $0x870] sm:$0xff]
        %v3760 = vld [vmem:[%s3402 + $0x878] sm:$0xff]
        %v3761 = vld [vmem:[%s3402 + $0x880] sm:$0xff]
        %v3762 = vld [vmem:[%s3402 + $0x888] sm:$0xff]
        %v3763 = vld [vmem:[%s3402 + $0x890] sm:$0xff]
        %v3764 = vld [vmem:[%s3402 + $0x898] sm:$0xff]
        %v3765 = vld [vmem:[%s3402 + $0x8a0] sm:$0xff]
        %v3766 = vld [vmem:[%s3402 + $0x8a8] sm:$0xff]
        %v3767 = vld [vmem:[%s3402 + $0x8b0] sm:$0xff]
        %v3768 = vld [vmem:[%s3402 + $0x8b8] sm:$0xff]
        %v3769 = vld [vmem:[%s3402 + $0x8c0] sm:$0xff]
        %v3770 = vld [vmem:[%s3402 + $0x8c8] sm:$0xff]
        %v3771 = vld [vmem:[%s3402 + $0x8d0] sm:$0xff]
        %v3772 = vld [vmem:[%s3402 + $0x8d8] sm:$0xff]
        %v3773 = vld [vmem:[%s3402 + $0x8e0] sm:$0xff]
        %v3774 = vld [vmem:[%s3402 + $0x8e8] sm:$0xff]
        %v3775 = vld [vmem:[%s3402 + $0x8f0] sm:$0xff]
        %v3776 = vld [vmem:[%s3402 + $0x8f8] sm:$0xff]
        %v3777 = vld [vmem:[%s3402 + $0x900] sm:$0xff]
        %v3778 = vld [vmem:[%s3402 + $0x908] sm:$0xff]
        %v3779 = vld [vmem:[%s3402 + $0x910] sm:$0xff]
        %v3780 = vld [vmem:[%s3402 + $0x918] sm:$0xff]
        %v3781 = vld [vmem:[%s3402 + $0x920] sm:$0xff]
        %v3782 = vld [vmem:[%s3402 + $0x928] sm:$0xff]
        %v3783 = vld [vmem:[%s3402 + $0x930] sm:$0xff]
        %v3784 = vld [vmem:[%s3402 + $0x938] sm:$0xff]
        %v3785 = vld [vmem:[%s3402 + $0x940] sm:$0xff]
        %v3786 = vld [vmem:[%s3402 + $0x948] sm:$0xff]
        %v3787 = vld [vmem:[%s3402 + $0x950] sm:$0xff]
        %v3788 = vld [vmem:[%s3402 + $0x958] sm:$0xff]
        %v3789 = vld [vmem:[%s3402 + $0x960] sm:$0xff]
        %v3790 = vld [vmem:[%s3402 + $0x968] sm:$0xff]
        %v3791 = vld [vmem:[%s3402 + $0x970] sm:$0xff]
        %v3792 = vld [vmem:[%s3402 + $0x978] sm:$0xff]
        %v3793 = vld [vmem:[%s3402 + $0x980] sm:$0xff]
        %v3794 = vld [vmem:[%s3402 + $0x988] sm:$0xff]
        %v3795 = vld [vmem:[%s3402 + $0x990] sm:$0xff]
        %v3796 = vld [vmem:[%s3402 + $0x998] sm:$0xff]
        %v3797 = vld [vmem:[%s3402 + $0x9a0] sm:$0xff]
        %v3798 = vld [vmem:[%s3402 + $0x9a8] sm:$0xff]
        %v3799 = vld [vmem:[%s3402 + $0x9b0] sm:$0xff]
        %v3800 = vld [vmem:[%s3402 + $0x9b8] sm:$0xff]
        %v3801 = vld [vmem:[%s3402 + $0x9c0] sm:$0xff]
        %v3802 = vld [vmem:[%s3402 + $0x9c8] sm:$0xff]
        %v3803 = vld [vmem:[%s3402 + $0x9d0] sm:$0xff]
        %v3804 = vld [vmem:[%s3402 + $0x9d8] sm:$0xff]
        %v3805 = vld [vmem:[%s3402 + $0x9e0] sm:$0xff]
        %v3806 = vld [vmem:[%s3402 + $0x9e8] sm:$0xff]
        %v3807 = vld [vmem:[%s3402 + $0x9f0] sm:$0xff]
        %v3808 = vld [vmem:[%s3402 + $0x9f8] sm:$0xff]
        %v3809 = vld [vmem:[%s3402 + $0xa00] sm:$0xff]
        %v3810 = vld [vmem:[%s3402 + $0xa08] sm:$0xff]
        %v3811 = vld [vmem:[%s3402 + $0xa10] sm:$0xff]
        %v3812 = vld [vmem:[%s3402 + $0xa18] sm:$0xff]
        %v3813 = vld [vmem:[%s3402 + $0xa20] sm:$0xff]
        %v3814 = vld [vmem:[%s3402 + $0xa28] sm:$0xff]
        %v3815 = vld [vmem:[%s3402 + $0xa30] sm:$0xff]
        %v3816 = vld [vmem:[%s3402 + $0xa38] sm:$0xff]
        %v3817 = vld [vmem:[%s3402 + $0xa40] sm:$0xff]
        %v3818 = vld [vmem:[%s3402 + $0xa48] sm:$0xff]
        %v3819 = vld [vmem:[%s3402 + $0xa50] sm:$0xff]
        %v3820 = vld [vmem:[%s3402 + $0xa58] sm:$0xff]
        %v3821 = vld [vmem:[%s3402 + $0xa60] sm:$0xff]
        %v3822 = vld [vmem:[%s3402 + $0xa68] sm:$0xff]
        %v3823 = vld [vmem:[%s3402 + $0xa70] sm:$0xff]
        %v3824 = vld [vmem:[%s3402 + $0xa78] sm:$0xff]
        %v3825 = vld [vmem:[%s3402 + $0xa80] sm:$0xff]
        %v3826 = vld [vmem:[%s3402 + $0xa88] sm:$0xff]
        %v3827 = vld [vmem:[%s3402 + $0xa90] sm:$0xff]
        %v3828 = vld [vmem:[%s3402 + $0xa98] sm:$0xff]
        %v3829 = vld [vmem:[%s3402 + $0xaa0] sm:$0xff]
        %v3830 = vld [vmem:[%s3402 + $0xaa8] sm:$0xff]
        %v3831 = vld [vmem:[%s3402 + $0xab0] sm:$0xff]
        %v3832 = vld [vmem:[%s3402 + $0xab8] sm:$0xff]
        %v3833 = vld [vmem:[%s3402 + $0xac0] sm:$0xff]
        %v3834 = vld [vmem:[%s3402 + $0xac8] sm:$0xff]
        %v3835 = vld [vmem:[%s3402 + $0xad0] sm:$0xff]
        %v3836 = vld [vmem:[%s3402 + $0xad8] sm:$0xff]
        %v3837 = vld [vmem:[%s3402 + $0xae0] sm:$0xff]
        %v3838 = vld [vmem:[%s3402 + $0xae8] sm:$0xff]
        %v3839 = vld [vmem:[%s3402 + $0xaf0] sm:$0xff]
        %v3840 = vld [vmem:[%s3402 + $0xaf8] sm:$0xff]
        %v3841 = vld [vmem:[%s3402 + $0xb00] sm:$0xff]
        %v3842 = vld [vmem:[%s3402 + $0xb08] sm:$0xff]
        %v3843 = vld [vmem:[%s3402 + $0xb10] sm:$0xff]
        %v3844 = vld [vmem:[%s3402 + $0xb18] sm:$0xff]
        %v3845 = vld [vmem:[%s3402 + $0xb20] sm:$0xff]
        %v3846 = vld [vmem:[%s3402 + $0xb28] sm:$0xff]
        %v3847 = vld [vmem:[%s3402 + $0xb30] sm:$0xff]
        %v3848 = vld [vmem:[%s3402 + $0xb38] sm:$0xff]
        %v3849 = vld [vmem:[%s3402 + $0xb40] sm:$0xff]
        %v3850 = vld [vmem:[%s3402 + $0xb48] sm:$0xff]
        %v3851 = vld [vmem:[%s3402 + $0xb50] sm:$0xff]
        %v3852 = vld [vmem:[%s3402 + $0xb58] sm:$0xff]
        %v3853 = vld [vmem:[%s3402 + $0xb60] sm:$0xff]
        %v3854 = vld [vmem:[%s3402 + $0xb68] sm:$0xff]
        %v3855 = vld [vmem:[%s3402 + $0xb70] sm:$0xff]
        %v3856 = vld [vmem:[%s3402 + $0xb78] sm:$0xff]
        %v3857 = vld [vmem:[%s3402 + $0xb80] sm:$0xff]
        %v3858 = vld [vmem:[%s3402 + $0xb88] sm:$0xff]
        %v3859 = vld [vmem:[%s3402 + $0xb90] sm:$0xff]
        %v3860 = vld [vmem:[%s3402 + $0xb98] sm:$0xff]
        %v3861 = vld [vmem:[%s3402 + $0xba0] sm:$0xff]
        %v3862 = vld [vmem:[%s3402 + $0xba8] sm:$0xff]
        %v3863 = vld [vmem:[%s3402 + $0xbb0] sm:$0xff]
        %v3864 = vld [vmem:[%s3402 + $0xbb8] sm:$0xff]
        %v3865 = vld [vmem:[%s3402 + $0xbc0] sm:$0xff]
        %v3866 = vld [vmem:[%s3402 + $0xbc8] sm:$0xff]
        %v3867 = vld [vmem:[%s3402 + $0xbd0] sm:$0xff]
        %v3868 = vld [vmem:[%s3402 + $0xbd8] sm:$0xff]
        %v3869 = vld [vmem:[%s3402 + $0xbe0] sm:$0xff]
        %v3870 = vld [vmem:[%s3402 + $0xbe8] sm:$0xff]
        %v3871 = vld [vmem:[%s3402 + $0xbf0] sm:$0xff]
        %v3872 = vld [vmem:[%s3402 + $0xbf8] sm:$0xff]
        %v3873 = vld [vmem:[%s3402 + $0xc00] sm:$0xff]
        %v3874 = vld [vmem:[%s3402 + $0xc08] sm:$0xff]
        %v3875 = vld [vmem:[%s3402 + $0xc10] sm:$0xff]
        %v3876 = vld [vmem:[%s3402 + $0xc18] sm:$0xff]
        %v3877 = vld [vmem:[%s3402 + $0xc20] sm:$0xff]
        %v3878 = vld [vmem:[%s3402 + $0xc28] sm:$0xff]
        %v3879 = vld [vmem:[%s3402 + $0xc30] sm:$0xff]
        %v3880 = vld [vmem:[%s3402 + $0xc38] sm:$0xff]
        %v3894 = vunpack.c.l.b16 %v3476
        %v3895 = vunpack.c.h.b16 %v3476
        %v3896 = vunpack.c.l.b16 %v3477
        %v3897 = vunpack.c.h.b16 %v3477
        %v3898 = vunpack.c.l.b16 %v3478
        %v3899 = vunpack.c.h.b16 %v3478
        %v3900 = vunpack.c.l.b16 %v3479
        %v3901 = vunpack.c.h.b16 %v3479
        %v3902 = vunpack.c.l.b16 %v3480
        %v3903 = vunpack.c.h.b16 %v3480
        %v3904 = vunpack.c.l.b16 %v3481
        %v3905 = vunpack.c.h.b16 %v3481
        %v3906 = vunpack.c.l.b16 %v3482
        %v3907 = vunpack.c.h.b16 %v3482
        %v3908 = vunpack.c.l.b16 %v3483
        %v3909 = vunpack.c.h.b16 %v3483
        %v3910 = vunpack.c.l.b16 %v3484
        %v3911 = vunpack.c.h.b16 %v3484
        %v3912 = vunpack.c.l.b16 %v3485
        %v3913 = vunpack.c.h.b16 %v3485
        %v3914 = vunpack.c.l.b16 %v3486
        %v3915 = vunpack.c.h.b16 %v3486
        %v3916 = vunpack.c.l.b16 %v3487
        %v3917 = vunpack.c.h.b16 %v3487
        %v3918 = vunpack.c.l.b16 %v3488
        %v3919 = vpack.c.b16 %v3894, %v3894
        %v3920 = vpack.c.b16 %v3895, %v3895
        %v3921 = vpack.c.b16 %v3896, %v3896
        %v3922 = vpack.c.b16 %v3897, %v3897
        %v3923 = vpack.c.b16 %v3898, %v3898
        %v3924 = vpack.c.b16 %v3899, %v3899
        %v3925 = vpack.c.b16 %v3900, %v3900
        %v3926 = vpack.c.b16 %v3901, %v3901
        %v3927 = vpack.c.b16 %v3902, %v3902
        %v3928 = vpack.c.b16 %v3903, %v3903
        %v3929 = vpack.c.b16 %v3904, %v3904
        %v3930 = vpack.c.b16 %v3905, %v3905
        %v3931 = vpack.c.b16 %v3906, %v3906
        %v3932 = vpack.c.b16 %v3907, %v3907
        %v3933 = vpack.c.b16 %v3908, %v3908
        %v3934 = vpack.c.b16 %v3909, %v3909
        %v3935 = vpack.c.b16 %v3910, %v3910
        %v3936 = vpack.c.b16 %v3911, %v3911
        %v3937 = vpack.c.b16 %v3912, %v3912
        %v3938 = vpack.c.b16 %v3913, %v3913
        %v3939 = vpack.c.b16 %v3914, %v3914
        %v3940 = vpack.c.b16 %v3915, %v3915
        %v3941 = vpack.c.b16 %v3916, %v3916
        %v3942 = vpack.c.b16 %v3917, %v3917
        %v3943 = vpack.c.b16 %v3918, %v3918
        %v4360 = vunpack.c.l.b16 %v3489
        %v4361 = vunpack.c.h.b16 %v3489
        %v4362 = vunpack.c.l.b16 %v3490
        %v4363 = vunpack.c.h.b16 %v3490
        %v4364 = vunpack.c.l.b16 %v3491
        %v4365 = vunpack.c.h.b16 %v3491
        %v4366 = vunpack.c.l.b16 %v3492
        %v4367 = vunpack.c.h.b16 %v3492
        %v4368 = vunpack.c.l.b16 %v3493
        %v4369 = vunpack.c.h.b16 %v3493
        %v4370 = vunpack.c.l.b16 %v3494
        %v4371 = vunpack.c.h.b16 %v3494
        %v4372 = vunpack.c.l.b16 %v3495
        %v4373 = vunpack.c.h.b16 %v3495
        %v4374 = vunpack.c.l.b16 %v3496
        %v4375 = vunpack.c.h.b16 %v3496
        %v4376 = vunpack.c.l.b16 %v3497
        %v4377 = vunpack.c.h.b16 %v3497
        %v4378 = vunpack.c.l.b16 %v3498
        %v4379 = vunpack.c.h.b16 %v3498
        %v4380 = vunpack.c.l.b16 %v3499
        %v4381 = vunpack.c.h.b16 %v3499
        %v4382 = vunpack.c.l.b16 %v3500
        %v4383 = vunpack.c.h.b16 %v3500
        %v4384 = vunpack.c.l.b16 %v3501
        %v4385 = vunpack.c.h.b16 %v3501
        %v4386 = vunpack.c.l.b16 %v3502
        %v4387 = vunpack.c.h.b16 %v3502
        %v4388 = vunpack.c.l.b16 %v3503
        %v4389 = vunpack.c.h.b16 %v3503
        %v4390 = vunpack.c.l.b16 %v3504
        %v4391 = vunpack.c.h.b16 %v3504
        %v4392 = vunpack.c.l.b16 %v3505
        %v4393 = vunpack.c.h.b16 %v3505
        %v4394 = vunpack.c.l.b16 %v3506
        %v4395 = vunpack.c.h.b16 %v3506
        %v4396 = vunpack.c.l.b16 %v3507
        %v4397 = vunpack.c.h.b16 %v3507
        %v4398 = vunpack.c.l.b16 %v3508
        %v4399 = vunpack.c.h.b16 %v3508
        %v4400 = vunpack.c.l.b16 %v3509
        %v4401 = vunpack.c.h.b16 %v3509
        %v4402 = vunpack.c.l.b16 %v3510
        %v4403 = vunpack.c.h.b16 %v3510
        %v4404 = vunpack.c.l.b16 %v3511
        %v4405 = vunpack.c.h.b16 %v3511
        %v4406 = vunpack.c.l.b16 %v3512
        %v4407 = vunpack.c.h.b16 %v3512
        %v4408 = vunpack.c.l.b16 %v3513
        %v4409 = vunpack.c.h.b16 %v3513
        %v4410 = vunpack.c.l.b16 %v3514
        %v4411 = vunpack.c.h.b16 %v3514
        %v4412 = vunpack.c.l.b16 %v3515
        %v4413 = vunpack.c.h.b16 %v3515
        %v4414 = vunpack.c.l.b16 %v3516
        %v4415 = vunpack.c.h.b16 %v3516
        %v4416 = vunpack.c.l.b16 %v3517
        %v4417 = vunpack.c.h.b16 %v3517
        %v4418 = vunpack.c.l.b16 %v3518
        %v4419 = vunpack.c.h.b16 %v3518
        %v4420 = vunpack.c.l.b16 %v3519
        %v4421 = vunpack.c.h.b16 %v3519
        %v4422 = vunpack.c.l.b16 %v3520
        %v4423 = vunpack.c.h.b16 %v3520
        %v4424 = vunpack.c.l.b16 %v3521
        %v4425 = vunpack.c.h.b16 %v3521
        %v4426 = vunpack.c.l.b16 %v3522
        %v4427 = vunpack.c.h.b16 %v3522
        %v4428 = vunpack.c.l.b16 %v3523
        %v4429 = vunpack.c.h.b16 %v3523
        %v4430 = vunpack.c.l.b16 %v3524
        %v4431 = vunpack.c.h.b16 %v3524
        %v4432 = vunpack.c.l.b16 %v3525
        %v4433 = vunpack.c.h.b16 %v3525
        %v4434 = vunpack.c.l.b16 %v3526
        %v4435 = vunpack.c.h.b16 %v3526
        %v4436 = vunpack.c.l.b16 %v3527
        %v4437 = vunpack.c.h.b16 %v3527
        %v4438 = vunpack.c.l.b16 %v3528
        %v4439 = vunpack.c.h.b16 %v3528
        %v4440 = vunpack.c.l.b16 %v3529
        %v4441 = vunpack.c.h.b16 %v3529
        %v4442 = vunpack.c.l.b16 %v3530
        %v4443 = vunpack.c.h.b16 %v3530
        %v4444 = vunpack.c.l.b16 %v3531
        %v4445 = vunpack.c.h.b16 %v3531
        %v4446 = vunpack.c.l.b16 %v3532
        %v4447 = vunpack.c.h.b16 %v3532
        %v4448 = vunpack.c.l.b16 %v3533
        %v4449 = vunpack.c.h.b16 %v3533
        %v4450 = vunpack.c.l.b16 %v3534
        %v4451 = vunpack.c.h.b16 %v3534
        %v4452 = vunpack.c.l.b16 %v3535
        %v4453 = vunpack.c.h.b16 %v3535
        %v4454 = vunpack.c.l.b16 %v3536
        %v4455 = vunpack.c.h.b16 %v3536
        %v4456 = vunpack.c.l.b16 %v3537
        %v4457 = vunpack.c.h.b16 %v3537
        %v4458 = vunpack.c.l.b16 %v3538
        %v4459 = vunpack.c.h.b16 %v3538
        %v4460 = vunpack.c.l.b16 %v3539
        %v4461 = vunpack.c.h.b16 %v3539
        %v4462 = vunpack.c.l.b16 %v3540
        %v4463 = vunpack.c.h.b16 %v3540
        %v4464 = vunpack.c.l.b16 %v3541
        %v4465 = vunpack.c.h.b16 %v3541
        %v4466 = vunpack.c.l.b16 %v3542
        %v4467 = vunpack.c.h.b16 %v3542
        %v4468 = vunpack.c.l.b16 %v3543
        %v4469 = vunpack.c.h.b16 %v3543
        %v4470 = vunpack.c.l.b16 %v3544
        %v4471 = vunpack.c.h.b16 %v3544
        %v4472 = vunpack.c.l.b16 %v3545
        %v4473 = vunpack.c.h.b16 %v3545
        %v4474 = vunpack.c.l.b16 %v3546
        %v4475 = vunpack.c.h.b16 %v3546
        %v4476 = vunpack.c.l.b16 %v3547
        %v4477 = vunpack.c.h.b16 %v3547
        %v4478 = vunpack.c.l.b16 %v3548
        %v4479 = vunpack.c.h.b16 %v3548
        %v4480 = vunpack.c.l.b16 %v3549
        %v4481 = vunpack.c.h.b16 %v3549
        %v4482 = vunpack.c.l.b16 %v3550
        %v4483 = vunpack.c.h.b16 %v3550
        %v4484 = vunpack.c.l.b16 %v3551
        %v4485 = vunpack.c.h.b16 %v3551
        %v4486 = vunpack.c.l.b16 %v3552
        %v4487 = vunpack.c.h.b16 %v3552
        %v4488 = vunpack.c.l.b16 %v3553
        %v4489 = vunpack.c.h.b16 %v3553
        %v4490 = vunpack.c.l.b16 %v3554
        %v4491 = vunpack.c.h.b16 %v3554
        %v4492 = vunpack.c.l.b16 %v3555
        %v4493 = vunpack.c.h.b16 %v3555
        %v4494 = vunpack.c.l.b16 %v3556
        %v4495 = vunpack.c.h.b16 %v3556
        %v4496 = vunpack.c.l.b16 %v3557
        %v4497 = vunpack.c.h.b16 %v3557
        %v4498 = vunpack.c.l.b16 %v3558
        %v4499 = vunpack.c.h.b16 %v3558
        %v4500 = vunpack.c.l.b16 %v3559
        %v4501 = vunpack.c.h.b16 %v3559
        %v4502 = vunpack.c.l.b16 %v3560
        %v4503 = vunpack.c.h.b16 %v3560
        %v4504 = vunpack.c.l.b16 %v3561
        %v4505 = vunpack.c.h.b16 %v3561
        %v4506 = vunpack.c.l.b16 %v3562
        %v4507 = vunpack.c.h.b16 %v3562
        %v4508 = vunpack.c.l.b16 %v3563
        %v4509 = vunpack.c.h.b16 %v3563
        %v4510 = vunpack.c.l.b16 %v3564
        %v4511 = vunpack.c.h.b16 %v3564
        %v4512 = vunpack.c.l.b16 %v3565
        %v4513 = vunpack.c.h.b16 %v3565
        %v4514 = vunpack.c.l.b16 %v3566
        %v4515 = vunpack.c.h.b16 %v3566
        %v4516 = vunpack.c.l.b16 %v3567
        %v4517 = vunpack.c.h.b16 %v3567
        %v4518 = vunpack.c.l.b16 %v3568
        %v4519 = vunpack.c.h.b16 %v3568
        %v4520 = vunpack.c.l.b16 %v3569
        %v4521 = vunpack.c.h.b16 %v3569
        %v4522 = vunpack.c.l.b16 %v3570
        %v4523 = vunpack.c.h.b16 %v3570
        %v4524 = vunpack.c.l.b16 %v3571
        %v4525 = vunpack.c.h.b16 %v3571
        %v4526 = vunpack.c.l.b16 %v3572
        %v4527 = vunpack.c.h.b16 %v3572
        %v4528 = vunpack.c.l.b16 %v3573
        %v4529 = vunpack.c.h.b16 %v3573
        %v4530 = vunpack.c.l.b16 %v3574
        %v4531 = vunpack.c.h.b16 %v3574
        %v4532 = vunpack.c.l.b16 %v3575
        %v4533 = vunpack.c.h.b16 %v3575
        %v4534 = vunpack.c.l.b16 %v3576
        %v4535 = vunpack.c.h.b16 %v3576
        %v4536 = vunpack.c.l.b16 %v3577
        %v4537 = vunpack.c.h.b16 %v3577
        %v4538 = vunpack.c.l.b16 %v3578
        %v4539 = vunpack.c.h.b16 %v3578
        %v4540 = vunpack.c.l.b16 %v3579
        %v4541 = vunpack.c.h.b16 %v3579
        %v4542 = vunpack.c.l.b16 %v3580
        %v4543 = vunpack.c.h.b16 %v3580
        %v4544 = vunpack.c.l.b16 %v3581
        %v4545 = vunpack.c.h.b16 %v3581
        %v4546 = vunpack.c.l.b16 %v3582
        %v4547 = vunpack.c.h.b16 %v3582
        %v4548 = vunpack.c.l.b16 %v3583
        %v4549 = vunpack.c.h.b16 %v3583
        %v4550 = vunpack.c.l.b16 %v3584
        %v4551 = vunpack.c.h.b16 %v3584
        %v4552 = vunpack.c.l.b16 %v3585
        %v4553 = vunpack.c.h.b16 %v3585
        %v4554 = vunpack.c.l.b16 %v3586
        %v4555 = vunpack.c.h.b16 %v3586
        %v4556 = vunpack.c.l.b16 %v3587
        %v4557 = vunpack.c.h.b16 %v3587
        %v4558 = vunpack.c.l.b16 %v3588
        %v4559 = vunpack.c.h.b16 %v3588
        %v4560 = vunpack.c.l.b16 %v3589
        %v4561 = vunpack.c.h.b16 %v3589
        %v4562 = vunpack.c.l.b16 %v3590
        %v4563 = vunpack.c.h.b16 %v3590
        %v4564 = vunpack.c.l.b16 %v3591
        %v4565 = vunpack.c.h.b16 %v3591
        %v4566 = vunpack.c.l.b16 %v3592
        %v4567 = vunpack.c.h.b16 %v3592
        %v4568 = vunpack.c.l.b16 %v3593
        %v4569 = vunpack.c.h.b16 %v3593
        %v4570 = vunpack.c.l.b16 %v3594
        %v4571 = vunpack.c.h.b16 %v3594
        %v4572 = vunpack.c.l.b16 %v3595
        %v4573 = vunpack.c.h.b16 %v3595
        %v4574 = vunpack.c.l.b16 %v3596
        %v4575 = vunpack.c.h.b16 %v3596
        %v4576 = vunpack.c.l.b16 %v3597
        %v4577 = vunpack.c.h.b16 %v3597
        %v4578 = vunpack.c.l.b16 %v3598
        %v4579 = vunpack.c.h.b16 %v3598
        %v4580 = vunpack.c.l.b16 %v3599
        %v4581 = vunpack.c.h.b16 %v3599
        %v4582 = vunpack.c.l.b16 %v3600
        %v4583 = vunpack.c.h.b16 %v3600
        %v4584 = vunpack.c.l.b16 %v3601
        %v4585 = vunpack.c.h.b16 %v3601
        %v4586 = vunpack.c.l.b16 %v3602
        %v4587 = vunpack.c.h.b16 %v3602
        %v4588 = vunpack.c.l.b16 %v3603
        %v4589 = vunpack.c.h.b16 %v3603
        %v4590 = vunpack.c.l.b16 %v3604
        %v4591 = vunpack.c.h.b16 %v3604
        %v4592 = vunpack.c.l.b16 %v3605
        %v4593 = vunpack.c.h.b16 %v3605
        %v4594 = vunpack.c.l.b16 %v3606
        %v4595 = vunpack.c.h.b16 %v3606
        %v4596 = vunpack.c.l.b16 %v3607
        %v4597 = vunpack.c.h.b16 %v3607
        %v4598 = vunpack.c.l.b16 %v3608
        %v4599 = vunpack.c.h.b16 %v3608
        %v4600 = vunpack.c.l.b16 %v3609
        %v4601 = vunpack.c.h.b16 %v3609
        %v4602 = vunpack.c.l.b16 %v3610
        %v4603 = vunpack.c.h.b16 %v3610
        %v4604 = vunpack.c.l.b16 %v3611
        %v4605 = vunpack.c.h.b16 %v3611
        %v4606 = vunpack.c.l.b16 %v3612
        %v4607 = vunpack.c.h.b16 %v3612
        %v4608 = vunpack.c.l.b16 %v3613
        %v4609 = vunpack.c.h.b16 %v3613
        %v4610 = vunpack.c.l.b16 %v3614
        %v4611 = vunpack.c.h.b16 %v3614
        %v4612 = vunpack.c.l.b16 %v3615
        %v4613 = vunpack.c.h.b16 %v3615
        %v4614 = vunpack.c.l.b16 %v3616
        %v4615 = vunpack.c.h.b16 %v3616
        %v4616 = vunpack.c.l.b16 %v3617
        %v4617 = vunpack.c.h.b16 %v3617
        %v4618 = vunpack.c.l.b16 %v3618
        %v4619 = vunpack.c.h.b16 %v3618
        %v4620 = vunpack.c.l.b16 %v3619
        %v4621 = vunpack.c.h.b16 %v3619
        %v4622 = vunpack.c.l.b16 %v3620
        %v4623 = vunpack.c.h.b16 %v3620
        %v4624 = vunpack.c.l.b16 %v3621
        %v4625 = vunpack.c.h.b16 %v3621
        %v4626 = vunpack.c.l.b16 %v3622
        %v4627 = vunpack.c.h.b16 %v3622
        %v4628 = vunpack.c.l.b16 %v3623
        %v4629 = vunpack.c.h.b16 %v3623
        %v4630 = vunpack.c.l.b16 %v3624
        %v4631 = vunpack.c.h.b16 %v3624
        %v4632 = vunpack.c.l.b16 %v3625
        %v4633 = vunpack.c.h.b16 %v3625
        %v4634 = vunpack.c.l.b16 %v3626
        %v4635 = vunpack.c.h.b16 %v3626
        %v4636 = vunpack.c.l.b16 %v3627
        %v4637 = vunpack.c.h.b16 %v3627
        %v4638 = vunpack.c.l.b16 %v3628
        %v4639 = vunpack.c.h.b16 %v3628
        %v4640 = vunpack.c.l.b16 %v3629
        %v4641 = vunpack.c.h.b16 %v3629
        %v4642 = vunpack.c.l.b16 %v3630
        %v4643 = vunpack.c.h.b16 %v3630
        %v4644 = vunpack.c.l.b16 %v3631
        %v4645 = vunpack.c.h.b16 %v3631
        %v4646 = vunpack.c.l.b16 %v3632
        %v4647 = vunpack.c.h.b16 %v3632
        %v4648 = vunpack.c.l.b16 %v3633
        %v4649 = vunpack.c.h.b16 %v3633
        %v4650 = vunpack.c.l.b16 %v3634
        %v4651 = vunpack.c.h.b16 %v3634
        %v4652 = vunpack.c.l.b16 %v3635
        %v4653 = vunpack.c.h.b16 %v3635
        %v4654 = vunpack.c.l.b16 %v3636
        %v4655 = vunpack.c.h.b16 %v3636
        %v4656 = vunpack.c.l.b16 %v3637
        %v4657 = vunpack.c.h.b16 %v3637
        %v4658 = vunpack.c.l.b16 %v3638
        %v4659 = vunpack.c.h.b16 %v3638
        %v4660 = vunpack.c.l.b16 %v3639
        %v4661 = vunpack.c.h.b16 %v3639
        %v4662 = vunpack.c.l.b16 %v3640
        %v4663 = vunpack.c.h.b16 %v3640
        %v4664 = vunpack.c.l.b16 %v3641
        %v4665 = vunpack.c.h.b16 %v3641
        %v4666 = vunpack.c.l.b16 %v3642
        %v4667 = vunpack.c.h.b16 %v3642
        %v4668 = vunpack.c.l.b16 %v3643
        %v4669 = vunpack.c.h.b16 %v3643
        %v4670 = vunpack.c.l.b16 %v3644
        %v4671 = vunpack.c.h.b16 %v3644
        %v4672 = vunpack.c.l.b16 %v3645
        %v4673 = vunpack.c.h.b16 %v3645
        %v4674 = vunpack.c.l.b16 %v3646
        %v4675 = vunpack.c.h.b16 %v3646
        %v4676 = vunpack.c.l.b16 %v3647
        %v4677 = vunpack.c.h.b16 %v3647
        %v4678 = vunpack.c.l.b16 %v3648
        %v4679 = vunpack.c.h.b16 %v3648
        %v4680 = vunpack.c.l.b16 %v3649
        %v4681 = vunpack.c.h.b16 %v3649
        %v4682 = vunpack.c.l.b16 %v3650
        %v4683 = vunpack.c.h.b16 %v3650
        %v4684 = vunpack.c.l.b16 %v3651
        %v4685 = vunpack.c.h.b16 %v3651
        %v4686 = vunpack.c.l.b16 %v3652
        %v4687 = vunpack.c.h.b16 %v3652
        %v4688 = vunpack.c.l.b16 %v3653
        %v4689 = vunpack.c.h.b16 %v3653
        %v4690 = vunpack.c.l.b16 %v3654
        %v4691 = vunpack.c.h.b16 %v3654
        %v4692 = vunpack.c.l.b16 %v3655
        %v4693 = vunpack.c.h.b16 %v3655
        %v4694 = vunpack.c.l.b16 %v3656
        %v4695 = vunpack.c.h.b16 %v3656
        %v4696 = vunpack.c.l.b16 %v3657
        %v4697 = vunpack.c.h.b16 %v3657
        %v4698 = vunpack.c.l.b16 %v3658
        %v4699 = vunpack.c.h.b16 %v3658
        %v4700 = vunpack.c.l.b16 %v3659
        %v4701 = vunpack.c.h.b16 %v3659
        %v4702 = vunpack.c.l.b16 %v3660
        %v4703 = vunpack.c.h.b16 %v3660
        %v4704 = vunpack.c.l.b16 %v3661
        %v4705 = vunpack.c.h.b16 %v3661
        %v4706 = vunpack.c.l.b16 %v3662
        %v4707 = vunpack.c.h.b16 %v3662
        %v4708 = vunpack.c.l.b16 %v3663
        %v4709 = vunpack.c.h.b16 %v3663
        %v4710 = vunpack.c.l.b16 %v3664
        %v4711 = vunpack.c.h.b16 %v3664
        %v4712 = vunpack.c.l.b16 %v3665
        %v4713 = vunpack.c.h.b16 %v3665
        %v4714 = vunpack.c.l.b16 %v3666
        %v4715 = vunpack.c.h.b16 %v3666
        %v4716 = vunpack.c.l.b16 %v3667
        %v4717 = vunpack.c.h.b16 %v3667
        %v4718 = vunpack.c.l.b16 %v3668
        %v4719 = vunpack.c.h.b16 %v3668
        %v4720 = vunpack.c.l.b16 %v3669
        %v4721 = vunpack.c.h.b16 %v3669
        %v4722 = vunpack.c.l.b16 %v3670
        %v4723 = vunpack.c.h.b16 %v3670
        %v4724 = vunpack.c.l.b16 %v3671
        %v4725 = vunpack.c.h.b16 %v3671
        %v4726 = vunpack.c.l.b16 %v3672
        %v4727 = vunpack.c.h.b16 %v3672
        %v4728 = vunpack.c.l.b16 %v3673
        %v4729 = vunpack.c.h.b16 %v3673
        %v4730 = vunpack.c.l.b16 %v3674
        %v4731 = vunpack.c.h.b16 %v3674
        %v4732 = vunpack.c.l.b16 %v3675
        %v4733 = vunpack.c.h.b16 %v3675
        %v4734 = vunpack.c.l.b16 %v3676
        %v4735 = vunpack.c.h.b16 %v3676
        %v4736 = vunpack.c.l.b16 %v3677
        %v4737 = vunpack.c.h.b16 %v3677
        %v4738 = vunpack.c.l.b16 %v3678
        %v4739 = vunpack.c.h.b16 %v3678
        %v4740 = vunpack.c.l.b16 %v3679
        %v4741 = vunpack.c.h.b16 %v3679
        %v4742 = vunpack.c.l.b16 %v3680
        %v4743 = vunpack.c.h.b16 %v3680
        %v4744 = vunpack.c.l.b16 %v3681
        %v4745 = vunpack.c.h.b16 %v3681
        %v4746 = vunpack.c.l.b16 %v3682
        %v4747 = vunpack.c.h.b16 %v3682
        %v4748 = vunpack.c.l.b16 %v3683
        %v4749 = vunpack.c.h.b16 %v3683
        %v4750 = vunpack.c.l.b16 %v3684
        %v4751 = vunpack.c.h.b16 %v3684
        %v4752 = vunpack.c.l.b16 %v3685
        %v4753 = vunpack.c.h.b16 %v3685
        %v4754 = vunpack.c.l.b16 %v3686
        %v4755 = vunpack.c.h.b16 %v3686
        %v4756 = vunpack.c.l.b16 %v3687
        %v4757 = vunpack.c.h.b16 %v3687
        %v4758 = vunpack.c.l.b16 %v3688
        %v4759 = vunpack.c.h.b16 %v3688
        %v4760 = vunpack.c.l.b16 %v3689
        %v4761 = vunpack.c.h.b16 %v3689
        %v4762 = vunpack.c.l.b16 %v3690
        %v4763 = vunpack.c.h.b16 %v3690
        %v4764 = vunpack.c.l.b16 %v3691
        %v4765 = vunpack.c.h.b16 %v3691
        %v4766 = vunpack.c.l.b16 %v3692
        %v4767 = vunpack.c.h.b16 %v3692
        %v4768 = vunpack.c.l.b16 %v3693
        %v4769 = vunpack.c.h.b16 %v3693
        %v4770 = vunpack.c.l.b16 %v3694
        %v4771 = vunpack.c.h.b16 %v3694
        %v4772 = vunpack.c.l.b16 %v3695
        %v4773 = vunpack.c.h.b16 %v3695
        %v4774 = vunpack.c.l.b16 %v3696
        %v4775 = vunpack.c.h.b16 %v3696
        %v4776 = vunpack.c.l.b16 %v3697
        %v4777 = vunpack.c.h.b16 %v3697
        %v4778 = vunpack.c.l.b16 %v3698
        %v4779 = vunpack.c.h.b16 %v3698
        %v4780 = vunpack.c.l.b16 %v3699
        %v4781 = vunpack.c.h.b16 %v3699
        %v4782 = vunpack.c.l.b16 %v3700
        %v4783 = vunpack.c.h.b16 %v3700
        %v4784 = vunpack.c.l.b16 %v3701
        %v4785 = vunpack.c.h.b16 %v3701
        %v4786 = vunpack.c.l.b16 %v3702
        %v4787 = vunpack.c.h.b16 %v3702
        %v4788 = vunpack.c.l.b16 %v3703
        %v4789 = vunpack.c.h.b16 %v3703
        %v4790 = vunpack.c.l.b16 %v3704
        %v4791 = vunpack.c.h.b16 %v3704
        %v4792 = vunpack.c.l.b16 %v3705
        %v4793 = vunpack.c.h.b16 %v3705
        %v4794 = vunpack.c.l.b16 %v3706
        %v4795 = vunpack.c.h.b16 %v3706
        %v4796 = vunpack.c.l.b16 %v3707
        %v4797 = vunpack.c.h.b16 %v3707
        %v4798 = vunpack.c.l.b16 %v3708
        %v4799 = vunpack.c.h.b16 %v3708
        %v4800 = vunpack.c.l.b16 %v3709
        %v4801 = vunpack.c.h.b16 %v3709
        %v4802 = vunpack.c.l.b16 %v3710
        %v4803 = vunpack.c.h.b16 %v3710
        %v4804 = vunpack.c.l.b16 %v3711
        %v4805 = vunpack.c.h.b16 %v3711
        %v4806 = vunpack.c.l.b16 %v3712
        %v4807 = vunpack.c.h.b16 %v3712
        %v4808 = vunpack.c.l.b16 %v3713
        %v4809 = vunpack.c.h.b16 %v3713
        %v4810 = vunpack.c.l.b16 %v3714
        %v4811 = vunpack.c.h.b16 %v3714
        %v4812 = vunpack.c.l.b16 %v3715
        %v4813 = vunpack.c.h.b16 %v3715
        %v4814 = vunpack.c.l.b16 %v3716
        %v4815 = vunpack.c.h.b16 %v3716
        %v4816 = vunpack.c.l.b16 %v3717
        %v4817 = vunpack.c.h.b16 %v3717
        %v4818 = vunpack.c.l.b16 %v3718
        %v4819 = vunpack.c.h.b16 %v3718
        %v4820 = vunpack.c.l.b16 %v3719
        %v4821 = vunpack.c.h.b16 %v3719
        %v4822 = vunpack.c.l.b16 %v3720
        %v4823 = vunpack.c.h.b16 %v3720
        %v4824 = vunpack.c.l.b16 %v3721
        %v4825 = vunpack.c.h.b16 %v3721
        %v4826 = vunpack.c.l.b16 %v3722
        %v4827 = vunpack.c.h.b16 %v3722
        %v4828 = vunpack.c.l.b16 %v3723
        %v4829 = vunpack.c.h.b16 %v3723
        %v4830 = vunpack.c.l.b16 %v3724
        %v4831 = vunpack.c.h.b16 %v3724
        %v4832 = vunpack.c.l.b16 %v3725
        %v4833 = vunpack.c.h.b16 %v3725
        %v4834 = vunpack.c.l.b16 %v3726
        %v4835 = vunpack.c.h.b16 %v3726
        %v4836 = vunpack.c.l.b16 %v3727
        %v4837 = vunpack.c.h.b16 %v3727
        %v4838 = vunpack.c.l.b16 %v3728
        %v4839 = vunpack.c.h.b16 %v3728
        %v4840 = vunpack.c.l.b16 %v3729
        %v4841 = vunpack.c.h.b16 %v3729
        %v4842 = vunpack.c.l.b16 %v3730
        %v4843 = vunpack.c.h.b16 %v3730
        %v4844 = vunpack.c.l.b16 %v3731
        %v4845 = vunpack.c.h.b16 %v3731
        %v4846 = vunpack.c.l.b16 %v3732
        %v4847 = vunpack.c.h.b16 %v3732
        %v4848 = vunpack.c.l.b16 %v3733
        %v4849 = vunpack.c.h.b16 %v3733
        %v4850 = vunpack.c.l.b16 %v3734
        %v4851 = vunpack.c.h.b16 %v3734
        %v4852 = vunpack.c.l.b16 %v3735
        %v4853 = vunpack.c.h.b16 %v3735
        %v4854 = vunpack.c.l.b16 %v3736
        %v4855 = vunpack.c.h.b16 %v3736
        %v4856 = vunpack.c.l.b16 %v3737
        %v4857 = vunpack.c.h.b16 %v3737
        %v4858 = vunpack.c.l.b16 %v3738
        %v4859 = vunpack.c.h.b16 %v3738
        %v4860 = vunpack.c.l.b16 %v3739
        %v4861 = vunpack.c.h.b16 %v3739
        %v4862 = vunpack.c.l.b16 %v3740
        %v4863 = vunpack.c.h.b16 %v3740
        %v4864 = vunpack.c.l.b16 %v3741
        %v4865 = vunpack.c.h.b16 %v3741
        %v4866 = vunpack.c.l.b16 %v3742
        %v4867 = vunpack.c.h.b16 %v3742
        %v4868 = vunpack.c.l.b16 %v3743
        %v4869 = vunpack.c.h.b16 %v3743
        %v4870 = vunpack.c.l.b16 %v3744
        %v4871 = vunpack.c.h.b16 %v3744
        %v4872 = vunpack.c.l.b16 %v3745
        %v4873 = vunpack.c.h.b16 %v3745
        %v4874 = vunpack.c.l.b16 %v3746
        %v4875 = vunpack.c.h.b16 %v3746
        %v4876 = vunpack.c.l.b16 %v3747
        %v4877 = vunpack.c.h.b16 %v3747
        %v4878 = vunpack.c.l.b16 %v3748
        %v4879 = vunpack.c.h.b16 %v3748
        %v4880 = vunpack.c.l.b16 %v3749
        %v4881 = vunpack.c.h.b16 %v3749
        %v4882 = vunpack.c.l.b16 %v3750
        %v4883 = vunpack.c.h.b16 %v3750
        %v4884 = vunpack.c.l.b16 %v3751
        %v4885 = vunpack.c.h.b16 %v3751
        %v4886 = vunpack.c.l.b16 %v3752
        %v4887 = vunpack.c.h.b16 %v3752
        %v4888 = vunpack.c.l.b16 %v3753
        %v4889 = vunpack.c.h.b16 %v3753
        %v4890 = vunpack.c.l.b16 %v3754
        %v4891 = vunpack.c.h.b16 %v3754
        %v4892 = vunpack.c.l.b16 %v3755
        %v4893 = vunpack.c.h.b16 %v3755
        %v4894 = vunpack.c.l.b16 %v3756
        %v4895 = vunpack.c.h.b16 %v3756
        %v4896 = vunpack.c.l.b16 %v3757
        %v4897 = vunpack.c.h.b16 %v3757
        %v4898 = vunpack.c.l.b16 %v3758
        %v4899 = vunpack.c.h.b16 %v3758
        %v4900 = vunpack.c.l.b16 %v3759
        %v4901 = vunpack.c.h.b16 %v3759
        %v4902 = vunpack.c.l.b16 %v3760
        %v4903 = vunpack.c.h.b16 %v3760
        %v4904 = vunpack.c.l.b16 %v3761
        %v4905 = vunpack.c.h.b16 %v3761
        %v4906 = vunpack.c.l.b16 %v3762
        %v4907 = vunpack.c.h.b16 %v3762
        %v4908 = vunpack.c.l.b16 %v3763
        %v4909 = vunpack.c.h.b16 %v3763
        %v4910 = vunpack.c.l.b16 %v3764
        %v4911 = vunpack.c.h.b16 %v3764
        %v4912 = vunpack.c.l.b16 %v3765
        %v4913 = vunpack.c.h.b16 %v3765
        %v4914 = vunpack.c.l.b16 %v3766
        %v4915 = vunpack.c.h.b16 %v3766
        %v4916 = vunpack.c.l.b16 %v3767
        %v4917 = vunpack.c.h.b16 %v3767
        %v4918 = vunpack.c.l.b16 %v3768
        %v4919 = vunpack.c.h.b16 %v3768
        %v4920 = vunpack.c.l.b16 %v3769
        %v4921 = vunpack.c.h.b16 %v3769
        %v4922 = vunpack.c.l.b16 %v3770
        %v4923 = vunpack.c.h.b16 %v3770
        %v4924 = vunpack.c.l.b16 %v3771
        %v4925 = vunpack.c.h.b16 %v3771
        %v4926 = vunpack.c.l.b16 %v3772
        %v4927 = vunpack.c.h.b16 %v3772
        %v4928 = vunpack.c.l.b16 %v3773
        %v4929 = vunpack.c.h.b16 %v3773
        %v4930 = vunpack.c.l.b16 %v3774
        %v4931 = vunpack.c.h.b16 %v3774
        %v4932 = vunpack.c.l.b16 %v3775
        %v4933 = vunpack.c.h.b16 %v3775
        %v4934 = vunpack.c.l.b16 %v3776
        %v4935 = vunpack.c.h.b16 %v3776
        %v4936 = vunpack.c.l.b16 %v3777
        %v4937 = vunpack.c.h.b16 %v3777
        %v4938 = vunpack.c.l.b16 %v3778
        %v4939 = vunpack.c.h.b16 %v3778
        %v4940 = vunpack.c.l.b16 %v3779
        %v4941 = vunpack.c.h.b16 %v3779
        %v4942 = vunpack.c.l.b16 %v3780
        %v4943 = vunpack.c.h.b16 %v3780
        %v4944 = vunpack.c.l.b16 %v3781
        %v4945 = vunpack.c.h.b16 %v3781
        %v4946 = vunpack.c.l.b16 %v3782
        %v4947 = vunpack.c.h.b16 %v3782
        %v4948 = vunpack.c.l.b16 %v3783
        %v4949 = vunpack.c.h.b16 %v3783
        %v4950 = vunpack.c.l.b16 %v3784
        %v4951 = vunpack.c.h.b16 %v3784
        %v4952 = vunpack.c.l.b16 %v3785
        %v4953 = vunpack.c.h.b16 %v3785
        %v4954 = vunpack.c.l.b16 %v3786
        %v4955 = vunpack.c.h.b16 %v3786
        %v4956 = vunpack.c.l.b16 %v3787
        %v4957 = vunpack.c.h.b16 %v3787
        %v4958 = vunpack.c.l.b16 %v3788
        %v4959 = vunpack.c.h.b16 %v3788
        %v4960 = vunpack.c.l.b16 %v3789
        %v4961 = vunpack.c.h.b16 %v3789
        %v4962 = vunpack.c.l.b16 %v3790
        %v4963 = vunpack.c.h.b16 %v3790
        %v4964 = vunpack.c.l.b16 %v3791
        %v4965 = vunpack.c.h.b16 %v3791
        %v4966 = vunpack.c.l.b16 %v3792
        %v4967 = vunpack.c.h.b16 %v3792
        %v4968 = vunpack.c.l.b16 %v3793
        %v4969 = vunpack.c.h.b16 %v3793
        %v4970 = vunpack.c.l.b16 %v3794
        %v4971 = vunpack.c.h.b16 %v3794
        %v4972 = vunpack.c.l.b16 %v3795
        %v4973 = vunpack.c.h.b16 %v3795
        %v4974 = vunpack.c.l.b16 %v3796
        %v4975 = vunpack.c.h.b16 %v3796
        %v4976 = vunpack.c.l.b16 %v3797
        %v4977 = vunpack.c.h.b16 %v3797
        %v4978 = vunpack.c.l.b16 %v3798
        %v4979 = vunpack.c.h.b16 %v3798
        %v4980 = vunpack.c.l.b16 %v3799
        %v4981 = vunpack.c.h.b16 %v3799
        %v4982 = vunpack.c.l.b16 %v3800
        %v4983 = vunpack.c.h.b16 %v3800
        %v4984 = vunpack.c.l.b16 %v3801
        %v4985 = vunpack.c.h.b16 %v3801
        %v4986 = vunpack.c.l.b16 %v3802
        %v4987 = vunpack.c.h.b16 %v3802
        %v4988 = vunpack.c.l.b16 %v3803
        %v4989 = vunpack.c.h.b16 %v3803
        %v4990 = vunpack.c.l.b16 %v3804
        %v4991 = vunpack.c.h.b16 %v3804
        %v4992 = vunpack.c.l.b16 %v3805
        %v4993 = vunpack.c.h.b16 %v3805
        %v4994 = vunpack.c.l.b16 %v3806
        %v4995 = vunpack.c.h.b16 %v3806
        %v4996 = vunpack.c.l.b16 %v3807
        %v4997 = vunpack.c.h.b16 %v3807
        %v4998 = vunpack.c.l.b16 %v3808
        %v4999 = vunpack.c.h.b16 %v3808
        %v5000 = vunpack.c.l.b16 %v3809
        %v5001 = vunpack.c.h.b16 %v3809
        %v5002 = vunpack.c.l.b16 %v3810
        %v5003 = vunpack.c.h.b16 %v3810
        %v5004 = vunpack.c.l.b16 %v3811
        %v5005 = vunpack.c.h.b16 %v3811
        %v5006 = vunpack.c.l.b16 %v3812
        %v5007 = vunpack.c.h.b16 %v3812
        %v5008 = vunpack.c.l.b16 %v3813
        %v5009 = vunpack.c.h.b16 %v3813
        %v5010 = vunpack.c.l.b16 %v3814
        %v5011 = vunpack.c.h.b16 %v3814
        %v5012 = vunpack.c.l.b16 %v3815
        %v5013 = vunpack.c.h.b16 %v3815
        %v5014 = vunpack.c.l.b16 %v3816
        %v5015 = vunpack.c.h.b16 %v3816
        %v5016 = vunpack.c.l.b16 %v3817
        %v5017 = vunpack.c.h.b16 %v3817
        %v5018 = vunpack.c.l.b16 %v3818
        %v5019 = vunpack.c.h.b16 %v3818
        %v5020 = vunpack.c.l.b16 %v3819
        %v5021 = vunpack.c.h.b16 %v3819
        %v5022 = vunpack.c.l.b16 %v3820
        %v5023 = vunpack.c.h.b16 %v3820
        %v5024 = vunpack.c.l.b16 %v3821
        %v5025 = vunpack.c.h.b16 %v3821
        %v5026 = vunpack.c.l.b16 %v3822
        %v5027 = vunpack.c.h.b16 %v3822
        %v5028 = vunpack.c.l.b16 %v3823
        %v5029 = vunpack.c.h.b16 %v3823
        %v5030 = vunpack.c.l.b16 %v3824
        %v5031 = vunpack.c.h.b16 %v3824
        %v5032 = vunpack.c.l.b16 %v3825
        %v5033 = vunpack.c.h.b16 %v3825
        %v5034 = vunpack.c.l.b16 %v3826
        %v5035 = vunpack.c.h.b16 %v3826
        %v5036 = vunpack.c.l.b16 %v3827
        %v5037 = vunpack.c.h.b16 %v3827
        %v5038 = vunpack.c.l.b16 %v3828
        %v5039 = vunpack.c.h.b16 %v3828
        %v5040 = vunpack.c.l.b16 %v3829
        %v5041 = vunpack.c.h.b16 %v3829
        %v5042 = vunpack.c.l.b16 %v3830
        %v5043 = vunpack.c.h.b16 %v3830
        %v5044 = vunpack.c.l.b16 %v3831
        %v5045 = vunpack.c.h.b16 %v3831
        %v5046 = vunpack.c.l.b16 %v3832
        %v5047 = vunpack.c.h.b16 %v3832
        %v5048 = vunpack.c.l.b16 %v3833
        %v5049 = vunpack.c.h.b16 %v3833
        %v5050 = vunpack.c.l.b16 %v3834
        %v5051 = vunpack.c.h.b16 %v3834
        %v5052 = vunpack.c.l.b16 %v3835
        %v5053 = vunpack.c.h.b16 %v3835
        %v5054 = vunpack.c.l.b16 %v3836
        %v5055 = vunpack.c.h.b16 %v3836
        %v5056 = vunpack.c.l.b16 %v3837
        %v5057 = vunpack.c.h.b16 %v3837
        %v5058 = vunpack.c.l.b16 %v3838
        %v5059 = vunpack.c.h.b16 %v3838
        %v5060 = vunpack.c.l.b16 %v3839
        %v5061 = vunpack.c.h.b16 %v3839
        %v5062 = vunpack.c.l.b16 %v3840
        %v5063 = vunpack.c.h.b16 %v3840
        %v5064 = vunpack.c.l.b16 %v3841
        %v5065 = vunpack.c.h.b16 %v3841
        %v5066 = vunpack.c.l.b16 %v3842
        %v5067 = vunpack.c.h.b16 %v3842
        %v5068 = vunpack.c.l.b16 %v3843
        %v5069 = vunpack.c.h.b16 %v3843
        %v5070 = vunpack.c.l.b16 %v3844
        %v5071 = vunpack.c.h.b16 %v3844
        %v5072 = vunpack.c.l.b16 %v3845
        %v5073 = vunpack.c.h.b16 %v3845
        %v5074 = vunpack.c.l.b16 %v3846
        %v5075 = vunpack.c.h.b16 %v3846
        %v5076 = vunpack.c.l.b16 %v3847
        %v5077 = vunpack.c.h.b16 %v3847
        %v5078 = vunpack.c.l.b16 %v3848
        %v5079 = vunpack.c.h.b16 %v3848
        %v5080 = vunpack.c.l.b16 %v3849
        %v5081 = vunpack.c.h.b16 %v3849
        %v5082 = vunpack.c.l.b16 %v3850
        %v5083 = vunpack.c.h.b16 %v3850
        %v5084 = vunpack.c.l.b16 %v3851
        %v5085 = vunpack.c.h.b16 %v3851
        %v5086 = vunpack.c.l.b16 %v3852
        %v5087 = vunpack.c.h.b16 %v3852
        %v5088 = vunpack.c.l.b16 %v3853
        %v5089 = vunpack.c.h.b16 %v3853
        %v5090 = vunpack.c.l.b16 %v3854
        %v5091 = vunpack.c.h.b16 %v3854
        %v5092 = vunpack.c.l.b16 %v3855
        %v5093 = vunpack.c.h.b16 %v3855
        %v5094 = vunpack.c.l.b16 %v3856
        %v5095 = vunpack.c.h.b16 %v3856
        %v5096 = vunpack.c.l.b16 %v3857
        %v5097 = vunpack.c.h.b16 %v3857
        %v5098 = vunpack.c.l.b16 %v3858
        %v5099 = vunpack.c.h.b16 %v3858
        %v5100 = vunpack.c.l.b16 %v3859
        %v5101 = vunpack.c.h.b16 %v3859
        %v5102 = vunpack.c.l.b16 %v3860
        %v5103 = vunpack.c.h.b16 %v3860
        %v5104 = vunpack.c.l.b16 %v3861
        %v5105 = vunpack.c.h.b16 %v3861
        %v5106 = vunpack.c.l.b16 %v3862
        %v5107 = vunpack.c.h.b16 %v3862
        %v5108 = vunpack.c.l.b16 %v3863
        %v5109 = vunpack.c.h.b16 %v3863
        %v5110 = vunpack.c.l.b16 %v3864
        %v5111 = vunpack.c.h.b16 %v3864
        %v5112 = vunpack.c.l.b16 %v3865
        %v5113 = vunpack.c.h.b16 %v3865
        %v5114 = vunpack.c.l.b16 %v3866
        %v5115 = vunpack.c.h.b16 %v3866
        %v5116 = vunpack.c.l.b16 %v3867
        %v5117 = vunpack.c.h.b16 %v3867
        %v5118 = vunpack.c.l.b16 %v3868
        %v5119 = vunpack.c.h.b16 %v3868
        %v5120 = vunpack.c.l.b16 %v3869
        %v5121 = vunpack.c.h.b16 %v3869
        %v5122 = vunpack.c.l.b16 %v3870
        %v5123 = vunpack.c.h.b16 %v3870
        %v5124 = vunpack.c.l.b16 %v3871
        %v5125 = vunpack.c.h.b16 %v3871
        %v5126 = vunpack.c.l.b16 %v3872
        %v5127 = vunpack.c.h.b16 %v3872
        %v5128 = vunpack.c.l.b16 %v3873
        %v5129 = vunpack.c.h.b16 %v3873
        %v5130 = vunpack.c.l.b16 %v3874
        %v5131 = vunpack.c.h.b16 %v3874
        %v5132 = vunpack.c.l.b16 %v3875
        %v5133 = vunpack.c.h.b16 %v3875
        %v5134 = vunpack.c.l.b16 %v3876
        %v5135 = vunpack.c.h.b16 %v3876
        %v5136 = vunpack.c.l.b16 %v3877
        %v5137 = vunpack.c.h.b16 %v3877
        %v5138 = vunpack.c.l.b16 %v3878
        %v5139 = vunpack.c.h.b16 %v3878
        %v5140 = vunpack.c.l.b16 %v3879
        %v5141 = vunpack.c.h.b16 %v3879
        %v5142 = vunpack.c.l.b16 %v3880
        %v5143 = vunpack.c.h.b16 %v3880
        %v5144 = vpack.c.b16 %v4362, %v4360
        %v5145 = vpack.c.b16 %v4363, %v4361
        %v5146 = vpack.c.b16 %v4366, %v4364
        %v5147 = vpack.c.b16 %v4367, %v4365
        %v5148 = vpack.c.b16 %v4370, %v4368
        %v5149 = vpack.c.b16 %v4371, %v4369
        %v5150 = vpack.c.b16 %v4374, %v4372
        %v5151 = vpack.c.b16 %v4375, %v4373
        %v5152 = vpack.c.b16 %v4378, %v4376
        %v5153 = vpack.c.b16 %v4379, %v4377
        %v5154 = vpack.c.b16 %v4382, %v4380
        %v5155 = vpack.c.b16 %v4383, %v4381
        %v5156 = vpack.c.b16 %v4386, %v4384
        %v5157 = vpack.c.b16 %v4387, %v4385
        %v5158 = vpack.c.b16 %v4390, %v4388
        %v5159 = vpack.c.b16 %v4391, %v4389
        %v5160 = vpack.c.b16 %v4394, %v4392
        %v5161 = vpack.c.b16 %v4395, %v4393
        %v5162 = vpack.c.b16 %v4398, %v4396
        %v5163 = vpack.c.b16 %v4399, %v4397
        %v5164 = vpack.c.b16 %v4402, %v4400
        %v5165 = vpack.c.b16 %v4403, %v4401
        %v5166 = vpack.c.b16 %v4406, %v4404
        %v5167 = vpack.c.b16 %v4407, %v4405
        %v5168 = vpack.c.b16 %v4410, %v4408
        %v5169 = vpack.c.b16 %v4411, %v4409
        %v5170 = vpack.c.b16 %v4414, %v4412
        %v5171 = vpack.c.b16 %v4415, %v4413
        %v5172 = vpack.c.b16 %v4418, %v4416
        %v5173 = vpack.c.b16 %v4419, %v4417
        %v5174 = vpack.c.b16 %v4422, %v4420
        %v5175 = vpack.c.b16 %v4423, %v4421
        %v5176 = vpack.c.b16 %v4426, %v4424
        %v5177 = vpack.c.b16 %v4427, %v4425
        %v5178 = vpack.c.b16 %v4430, %v4428
        %v5179 = vpack.c.b16 %v4431, %v4429
        %v5180 = vpack.c.b16 %v4434, %v4432
        %v5181 = vpack.c.b16 %v4435, %v4433
        %v5182 = vpack.c.b16 %v4438, %v4436
        %v5183 = vpack.c.b16 %v4439, %v4437
        %v5184 = vpack.c.b16 %v4442, %v4440
        %v5185 = vpack.c.b16 %v4443, %v4441
        %v5186 = vpack.c.b16 %v4446, %v4444
        %v5187 = vpack.c.b16 %v4447, %v4445
        %v5188 = vpack.c.b16 %v4450, %v4448
        %v5189 = vpack.c.b16 %v4451, %v4449
        %v5190 = vpack.c.b16 %v4454, %v4452
        %v5191 = vpack.c.b16 %v4455, %v4453
        %v5192 = vpack.c.b16 %v4458, %v4456
        %v5193 = vpack.c.b16 %v4459, %v4457
        %v5194 = vpack.c.b16 %v4462, %v4460
        %v5195 = vpack.c.b16 %v4463, %v4461
        %v5196 = vpack.c.b16 %v4466, %v4464
        %v5197 = vpack.c.b16 %v4467, %v4465
        %v5198 = vpack.c.b16 %v4470, %v4468
        %v5199 = vpack.c.b16 %v4471, %v4469
        %v5200 = vpack.c.b16 %v4474, %v4472
        %v5201 = vpack.c.b16 %v4475, %v4473
        %v5202 = vpack.c.b16 %v4478, %v4476
        %v5203 = vpack.c.b16 %v4479, %v4477
        %v5204 = vpack.c.b16 %v4482, %v4480
        %v5205 = vpack.c.b16 %v4483, %v4481
        %v5206 = vpack.c.b16 %v4486, %v4484
        %v5207 = vpack.c.b16 %v4487, %v4485
        %v5208 = vpack.c.b16 %v4490, %v4488
        %v5209 = vpack.c.b16 %v4491, %v4489
        %v5210 = vpack.c.b16 %v4494, %v4492
        %v5211 = vpack.c.b16 %v4495, %v4493
        %v5212 = vpack.c.b16 %v4498, %v4496
        %v5213 = vpack.c.b16 %v4499, %v4497
        %v5214 = vpack.c.b16 %v4502, %v4500
        %v5215 = vpack.c.b16 %v4503, %v4501
        %v5216 = vpack.c.b16 %v4506, %v4504
        %v5217 = vpack.c.b16 %v4507, %v4505
        %v5218 = vpack.c.b16 %v4510, %v4508
        %v5219 = vpack.c.b16 %v4511, %v4509
        %v5220 = vpack.c.b16 %v4514, %v4512
        %v5221 = vpack.c.b16 %v4515, %v4513
        %v5222 = vpack.c.b16 %v4518, %v4516
        %v5223 = vpack.c.b16 %v4519, %v4517
        %v5224 = vpack.c.b16 %v4522, %v4520
        %v5225 = vpack.c.b16 %v4523, %v4521
        %v5226 = vpack.c.b16 %v4526, %v4524
        %v5227 = vpack.c.b16 %v4527, %v4525
        %v5228 = vpack.c.b16 %v4530, %v4528
        %v5229 = vpack.c.b16 %v4531, %v4529
        %v5230 = vpack.c.b16 %v4534, %v4532
        %v5231 = vpack.c.b16 %v4535, %v4533
        %v5232 = vpack.c.b16 %v4538, %v4536
        %v5233 = vpack.c.b16 %v4539, %v4537
        %v5234 = vpack.c.b16 %v4542, %v4540
        %v5235 = vpack.c.b16 %v4543, %v4541
        %v5236 = vpack.c.b16 %v4546, %v4544
        %v5237 = vpack.c.b16 %v4547, %v4545
        %v5238 = vpack.c.b16 %v4550, %v4548
        %v5239 = vpack.c.b16 %v4551, %v4549
        %v5240 = vpack.c.b16 %v4554, %v4552
        %v5241 = vpack.c.b16 %v4555, %v4553
        %v5242 = vpack.c.b16 %v4558, %v4556
        %v5243 = vpack.c.b16 %v4559, %v4557
        %v5244 = vpack.c.b16 %v4562, %v4560
        %v5245 = vpack.c.b16 %v4563, %v4561
        %v5246 = vpack.c.b16 %v4566, %v4564
        %v5247 = vpack.c.b16 %v4567, %v4565
        %v5248 = vpack.c.b16 %v4570, %v4568
        %v5249 = vpack.c.b16 %v4571, %v4569
        %v5250 = vpack.c.b16 %v4574, %v4572
        %v5251 = vpack.c.b16 %v4575, %v4573
        %v5252 = vpack.c.b16 %v4578, %v4576
        %v5253 = vpack.c.b16 %v4579, %v4577
        %v5254 = vpack.c.b16 %v4582, %v4580
        %v5255 = vpack.c.b16 %v4583, %v4581
        %v5256 = vpack.c.b16 %v4586, %v4584
        %v5257 = vpack.c.b16 %v4587, %v4585
        %v5258 = vpack.c.b16 %v4590, %v4588
        %v5259 = vpack.c.b16 %v4591, %v4589
        %v5260 = vpack.c.b16 %v4594, %v4592
        %v5261 = vpack.c.b16 %v4595, %v4593
        %v5262 = vpack.c.b16 %v4598, %v4596
        %v5263 = vpack.c.b16 %v4599, %v4597
        %v5264 = vpack.c.b16 %v4602, %v4600
        %v5265 = vpack.c.b16 %v4603, %v4601
        %v5266 = vpack.c.b16 %v4606, %v4604
        %v5267 = vpack.c.b16 %v4607, %v4605
        %v5268 = vpack.c.b16 %v4610, %v4608
        %v5269 = vpack.c.b16 %v4611, %v4609
        %v5270 = vpack.c.b16 %v4614, %v4612
        %v5271 = vpack.c.b16 %v4615, %v4613
        %v5272 = vpack.c.b16 %v4618, %v4616
        %v5273 = vpack.c.b16 %v4619, %v4617
        %v5274 = vpack.c.b16 %v4622, %v4620
        %v5275 = vpack.c.b16 %v4623, %v4621
        %v5276 = vpack.c.b16 %v4626, %v4624
        %v5277 = vpack.c.b16 %v4627, %v4625
        %v5278 = vpack.c.b16 %v4630, %v4628
        %v5279 = vpack.c.b16 %v4631, %v4629
        %v5280 = vpack.c.b16 %v4634, %v4632
        %v5281 = vpack.c.b16 %v4635, %v4633
        %v5282 = vpack.c.b16 %v4638, %v4636
        %v5283 = vpack.c.b16 %v4639, %v4637
        %v5284 = vpack.c.b16 %v4642, %v4640
        %v5285 = vpack.c.b16 %v4643, %v4641
        %v5286 = vpack.c.b16 %v4646, %v4644
        %v5287 = vpack.c.b16 %v4647, %v4645
        %v5288 = vpack.c.b16 %v4650, %v4648
        %v5289 = vpack.c.b16 %v4651, %v4649
        %v5290 = vpack.c.b16 %v4654, %v4652
        %v5291 = vpack.c.b16 %v4655, %v4653
        %v5292 = vpack.c.b16 %v4658, %v4656
        %v5293 = vpack.c.b16 %v4659, %v4657
        %v5294 = vpack.c.b16 %v4662, %v4660
        %v5295 = vpack.c.b16 %v4663, %v4661
        %v5296 = vpack.c.b16 %v4666, %v4664
        %v5297 = vpack.c.b16 %v4667, %v4665
        %v5298 = vpack.c.b16 %v4670, %v4668
        %v5299 = vpack.c.b16 %v4671, %v4669
        %v5300 = vpack.c.b16 %v4674, %v4672
        %v5301 = vpack.c.b16 %v4675, %v4673
        %v5302 = vpack.c.b16 %v4678, %v4676
        %v5303 = vpack.c.b16 %v4679, %v4677
        %v5304 = vpack.c.b16 %v4682, %v4680
        %v5305 = vpack.c.b16 %v4683, %v4681
        %v5306 = vpack.c.b16 %v4686, %v4684
        %v5307 = vpack.c.b16 %v4687, %v4685
        %v5308 = vpack.c.b16 %v4690, %v4688
        %v5309 = vpack.c.b16 %v4691, %v4689
        %v5310 = vpack.c.b16 %v4694, %v4692
        %v5311 = vpack.c.b16 %v4695, %v4693
        %v5312 = vpack.c.b16 %v4698, %v4696
        %v5313 = vpack.c.b16 %v4699, %v4697
        %v5314 = vpack.c.b16 %v4702, %v4700
        %v5315 = vpack.c.b16 %v4703, %v4701
        %v5316 = vpack.c.b16 %v4706, %v4704
        %v5317 = vpack.c.b16 %v4707, %v4705
        %v5318 = vpack.c.b16 %v4710, %v4708
        %v5319 = vpack.c.b16 %v4711, %v4709
        %v5320 = vpack.c.b16 %v4714, %v4712
        %v5321 = vpack.c.b16 %v4715, %v4713
        %v5322 = vpack.c.b16 %v4718, %v4716
        %v5323 = vpack.c.b16 %v4719, %v4717
        %v5324 = vpack.c.b16 %v4722, %v4720
        %v5325 = vpack.c.b16 %v4723, %v4721
        %v5326 = vpack.c.b16 %v4726, %v4724
        %v5327 = vpack.c.b16 %v4727, %v4725
        %v5328 = vpack.c.b16 %v4730, %v4728
        %v5329 = vpack.c.b16 %v4731, %v4729
        %v5330 = vpack.c.b16 %v4734, %v4732
        %v5331 = vpack.c.b16 %v4735, %v4733
        %v5332 = vpack.c.b16 %v4738, %v4736
        %v5333 = vpack.c.b16 %v4739, %v4737
        %v5334 = vpack.c.b16 %v4742, %v4740
        %v5335 = vpack.c.b16 %v4743, %v4741
        %v5336 = vpack.c.b16 %v4746, %v4744
        %v5337 = vpack.c.b16 %v4747, %v4745
        %v5338 = vpack.c.b16 %v4750, %v4748
        %v5339 = vpack.c.b16 %v4751, %v4749
        %v5340 = vpack.c.b16 %v4754, %v4752
        %v5341 = vpack.c.b16 %v4755, %v4753
        %v5342 = vpack.c.b16 %v4758, %v4756
        %v5343 = vpack.c.b16 %v4759, %v4757
        %v5344 = vpack.c.b16 %v4762, %v4760
        %v5345 = vpack.c.b16 %v4763, %v4761
        %v5346 = vpack.c.b16 %v4766, %v4764
        %v5347 = vpack.c.b16 %v4767, %v4765
        %v5348 = vpack.c.b16 %v4770, %v4768
        %v5349 = vpack.c.b16 %v4771, %v4769
        %v5350 = vpack.c.b16 %v4774, %v4772
        %v5351 = vpack.c.b16 %v4775, %v4773
        %v5352 = vpack.c.b16 %v4778, %v4776
        %v5353 = vpack.c.b16 %v4779, %v4777
        %v5354 = vpack.c.b16 %v4782, %v4780
        %v5355 = vpack.c.b16 %v4783, %v4781
        %v5356 = vpack.c.b16 %v4786, %v4784
        %v5357 = vpack.c.b16 %v4787, %v4785
        %v5358 = vpack.c.b16 %v4790, %v4788
        %v5359 = vpack.c.b16 %v4791, %v4789
        %v5360 = vpack.c.b16 %v4794, %v4792
        %v5361 = vpack.c.b16 %v4795, %v4793
        %v5362 = vpack.c.b16 %v4798, %v4796
        %v5363 = vpack.c.b16 %v4799, %v4797
        %v5364 = vpack.c.b16 %v4802, %v4800
        %v5365 = vpack.c.b16 %v4803, %v4801
        %v5366 = vpack.c.b16 %v4806, %v4804
        %v5367 = vpack.c.b16 %v4807, %v4805
        %v5368 = vpack.c.b16 %v4810, %v4808
        %v5369 = vpack.c.b16 %v4811, %v4809
        %v5370 = vpack.c.b16 %v4814, %v4812
        %v5371 = vpack.c.b16 %v4815, %v4813
        %v5372 = vpack.c.b16 %v4818, %v4816
        %v5373 = vpack.c.b16 %v4819, %v4817
        %v5374 = vpack.c.b16 %v4822, %v4820
        %v5375 = vpack.c.b16 %v4823, %v4821
        %v5376 = vpack.c.b16 %v4826, %v4824
        %v5377 = vpack.c.b16 %v4827, %v4825
        %v5378 = vpack.c.b16 %v4830, %v4828
        %v5379 = vpack.c.b16 %v4831, %v4829
        %v5380 = vpack.c.b16 %v4834, %v4832
        %v5381 = vpack.c.b16 %v4835, %v4833
        %v5382 = vpack.c.b16 %v4838, %v4836
        %v5383 = vpack.c.b16 %v4839, %v4837
        %v5384 = vpack.c.b16 %v4842, %v4840
        %v5385 = vpack.c.b16 %v4843, %v4841
        %v5386 = vpack.c.b16 %v4846, %v4844
        %v5387 = vpack.c.b16 %v4847, %v4845
        %v5388 = vpack.c.b16 %v4850, %v4848
        %v5389 = vpack.c.b16 %v4851, %v4849
        %v5390 = vpack.c.b16 %v4854, %v4852
        %v5391 = vpack.c.b16 %v4855, %v4853
        %v5392 = vpack.c.b16 %v4858, %v4856
        %v5393 = vpack.c.b16 %v4859, %v4857
        %v5394 = vpack.c.b16 %v4862, %v4860
        %v5395 = vpack.c.b16 %v4863, %v4861
        %v5396 = vpack.c.b16 %v4866, %v4864
        %v5397 = vpack.c.b16 %v4867, %v4865
        %v5398 = vpack.c.b16 %v4870, %v4868
        %v5399 = vpack.c.b16 %v4871, %v4869
        %v5400 = vpack.c.b16 %v4874, %v4872
        %v5401 = vpack.c.b16 %v4875, %v4873
        %v5402 = vpack.c.b16 %v4878, %v4876
        %v5403 = vpack.c.b16 %v4879, %v4877
        %v5404 = vpack.c.b16 %v4882, %v4880
        %v5405 = vpack.c.b16 %v4883, %v4881
        %v5406 = vpack.c.b16 %v4886, %v4884
        %v5407 = vpack.c.b16 %v4887, %v4885
        %v5408 = vpack.c.b16 %v4890, %v4888
        %v5409 = vpack.c.b16 %v4891, %v4889
        %v5410 = vpack.c.b16 %v4894, %v4892
        %v5411 = vpack.c.b16 %v4895, %v4893
        %v5412 = vpack.c.b16 %v4898, %v4896
        %v5413 = vpack.c.b16 %v4899, %v4897
        %v5414 = vpack.c.b16 %v4902, %v4900
        %v5415 = vpack.c.b16 %v4903, %v4901
        %v5416 = vpack.c.b16 %v4906, %v4904
        %v5417 = vpack.c.b16 %v4907, %v4905
        %v5418 = vpack.c.b16 %v4910, %v4908
        %v5419 = vpack.c.b16 %v4911, %v4909
        %v5420 = vpack.c.b16 %v4914, %v4912
        %v5421 = vpack.c.b16 %v4915, %v4913
        %v5422 = vpack.c.b16 %v4918, %v4916
        %v5423 = vpack.c.b16 %v4919, %v4917
        %v5424 = vpack.c.b16 %v4922, %v4920
        %v5425 = vpack.c.b16 %v4923, %v4921
        %v5426 = vpack.c.b16 %v4926, %v4924
        %v5427 = vpack.c.b16 %v4927, %v4925
        %v5428 = vpack.c.b16 %v4930, %v4928
        %v5429 = vpack.c.b16 %v4931, %v4929
        %v5430 = vpack.c.b16 %v4934, %v4932
        %v5431 = vpack.c.b16 %v4935, %v4933
        %v5432 = vpack.c.b16 %v4938, %v4936
        %v5433 = vpack.c.b16 %v4939, %v4937
        %v5434 = vpack.c.b16 %v4942, %v4940
        %v5435 = vpack.c.b16 %v4943, %v4941
        %v5436 = vpack.c.b16 %v4946, %v4944
        %v5437 = vpack.c.b16 %v4947, %v4945
        %v5438 = vpack.c.b16 %v4950, %v4948
        %v5439 = vpack.c.b16 %v4951, %v4949
        %v5440 = vpack.c.b16 %v4954, %v4952
        %v5441 = vpack.c.b16 %v4955, %v4953
        %v5442 = vpack.c.b16 %v4958, %v4956
        %v5443 = vpack.c.b16 %v4959, %v4957
        %v5444 = vpack.c.b16 %v4962, %v4960
        %v5445 = vpack.c.b16 %v4963, %v4961
        %v5446 = vpack.c.b16 %v4966, %v4964
        %v5447 = vpack.c.b16 %v4967, %v4965
        %v5448 = vpack.c.b16 %v4970, %v4968
        %v5449 = vpack.c.b16 %v4971, %v4969
        %v5450 = vpack.c.b16 %v4974, %v4972
        %v5451 = vpack.c.b16 %v4975, %v4973
        %v5452 = vpack.c.b16 %v4978, %v4976
        %v5453 = vpack.c.b16 %v4979, %v4977
        %v5454 = vpack.c.b16 %v4982, %v4980
        %v5455 = vpack.c.b16 %v4983, %v4981
        %v5456 = vpack.c.b16 %v4986, %v4984
        %v5457 = vpack.c.b16 %v4987, %v4985
        %v5458 = vpack.c.b16 %v4990, %v4988
        %v5459 = vpack.c.b16 %v4991, %v4989
        %v5460 = vpack.c.b16 %v4994, %v4992
        %v5461 = vpack.c.b16 %v4995, %v4993
        %v5462 = vpack.c.b16 %v4998, %v4996
        %v5463 = vpack.c.b16 %v4999, %v4997
        %v5464 = vpack.c.b16 %v5002, %v5000
        %v5465 = vpack.c.b16 %v5003, %v5001
        %v5466 = vpack.c.b16 %v5006, %v5004
        %v5467 = vpack.c.b16 %v5007, %v5005
        %v5468 = vpack.c.b16 %v5010, %v5008
        %v5469 = vpack.c.b16 %v5011, %v5009
        %v5470 = vpack.c.b16 %v5014, %v5012
        %v5471 = vpack.c.b16 %v5015, %v5013
        %v5472 = vpack.c.b16 %v5018, %v5016
        %v5473 = vpack.c.b16 %v5019, %v5017
        %v5474 = vpack.c.b16 %v5022, %v5020
        %v5475 = vpack.c.b16 %v5023, %v5021
        %v5476 = vpack.c.b16 %v5026, %v5024
        %v5477 = vpack.c.b16 %v5027, %v5025
        %v5478 = vpack.c.b16 %v5030, %v5028
        %v5479 = vpack.c.b16 %v5031, %v5029
        %v5480 = vpack.c.b16 %v5034, %v5032
        %v5481 = vpack.c.b16 %v5035, %v5033
        %v5482 = vpack.c.b16 %v5038, %v5036
        %v5483 = vpack.c.b16 %v5039, %v5037
        %v5484 = vpack.c.b16 %v5042, %v5040
        %v5485 = vpack.c.b16 %v5043, %v5041
        %v5486 = vpack.c.b16 %v5046, %v5044
        %v5487 = vpack.c.b16 %v5047, %v5045
        %v5488 = vpack.c.b16 %v5050, %v5048
        %v5489 = vpack.c.b16 %v5051, %v5049
        %v5490 = vpack.c.b16 %v5054, %v5052
        %v5491 = vpack.c.b16 %v5055, %v5053
        %v5492 = vpack.c.b16 %v5058, %v5056
        %v5493 = vpack.c.b16 %v5059, %v5057
        %v5494 = vpack.c.b16 %v5062, %v5060
        %v5495 = vpack.c.b16 %v5063, %v5061
        %v5496 = vpack.c.b16 %v5066, %v5064
        %v5497 = vpack.c.b16 %v5067, %v5065
        %v5498 = vpack.c.b16 %v5070, %v5068
        %v5499 = vpack.c.b16 %v5071, %v5069
        %v5500 = vpack.c.b16 %v5074, %v5072
        %v5501 = vpack.c.b16 %v5075, %v5073
        %v5502 = vpack.c.b16 %v5078, %v5076
        %v5503 = vpack.c.b16 %v5079, %v5077
        %v5504 = vpack.c.b16 %v5082, %v5080
        %v5505 = vpack.c.b16 %v5083, %v5081
        %v5506 = vpack.c.b16 %v5086, %v5084
        %v5507 = vpack.c.b16 %v5087, %v5085
        %v5508 = vpack.c.b16 %v5090, %v5088
        %v5509 = vpack.c.b16 %v5091, %v5089
        %v5510 = vpack.c.b16 %v5094, %v5092
        %v5511 = vpack.c.b16 %v5095, %v5093
        %v5512 = vpack.c.b16 %v5098, %v5096
        %v5513 = vpack.c.b16 %v5099, %v5097
        %v5514 = vpack.c.b16 %v5102, %v5100
        %v5515 = vpack.c.b16 %v5103, %v5101
        %v5516 = vpack.c.b16 %v5106, %v5104
        %v5517 = vpack.c.b16 %v5107, %v5105
        %v5518 = vpack.c.b16 %v5110, %v5108
        %v5519 = vpack.c.b16 %v5111, %v5109
        %v5520 = vpack.c.b16 %v5114, %v5112
        %v5521 = vpack.c.b16 %v5115, %v5113
        %v5522 = vpack.c.b16 %v5118, %v5116
        %v5523 = vpack.c.b16 %v5119, %v5117
        %v5524 = vpack.c.b16 %v5122, %v5120
        %v5525 = vpack.c.b16 %v5123, %v5121
        %v5526 = vpack.c.b16 %v5126, %v5124
        %v5527 = vpack.c.b16 %v5127, %v5125
        %v5528 = vpack.c.b16 %v5130, %v5128
        %v5529 = vpack.c.b16 %v5131, %v5129
        %v5530 = vpack.c.b16 %v5134, %v5132
        %v5531 = vpack.c.b16 %v5135, %v5133
        %v5532 = vpack.c.b16 %v5138, %v5136
        %v5533 = vpack.c.b16 %v5139, %v5137
        %v5534 = vpack.c.b16 %v5142, %v5140
        %v5535 = vpack.c.b16 %v5143, %v5141
        %vm5928 = vcmask 523264
        %v5930 = vsel %vm5928, %v3943, 0
        %5932 = vmatpush.bf16.msra.mxu0 %v5158
        %5933 = vmatpush.bf16.msra.mxu0 %v5156
        %5934 = vmatpush.bf16.msra.mxu0 %v5154
        %5935 = vmatpush.bf16.msra.mxu0 %v5152
        %5936 = vmatpush.bf16.msra.mxu0 %v5150
        %5937 = vmatpush.bf16.msra.mxu0 %v5148
        %5938 = vmatpush.bf16.msra.mxu0 %v5146
        %5939 = vmatpush.bf16.msra.mxu0 %v5144
        %5940 = vmatmul.bf16.gmra.mxu0 %v3919
        %v5941 = vpop.f32.mrf.mxu0
        %v5942 = vadd.f32 0.0, %v5941
        %v5943 = vpop.f32.mrf.mxu0
        %5944 = vdwg.mxu0
        %5945 = vmatpush.bf16.msra.mxu0 %v5174
        %5946 = vmatpush.bf16.msra.mxu0 %v5172
        %5947 = vmatpush.bf16.msra.mxu0 %v5170
        %5948 = vmatpush.bf16.msra.mxu0 %v5168
        %5949 = vmatpush.bf16.msra.mxu0 %v5166
        %5950 = vmatpush.bf16.msra.mxu0 %v5164
        %5951 = vmatpush.bf16.msra.mxu0 %v5162
        %5952 = vmatpush.bf16.msra.mxu0 %v5160
        %5953 = vmatmul.bf16.gmra.mxu0 %v3920
        %v5954 = vpop.f32.mrf.mxu0
        %v5955 = vadd.f32 %v5942, %v5954
        %v5956 = vpop.f32.mrf.mxu0
        %5957 = vdwg.mxu0
        %5958 = vmatpush.bf16.msra.mxu0 %v5190
        %5959 = vmatpush.bf16.msra.mxu0 %v5188
        %5960 = vmatpush.bf16.msra.mxu0 %v5186
        %5961 = vmatpush.bf16.msra.mxu0 %v5184
        %5962 = vmatpush.bf16.msra.mxu0 %v5182
        %5963 = vmatpush.bf16.msra.mxu0 %v5180
        %5964 = vmatpush.bf16.msra.mxu0 %v5178
        %5965 = vmatpush.bf16.msra.mxu0 %v5176
        %5966 = vmatmul.bf16.gmra.mxu0 %v3921
        %v5967 = vpop.f32.mrf.mxu0
        %v5968 = vadd.f32 %v5955, %v5967
        %v5969 = vpop.f32.mrf.mxu0
        %5970 = vdwg.mxu0
        %5971 = vmatpush.bf16.msra.mxu0 %v5206
        %5972 = vmatpush.bf16.msra.mxu0 %v5204
        %5973 = vmatpush.bf16.msra.mxu0 %v5202
        %5974 = vmatpush.bf16.msra.mxu0 %v5200
        %5975 = vmatpush.bf16.msra.mxu0 %v5198
        %5976 = vmatpush.bf16.msra.mxu0 %v5196
        %5977 = vmatpush.bf16.msra.mxu0 %v5194
        %5978 = vmatpush.bf16.msra.mxu0 %v5192
        %5979 = vmatmul.bf16.gmra.mxu0 %v3922
        %v5980 = vpop.f32.mrf.mxu0
        %v5981 = vadd.f32 %v5968, %v5980
        %v5982 = vpop.f32.mrf.mxu0
        %5983 = vdwg.mxu0
        %5984 = vmatpush.bf16.msra.mxu0 %v5222
        %5985 = vmatpush.bf16.msra.mxu0 %v5220
        %5986 = vmatpush.bf16.msra.mxu0 %v5218
        %5987 = vmatpush.bf16.msra.mxu0 %v5216
        %5988 = vmatpush.bf16.msra.mxu0 %v5214
        %5989 = vmatpush.bf16.msra.mxu0 %v5212
        %5990 = vmatpush.bf16.msra.mxu0 %v5210
        %5991 = vmatpush.bf16.msra.mxu0 %v5208
        %5992 = vmatmul.bf16.gmra.mxu0 %v3923
        %v5993 = vpop.f32.mrf.mxu0
        %v5994 = vadd.f32 %v5981, %v5993
        %v5995 = vpop.f32.mrf.mxu0
        %5996 = vdwg.mxu0
        %5997 = vmatpush.bf16.msra.mxu0 %v5238
        %5998 = vmatpush.bf16.msra.mxu0 %v5236
        %5999 = vmatpush.bf16.msra.mxu0 %v5234
        %6000 = vmatpush.bf16.msra.mxu0 %v5232
        %6001 = vmatpush.bf16.msra.mxu0 %v5230
        %6002 = vmatpush.bf16.msra.mxu0 %v5228
        %6003 = vmatpush.bf16.msra.mxu0 %v5226
        %6004 = vmatpush.bf16.msra.mxu0 %v5224
        %6005 = vmatmul.bf16.gmra.mxu0 %v3924
        %v6006 = vpop.f32.mrf.mxu0
        %v6007 = vadd.f32 %v5994, %v6006
        %v6008 = vpop.f32.mrf.mxu0
        %6009 = vdwg.mxu0
        %6010 = vmatpush.bf16.msra.mxu0 %v5254
        %6011 = vmatpush.bf16.msra.mxu0 %v5252
        %6012 = vmatpush.bf16.msra.mxu0 %v5250
        %6013 = vmatpush.bf16.msra.mxu0 %v5248
        %6014 = vmatpush.bf16.msra.mxu0 %v5246
        %6015 = vmatpush.bf16.msra.mxu0 %v5244
        %6016 = vmatpush.bf16.msra.mxu0 %v5242
        %6017 = vmatpush.bf16.msra.mxu0 %v5240
        %6018 = vmatmul.bf16.gmra.mxu0 %v3925
        %v6019 = vpop.f32.mrf.mxu0
        %v6020 = vadd.f32 %v6007, %v6019
        %v6021 = vpop.f32.mrf.mxu0
        %6022 = vdwg.mxu0
        %6023 = vmatpush.bf16.msra.mxu0 %v5270
        %6024 = vmatpush.bf16.msra.mxu0 %v5268
        %6025 = vmatpush.bf16.msra.mxu0 %v5266
        %6026 = vmatpush.bf16.msra.mxu0 %v5264
        %6027 = vmatpush.bf16.msra.mxu0 %v5262
        %6028 = vmatpush.bf16.msra.mxu0 %v5260
        %6029 = vmatpush.bf16.msra.mxu0 %v5258
        %6030 = vmatpush.bf16.msra.mxu0 %v5256
        %6031 = vmatmul.bf16.gmra.mxu0 %v3926
        %v6032 = vpop.f32.mrf.mxu0
        %v6033 = vadd.f32 %v6020, %v6032
        %v6034 = vpop.f32.mrf.mxu0
        %6035 = vdwg.mxu0
        %6036 = vmatpush.bf16.msra.mxu0 %v5286
        %6037 = vmatpush.bf16.msra.mxu0 %v5284
        %6038 = vmatpush.bf16.msra.mxu0 %v5282
        %6039 = vmatpush.bf16.msra.mxu0 %v5280
        %6040 = vmatpush.bf16.msra.mxu0 %v5278
        %6041 = vmatpush.bf16.msra.mxu0 %v5276
        %6042 = vmatpush.bf16.msra.mxu0 %v5274
        %6043 = vmatpush.bf16.msra.mxu0 %v5272
        %6044 = vmatmul.bf16.gmra.mxu0 %v3927
        %v6045 = vpop.f32.mrf.mxu0
        %v6046 = vadd.f32 %v6033, %v6045
        %v6047 = vpop.f32.mrf.mxu0
        %6048 = vdwg.mxu0
        %6049 = vmatpush.bf16.msra.mxu0 %v5302
        %6050 = vmatpush.bf16.msra.mxu0 %v5300
        %6051 = vmatpush.bf16.msra.mxu0 %v5298
        %6052 = vmatpush.bf16.msra.mxu0 %v5296
        %6053 = vmatpush.bf16.msra.mxu0 %v5294
        %6054 = vmatpush.bf16.msra.mxu0 %v5292
        %6055 = vmatpush.bf16.msra.mxu0 %v5290
        %6056 = vmatpush.bf16.msra.mxu0 %v5288
        %6057 = vmatmul.bf16.gmra.mxu0 %v3928
        %v6058 = vpop.f32.mrf.mxu0
        %v6059 = vadd.f32 %v6046, %v6058
        %v6060 = vpop.f32.mrf.mxu0
        %6061 = vdwg.mxu0
        %6062 = vmatpush.bf16.msra.mxu0 %v5318
        %6063 = vmatpush.bf16.msra.mxu0 %v5316
        %6064 = vmatpush.bf16.msra.mxu0 %v5314
        %6065 = vmatpush.bf16.msra.mxu0 %v5312
        %6066 = vmatpush.bf16.msra.mxu0 %v5310
        %6067 = vmatpush.bf16.msra.mxu0 %v5308
        %6068 = vmatpush.bf16.msra.mxu0 %v5306
        %6069 = vmatpush.bf16.msra.mxu0 %v5304
        %6070 = vmatmul.bf16.gmra.mxu0 %v3929
        %v6071 = vpop.f32.mrf.mxu0
        %v6072 = vadd.f32 %v6059, %v6071
        %v6073 = vpop.f32.mrf.mxu0
        %6074 = vdwg.mxu0
        %6075 = vmatpush.bf16.msra.mxu0 %v5334
        %6076 = vmatpush.bf16.msra.mxu0 %v5332
        %6077 = vmatpush.bf16.msra.mxu0 %v5330
        %6078 = vmatpush.bf16.msra.mxu0 %v5328
        %6079 = vmatpush.bf16.msra.mxu0 %v5326
        %6080 = vmatpush.bf16.msra.mxu0 %v5324
        %6081 = vmatpush.bf16.msra.mxu0 %v5322
        %6082 = vmatpush.bf16.msra.mxu0 %v5320
        %6083 = vmatmul.bf16.gmra.mxu0 %v3930
        %v6084 = vpop.f32.mrf.mxu0
        %v6085 = vadd.f32 %v6072, %v6084
        %v6086 = vpop.f32.mrf.mxu0
        %6087 = vdwg.mxu0
        %6088 = vmatpush.bf16.msra.mxu0 %v5350
        %6089 = vmatpush.bf16.msra.mxu0 %v5348
        %6090 = vmatpush.bf16.msra.mxu0 %v5346
        %6091 = vmatpush.bf16.msra.mxu0 %v5344
        %6092 = vmatpush.bf16.msra.mxu0 %v5342
        %6093 = vmatpush.bf16.msra.mxu0 %v5340
        %6094 = vmatpush.bf16.msra.mxu0 %v5338
        %6095 = vmatpush.bf16.msra.mxu0 %v5336
        %6096 = vmatmul.bf16.gmra.mxu0 %v3931
        %v6097 = vpop.f32.mrf.mxu0
        %v6098 = vadd.f32 %v6085, %v6097
        %v6099 = vpop.f32.mrf.mxu0
        %6100 = vdwg.mxu0
        %6101 = vmatpush.bf16.msra.mxu0 %v5366
        %6102 = vmatpush.bf16.msra.mxu0 %v5364
        %6103 = vmatpush.bf16.msra.mxu0 %v5362
        %6104 = vmatpush.bf16.msra.mxu0 %v5360
        %6105 = vmatpush.bf16.msra.mxu0 %v5358
        %6106 = vmatpush.bf16.msra.mxu0 %v5356
        %6107 = vmatpush.bf16.msra.mxu0 %v5354
        %6108 = vmatpush.bf16.msra.mxu0 %v5352
        %6109 = vmatmul.bf16.gmra.mxu0 %v3932
        %v6110 = vpop.f32.mrf.mxu0
        %v6111 = vadd.f32 %v6098, %v6110
        %v6112 = vpop.f32.mrf.mxu0
        %6113 = vdwg.mxu0
        %6114 = vmatpush.bf16.msra.mxu0 %v5382
        %6115 = vmatpush.bf16.msra.mxu0 %v5380
        %6116 = vmatpush.bf16.msra.mxu0 %v5378
        %6117 = vmatpush.bf16.msra.mxu0 %v5376
        %6118 = vmatpush.bf16.msra.mxu0 %v5374
        %6119 = vmatpush.bf16.msra.mxu0 %v5372
        %6120 = vmatpush.bf16.msra.mxu0 %v5370
        %6121 = vmatpush.bf16.msra.mxu0 %v5368
        %6122 = vmatmul.bf16.gmra.mxu0 %v3933
        %v6123 = vpop.f32.mrf.mxu0
        %v6124 = vadd.f32 %v6111, %v6123
        %v6125 = vpop.f32.mrf.mxu0
        %6126 = vdwg.mxu0
        %6127 = vmatpush.bf16.msra.mxu0 %v5398
        %6128 = vmatpush.bf16.msra.mxu0 %v5396
        %6129 = vmatpush.bf16.msra.mxu0 %v5394
        %6130 = vmatpush.bf16.msra.mxu0 %v5392
        %6131 = vmatpush.bf16.msra.mxu0 %v5390
        %6132 = vmatpush.bf16.msra.mxu0 %v5388
        %6133 = vmatpush.bf16.msra.mxu0 %v5386
        %6134 = vmatpush.bf16.msra.mxu0 %v5384
        %6135 = vmatmul.bf16.gmra.mxu0 %v3934
        %v6136 = vpop.f32.mrf.mxu0
        %v6137 = vadd.f32 %v6124, %v6136
        %v6138 = vpop.f32.mrf.mxu0
        %6139 = vdwg.mxu0
        %6140 = vmatpush.bf16.msra.mxu0 %v5414
        %6141 = vmatpush.bf16.msra.mxu0 %v5412
        %6142 = vmatpush.bf16.msra.mxu0 %v5410
        %6143 = vmatpush.bf16.msra.mxu0 %v5408
        %6144 = vmatpush.bf16.msra.mxu0 %v5406
        %6145 = vmatpush.bf16.msra.mxu0 %v5404
        %6146 = vmatpush.bf16.msra.mxu0 %v5402
        %6147 = vmatpush.bf16.msra.mxu0 %v5400
        %6148 = vmatmul.bf16.gmra.mxu0 %v3935
        %v6149 = vpop.f32.mrf.mxu0
        %v6150 = vadd.f32 %v6137, %v6149
        %v6151 = vpop.f32.mrf.mxu0
        %6152 = vdwg.mxu0
        %6153 = vmatpush.bf16.msra.mxu0 %v5430
        %6154 = vmatpush.bf16.msra.mxu0 %v5428
        %6155 = vmatpush.bf16.msra.mxu0 %v5426
        %6156 = vmatpush.bf16.msra.mxu0 %v5424
        %6157 = vmatpush.bf16.msra.mxu0 %v5422
        %6158 = vmatpush.bf16.msra.mxu0 %v5420
        %6159 = vmatpush.bf16.msra.mxu0 %v5418
        %6160 = vmatpush.bf16.msra.mxu0 %v5416
        %6161 = vmatmul.bf16.gmra.mxu0 %v3936
        %v6162 = vpop.f32.mrf.mxu0
        %v6163 = vadd.f32 %v6150, %v6162
        %v6164 = vpop.f32.mrf.mxu0
        %6165 = vdwg.mxu0
        %6166 = vmatpush.bf16.msra.mxu0 %v5446
        %6167 = vmatpush.bf16.msra.mxu0 %v5444
        %6168 = vmatpush.bf16.msra.mxu0 %v5442
        %6169 = vmatpush.bf16.msra.mxu0 %v5440
        %6170 = vmatpush.bf16.msra.mxu0 %v5438
        %6171 = vmatpush.bf16.msra.mxu0 %v5436
        %6172 = vmatpush.bf16.msra.mxu0 %v5434
        %6173 = vmatpush.bf16.msra.mxu0 %v5432
        %6174 = vmatmul.bf16.gmra.mxu0 %v3937
        %v6175 = vpop.f32.mrf.mxu0
        %v6176 = vadd.f32 %v6163, %v6175
        %v6177 = vpop.f32.mrf.mxu0
        %6178 = vdwg.mxu0
        %6179 = vmatpush.bf16.msra.mxu0 %v5462
        %6180 = vmatpush.bf16.msra.mxu0 %v5460
        %6181 = vmatpush.bf16.msra.mxu0 %v5458
        %6182 = vmatpush.bf16.msra.mxu0 %v5456
        %6183 = vmatpush.bf16.msra.mxu0 %v5454
        %6184 = vmatpush.bf16.msra.mxu0 %v5452
        %6185 = vmatpush.bf16.msra.mxu0 %v5450
        %6186 = vmatpush.bf16.msra.mxu0 %v5448
        %6187 = vmatmul.bf16.gmra.mxu0 %v3938
        %v6188 = vpop.f32.mrf.mxu0
        %v6189 = vadd.f32 %v6176, %v6188
        %v6190 = vpop.f32.mrf.mxu0
        %6191 = vdwg.mxu0
        %6192 = vmatpush.bf16.msra.mxu0 %v5478
        %6193 = vmatpush.bf16.msra.mxu0 %v5476
        %6194 = vmatpush.bf16.msra.mxu0 %v5474
        %6195 = vmatpush.bf16.msra.mxu0 %v5472
        %6196 = vmatpush.bf16.msra.mxu0 %v5470
        %6197 = vmatpush.bf16.msra.mxu0 %v5468
        %6198 = vmatpush.bf16.msra.mxu0 %v5466
        %6199 = vmatpush.bf16.msra.mxu0 %v5464
        %6200 = vmatmul.bf16.gmra.mxu0 %v3939
        %v6201 = vpop.f32.mrf.mxu0
        %v6202 = vadd.f32 %v6189, %v6201
        %v6203 = vpop.f32.mrf.mxu0
        %6204 = vdwg.mxu0
        %6205 = vmatpush.bf16.msra.mxu0 %v5494
        %6206 = vmatpush.bf16.msra.mxu0 %v5492
        %6207 = vmatpush.bf16.msra.mxu0 %v5490
        %6208 = vmatpush.bf16.msra.mxu0 %v5488
        %6209 = vmatpush.bf16.msra.mxu0 %v5486
        %6210 = vmatpush.bf16.msra.mxu0 %v5484
        %6211 = vmatpush.bf16.msra.mxu0 %v5482
        %6212 = vmatpush.bf16.msra.mxu0 %v5480
        %6213 = vmatmul.bf16.gmra.mxu0 %v3940
        %v6214 = vpop.f32.mrf.mxu0
        %v6215 = vadd.f32 %v6202, %v6214
        %v6216 = vpop.f32.mrf.mxu0
        %6217 = vdwg.mxu0
        %6218 = vmatpush.bf16.msra.mxu0 %v5510
        %6219 = vmatpush.bf16.msra.mxu0 %v5508
        %6220 = vmatpush.bf16.msra.mxu0 %v5506
        %6221 = vmatpush.bf16.msra.mxu0 %v5504
        %6222 = vmatpush.bf16.msra.mxu0 %v5502
        %6223 = vmatpush.bf16.msra.mxu0 %v5500
        %6224 = vmatpush.bf16.msra.mxu0 %v5498
        %6225 = vmatpush.bf16.msra.mxu0 %v5496
        %6226 = vmatmul.bf16.gmra.mxu0 %v3941
        %v6227 = vpop.f32.mrf.mxu0
        %v6228 = vadd.f32 %v6215, %v6227
        %v6229 = vpop.f32.mrf.mxu0
        %6230 = vdwg.mxu0
        %6231 = vmatpush.bf16.msra.mxu0 %v5526
        %6232 = vmatpush.bf16.msra.mxu0 %v5524
        %6233 = vmatpush.bf16.msra.mxu0 %v5522
        %6234 = vmatpush.bf16.msra.mxu0 %v5520
        %6235 = vmatpush.bf16.msra.mxu0 %v5518
        %6236 = vmatpush.bf16.msra.mxu0 %v5516
        %6237 = vmatpush.bf16.msra.mxu0 %v5514
        %6238 = vmatpush.bf16.msra.mxu0 %v5512
        %6239 = vmatmul.bf16.gmra.mxu0 %v3942
        %v6240 = vpop.f32.mrf.mxu0
        %v6241 = vadd.f32 %v6228, %v6240
        %v6242 = vpop.f32.mrf.mxu0
        %6243 = vdwg.mxu0
        %6244 = vmatpush.bf16.msra.mxu0 0
        %6245 = vmatpush.bf16.msra.mxu0 0
        %6246 = vmatpush.bf16.msra.mxu0 0
        %6247 = vmatpush.bf16.msra.mxu0 0
        %6248 = vmatpush.bf16.msra.mxu0 %v5534
        %6249 = vmatpush.bf16.msra.mxu0 %v5532
        %6250 = vmatpush.bf16.msra.mxu0 %v5530
        %6251 = vmatpush.bf16.msra.mxu0 %v5528
        %6252 = vmatmul.bf16.gmra.mxu0 %v5930
        %v6253 = vpop.f32.mrf.mxu0
        %v6254 = vadd.f32 %v6241, %v6253
        %v6255 = vpop.f32.mrf.mxu0
        %6256 = vdwg.mxu0
        %6257 = vmatpush.bf16.msra.mxu0 %v5159
        %6258 = vmatpush.bf16.msra.mxu0 %v5157
        %6259 = vmatpush.bf16.msra.mxu0 %v5155
        %6260 = vmatpush.bf16.msra.mxu0 %v5153
        %6261 = vmatpush.bf16.msra.mxu0 %v5151
        %6262 = vmatpush.bf16.msra.mxu0 %v5149
        %6263 = vmatpush.bf16.msra.mxu0 %v5147
        %6264 = vmatpush.bf16.msra.mxu0 %v5145
        %6265 = vmatmul.bf16.gmra.mxu0 %v3919
        %v6266 = vpop.f32.mrf.mxu0
        %v6267 = vadd.f32 0.0, %v6266
        %v6268 = vpop.f32.mrf.mxu0
        %6269 = vdwg.mxu0
        %6270 = vmatpush.bf16.msra.mxu0 %v5175
        %6271 = vmatpush.bf16.msra.mxu0 %v5173
        %6272 = vmatpush.bf16.msra.mxu0 %v5171
        %6273 = vmatpush.bf16.msra.mxu0 %v5169
        %6274 = vmatpush.bf16.msra.mxu0 %v5167
        %6275 = vmatpush.bf16.msra.mxu0 %v5165
        %6276 = vmatpush.bf16.msra.mxu0 %v5163
        %6277 = vmatpush.bf16.msra.mxu0 %v5161
        %6278 = vmatmul.bf16.gmra.mxu0 %v3920
        %v6279 = vpop.f32.mrf.mxu0
        %v6280 = vadd.f32 %v6267, %v6279
        %v6281 = vpop.f32.mrf.mxu0
        %6282 = vdwg.mxu0
        %6283 = vmatpush.bf16.msra.mxu0 %v5191
        %6284 = vmatpush.bf16.msra.mxu0 %v5189
        %6285 = vmatpush.bf16.msra.mxu0 %v5187
        %6286 = vmatpush.bf16.msra.mxu0 %v5185
        %6287 = vmatpush.bf16.msra.mxu0 %v5183
        %6288 = vmatpush.bf16.msra.mxu0 %v5181
        %6289 = vmatpush.bf16.msra.mxu0 %v5179
        %6290 = vmatpush.bf16.msra.mxu0 %v5177
        %6291 = vmatmul.bf16.gmra.mxu0 %v3921
        %v6292 = vpop.f32.mrf.mxu0
        %v6293 = vadd.f32 %v6280, %v6292
        %v6294 = vpop.f32.mrf.mxu0
        %6295 = vdwg.mxu0
        %6296 = vmatpush.bf16.msra.mxu0 %v5207
        %6297 = vmatpush.bf16.msra.mxu0 %v5205
        %6298 = vmatpush.bf16.msra.mxu0 %v5203
        %6299 = vmatpush.bf16.msra.mxu0 %v5201
        %6300 = vmatpush.bf16.msra.mxu0 %v5199
        %6301 = vmatpush.bf16.msra.mxu0 %v5197
        %6302 = vmatpush.bf16.msra.mxu0 %v5195
        %6303 = vmatpush.bf16.msra.mxu0 %v5193
        %6304 = vmatmul.bf16.gmra.mxu0 %v3922
        %v6305 = vpop.f32.mrf.mxu0
        %v6306 = vadd.f32 %v6293, %v6305
        %v6307 = vpop.f32.mrf.mxu0
        %6308 = vdwg.mxu0
        %6309 = vmatpush.bf16.msra.mxu0 %v5223
        %6310 = vmatpush.bf16.msra.mxu0 %v5221
        %6311 = vmatpush.bf16.msra.mxu0 %v5219
        %6312 = vmatpush.bf16.msra.mxu0 %v5217
        %6313 = vmatpush.bf16.msra.mxu0 %v5215
        %6314 = vmatpush.bf16.msra.mxu0 %v5213
        %6315 = vmatpush.bf16.msra.mxu0 %v5211
        %6316 = vmatpush.bf16.msra.mxu0 %v5209
        %6317 = vmatmul.bf16.gmra.mxu0 %v3923
        %v6318 = vpop.f32.mrf.mxu0
        %v6319 = vadd.f32 %v6306, %v6318
        %v6320 = vpop.f32.mrf.mxu0
        %6321 = vdwg.mxu0
        %6322 = vmatpush.bf16.msra.mxu0 %v5239
        %6323 = vmatpush.bf16.msra.mxu0 %v5237
        %6324 = vmatpush.bf16.msra.mxu0 %v5235
        %6325 = vmatpush.bf16.msra.mxu0 %v5233
        %6326 = vmatpush.bf16.msra.mxu0 %v5231
        %6327 = vmatpush.bf16.msra.mxu0 %v5229
        %6328 = vmatpush.bf16.msra.mxu0 %v5227
        %6329 = vmatpush.bf16.msra.mxu0 %v5225
        %6330 = vmatmul.bf16.gmra.mxu0 %v3924
        %v6331 = vpop.f32.mrf.mxu0
        %v6332 = vadd.f32 %v6319, %v6331
        %v6333 = vpop.f32.mrf.mxu0
        %6334 = vdwg.mxu0
        %6335 = vmatpush.bf16.msra.mxu0 %v5255
        %6336 = vmatpush.bf16.msra.mxu0 %v5253
        %6337 = vmatpush.bf16.msra.mxu0 %v5251
        %6338 = vmatpush.bf16.msra.mxu0 %v5249
        %6339 = vmatpush.bf16.msra.mxu0 %v5247
        %6340 = vmatpush.bf16.msra.mxu0 %v5245
        %6341 = vmatpush.bf16.msra.mxu0 %v5243
        %6342 = vmatpush.bf16.msra.mxu0 %v5241
        %6343 = vmatmul.bf16.gmra.mxu0 %v3925
        %v6344 = vpop.f32.mrf.mxu0
        %v6345 = vadd.f32 %v6332, %v6344
        %v6346 = vpop.f32.mrf.mxu0
        %6347 = vdwg.mxu0
        %6348 = vmatpush.bf16.msra.mxu0 %v5271
        %6349 = vmatpush.bf16.msra.mxu0 %v5269
        %6350 = vmatpush.bf16.msra.mxu0 %v5267
        %6351 = vmatpush.bf16.msra.mxu0 %v5265
        %6352 = vmatpush.bf16.msra.mxu0 %v5263
        %6353 = vmatpush.bf16.msra.mxu0 %v5261
        %6354 = vmatpush.bf16.msra.mxu0 %v5259
        %6355 = vmatpush.bf16.msra.mxu0 %v5257
        %6356 = vmatmul.bf16.gmra.mxu0 %v3926
        %v6357 = vpop.f32.mrf.mxu0
        %v6358 = vadd.f32 %v6345, %v6357
        %v6359 = vpop.f32.mrf.mxu0
        %6360 = vdwg.mxu0
        %6361 = vmatpush.bf16.msra.mxu0 %v5287
        %6362 = vmatpush.bf16.msra.mxu0 %v5285
        %6363 = vmatpush.bf16.msra.mxu0 %v5283
        %6364 = vmatpush.bf16.msra.mxu0 %v5281
        %6365 = vmatpush.bf16.msra.mxu0 %v5279
        %6366 = vmatpush.bf16.msra.mxu0 %v5277
        %6367 = vmatpush.bf16.msra.mxu0 %v5275
        %6368 = vmatpush.bf16.msra.mxu0 %v5273
        %6369 = vmatmul.bf16.gmra.mxu0 %v3927
        %v6370 = vpop.f32.mrf.mxu0
        %v6371 = vadd.f32 %v6358, %v6370
        %v6372 = vpop.f32.mrf.mxu0
        %6373 = vdwg.mxu0
        %6374 = vmatpush.bf16.msra.mxu0 %v5303
        %6375 = vmatpush.bf16.msra.mxu0 %v5301
        %6376 = vmatpush.bf16.msra.mxu0 %v5299
        %6377 = vmatpush.bf16.msra.mxu0 %v5297
        %6378 = vmatpush.bf16.msra.mxu0 %v5295
        %6379 = vmatpush.bf16.msra.mxu0 %v5293
        %6380 = vmatpush.bf16.msra.mxu0 %v5291
        %6381 = vmatpush.bf16.msra.mxu0 %v5289
        %6382 = vmatmul.bf16.gmra.mxu0 %v3928
        %v6383 = vpop.f32.mrf.mxu0
        %v6384 = vadd.f32 %v6371, %v6383
        %v6385 = vpop.f32.mrf.mxu0
        %6386 = vdwg.mxu0
        %6387 = vmatpush.bf16.msra.mxu0 %v5319
        %6388 = vmatpush.bf16.msra.mxu0 %v5317
        %6389 = vmatpush.bf16.msra.mxu0 %v5315
        %6390 = vmatpush.bf16.msra.mxu0 %v5313
        %6391 = vmatpush.bf16.msra.mxu0 %v5311
        %6392 = vmatpush.bf16.msra.mxu0 %v5309
        %6393 = vmatpush.bf16.msra.mxu0 %v5307
        %6394 = vmatpush.bf16.msra.mxu0 %v5305
        %6395 = vmatmul.bf16.gmra.mxu0 %v3929
        %v6396 = vpop.f32.mrf.mxu0
        %v6397 = vadd.f32 %v6384, %v6396
        %v6398 = vpop.f32.mrf.mxu0
        %6399 = vdwg.mxu0
        %6400 = vmatpush.bf16.msra.mxu0 %v5335
        %6401 = vmatpush.bf16.msra.mxu0 %v5333
        %6402 = vmatpush.bf16.msra.mxu0 %v5331
        %6403 = vmatpush.bf16.msra.mxu0 %v5329
        %6404 = vmatpush.bf16.msra.mxu0 %v5327
        %6405 = vmatpush.bf16.msra.mxu0 %v5325
        %6406 = vmatpush.bf16.msra.mxu0 %v5323
        %6407 = vmatpush.bf16.msra.mxu0 %v5321
        %6408 = vmatmul.bf16.gmra.mxu0 %v3930
        %v6409 = vpop.f32.mrf.mxu0
        %v6410 = vadd.f32 %v6397, %v6409
        %v6411 = vpop.f32.mrf.mxu0
        %6412 = vdwg.mxu0
        %6413 = vmatpush.bf16.msra.mxu0 %v5351
        %6414 = vmatpush.bf16.msra.mxu0 %v5349
        %6415 = vmatpush.bf16.msra.mxu0 %v5347
        %6416 = vmatpush.bf16.msra.mxu0 %v5345
        %6417 = vmatpush.bf16.msra.mxu0 %v5343
        %6418 = vmatpush.bf16.msra.mxu0 %v5341
        %6419 = vmatpush.bf16.msra.mxu0 %v5339
        %6420 = vmatpush.bf16.msra.mxu0 %v5337
        %6421 = vmatmul.bf16.gmra.mxu0 %v3931
        %v6422 = vpop.f32.mrf.mxu0
        %v6423 = vadd.f32 %v6410, %v6422
        %v6424 = vpop.f32.mrf.mxu0
        %6425 = vdwg.mxu0
        %6426 = vmatpush.bf16.msra.mxu0 %v5367
        %6427 = vmatpush.bf16.msra.mxu0 %v5365
        %6428 = vmatpush.bf16.msra.mxu0 %v5363
        %6429 = vmatpush.bf16.msra.mxu0 %v5361
        %6430 = vmatpush.bf16.msra.mxu0 %v5359
        %6431 = vmatpush.bf16.msra.mxu0 %v5357
        %6432 = vmatpush.bf16.msra.mxu0 %v5355
        %6433 = vmatpush.bf16.msra.mxu0 %v5353
        %6434 = vmatmul.bf16.gmra.mxu0 %v3932
        %v6435 = vpop.f32.mrf.mxu0
        %v6436 = vadd.f32 %v6423, %v6435
        %v6437 = vpop.f32.mrf.mxu0
        %6438 = vdwg.mxu0
        %6439 = vmatpush.bf16.msra.mxu0 %v5383
        %6440 = vmatpush.bf16.msra.mxu0 %v5381
        %6441 = vmatpush.bf16.msra.mxu0 %v5379
        %6442 = vmatpush.bf16.msra.mxu0 %v5377
        %6443 = vmatpush.bf16.msra.mxu0 %v5375
        %6444 = vmatpush.bf16.msra.mxu0 %v5373
        %6445 = vmatpush.bf16.msra.mxu0 %v5371
        %6446 = vmatpush.bf16.msra.mxu0 %v5369
        %6447 = vmatmul.bf16.gmra.mxu0 %v3933
        %v6448 = vpop.f32.mrf.mxu0
        %v6449 = vadd.f32 %v6436, %v6448
        %v6450 = vpop.f32.mrf.mxu0
        %6451 = vdwg.mxu0
        %6452 = vmatpush.bf16.msra.mxu0 %v5399
        %6453 = vmatpush.bf16.msra.mxu0 %v5397
        %6454 = vmatpush.bf16.msra.mxu0 %v5395
        %6455 = vmatpush.bf16.msra.mxu0 %v5393
        %6456 = vmatpush.bf16.msra.mxu0 %v5391
        %6457 = vmatpush.bf16.msra.mxu0 %v5389
        %6458 = vmatpush.bf16.msra.mxu0 %v5387
        %6459 = vmatpush.bf16.msra.mxu0 %v5385
        %6460 = vmatmul.bf16.gmra.mxu0 %v3934
        %v6461 = vpop.f32.mrf.mxu0
        %v6462 = vadd.f32 %v6449, %v6461
        %v6463 = vpop.f32.mrf.mxu0
        %6464 = vdwg.mxu0
        %6465 = vmatpush.bf16.msra.mxu0 %v5415
        %6466 = vmatpush.bf16.msra.mxu0 %v5413
        %6467 = vmatpush.bf16.msra.mxu0 %v5411
        %6468 = vmatpush.bf16.msra.mxu0 %v5409
        %6469 = vmatpush.bf16.msra.mxu0 %v5407
        %6470 = vmatpush.bf16.msra.mxu0 %v5405
        %6471 = vmatpush.bf16.msra.mxu0 %v5403
        %6472 = vmatpush.bf16.msra.mxu0 %v5401
        %6473 = vmatmul.bf16.gmra.mxu0 %v3935
        %v6474 = vpop.f32.mrf.mxu0
        %v6475 = vadd.f32 %v6462, %v6474
        %v6476 = vpop.f32.mrf.mxu0
        %6477 = vdwg.mxu0
        %6478 = vmatpush.bf16.msra.mxu0 %v5431
        %6479 = vmatpush.bf16.msra.mxu0 %v5429
        %6480 = vmatpush.bf16.msra.mxu0 %v5427
        %6481 = vmatpush.bf16.msra.mxu0 %v5425
        %6482 = vmatpush.bf16.msra.mxu0 %v5423
        %6483 = vmatpush.bf16.msra.mxu0 %v5421
        %6484 = vmatpush.bf16.msra.mxu0 %v5419
        %6485 = vmatpush.bf16.msra.mxu0 %v5417
        %6486 = vmatmul.bf16.gmra.mxu0 %v3936
        %v6487 = vpop.f32.mrf.mxu0
        %v6488 = vadd.f32 %v6475, %v6487
        %v6489 = vpop.f32.mrf.mxu0
        %6490 = vdwg.mxu0
        %6491 = vmatpush.bf16.msra.mxu0 %v5447
        %6492 = vmatpush.bf16.msra.mxu0 %v5445
        %6493 = vmatpush.bf16.msra.mxu0 %v5443
        %6494 = vmatpush.bf16.msra.mxu0 %v5441
        %6495 = vmatpush.bf16.msra.mxu0 %v5439
        %6496 = vmatpush.bf16.msra.mxu0 %v5437
        %6497 = vmatpush.bf16.msra.mxu0 %v5435
        %6498 = vmatpush.bf16.msra.mxu0 %v5433
        %6499 = vmatmul.bf16.gmra.mxu0 %v3937
        %v6500 = vpop.f32.mrf.mxu0
        %v6501 = vadd.f32 %v6488, %v6500
        %v6502 = vpop.f32.mrf.mxu0
        %6503 = vdwg.mxu0
        %6504 = vmatpush.bf16.msra.mxu0 %v5463
        %6505 = vmatpush.bf16.msra.mxu0 %v5461
        %6506 = vmatpush.bf16.msra.mxu0 %v5459
        %6507 = vmatpush.bf16.msra.mxu0 %v5457
        %6508 = vmatpush.bf16.msra.mxu0 %v5455
        %6509 = vmatpush.bf16.msra.mxu0 %v5453
        %6510 = vmatpush.bf16.msra.mxu0 %v5451
        %6511 = vmatpush.bf16.msra.mxu0 %v5449
        %6512 = vmatmul.bf16.gmra.mxu0 %v3938
        %v6513 = vpop.f32.mrf.mxu0
        %v6514 = vadd.f32 %v6501, %v6513
        %v6515 = vpop.f32.mrf.mxu0
        %6516 = vdwg.mxu0
        %6517 = vmatpush.bf16.msra.mxu0 %v5479
        %6518 = vmatpush.bf16.msra.mxu0 %v5477
        %6519 = vmatpush.bf16.msra.mxu0 %v5475
        %6520 = vmatpush.bf16.msra.mxu0 %v5473
        %6521 = vmatpush.bf16.msra.mxu0 %v5471
        %6522 = vmatpush.bf16.msra.mxu0 %v5469
        %6523 = vmatpush.bf16.msra.mxu0 %v5467
        %6524 = vmatpush.bf16.msra.mxu0 %v5465
        %6525 = vmatmul.bf16.gmra.mxu0 %v3939
        %v6526 = vpop.f32.mrf.mxu0
        %v6527 = vadd.f32 %v6514, %v6526
        %v6528 = vpop.f32.mrf.mxu0
        %6529 = vdwg.mxu0
        %6530 = vmatpush.bf16.msra.mxu0 %v5495
        %6531 = vmatpush.bf16.msra.mxu0 %v5493
        %6532 = vmatpush.bf16.msra.mxu0 %v5491
        %6533 = vmatpush.bf16.msra.mxu0 %v5489
        %6534 = vmatpush.bf16.msra.mxu0 %v5487
        %6535 = vmatpush.bf16.msra.mxu0 %v5485
        %6536 = vmatpush.bf16.msra.mxu0 %v5483
        %6537 = vmatpush.bf16.msra.mxu0 %v5481
        %6538 = vmatmul.bf16.gmra.mxu0 %v3940
        %v6539 = vpop.f32.mrf.mxu0
        %v6540 = vadd.f32 %v6527, %v6539
        %v6541 = vpop.f32.mrf.mxu0
        %6542 = vdwg.mxu0
        %6543 = vmatpush.bf16.msra.mxu0 %v5511
        %6544 = vmatpush.bf16.msra.mxu0 %v5509
        %6545 = vmatpush.bf16.msra.mxu0 %v5507
        %6546 = vmatpush.bf16.msra.mxu0 %v5505
        %6547 = vmatpush.bf16.msra.mxu0 %v5503
        %6548 = vmatpush.bf16.msra.mxu0 %v5501
        %6549 = vmatpush.bf16.msra.mxu0 %v5499
        %6550 = vmatpush.bf16.msra.mxu0 %v5497
        %6551 = vmatmul.bf16.gmra.mxu0 %v3941
        %v6552 = vpop.f32.mrf.mxu0
        %v6553 = vadd.f32 %v6540, %v6552
        %v6554 = vpop.f32.mrf.mxu0
        %6555 = vdwg.mxu0
        %6556 = vmatpush.bf16.msra.mxu0 %v5527
        %6557 = vmatpush.bf16.msra.mxu0 %v5525
        %6558 = vmatpush.bf16.msra.mxu0 %v5523
        %6559 = vmatpush.bf16.msra.mxu0 %v5521
        %6560 = vmatpush.bf16.msra.mxu0 %v5519
        %6561 = vmatpush.bf16.msra.mxu0 %v5517
        %6562 = vmatpush.bf16.msra.mxu0 %v5515
        %6563 = vmatpush.bf16.msra.mxu0 %v5513
        %6564 = vmatmul.bf16.gmra.mxu0 %v3942
        %v6565 = vpop.f32.mrf.mxu0
        %v6566 = vadd.f32 %v6553, %v6565
        %v6567 = vpop.f32.mrf.mxu0
        %6568 = vdwg.mxu0
        %6569 = vmatpush.bf16.msra.mxu0 0
        %6570 = vmatpush.bf16.msra.mxu0 0
        %6571 = vmatpush.bf16.msra.mxu0 0
        %6572 = vmatpush.bf16.msra.mxu0 0
        %6573 = vmatpush.bf16.msra.mxu0 %v5535
        %6574 = vmatpush.bf16.msra.mxu0 %v5533
        %6575 = vmatpush.bf16.msra.mxu0 %v5531
        %6576 = vmatpush.bf16.msra.mxu0 %v5529
        %6577 = vmatmul.bf16.gmra.mxu0 %v5930
        %v6578 = vpop.f32.mrf.mxu0
        %v6579 = vadd.f32 %v6566, %v6578
        %v6580 = vpop.f32.mrf.mxu0
        %6581 = vdwg.mxu0
        %v6582 = vadd.f32 %v3474, %v6254
        %v6583 = vadd.f32 %v3475, %v6579
        %6584 = vst [vmem:[#allocation2] sm:$0xff] %v6582
        %6585 = vst [vmem:[#allocation2 + $0x8] sm:$0xff] %v6583
        // Predicated region
        $region89: #{policy_forward.8} parent=79 // pred_check
          %p6586 = pneg %p3468
        $region90: #{policy_forward.8} parent=79 // pred_check_branch
          %6588 = sbr.rel (%p6586) target = $region92
        $region91: #{policy_forward.8} parent=79 // pred_region
          %v6589 = vld [vmem:[#allocation2] sm:$0xff]
          %v6590 = vld [vmem:[#allocation2 + $0x8] sm:$0xff]
          %v6591 = vld [vmem:[%s3455] sm:$0x3]
          %v6593 = vperm.slane %v6591, 0
          %v6594 = vperm.slane %v6591, 1
          %v6597 = vadd.f32 %v6589, %v6593
          %v6598 = vadd.f32 %v6590, %v6594
          %v6599 = vmax.f32 %v6597, 0.0
          %v6600 = vmax.f32 %v6598, 0.0
          %v6601 = vpack.c.bf16 %v6600, %v6599
          %6602 = vst [vmem:[%s3465] sm:$0xff] %v6601
        $region92: #{policy_forward.8} parent=79 // pred_fallthru
          _
        %s6603 = smul.u32 2, %s20
        %p6604 = scmp.lt.s32.totalorder %s19, 0
        %s6605 = scalar_select %p6604, %s19, 0
        %p6606 = scmp.lt.s32.totalorder %s6603, 3
        %s6607 = scalar_select %p6606, %s6603, 3
        %s6608 = smul.addr %s6605, 4
        %s6609 = sadd.s32 %s6607, %s6608
        %s6610 = smul.addr %s6609, 4
        %s6611 = scalar_lea.vmem %s3, %s6610
        // Predicated region
        $region93: #{policy_forward.8} parent=79 // pred_check
          %p6612 = pneg %p135
        $region94: #{policy_forward.8} parent=79 // pred_check_branch
          %6614 = sbr.rel (%p6612) target = $region96
        $region95: #{policy_forward.8} parent=79 // pred_region
          %s6615 = smul.u32 2, %s20
        $region96: #{policy_forward.8} parent=79 // pred_fallthru
          _
      $region80: #{policy_forward.8} parent=5 // pred_fallthru
        _
      %p6616 = scmp.le.s32.totalorder 2, %s9
      // Predicated region
      $region97: #{policy_forward.8} parent=5 // pred_check
        %p6617 = pneg %p6616
      $region98: #{policy_forward.8} parent=5 // pred_check_branch
        %6619 = sbr.rel (%p6617) target = $region100
      $region99: #{policy_forward.8} parent=5 // pred_region
        %s6620 = ssub.s32 %s9, 2
        // Predicated region
        $region101: #{policy_forward.8} parent=99 // pred_check
          %p6621 = pneg %p141
        $region102: #{policy_forward.8} parent=99 // pred_check_branch
          %6623 = sbr.rel (%p6621) target = $region104
        $region103: #{policy_forward.8} parent=99 // pred_region
          %s6624 = smul.u32 2, %s23
          %p6625 = scmp.lt.s32.totalorder %s22, 0
          %s6626 = scalar_select %p6625, %s22, 0
          %p6627 = scmp.lt.s32.totalorder %s6624, 3
          %s6628 = scalar_select %p6627, %s6624, 3
          %s6629 = smul.addr %s6626, 4
          %s6630 = sadd.s32 %s6628, %s6629
          %s6631 = smul.addr %s6630, 4
          %s6632 = scalar_lea.vmem %s3, %s6631
        $region104: #{policy_forward.8} parent=99 // pred_fallthru
          _
      $region100: #{policy_forward.8} parent=5 // pred_fallthru
        _
    $region6: #{policy_forward.8} parent=1 // loop_footer
      %s13 = sadd.s32 1, %s9
    $region7: #{policy_forward.8} parent=1 // loop_footer_branch
      %8 = sbr.rel target = $region3
    $region8: #{policy_forward.8} parent=1 // loop_exit
      _

</llo_original>
